<compile_context>
chip_gen: v7x
topology: tpu7x:2x2x1
jax: 0.10.0
libtpu: 0.0.40
codegen_flags: <defaults>
</compile_context>

<pallas_src>
import jax
import jax.numpy as jnp
from jax import lax
from jax.experimental import pallas as pl
from jax.experimental.pallas import tpu as pltpu


# --------------------------- fixed module geometry ---------------------------
C_IN = 3               # conv1 input channels (RGB)
C1, C2, C3 = 32, 64, 64
CP = 128               # every conv output channel dim padded to a full lane width
BBLK = 8               # images per grid step (multiple of 8 = one sublane tile)
K1, S1 = 8, 4          # conv1
K2, S2 = 4, 2          # conv2
K3, S3 = 3, 1          # conv3
KD = K1 * K1 * C_IN    # conv1 im2col K = 192


def _conv_out(n, k, s):
    return (n - k) // s + 1


# ------------------------------- Pallas kernel -------------------------------
def _make_kernel(OH1, OW1, OH2, OW2, OH3, OW3):
    PH, PW = OH1 // 2, OW1 // 2
    M2 = OH2 * OW2 * BBLK
    M3 = OH3 * OW3 * BBLK

    def kernel(p_ref, w1_ref, b1_ref, w2_ref, b2_ref, w3_ref, b3_ref,
               o_ref, ph1_ref, h2_ref):
        f32 = jnp.float32

        # ---- layer 1: ReLU(P @ W1 + b1) as one fat MXU matmul -------------
        # p_ref: (OH1*OW1*BBLK, 192), rows ordered (ph, i, pw, j, b).
        h1 = jnp.dot(p_ref[...], w1_ref[...], preferred_element_type=f32)
        h1 = jnp.maximum(h1 + b1_ref[...], 0.0)
        # Reinterpret as the parity-decomposed activation (tile-preserving:
        # the minor (8, 128) vreg tile is untouched) so the stride-2 conv2
        # below only ever reads contiguous static slices.
        ph1_ref[...] = h1.reshape(2, PH, 2, PW, BBLK, CP)

        # ---- layer 2: 4x4 / stride-2 conv as 16 tap matmuls, M = 200 ------
        acc0 = jnp.broadcast_to(b2_ref[...], (M2, CP))     # bias-initialized
        acc1 = jnp.zeros((M2, CP), f32)
        t = 0
        for kh in range(K2):
            ph, dh = kh % 2, kh // 2
            for kw in range(K2):
                pw, dw = kw % 2, kw // 2
                # input index 2*oh+kh == phase ph, within-phase index oh+dh
                slab = ph1_ref[ph, pl.ds(dh, OH2), pw, pl.ds(dw, OW2), :, :]
                part = jnp.dot(slab.reshape(M2, CP), w2_ref[kh, kw],
                               preferred_element_type=f32)
                if t % 2 == 0:
                    acc0 = acc0 + part
                else:
                    acc1 = acc1 + part
                t += 1
        h2 = jnp.maximum(acc0 + acc1, 0.0)
        h2_ref[...] = h2.reshape(OH2, OW2, BBLK, CP)

        # ---- layer 3: 3x3 / stride-1 conv as 9 tap matmuls, M = 72 --------
        acc0 = jnp.broadcast_to(b3_ref[...], (M3, CP))
        acc1 = jnp.zeros((M3, CP), f32)
        t = 0
        for kh in range(K3):
            for kw in range(K3):
                slab = h2_ref[pl.ds(kh, OH3), pl.ds(kw, OW3), :, :]
                part = jnp.dot(slab.reshape(M3, CP), w3_ref[kh, kw],
                               preferred_element_type=f32)
                if t % 2 == 0:
                    acc0 = acc0 + part
                else:
                    acc1 = acc1 + part
                t += 1
        o_ref[...] = jnp.maximum(acc0 + acc1, 0.0)

    return kernel


def _fused_encoder(p1, w1, b1, w2, b2, w3, b3, NB, dims):
    OH1, OW1, OH2, OW2, OH3, OW3 = dims
    M1 = OH1 * OW1 * BBLK
    M2 = OH2 * OW2 * BBLK
    M3 = OH3 * OW3 * BBLK
    kernel = _make_kernel(*dims)

    flops = 2 * NB * (M1 * KD * CP
                      + K2 * K2 * M2 * CP * CP
                      + K3 * K3 * M3 * CP * CP)
    bytes_accessed = 4 * (NB * (M1 * KD + M3 * CP)
                          + KD * CP + K2 * K2 * CP * CP + K3 * K3 * CP * CP
                          + 3 * CP)

    return pl.pallas_call(
        kernel,
        out_shape=jax.ShapeDtypeStruct((NB * M3, CP), jnp.float32),
        grid=(NB,),
        in_specs=[
            # Per-block im2col patches for conv1 (batch is the minor M dim).
            pl.BlockSpec((M1, KD), lambda nb: (nb, 0)),
            # Weights / biases: constant block index -> fetched once, stay
            # VMEM-resident across the whole batch grid.  (VMEM is not a
            # constraint here, so default double-buffering is left as-is.)
            pl.BlockSpec((KD, CP), lambda nb: (0, 0)),
            pl.BlockSpec((1, CP), lambda nb: (0, 0)),
            pl.BlockSpec((K2, K2, CP, CP), lambda nb: (0, 0, 0, 0)),
            pl.BlockSpec((1, CP), lambda nb: (0, 0)),
            pl.BlockSpec((K3, K3, CP, CP), lambda nb: (0, 0, 0, 0)),
            pl.BlockSpec((1, CP), lambda nb: (0, 0)),
        ],
        out_specs=pl.BlockSpec((M3, CP), lambda nb: (nb, 0)),
        scratch_shapes=[
            # Parity-decomposed conv1 activation (conv2 input).
            pltpu.VMEM((2, OH1 // 2, 2, OW1 // 2, BBLK, CP), jnp.float32),
            # conv2 activation (conv3 input).
            pltpu.VMEM((OH2, OW2, BBLK, CP), jnp.float32),
        ],
        compiler_params=pltpu.CompilerParams(
            dimension_semantics=("parallel",),
            vmem_limit_bytes=32 * 1024 * 1024),
        cost_estimate=pl.CostEstimate(flops=flops, transcendentals=0,
                                      bytes_accessed=bytes_accessed),
    )(p1, w1, b1, w2, b2, w3, b3)


# ------------------------------- host-side glue -------------------------------
def init_params(key):
    k1, k2, k3, k4, k5, k6 = jax.random.split(key, 6)
    scale = 0.05
    return {
        "conv1_w": scale * jax.random.normal(k1, (32, 3, 8, 8), jnp.float32),
        "conv1_b": scale * jax.random.normal(k2, (32,), jnp.float32),
        "conv2_w": scale * jax.random.normal(k3, (64, 32, 4, 4), jnp.float32),
        "conv2_b": scale * jax.random.normal(k4, (64,), jnp.float32),
        "conv3_w": scale * jax.random.normal(k5, (64, 64, 3, 3), jnp.float32),
        "conv3_b": scale * jax.random.normal(k6, (64,), jnp.float32),
    }


def _prep_w1(w):
    # conv1 OIHW (32,3,8,8) -> K ordered (kh, kw, cin); pad Cout 32 -> 128.
    w = jnp.transpose(w, (2, 3, 1, 0)).reshape(KD, C1)
    return jnp.pad(w, ((0, 0), (0, CP - C1)))


def _prep_w(w):
    # OIHW -> (kh, kw, cin, cout); zero-pad cin/cout to 128 (inert channels).
    w = jnp.transpose(w, (2, 3, 1, 0))
    _, _, cin, cout = w.shape
    return jnp.pad(w, ((0, 0), (0, 0), (0, CP - cin), (0, CP - cout)))


def _prep_b(b):
    return jnp.pad(b, (0, CP - b.shape[0])).reshape(1, CP)


def _conv1_patches(x_nhwc, OH1, OW1):
    """im2col for conv1, output rows ordered (parity_h, i, parity_w, j, b)."""
    PH, PW = OH1 // 2, OW1 // 2
    # Output positions in parity-major order: oh = 2*i + ph.
    oh_idx = (2 * jnp.arange(PH)[None, :] + jnp.arange(2)[:, None]).reshape(-1)
    ow_idx = (2 * jnp.arange(PW)[None, :] + jnp.arange(2)[:, None]).reshape(-1)
    rows = S1 * oh_idx[:, None] + jnp.arange(K1)[None, :]        # (OH1, K1)
    cols = S1 * ow_idx[:, None] + jnp.arange(K1)[None, :]        # (OW1, K1)
    g = x_nhwc[:, rows]                      # (B, OH1, K1, W, C)
    g = g[:, :, :, cols]                     # (B, OH1, K1, OW1, K1, C)
    g = jnp.transpose(g, (1, 3, 0, 2, 4, 5))  # (OH1, OW1, B, kh, kw, c)
    return g.reshape(OH1 * OW1, x_nhwc.shape[0], KD)


@jax.jit
def visual_encoder_forward(params, x):
    """x: (B, 3, H, W) float32 NCHW (PyTorch layout). Returns (B, 64*OH3*OW3)."""
    B, _, H, W = x.shape
    OH1, OW1 = _conv_out(H, K1, S1), _conv_out(W, K1, S1)
    OH2, OW2 = _conv_out(OH1, K2, S2), _conv_out(OW1, K2, S2)
    OH3, OW3 = _conv_out(OH2, K3, S3), _conv_out(OW2, K3, S3)
    assert OH1 % 2 == 0 and OW1 % 2 == 0, "conv1 output H/W must be even"

    NB = -(-B // BBLK)                 # number of grid steps
    B_pad = NB * BBLK

    # One-time layout plumbing in XLA (tiny): NCHW -> NHWC, pad batch, im2col.
    x_nhwc = jnp.transpose(x, (0, 2, 3, 1))
    if B_pad != B:
        x_nhwc = jnp.pad(x_nhwc, ((0, B_pad - B), (0, 0), (0, 0), (0, 0)))
    p = _conv1_patches(x_nhwc, OH1, OW1)            # (OH1*OW1, B_pad, 192)
    p = p.reshape(OH1 * OW1, NB, BBLK, KD)
    p = jnp.transpose(p, (1, 0, 2, 3)).reshape(NB * OH1 * OW1 * BBLK, KD)

    w1, b1 = _prep_w1(params["conv1_w"]), _prep_b(params["conv1_b"])
    w2, b2 = _prep_w(params["conv2_w"]), _prep_b(params["conv2_b"])
    w3, b3 = _prep_w(params["conv3_w"]), _prep_b(params["conv3_b"])

    y = _fused_encoder(p, w1, b1, w2, b2, w3, b3, NB,
                       (OH1, OW1, OH2, OW2, OH3, OW3))
    # (NB*OH3*OW3*BBLK, 128): rows ordered (nb, oh, ow, b).  Drop the lane
    # padding and redo the tiny NHWC -> NCHW flatten to match x.view(B, -1).
    y = y.reshape(NB, OH3, OW3, BBLK, CP)[..., :C3]
    y = jnp.transpose(y, (0, 3, 4, 1, 2)).reshape(B_pad, C3 * OH3 * OW3)
    return y[:B]


# ------------------------------ pure-JAX reference ----------------------------
def _reference_forward(params, x):
    def conv(x, w, b, s):
        y = lax.conv_general_dilated(
            x, w, window_strides=(s, s), padding="VALID",
            dimension_numbers=("NCHW", "OIHW", "NCHW"))
        return jax.nn.relu(y + b.reshape(1, -1, 1, 1))
    x = conv(x, params["conv1_w"], params["conv1_b"], 4)
    x = conv(x, params["conv2_w"], params["conv2_b"], 2)
    x = conv(x, params["conv3_w"], params["conv3_b"], 1)
    return x.reshape(x.shape[0], -1)


if __name__ == "__main__":
    key = jax.random.PRNGKey(0)
    pkey, xkey = jax.random.split(key)
    params = init_params(pkey)

    # 52x52 -> 12x12 -> 5x5 -> 3x3, flatten -> (B, 576).  B=16 gives two grid
    # steps of 8 images each (keeps both v7x TensorCores busy).
    x = jax.random.normal(xkey, (16, 3, 52, 52), jnp.float32)

    out = jax.block_until_ready(visual_encoder_forward(params, x))
    assert out.shape == (16, 576), out.shape

    ref = _reference_forward(params, x)
    err = float(jnp.max(jnp.abs(out - ref)))
    assert jnp.allclose(out, ref, atol=1e-4, rtol=1e-4), err

    print("KERNEL_OK")
</pallas_src>

<mosaic_0001>
module attributes {stable_mosaic.version = 11 : i64} {
  func.func @kernel(%arg0: i32, %arg1: memref<1152x192xf32, #tpu.memory_space<vmem>>, %arg2: memref<192x128xf32, #tpu.memory_space<vmem>>, %arg3: memref<1x128xf32, #tpu.memory_space<vmem>>, %arg4: memref<4x4x128x128xf32, #tpu.memory_space<vmem>>, %arg5: memref<1x128xf32, #tpu.memory_space<vmem>>, %arg6: memref<3x3x128x128xf32, #tpu.memory_space<vmem>>, %arg7: memref<1x128xf32, #tpu.memory_space<vmem>>, %arg8: memref<72x128xf32, #tpu.memory_space<vmem>>, %arg9: memref<2x6x2x6x8x128xf32, #tpu.memory_space<vmem>>, %arg10: memref<5x5x8x128xf32, #tpu.memory_space<vmem>>) attributes {dimension_semantics = [#tpu.dimension_semantics<parallel>], iteration_bounds = array<i64: 2>, scalar_prefetch = 0 : i64, scratch_operands = 2 : i64, tpu.core_type = #tpu.core_type<tc>, window_params = [{transform_indices = @transform_0, window_bounds = array<i64: 1152, 192>}, {pipeline_mode = #tpu.pipeline_mode<synchronous>, transform_indices = @transform_1, window_bounds = array<i64: 192, 128>}, {pipeline_mode = #tpu.pipeline_mode<synchronous>, transform_indices = @transform_2, window_bounds = array<i64: 1, 128>}, {pipeline_mode = #tpu.pipeline_mode<synchronous>, transform_indices = @transform_3, window_bounds = array<i64: 4, 4, 128, 128>}, {pipeline_mode = #tpu.pipeline_mode<synchronous>, transform_indices = @transform_4, window_bounds = array<i64: 1, 128>}, {pipeline_mode = #tpu.pipeline_mode<synchronous>, transform_indices = @transform_5, window_bounds = array<i64: 3, 3, 128, 128>}, {pipeline_mode = #tpu.pipeline_mode<synchronous>, transform_indices = @transform_6, window_bounds = array<i64: 1, 128>}, {transform_indices = @transform_7, window_bounds = array<i64: 72, 128>}]} {
    %c0 = arith.constant 0 : index
    %c0_0 = arith.constant 0 : index
    %0 = vector.load %arg1[%c0, %c0_0] : memref<1152x192xf32, #tpu.memory_space<vmem>>, vector<1152x192xf32>
    %c0_1 = arith.constant 0 : index
    %c0_2 = arith.constant 0 : index
    %1 = vector.load %arg2[%c0_1, %c0_2] : memref<192x128xf32, #tpu.memory_space<vmem>>, vector<192x128xf32>
    %cst = arith.constant dense<0.000000e+00> : vector<1152x128xf32>
    %2 = tpu.matmul %0, %1, %cst {dimension_numbers = #tpu.dot_dimension_numbers<[1], [0], [0], [1], [0, 0, 1, 1], [], []>} : vector<1152x192xf32>, vector<192x128xf32>, vector<1152x128xf32> -> vector<1152x128xf32>
    %c0_3 = arith.constant 0 : index
    %c0_4 = arith.constant 0 : index
    %3 = vector.load %arg3[%c0_3, %c0_4] : memref<1x128xf32, #tpu.memory_space<vmem>>, vector<1x128xf32>
    %4 = vector.broadcast %3 : vector<1x128xf32> to vector<1152x128xf32>
    %5 = arith.addf %2, %4 : vector<1152x128xf32>
    %cst_5 = arith.constant 0.000000e+00 : f32
    %6 = vector.broadcast %cst_5 : f32 to vector<1152x128xf32>
    %7 = arith.maximumf %5, %6 : vector<1152x128xf32>
    %8 = vector.shape_cast %7 : vector<1152x128xf32> to vector<2x6x2x6x8x128xf32>
    %c0_6 = arith.constant 0 : index
    %c0_7 = arith.constant 0 : index
    %c0_8 = arith.constant 0 : index
    %c0_9 = arith.constant 0 : index
    %c0_10 = arith.constant 0 : index
    %c0_11 = arith.constant 0 : index
    %9 = vector.load %arg9[%c0_6, %c0_7, %c0_8, %c0_9, %c0_10, %c0_11] : memref<2x6x2x6x8x128xf32, #tpu.memory_space<vmem>>, vector<2x6x2x6x8x128xf32>
    tpu.vector_store %arg9[%c0_6, %c0_7, %c0_8, %c0_9, %c0_10, %c0_11], %8 {strides = array<i32>} : memref<2x6x2x6x8x128xf32, #tpu.memory_space<vmem>>, vector<2x6x2x6x8x128xf32>,
    %c0_12 = arith.constant 0 : index
    %c0_13 = arith.constant 0 : index
    %10 = vector.load %arg5[%c0_12, %c0_13] : memref<1x128xf32, #tpu.memory_space<vmem>>, vector<1x128xf32>
    %11 = vector.shape_cast %10 : vector<1x128xf32> to vector<1x128xf32>
    %12 = vector.broadcast %11 : vector<1x128xf32> to vector<200x128xf32>
    %cst_14 = arith.constant 0.000000e+00 : f32
    %13 = vector.broadcast %cst_14 : f32 to vector<200x128xf32>
    %c0_15 = arith.constant 0 : index
    %c0_16 = arith.constant 0 : index
    %c0_17 = arith.constant 0 : index
    %c0_18 = arith.constant 0 : index
    %c0_19 = arith.constant 0 : index
    %c0_20 = arith.constant 0 : index
    %14 = vector.load %arg9[%c0_15, %c0_16, %c0_17, %c0_18, %c0_19, %c0_20] : memref<2x6x2x6x8x128xf32, #tpu.memory_space<vmem>>, vector<1x5x1x5x8x128xf32>
    %15 = vector.shape_cast %14 : vector<1x5x1x5x8x128xf32> to vector<5x5x8x128xf32>
    %16 = vector.shape_cast %15 : vector<5x5x8x128xf32> to vector<200x128xf32>
    %c0_21 = arith.constant 0 : index
    %c0_22 = arith.constant 0 : index
    %c0_23 = arith.constant 0 : index
    %c0_24 = arith.constant 0 : index
    %17 = vector.load %arg4[%c0_21, %c0_22, %c0_23, %c0_24] : memref<4x4x128x128xf32, #tpu.memory_space<vmem>>, vector<1x1x128x128xf32>
    %18 = vector.shape_cast %17 : vector<1x1x128x128xf32> to vector<128x128xf32>
    %cst_25 = arith.constant dense<0.000000e+00> : vector<200x128xf32>
    %19 = tpu.matmul %16, %18, %cst_25 {dimension_numbers = #tpu.dot_dimension_numbers<[1], [0], [0], [1], [0, 0, 1, 1], [], []>} : vector<200x128xf32>, vector<128x128xf32>, vector<200x128xf32> -> vector<200x128xf32>
    %20 = arith.addf %12, %19 : vector<200x128xf32>
    %c0_26 = arith.constant 0 : index
    %c0_27 = arith.constant 0 : index
    %c1 = arith.constant 1 : index
    %c0_28 = arith.constant 0 : index
    %c0_29 = arith.constant 0 : index
    %c0_30 = arith.constant 0 : index
    %21 = vector.load %arg9[%c0_26, %c0_27, %c1, %c0_28, %c0_29, %c0_30] : memref<2x6x2x6x8x128xf32, #tpu.memory_space<vmem>>, vector<1x5x1x5x8x128xf32>
    %22 = vector.shape_cast %21 : vector<1x5x1x5x8x128xf32> to vector<5x5x8x128xf32>
    %23 = vector.shape_cast %22 : vector<5x5x8x128xf32> to vector<200x128xf32>
    %c0_31 = arith.constant 0 : index
    %c1_32 = arith.constant 1 : index
    %c0_33 = arith.constant 0 : index
    %c0_34 = arith.constant 0 : index
    %24 = vector.load %arg4[%c0_31, %c1_32, %c0_33, %c0_34] : memref<4x4x128x128xf32, #tpu.memory_space<vmem>>, vector<1x1x128x128xf32>
    %25 = vector.shape_cast %24 : vector<1x1x128x128xf32> to vector<128x128xf32>
    %cst_35 = arith.constant dense<0.000000e+00> : vector<200x128xf32>
    %26 = tpu.matmul %23, %25, %cst_35 {dimension_numbers = #tpu.dot_dimension_numbers<[1], [0], [0], [1], [0, 0, 1, 1], [], []>} : vector<200x128xf32>, vector<128x128xf32>, vector<200x128xf32> -> vector<200x128xf32>
    %27 = arith.addf %13, %26 : vector<200x128xf32>
    %c0_36 = arith.constant 0 : index
    %c0_37 = arith.constant 0 : index
    %c0_38 = arith.constant 0 : index
    %c1_39 = arith.constant 1 : index
    %c0_40 = arith.constant 0 : index
    %c0_41 = arith.constant 0 : index
    %28 = vector.load %arg9[%c0_36, %c0_37, %c0_38, %c1_39, %c0_40, %c0_41] : memref<2x6x2x6x8x128xf32, #tpu.memory_space<vmem>>, vector<1x5x1x5x8x128xf32>
    %29 = vector.shape_cast %28 : vector<1x5x1x5x8x128xf32> to vector<5x5x8x128xf32>
    %30 = vector.shape_cast %29 : vector<5x5x8x128xf32> to vector<200x128xf32>
    %c0_42 = arith.constant 0 : index
    %c2 = arith.constant 2 : index
    %c0_43 = arith.constant 0 : index
    %c0_44 = arith.constant 0 : index
    %31 = vector.load %arg4[%c0_42, %c2, %c0_43, %c0_44] : memref<4x4x128x128xf32, #tpu.memory_space<vmem>>, vector<1x1x128x128xf32>
    %32 = vector.shape_cast %31 : vector<1x1x128x128xf32> to vector<128x128xf32>
    %cst_45 = arith.constant dense<0.000000e+00> : vector<200x128xf32>
    %33 = tpu.matmul %30, %32, %cst_45 {dimension_numbers = #tpu.dot_dimension_numbers<[1], [0], [0], [1], [0, 0, 1, 1], [], []>} : vector<200x128xf32>, vector<128x128xf32>, vector<200x128xf32> -> vector<200x128xf32>
    %34 = arith.addf %20, %33 : vector<200x128xf32>
    %c0_46 = arith.constant 0 : index
    %c0_47 = arith.constant 0 : index
    %c1_48 = arith.constant 1 : index
    %c1_49 = arith.constant 1 : index
    %c0_50 = arith.constant 0 : index
    %c0_51 = arith.constant 0 : index
    %35 = vector.load %arg9[%c0_46, %c0_47, %c1_48, %c1_49, %c0_50, %c0_51] : memref<2x6x2x6x8x128xf32, #tpu.memory_space<vmem>>, vector<1x5x1x5x8x128xf32>
    %36 = vector.shape_cast %35 : vector<1x5x1x5x8x128xf32> to vector<5x5x8x128xf32>
    %37 = vector.shape_cast %36 : vector<5x5x8x128xf32> to vector<200x128xf32>
    %c0_52 = arith.constant 0 : index
    %c3 = arith.constant 3 : index
    %c0_53 = arith.constant 0 : index
    %c0_54 = arith.constant 0 : index
    %38 = vector.load %arg4[%c0_52, %c3, %c0_53, %c0_54] : memref<4x4x128x128xf32, #tpu.memory_space<vmem>>, vector<1x1x128x128xf32>
    %39 = vector.shape_cast %38 : vector<1x1x128x128xf32> to vector<128x128xf32>
    %cst_55 = arith.constant dense<0.000000e+00> : vector<200x128xf32>
    %40 = tpu.matmul %37, %39, %cst_55 {dimension_numbers = #tpu.dot_dimension_numbers<[1], [0], [0], [1], [0, 0, 1, 1], [], []>} : vector<200x128xf32>, vector<128x128xf32>, vector<200x128xf32> -> vector<200x128xf32>
    %41 = arith.addf %27, %40 : vector<200x128xf32>
    %c1_56 = arith.constant 1 : index
    %c0_57 = arith.constant 0 : index
    %c0_58 = arith.constant 0 : index
    %c0_59 = arith.constant 0 : index
    %c0_60 = arith.constant 0 : index
    %c0_61 = arith.constant 0 : index
    %42 = vector.load %arg9[%c1_56, %c0_57, %c0_58, %c0_59, %c0_60, %c0_61] : memref<2x6x2x6x8x128xf32, #tpu.memory_space<vmem>>, vector<1x5x1x5x8x128xf32>
    %43 = vector.shape_cast %42 : vector<1x5x1x5x8x128xf32> to vector<5x5x8x128xf32>
    %44 = vector.shape_cast %43 : vector<5x5x8x128xf32> to vector<200x128xf32>
    %c1_62 = arith.constant 1 : index
    %c0_63 = arith.constant 0 : index
    %c0_64 = arith.constant 0 : index
    %c0_65 = arith.constant 0 : index
    %45 = vector.load %arg4[%c1_62, %c0_63, %c0_64, %c0_65] : memref<4x4x128x128xf32, #tpu.memory_space<vmem>>, vector<1x1x128x128xf32>
    %46 = vector.shape_cast %45 : vector<1x1x128x128xf32> to vector<128x128xf32>
    %cst_66 = arith.constant dense<0.000000e+00> : vector<200x128xf32>
    %47 = tpu.matmul %44, %46, %cst_66 {dimension_numbers = #tpu.dot_dimension_numbers<[1], [0], [0], [1], [0, 0, 1, 1], [], []>} : vector<200x128xf32>, vector<128x128xf32>, vector<200x128xf32> -> vector<200x128xf32>
    %48 = arith.addf %34, %47 : vector<200x128xf32>
    %c1_67 = arith.constant 1 : index
    %c0_68 = arith.constant 0 : index
    %c1_69 = arith.constant 1 : index
    %c0_70 = arith.constant 0 : index
    %c0_71 = arith.constant 0 : index
    %c0_72 = arith.constant 0 : index
    %49 = vector.load %arg9[%c1_67, %c0_68, %c1_69, %c0_70, %c0_71, %c0_72] : memref<2x6x2x6x8x128xf32, #tpu.memory_space<vmem>>, vector<1x5x1x5x8x128xf32>
    %50 = vector.shape_cast %49 : vector<1x5x1x5x8x128xf32> to vector<5x5x8x128xf32>
    %51 = vector.shape_cast %50 : vector<5x5x8x128xf32> to vector<200x128xf32>
    %c1_73 = arith.constant 1 : index
    %c1_74 = arith.constant 1 : index
    %c0_75 = arith.constant 0 : index
    %c0_76 = arith.constant 0 : index
    %52 = vector.load %arg4[%c1_73, %c1_74, %c0_75, %c0_76] : memref<4x4x128x128xf32, #tpu.memory_space<vmem>>, vector<1x1x128x128xf32>
    %53 = vector.shape_cast %52 : vector<1x1x128x128xf32> to vector<128x128xf32>
    %cst_77 = arith.constant dense<0.000000e+00> : vector<200x128xf32>
    %54 = tpu.matmul %51, %53, %cst_77 {dimension_numbers = #tpu.dot_dimension_numbers<[1], [0], [0], [1], [0, 0, 1, 1], [], []>} : vector<200x128xf32>, vector<128x128xf32>, vector<200x128xf32> -> vector<200x128xf32>
    %55 = arith.addf %41, %54 : vector<200x128xf32>
    %c1_78 = arith.constant 1 : index
    %c0_79 = arith.constant 0 : index
    %c0_80 = arith.constant 0 : index
    %c1_81 = arith.constant 1 : index
    %c0_82 = arith.constant 0 : index
    %c0_83 = arith.constant 0 : index
    %56 = vector.load %arg9[%c1_78, %c0_79, %c0_80, %c1_81, %c0_82, %c0_83] : memref<2x6x2x6x8x128xf32, #tpu.memory_space<vmem>>, vector<1x5x1x5x8x128xf32>
    %57 = vector.shape_cast %56 : vector<1x5x1x5x8x128xf32> to vector<5x5x8x128xf32>
    %58 = vector.shape_cast %57 : vector<5x5x8x128xf32> to vector<200x128xf32>
    %c1_84 = arith.constant 1 : index
    %c2_85 = arith.constant 2 : index
    %c0_86 = arith.constant 0 : index
    %c0_87 = arith.constant 0 : index
    %59 = vector.load %arg4[%c1_84, %c2_85, %c0_86, %c0_87] : memref<4x4x128x128xf32, #tpu.memory_space<vmem>>, vector<1x1x128x128xf32>
    %60 = vector.shape_cast %59 : vector<1x1x128x128xf32> to vector<128x128xf32>
    %cst_88 = arith.constant dense<0.000000e+00> : vector<200x128xf32>
    %61 = tpu.matmul %58, %60, %cst_88 {dimension_numbers = #tpu.dot_dimension_numbers<[1], [0], [0], [1], [0, 0, 1, 1], [], []>} : vector<200x128xf32>, vector<128x128xf32>, vector<200x128xf32> -> vector<200x128xf32>
    %62 = arith.addf %48, %61 : vector<200x128xf32>
    %c1_89 = arith.constant 1 : index
    %c0_90 = arith.constant 0 : index
    %c1_91 = arith.constant 1 : index
    %c1_92 = arith.constant 1 : index
    %c0_93 = arith.constant 0 : index
    %c0_94 = arith.constant 0 : index
    %63 = vector.load %arg9[%c1_89, %c0_90, %c1_91, %c1_92, %c0_93, %c0_94] : memref<2x6x2x6x8x128xf32, #tpu.memory_space<vmem>>, vector<1x5x1x5x8x128xf32>
    %64 = vector.shape_cast %63 : vector<1x5x1x5x8x128xf32> to vector<5x5x8x128xf32>
    %65 = vector.shape_cast %64 : vector<5x5x8x128xf32> to vector<200x128xf32>
    %c1_95 = arith.constant 1 : index
    %c3_96 = arith.constant 3 : index
    %c0_97 = arith.constant 0 : index
    %c0_98 = arith.constant 0 : index
    %66 = vector.load %arg4[%c1_95, %c3_96, %c0_97, %c0_98] : memref<4x4x128x128xf32, #tpu.memory_space<vmem>>, vector<1x1x128x128xf32>
    %67 = vector.shape_cast %66 : vector<1x1x128x128xf32> to vector<128x128xf32>
    %cst_99 = arith.constant dense<0.000000e+00> : vector<200x128xf32>
    %68 = tpu.matmul %65, %67, %cst_99 {dimension_numbers = #tpu.dot_dimension_numbers<[1], [0], [0], [1], [0, 0, 1, 1], [], []>} : vector<200x128xf32>, vector<128x128xf32>, vector<200x128xf32> -> vector<200x128xf32>
    %69 = arith.addf %55, %68 : vector<200x128xf32>
    %c0_100 = arith.constant 0 : index
    %c1_101 = arith.constant 1 : index
    %c0_102 = arith.constant 0 : index
    %c0_103 = arith.constant 0 : index
    %c0_104 = arith.constant 0 : index
    %c0_105 = arith.constant 0 : index
    %70 = vector.load %arg9[%c0_100, %c1_101, %c0_102, %c0_103, %c0_104, %c0_105] : memref<2x6x2x6x8x128xf32, #tpu.memory_space<vmem>>, vector<1x5x1x5x8x128xf32>
    %71 = vector.shape_cast %70 : vector<1x5x1x5x8x128xf32> to vector<5x5x8x128xf32>
    %72 = vector.shape_cast %71 : vector<5x5x8x128xf32> to vector<200x128xf32>
    %c2_106 = arith.constant 2 : index
    %c0_107 = arith.constant 0 : index
    %c0_108 = arith.constant 0 : index
    %c0_109 = arith.constant 0 : index
    %73 = vector.load %arg4[%c2_106, %c0_107, %c0_108, %c0_109] : memref<4x4x128x128xf32, #tpu.memory_space<vmem>>, vector<1x1x128x128xf32>
    %74 = vector.shape_cast %73 : vector<1x1x128x128xf32> to vector<128x128xf32>
    %cst_110 = arith.constant dense<0.000000e+00> : vector<200x128xf32>
    %75 = tpu.matmul %72, %74, %cst_110 {dimension_numbers = #tpu.dot_dimension_numbers<[1], [0], [0], [1], [0, 0, 1, 1], [], []>} : vector<200x128xf32>, vector<128x128xf32>, vector<200x128xf32> -> vector<200x128xf32>
    %76 = arith.addf %62, %75 : vector<200x128xf32>
    %c0_111 = arith.constant 0 : index
    %c1_112 = arith.constant 1 : index
    %c1_113 = arith.constant 1 : index
    %c0_114 = arith.constant 0 : index
    %c0_115 = arith.constant 0 : index
    %c0_116 = arith.constant 0 : index
    %77 = vector.load %arg9[%c0_111, %c1_112, %c1_113, %c0_114, %c0_115, %c0_116] : memref<2x6x2x6x8x128xf32, #tpu.memory_space<vmem>>, vector<1x5x1x5x8x128xf32>
    %78 = vector.shape_cast %77 : vector<1x5x1x5x8x128xf32> to vector<5x5x8x128xf32>
    %79 = vector.shape_cast %78 : vector<5x5x8x128xf32> to vector<200x128xf32>
    %c2_117 = arith.constant 2 : index
    %c1_118 = arith.constant 1 : index
    %c0_119 = arith.constant 0 : index
    %c0_120 = arith.constant 0 : index
    %80 = vector.load %arg4[%c2_117, %c1_118, %c0_119, %c0_120] : memref<4x4x128x128xf32, #tpu.memory_space<vmem>>, vector<1x1x128x128xf32>
    %81 = vector.shape_cast %80 : vector<1x1x128x128xf32> to vector<128x128xf32>
    %cst_121 = arith.constant dense<0.000000e+00> : vector<200x128xf32>
    %82 = tpu.matmul %79, %81, %cst_121 {dimension_numbers = #tpu.dot_dimension_numbers<[1], [0], [0], [1], [0, 0, 1, 1], [], []>} : vector<200x128xf32>, vector<128x128xf32>, vector<200x128xf32> -> vector<200x128xf32>
    %83 = arith.addf %69, %82 : vector<200x128xf32>
    %c0_122 = arith.constant 0 : index
    %c1_123 = arith.constant 1 : index
    %c0_124 = arith.constant 0 : index
    %c1_125 = arith.constant 1 : index
    %c0_126 = arith.constant 0 : index
    %c0_127 = arith.constant 0 : index
    %84 = vector.load %arg9[%c0_122, %c1_123, %c0_124, %c1_125, %c0_126, %c0_127] : memref<2x6x2x6x8x128xf32, #tpu.memory_space<vmem>>, vector<1x5x1x5x8x128xf32>
    %85 = vector.shape_cast %84 : vector<1x5x1x5x8x128xf32> to vector<5x5x8x128xf32>
    %86 = vector.shape_cast %85 : vector<5x5x8x128xf32> to vector<200x128xf32>
    %c2_128 = arith.constant 2 : index
    %c2_129 = arith.constant 2 : index
    %c0_130 = arith.constant 0 : index
    %c0_131 = arith.constant 0 : index
    %87 = vector.load %arg4[%c2_128, %c2_129, %c0_130, %c0_131] : memref<4x4x128x128xf32, #tpu.memory_space<vmem>>, vector<1x1x128x128xf32>
    %88 = vector.shape_cast %87 : vector<1x1x128x128xf32> to vector<128x128xf32>
    %cst_132 = arith.constant dense<0.000000e+00> : vector<200x128xf32>
    %89 = tpu.matmul %86, %88, %cst_132 {dimension_numbers = #tpu.dot_dimension_numbers<[1], [0], [0], [1], [0, 0, 1, 1], [], []>} : vector<200x128xf32>, vector<128x128xf32>, vector<200x128xf32> -> vector<200x128xf32>
    %90 = arith.addf %76, %89 : vector<200x128xf32>
    %c0_133 = arith.constant 0 : index
    %c1_134 = arith.constant 1 : index
    %c1_135 = arith.constant 1 : index
    %c1_136 = arith.constant 1 : index
    %c0_137 = arith.constant 0 : index
    %c0_138 = arith.constant 0 : index
    %91 = vector.load %arg9[%c0_133, %c1_134, %c1_135, %c1_136, %c0_137, %c0_138] : memref<2x6x2x6x8x128xf32, #tpu.memory_space<vmem>>, vector<1x5x1x5x8x128xf32>
    %92 = vector.shape_cast %91 : vector<1x5x1x5x8x128xf32> to vector<5x5x8x128xf32>
    %93 = vector.shape_cast %92 : vector<5x5x8x128xf32> to vector<200x128xf32>
    %c2_139 = arith.constant 2 : index
    %c3_140 = arith.constant 3 : index
    %c0_141 = arith.constant 0 : index
    %c0_142 = arith.constant 0 : index
    %94 = vector.load %arg4[%c2_139, %c3_140, %c0_141, %c0_142] : memref<4x4x128x128xf32, #tpu.memory_space<vmem>>, vector<1x1x128x128xf32>
    %95 = vector.shape_cast %94 : vector<1x1x128x128xf32> to vector<128x128xf32>
    %cst_143 = arith.constant dense<0.000000e+00> : vector<200x128xf32>
    %96 = tpu.matmul %93, %95, %cst_143 {dimension_numbers = #tpu.dot_dimension_numbers<[1], [0], [0], [1], [0, 0, 1, 1], [], []>} : vector<200x128xf32>, vector<128x128xf32>, vector<200x128xf32> -> vector<200x128xf32>
    %97 = arith.addf %83, %96 : vector<200x128xf32>
    %c1_144 = arith.constant 1 : index
    %c1_145 = arith.constant 1 : index
    %c0_146 = arith.constant 0 : index
    %c0_147 = arith.constant 0 : index
    %c0_148 = arith.constant 0 : index
    %c0_149 = arith.constant 0 : index
    %98 = vector.load %arg9[%c1_144, %c1_145, %c0_146, %c0_147, %c0_148, %c0_149] : memref<2x6x2x6x8x128xf32, #tpu.memory_space<vmem>>, vector<1x5x1x5x8x128xf32>
    %99 = vector.shape_cast %98 : vector<1x5x1x5x8x128xf32> to vector<5x5x8x128xf32>
    %100 = vector.shape_cast %99 : vector<5x5x8x128xf32> to vector<200x128xf32>
    %c3_150 = arith.constant 3 : index
    %c0_151 = arith.constant 0 : index
    %c0_152 = arith.constant 0 : index
    %c0_153 = arith.constant 0 : index
    %101 = vector.load %arg4[%c3_150, %c0_151, %c0_152, %c0_153] : memref<4x4x128x128xf32, #tpu.memory_space<vmem>>, vector<1x1x128x128xf32>
    %102 = vector.shape_cast %101 : vector<1x1x128x128xf32> to vector<128x128xf32>
    %cst_154 = arith.constant dense<0.000000e+00> : vector<200x128xf32>
    %103 = tpu.matmul %100, %102, %cst_154 {dimension_numbers = #tpu.dot_dimension_numbers<[1], [0], [0], [1], [0, 0, 1, 1], [], []>} : vector<200x128xf32>, vector<128x128xf32>, vector<200x128xf32> -> vector<200x128xf32>
    %104 = arith.addf %90, %103 : vector<200x128xf32>
    %c1_155 = arith.constant 1 : index
    %c1_156 = arith.constant 1 : index
    %c1_157 = arith.constant 1 : index
    %c0_158 = arith.constant 0 : index
    %c0_159 = arith.constant 0 : index
    %c0_160 = arith.constant 0 : index
    %105 = vector.load %arg9[%c1_155, %c1_156, %c1_157, %c0_158, %c0_159, %c0_160] : memref<2x6x2x6x8x128xf32, #tpu.memory_space<vmem>>, vector<1x5x1x5x8x128xf32>
    %106 = vector.shape_cast %105 : vector<1x5x1x5x8x128xf32> to vector<5x5x8x128xf32>
    %107 = vector.shape_cast %106 : vector<5x5x8x128xf32> to vector<200x128xf32>
    %c3_161 = arith.constant 3 : index
    %c1_162 = arith.constant 1 : index
    %c0_163 = arith.constant 0 : index
    %c0_164 = arith.constant 0 : index
    %108 = vector.load %arg4[%c3_161, %c1_162, %c0_163, %c0_164] : memref<4x4x128x128xf32, #tpu.memory_space<vmem>>, vector<1x1x128x128xf32>
    %109 = vector.shape_cast %108 : vector<1x1x128x128xf32> to vector<128x128xf32>
    %cst_165 = arith.constant dense<0.000000e+00> : vector<200x128xf32>
    %110 = tpu.matmul %107, %109, %cst_165 {dimension_numbers = #tpu.dot_dimension_numbers<[1], [0], [0], [1], [0, 0, 1, 1], [], []>} : vector<200x128xf32>, vector<128x128xf32>, vector<200x128xf32> -> vector<200x128xf32>
    %111 = arith.addf %97, %110 : vector<200x128xf32>
    %c1_166 = arith.constant 1 : index
    %c1_167 = arith.constant 1 : index
    %c0_168 = arith.constant 0 : index
    %c1_169 = arith.constant 1 : index
    %c0_170 = arith.constant 0 : index
    %c0_171 = arith.constant 0 : index
    %112 = vector.load %arg9[%c1_166, %c1_167, %c0_168, %c1_169, %c0_170, %c0_171] : memref<2x6x2x6x8x128xf32, #tpu.memory_space<vmem>>, vector<1x5x1x5x8x128xf32>
    %113 = vector.shape_cast %112 : vector<1x5x1x5x8x128xf32> to vector<5x5x8x128xf32>
    %114 = vector.shape_cast %113 : vector<5x5x8x128xf32> to vector<200x128xf32>
    %c3_172 = arith.constant 3 : index
    %c2_173 = arith.constant 2 : index
    %c0_174 = arith.constant 0 : index
    %c0_175 = arith.constant 0 : index
    %115 = vector.load %arg4[%c3_172, %c2_173, %c0_174, %c0_175] : memref<4x4x128x128xf32, #tpu.memory_space<vmem>>, vector<1x1x128x128xf32>
    %116 = vector.shape_cast %115 : vector<1x1x128x128xf32> to vector<128x128xf32>
    %cst_176 = arith.constant dense<0.000000e+00> : vector<200x128xf32>
    %117 = tpu.matmul %114, %116, %cst_176 {dimension_numbers = #tpu.dot_dimension_numbers<[1], [0], [0], [1], [0, 0, 1, 1], [], []>} : vector<200x128xf32>, vector<128x128xf32>, vector<200x128xf32> -> vector<200x128xf32>
    %118 = arith.addf %104, %117 : vector<200x128xf32>
    %c1_177 = arith.constant 1 : index
    %c1_178 = arith.constant 1 : index
    %c1_179 = arith.constant 1 : index
    %c1_180 = arith.constant 1 : index
    %c0_181 = arith.constant 0 : index
    %c0_182 = arith.constant 0 : index
    %119 = vector.load %arg9[%c1_177, %c1_178, %c1_179, %c1_180, %c0_181, %c0_182] : memref<2x6x2x6x8x128xf32, #tpu.memory_space<vmem>>, vector<1x5x1x5x8x128xf32>
    %120 = vector.shape_cast %119 : vector<1x5x1x5x8x128xf32> to vector<5x5x8x128xf32>
    %121 = vector.shape_cast %120 : vector<5x5x8x128xf32> to vector<200x128xf32>
    %c3_183 = arith.constant 3 : index
    %c3_184 = arith.constant 3 : index
    %c0_185 = arith.constant 0 : index
    %c0_186 = arith.constant 0 : index
    %122 = vector.load %arg4[%c3_183, %c3_184, %c0_185, %c0_186] : memref<4x4x128x128xf32, #tpu.memory_space<vmem>>, vector<1x1x128x128xf32>
    %123 = vector.shape_cast %122 : vector<1x1x128x128xf32> to vector<128x128xf32>
    %cst_187 = arith.constant dense<0.000000e+00> : vector<200x128xf32>
    %124 = tpu.matmul %121, %123, %cst_187 {dimension_numbers = #tpu.dot_dimension_numbers<[1], [0], [0], [1], [0, 0, 1, 1], [], []>} : vector<200x128xf32>, vector<128x128xf32>, vector<200x128xf32> -> vector<200x128xf32>
    %125 = arith.addf %111, %124 : vector<200x128xf32>
    %126 = arith.addf %118, %125 : vector<200x128xf32>
    %cst_188 = arith.constant 0.000000e+00 : f32
    %127 = vector.broadcast %cst_188 : f32 to vector<200x128xf32>
    %128 = arith.maximumf %126, %127 : vector<200x128xf32>
    %129 = vector.shape_cast %128 : vector<200x128xf32> to vector<5x5x8x128xf32>
    %c0_189 = arith.constant 0 : index
    %c0_190 = arith.constant 0 : index
    %c0_191 = arith.constant 0 : index
    %c0_192 = arith.constant 0 : index
    %130 = vector.load %arg10[%c0_189, %c0_190, %c0_191, %c0_192] : memref<5x5x8x128xf32, #tpu.memory_space<vmem>>, vector<5x5x8x128xf32>
    tpu.vector_store %arg10[%c0_189, %c0_190, %c0_191, %c0_192], %129 {strides = array<i32>} : memref<5x5x8x128xf32, #tpu.memory_space<vmem>>, vector<5x5x8x128xf32>,
    %c0_193 = arith.constant 0 : index
    %c0_194 = arith.constant 0 : index
    %131 = vector.load %arg7[%c0_193, %c0_194] : memref<1x128xf32, #tpu.memory_space<vmem>>, vector<1x128xf32>
    %132 = vector.shape_cast %131 : vector<1x128xf32> to vector<1x128xf32>
    %133 = vector.broadcast %132 : vector<1x128xf32> to vector<72x128xf32>
    %cst_195 = arith.constant 0.000000e+00 : f32
    %134 = vector.broadcast %cst_195 : f32 to vector<72x128xf32>
    %c0_196 = arith.constant 0 : index
    %c0_197 = arith.constant 0 : index
    %c0_198 = arith.constant 0 : index
    %c0_199 = arith.constant 0 : index
    %135 = vector.load %arg10[%c0_196, %c0_197, %c0_198, %c0_199] : memref<5x5x8x128xf32, #tpu.memory_space<vmem>>, vector<3x3x8x128xf32>
    %136 = vector.shape_cast %135 : vector<3x3x8x128xf32> to vector<72x128xf32>
    %c0_200 = arith.constant 0 : index
    %c0_201 = arith.constant 0 : index
    %c0_202 = arith.constant 0 : index
    %c0_203 = arith.constant 0 : index
    %137 = vector.load %arg6[%c0_200, %c0_201, %c0_202, %c0_203] : memref<3x3x128x128xf32, #tpu.memory_space<vmem>>, vector<1x1x128x128xf32>
    %138 = vector.shape_cast %137 : vector<1x1x128x128xf32> to vector<128x128xf32>
    %cst_204 = arith.constant dense<0.000000e+00> : vector<72x128xf32>
    %139 = tpu.matmul %136, %138, %cst_204 {dimension_numbers = #tpu.dot_dimension_numbers<[1], [0], [0], [1], [0, 0, 1, 1], [], []>} : vector<72x128xf32>, vector<128x128xf32>, vector<72x128xf32> -> vector<72x128xf32>
    %140 = arith.addf %133, %139 : vector<72x128xf32>
    %c0_205 = arith.constant 0 : index
    %c1_206 = arith.constant 1 : index
    %c0_207 = arith.constant 0 : index
    %c0_208 = arith.constant 0 : index
    %141 = vector.load %arg10[%c0_205, %c1_206, %c0_207, %c0_208] : memref<5x5x8x128xf32, #tpu.memory_space<vmem>>, vector<3x3x8x128xf32>
    %142 = vector.shape_cast %141 : vector<3x3x8x128xf32> to vector<72x128xf32>
    %c0_209 = arith.constant 0 : index
    %c1_210 = arith.constant 1 : index
    %c0_211 = arith.constant 0 : index
    %c0_212 = arith.constant 0 : index
    %143 = vector.load %arg6[%c0_209, %c1_210, %c0_211, %c0_212] : memref<3x3x128x128xf32, #tpu.memory_space<vmem>>, vector<1x1x128x128xf32>
    %144 = vector.shape_cast %143 : vector<1x1x128x128xf32> to vector<128x128xf32>
    %cst_213 = arith.constant dense<0.000000e+00> : vector<72x128xf32>
    %145 = tpu.matmul %142, %144, %cst_213 {dimension_numbers = #tpu.dot_dimension_numbers<[1], [0], [0], [1], [0, 0, 1, 1], [], []>} : vector<72x128xf32>, vector<128x128xf32>, vector<72x128xf32> -> vector<72x128xf32>
    %146 = arith.addf %134, %145 : vector<72x128xf32>
    %c0_214 = arith.constant 0 : index
    %c2_215 = arith.constant 2 : index
    %c0_216 = arith.constant 0 : index
    %c0_217 = arith.constant 0 : index
    %147 = vector.load %arg10[%c0_214, %c2_215, %c0_216, %c0_217] : memref<5x5x8x128xf32, #tpu.memory_space<vmem>>, vector<3x3x8x128xf32>
    %148 = vector.shape_cast %147 : vector<3x3x8x128xf32> to vector<72x128xf32>
    %c0_218 = arith.constant 0 : index
    %c2_219 = arith.constant 2 : index
    %c0_220 = arith.constant 0 : index
    %c0_221 = arith.constant 0 : index
    %149 = vector.load %arg6[%c0_218, %c2_219, %c0_220, %c0_221] : memref<3x3x128x128xf32, #tpu.memory_space<vmem>>, vector<1x1x128x128xf32>
    %150 = vector.shape_cast %149 : vector<1x1x128x128xf32> to vector<128x128xf32>
    %cst_222 = arith.constant dense<0.000000e+00> : vector<72x128xf32>
    %151 = tpu.matmul %148, %150, %cst_222 {dimension_numbers = #tpu.dot_dimension_numbers<[1], [0], [0], [1], [0, 0, 1, 1], [], []>} : vector<72x128xf32>, vector<128x128xf32>, vector<72x128xf32> -> vector<72x128xf32>
    %152 = arith.addf %140, %151 : vector<72x128xf32>
    %c1_223 = arith.constant 1 : index
    %c0_224 = arith.constant 0 : index
    %c0_225 = arith.constant 0 : index
    %c0_226 = arith.constant 0 : index
    %153 = vector.load %arg10[%c1_223, %c0_224, %c0_225, %c0_226] : memref<5x5x8x128xf32, #tpu.memory_space<vmem>>, vector<3x3x8x128xf32>
    %154 = vector.shape_cast %153 : vector<3x3x8x128xf32> to vector<72x128xf32>
    %c1_227 = arith.constant 1 : index
    %c0_228 = arith.constant 0 : index
    %c0_229 = arith.constant 0 : index
    %c0_230 = arith.constant 0 : index
    %155 = vector.load %arg6[%c1_227, %c0_228, %c0_229, %c0_230] : memref<3x3x128x128xf32, #tpu.memory_space<vmem>>, vector<1x1x128x128xf32>
    %156 = vector.shape_cast %155 : vector<1x1x128x128xf32> to vector<128x128xf32>
    %cst_231 = arith.constant dense<0.000000e+00> : vector<72x128xf32>
    %157 = tpu.matmul %154, %156, %cst_231 {dimension_numbers = #tpu.dot_dimension_numbers<[1], [0], [0], [1], [0, 0, 1, 1], [], []>} : vector<72x128xf32>, vector<128x128xf32>, vector<72x128xf32> -> vector<72x128xf32>
    %158 = arith.addf %146, %157 : vector<72x128xf32>
    %c1_232 = arith.constant 1 : index
    %c1_233 = arith.constant 1 : index
    %c0_234 = arith.constant 0 : index
    %c0_235 = arith.constant 0 : index
    %159 = vector.load %arg10[%c1_232, %c1_233, %c0_234, %c0_235] : memref<5x5x8x128xf32, #tpu.memory_space<vmem>>, vector<3x3x8x128xf32>
    %160 = vector.shape_cast %159 : vector<3x3x8x128xf32> to vector<72x128xf32>
    %c1_236 = arith.constant 1 : index
    %c1_237 = arith.constant 1 : index
    %c0_238 = arith.constant 0 : index
    %c0_239 = arith.constant 0 : index
    %161 = vector.load %arg6[%c1_236, %c1_237, %c0_238, %c0_239] : memref<3x3x128x128xf32, #tpu.memory_space<vmem>>, vector<1x1x128x128xf32>
    %162 = vector.shape_cast %161 : vector<1x1x128x128xf32> to vector<128x128xf32>
    %cst_240 = arith.constant dense<0.000000e+00> : vector<72x128xf32>
    %163 = tpu.matmul %160, %162, %cst_240 {dimension_numbers = #tpu.dot_dimension_numbers<[1], [0], [0], [1], [0, 0, 1, 1], [], []>} : vector<72x128xf32>, vector<128x128xf32>, vector<72x128xf32> -> vector<72x128xf32>
    %164 = arith.addf %152, %163 : vector<72x128xf32>
    %c1_241 = arith.constant 1 : index
    %c2_242 = arith.constant 2 : index
    %c0_243 = arith.constant 0 : index
    %c0_244 = arith.constant 0 : index
    %165 = vector.load %arg10[%c1_241, %c2_242, %c0_243, %c0_244] : memref<5x5x8x128xf32, #tpu.memory_space<vmem>>, vector<3x3x8x128xf32>
    %166 = vector.shape_cast %165 : vector<3x3x8x128xf32> to vector<72x128xf32>
    %c1_245 = arith.constant 1 : index
    %c2_246 = arith.constant 2 : index
    %c0_247 = arith.constant 0 : index
    %c0_248 = arith.constant 0 : index
    %167 = vector.load %arg6[%c1_245, %c2_246, %c0_247, %c0_248] : memref<3x3x128x128xf32, #tpu.memory_space<vmem>>, vector<1x1x128x128xf32>
    %168 = vector.shape_cast %167 : vector<1x1x128x128xf32> to vector<128x128xf32>
    %cst_249 = arith.constant dense<0.000000e+00> : vector<72x128xf32>
    %169 = tpu.matmul %166, %168, %cst_249 {dimension_numbers = #tpu.dot_dimension_numbers<[1], [0], [0], [1], [0, 0, 1, 1], [], []>} : vector<72x128xf32>, vector<128x128xf32>, vector<72x128xf32> -> vector<72x128xf32>
    %170 = arith.addf %158, %169 : vector<72x128xf32>
    %c2_250 = arith.constant 2 : index
    %c0_251 = arith.constant 0 : index
    %c0_252 = arith.constant 0 : index
    %c0_253 = arith.constant 0 : index
    %171 = vector.load %arg10[%c2_250, %c0_251, %c0_252, %c0_253] : memref<5x5x8x128xf32, #tpu.memory_space<vmem>>, vector<3x3x8x128xf32>
    %172 = vector.shape_cast %171 : vector<3x3x8x128xf32> to vector<72x128xf32>
    %c2_254 = arith.constant 2 : index
    %c0_255 = arith.constant 0 : index
    %c0_256 = arith.constant 0 : index
    %c0_257 = arith.constant 0 : index
    %173 = vector.load %arg6[%c2_254, %c0_255, %c0_256, %c0_257] : memref<3x3x128x128xf32, #tpu.memory_space<vmem>>, vector<1x1x128x128xf32>
    %174 = vector.shape_cast %173 : vector<1x1x128x128xf32> to vector<128x128xf32>
    %cst_258 = arith.constant dense<0.000000e+00> : vector<72x128xf32>
    %175 = tpu.matmul %172, %174, %cst_258 {dimension_numbers = #tpu.dot_dimension_numbers<[1], [0], [0], [1], [0, 0, 1, 1], [], []>} : vector<72x128xf32>, vector<128x128xf32>, vector<72x128xf32> -> vector<72x128xf32>
    %176 = arith.addf %164, %175 : vector<72x128xf32>
    %c2_259 = arith.constant 2 : index
    %c1_260 = arith.constant 1 : index
    %c0_261 = arith.constant 0 : index
    %c0_262 = arith.constant 0 : index
    %177 = vector.load %arg10[%c2_259, %c1_260, %c0_261, %c0_262] : memref<5x5x8x128xf32, #tpu.memory_space<vmem>>, vector<3x3x8x128xf32>
    %178 = vector.shape_cast %177 : vector<3x3x8x128xf32> to vector<72x128xf32>
    %c2_263 = arith.constant 2 : index
    %c1_264 = arith.constant 1 : index
    %c0_265 = arith.constant 0 : index
    %c0_266 = arith.constant 0 : index
    %179 = vector.load %arg6[%c2_263, %c1_264, %c0_265, %c0_266] : memref<3x3x128x128xf32, #tpu.memory_space<vmem>>, vector<1x1x128x128xf32>
    %180 = vector.shape_cast %179 : vector<1x1x128x128xf32> to vector<128x128xf32>
    %cst_267 = arith.constant dense<0.000000e+00> : vector<72x128xf32>
    %181 = tpu.matmul %178, %180, %cst_267 {dimension_numbers = #tpu.dot_dimension_numbers<[1], [0], [0], [1], [0, 0, 1, 1], [], []>} : vector<72x128xf32>, vector<128x128xf32>, vector<72x128xf32> -> vector<72x128xf32>
    %182 = arith.addf %170, %181 : vector<72x128xf32>
    %c2_268 = arith.constant 2 : index
    %c2_269 = arith.constant 2 : index
    %c0_270 = arith.constant 0 : index
    %c0_271 = arith.constant 0 : index
    %183 = vector.load %arg10[%c2_268, %c2_269, %c0_270, %c0_271] : memref<5x5x8x128xf32, #tpu.memory_space<vmem>>, vector<3x3x8x128xf32>
    %184 = vector.shape_cast %183 : vector<3x3x8x128xf32> to vector<72x128xf32>
    %c2_272 = arith.constant 2 : index
    %c2_273 = arith.constant 2 : index
    %c0_274 = arith.constant 0 : index
    %c0_275 = arith.constant 0 : index
    %185 = vector.load %arg6[%c2_272, %c2_273, %c0_274, %c0_275] : memref<3x3x128x128xf32, #tpu.memory_space<vmem>>, vector<1x1x128x128xf32>
    %186 = vector.shape_cast %185 : vector<1x1x128x128xf32> to vector<128x128xf32>
    %cst_276 = arith.constant dense<0.000000e+00> : vector<72x128xf32>
    %187 = tpu.matmul %184, %186, %cst_276 {dimension_numbers = #tpu.dot_dimension_numbers<[1], [0], [0], [1], [0, 0, 1, 1], [], []>} : vector<72x128xf32>, vector<128x128xf32>, vector<72x128xf32> -> vector<72x128xf32>
    %188 = arith.addf %176, %187 : vector<72x128xf32>
    %189 = arith.addf %188, %182 : vector<72x128xf32>
    %cst_277 = arith.constant 0.000000e+00 : f32
    %190 = vector.broadcast %cst_277 : f32 to vector<72x128xf32>
    %191 = arith.maximumf %189, %190 : vector<72x128xf32>
    %c0_278 = arith.constant 0 : index
    %c0_279 = arith.constant 0 : index
    %192 = vector.load %arg8[%c0_278, %c0_279] : memref<72x128xf32, #tpu.memory_space<vmem>>, vector<72x128xf32>
    tpu.vector_store %arg8[%c0_278, %c0_279], %191 {strides = array<i32>} : memref<72x128xf32, #tpu.memory_space<vmem>>, vector<72x128xf32>,
    return
  }
  func.func @transform_0(%arg0: i32) -> (i32, i32) {
    %c0_i32 = arith.constant 0 : i32
    %c0_i32_0 = arith.constant 0 : i32
    return %arg0, %c0_i32 : i32, i32
  }
  func.func @transform_1(%arg0: i32) -> (i32, i32) {
    %c0_i32 = arith.constant 0 : i32
    %c0_i32_0 = arith.constant 0 : i32
    %c0_i32_1 = arith.constant 0 : i32
    return %c0_i32, %c0_i32_0 : i32, i32
  }
  func.func @transform_2(%arg0: i32) -> (i32, i32) {
    %c0_i32 = arith.constant 0 : i32
    %c0_i32_0 = arith.constant 0 : i32
    %c0_i32_1 = arith.constant 0 : i32
    return %c0_i32, %c0_i32_0 : i32, i32
  }
  func.func @transform_3(%arg0: i32) -> (i32, i32, i32, i32) {
    %c0_i32 = arith.constant 0 : i32
    %c0_i32_0 = arith.constant 0 : i32
    %c0_i32_1 = arith.constant 0 : i32
    %c0_i32_2 = arith.constant 0 : i32
    %c0_i32_3 = arith.constant 0 : i32
    return %c0_i32, %c0_i32_0, %c0_i32_1, %c0_i32_2 : i32, i32, i32, i32
  }
  func.func @transform_4(%arg0: i32) -> (i32, i32) {
    %c0_i32 = arith.constant 0 : i32
    %c0_i32_0 = arith.constant 0 : i32
    %c0_i32_1 = arith.constant 0 : i32
    return %c0_i32, %c0_i32_0 : i32, i32
  }
  func.func @transform_5(%arg0: i32) -> (i32, i32, i32, i32) {
    %c0_i32 = arith.constant 0 : i32
    %c0_i32_0 = arith.constant 0 : i32
    %c0_i32_1 = arith.constant 0 : i32
    %c0_i32_2 = arith.constant 0 : i32
    %c0_i32_3 = arith.constant 0 : i32
    return %c0_i32, %c0_i32_0, %c0_i32_1, %c0_i32_2 : i32, i32, i32, i32
  }
  func.func @transform_6(%arg0: i32) -> (i32, i32) {
    %c0_i32 = arith.constant 0 : i32
    %c0_i32_0 = arith.constant 0 : i32
    %c0_i32_1 = arith.constant 0 : i32
    return %c0_i32, %c0_i32_0 : i32, i32
  }
  func.func @transform_7(%arg0: i32) -> (i32, i32) {
    %c0_i32 = arith.constant 0 : i32
    %c0_i32_0 = arith.constant 0 : i32
    return %arg0, %c0_i32 : i32, i32
  }
}

</mosaic_0001>

<llo_original>
// kernel: visual_encoder_forward.1
$region0: #{visual_encoder_forward.1}
  #allocation0 [shape = 'u32[]', space=smem, size = 0x4, offset = 0x4, fixed_abs, tag = 'smem constant byte address 0x4 - core index']
  #allocation1 [shape = 'u32[144,128]{1,0:T(1,128)}', space=vmem, size = 0x12000, scoped, tag = 'internal scratch']
  #allocation2 [shape = 'f32[2,6,2,6,8,128]{5,4,3,2,1,0:T(8,128)}', space=vmem, size = 0x90000, scoped, tag = 'scratch operand']
  #allocation3 [shape = 'f32[5,5,8,128]{3,2,1,0:T(8,128)}', space=vmem, size = 0x19000, scoped, tag = 'scratch operand']
  %s0 = inlined_call_operand.vmem [shape: f32[2304,192], index: 0, kind: input, shape index: {}]
  %s1 = inlined_call_operand.vmem [shape: f32[192,128], index: 1, kind: input, shape index: {}]
  %s2 = inlined_call_operand.vmem [shape: f32[1,128], index: 2, kind: input, shape index: {}]
  %s3 = inlined_call_operand.vmem [shape: f32[4,4,128,128], index: 3, kind: input, shape index: {}]
  %s4 = inlined_call_operand.vmem [shape: f32[1,128], index: 4, kind: input, shape index: {}]
  %s5 = inlined_call_operand.vmem [shape: f32[3,3,128,128], index: 5, kind: input, shape index: {}]
  %s6 = inlined_call_operand.vmem [shape: f32[1,128], index: 6, kind: input, shape index: {}]
  %s7 = inlined_call_operand.vmem [shape: f32[144,128], index: 7, kind: output, shape index: {}]
  %s8 = sld [smem:[#allocation0]]
  $region61: #{visual_encoder_forward.1} parent=0
    _
  %s10 = ssub.s32 1, %s8
  %s11 = scalar_select 0, %s10, %s8
  loop: start=0, step=1, limit=4
  $region2: #{visual_encoder_forward.1} parent=0 // loop_pre_header
    _
  $region3: #{visual_encoder_forward.1} parent=0 // loop_header
    %s13 = sphi 0, %s17
    %p14 = scmp.ge.s32.totalorder %s13, 4
    %s23 = sphi 0, %s25
    %s26 = sphi 0, %s23
    %s27 = sphi 0, %s26
    %s43 = sphi 0, %s27
    %s47 = sphi 0, %s47
    %s49 = sphi 0, %s47
    %s50 = sphi 0, %s49
    %s64 = sphi 0, %s50
    %s68 = sphi 0, %s68
    %s70 = sphi 0, %s68
    %s71 = sphi 0, %s70
    %s85 = sphi 0, %s71
    %s89 = sphi 0, %s89
    %s91 = sphi 0, %s89
    %s92 = sphi 0, %s91
    %s106 = sphi 0, %s92
    %s110 = sphi 0, %s110
    %s112 = sphi 0, %s110
    %s113 = sphi 0, %s112
    %s127 = sphi 0, %s113
    %s131 = sphi 0, %s131
    %s133 = sphi 0, %s131
    %s134 = sphi 0, %s133
    %s148 = sphi 0, %s134
    %s152 = sphi 0, %s152
    %s154 = sphi 0, %s152
    %s155 = sphi 0, %s154
    %s169 = sphi 0, %s155
    %s175 = sphi 0, %s177
    %s178 = sphi 0, %s175
    %s179 = sphi 0, %s178
    %s195 = sphi 0, %s179
  $region4: #{visual_encoder_forward.1} parent=0 // loop_header_branch
    %16 = sbr.rel (%p14) target = $region8
  $region5: #{visual_encoder_forward.1} parent=0 // loop_body
    %s18 = ssub.s32 %s13, 1
    %s19 = ssub.s32 %s13, 2
    %s20 = sadd.s32 %s13, 1
    %s21 = ssub.s32 %s13, %s20
    %p22 = scmp.eq.s32.totalorder %s21, 0
    %s24 = sadd.s32 %s23, 1
    %s25 = scalar_select %p22, %s23, %s24
    %p28 = pneg %p22
    %p29 = scmp.eq.s32.totalorder %s13, 1
    %p30 = por %p28, %p29
    %p31 = scmp.ne.s32.totalorder %s23, %s26
    %p32 = scmp.eq.s32.totalorder %s13, 0
    %p33 = por %p31, %p32
    %p34 = scmp.ne.s32.totalorder %s23, %s26
    %p35 = scmp.eq.s32.totalorder %s18, 1
    %p36 = por %p34, %p35
    %p37 = scmp.ne.s32.totalorder %s26, %s27
    %p38 = scmp.eq.s32.totalorder %s18, 0
    %p39 = por %p37, %p38
    %p40 = scmp.ne.s32.totalorder %s26, %s27
    %p41 = scmp.eq.s32.totalorder %s19, 1
    %p42 = por %p40, %p41
    %p44 = scmp.ne.s32.totalorder %s27, %s43
    %p45 = scmp.eq.s32.totalorder %s19, 0
    %p46 = por %p44, %p45
    %s48 = sadd.s32 %s47, 1
    %p51 = scmp.eq.s32.totalorder %s13, 1
    %p52 = scmp.ne.s32.totalorder %s47, %s49
    %p53 = scmp.eq.s32.totalorder %s13, 0
    %p54 = por %p52, %p53
    %p55 = scmp.ne.s32.totalorder %s47, %s49
    %p56 = scmp.eq.s32.totalorder %s18, 1
    %p57 = por %p55, %p56
    %p58 = scmp.ne.s32.totalorder %s49, %s50
    %p59 = scmp.eq.s32.totalorder %s18, 0
    %p60 = por %p58, %p59
    %p61 = scmp.ne.s32.totalorder %s49, %s50
    %p62 = scmp.eq.s32.totalorder %s19, 1
    %p63 = por %p61, %p62
    %p65 = scmp.ne.s32.totalorder %s50, %s64
    %p66 = scmp.eq.s32.totalorder %s19, 0
    %p67 = por %p65, %p66
    %s69 = sadd.s32 %s68, 1
    %p72 = scmp.eq.s32.totalorder %s13, 1
    %p73 = scmp.ne.s32.totalorder %s68, %s70
    %p74 = scmp.eq.s32.totalorder %s13, 0
    %p75 = por %p73, %p74
    %p76 = scmp.ne.s32.totalorder %s68, %s70
    %p77 = scmp.eq.s32.totalorder %s18, 1
    %p78 = por %p76, %p77
    %p79 = scmp.ne.s32.totalorder %s70, %s71
    %p80 = scmp.eq.s32.totalorder %s18, 0
    %p81 = por %p79, %p80
    %p82 = scmp.ne.s32.totalorder %s70, %s71
    %p83 = scmp.eq.s32.totalorder %s19, 1
    %p84 = por %p82, %p83
    %p86 = scmp.ne.s32.totalorder %s71, %s85
    %p87 = scmp.eq.s32.totalorder %s19, 0
    %p88 = por %p86, %p87
    %s90 = sadd.s32 %s89, 1
    %p93 = scmp.eq.s32.totalorder %s13, 1
    %p94 = scmp.ne.s32.totalorder %s89, %s91
    %p95 = scmp.eq.s32.totalorder %s13, 0
    %p96 = por %p94, %p95
    %p97 = scmp.ne.s32.totalorder %s89, %s91
    %p98 = scmp.eq.s32.totalorder %s18, 1
    %p99 = por %p97, %p98
    %p100 = scmp.ne.s32.totalorder %s91, %s92
    %p101 = scmp.eq.s32.totalorder %s18, 0
    %p102 = por %p100, %p101
    %p103 = scmp.ne.s32.totalorder %s91, %s92
    %p104 = scmp.eq.s32.totalorder %s19, 1
    %p105 = por %p103, %p104
    %p107 = scmp.ne.s32.totalorder %s92, %s106
    %p108 = scmp.eq.s32.totalorder %s19, 0
    %p109 = por %p107, %p108
    %s111 = sadd.s32 %s110, 1
    %p114 = scmp.eq.s32.totalorder %s13, 1
    %p115 = scmp.ne.s32.totalorder %s110, %s112
    %p116 = scmp.eq.s32.totalorder %s13, 0
    %p117 = por %p115, %p116
    %p118 = scmp.ne.s32.totalorder %s110, %s112
    %p119 = scmp.eq.s32.totalorder %s18, 1
    %p120 = por %p118, %p119
    %p121 = scmp.ne.s32.totalorder %s112, %s113
    %p122 = scmp.eq.s32.totalorder %s18, 0
    %p123 = por %p121, %p122
    %p124 = scmp.ne.s32.totalorder %s112, %s113
    %p125 = scmp.eq.s32.totalorder %s19, 1
    %p126 = por %p124, %p125
    %p128 = scmp.ne.s32.totalorder %s113, %s127
    %p129 = scmp.eq.s32.totalorder %s19, 0
    %p130 = por %p128, %p129
    %s132 = sadd.s32 %s131, 1
    %p135 = scmp.eq.s32.totalorder %s13, 1
    %p136 = scmp.ne.s32.totalorder %s131, %s133
    %p137 = scmp.eq.s32.totalorder %s13, 0
    %p138 = por %p136, %p137
    %p139 = scmp.ne.s32.totalorder %s131, %s133
    %p140 = scmp.eq.s32.totalorder %s18, 1
    %p141 = por %p139, %p140
    %p142 = scmp.ne.s32.totalorder %s133, %s134
    %p143 = scmp.eq.s32.totalorder %s18, 0
    %p144 = por %p142, %p143
    %p145 = scmp.ne.s32.totalorder %s133, %s134
    %p146 = scmp.eq.s32.totalorder %s19, 1
    %p147 = por %p145, %p146
    %p149 = scmp.ne.s32.totalorder %s134, %s148
    %p150 = scmp.eq.s32.totalorder %s19, 0
    %p151 = por %p149, %p150
    %s153 = sadd.s32 %s152, 1
    %p156 = scmp.eq.s32.totalorder %s13, 1
    %p157 = scmp.ne.s32.totalorder %s152, %s154
    %p158 = scmp.eq.s32.totalorder %s13, 0
    %p159 = por %p157, %p158
    %p160 = scmp.ne.s32.totalorder %s152, %s154
    %p161 = scmp.eq.s32.totalorder %s18, 1
    %p162 = por %p160, %p161
    %p163 = scmp.ne.s32.totalorder %s154, %s155
    %p164 = scmp.eq.s32.totalorder %s18, 0
    %p165 = por %p163, %p164
    %p166 = scmp.ne.s32.totalorder %s154, %s155
    %p167 = scmp.eq.s32.totalorder %s19, 1
    %p168 = por %p166, %p167
    %p170 = scmp.ne.s32.totalorder %s155, %s169
    %p171 = scmp.eq.s32.totalorder %s19, 0
    %p172 = por %p170, %p171
    %s173 = ssub.s32 %s13, %s20
    %p174 = scmp.eq.s32.totalorder %s173, 0
    %s176 = sadd.s32 %s175, 1
    %s177 = scalar_select %p174, %s175, %s176
    %p180 = pneg %p174
    %p181 = scmp.eq.s32.totalorder %s13, 1
    %p182 = por %p180, %p181
    %p183 = scmp.ne.s32.totalorder %s175, %s178
    %p184 = scmp.eq.s32.totalorder %s13, 0
    %p185 = por %p183, %p184
    %p186 = scmp.ne.s32.totalorder %s175, %s178
    %p187 = scmp.eq.s32.totalorder %s18, 1
    %p188 = por %p186, %p187
    %p189 = scmp.ne.s32.totalorder %s178, %s179
    %p190 = scmp.eq.s32.totalorder %s18, 0
    %p191 = por %p189, %p190
    %p192 = scmp.ne.s32.totalorder %s178, %s179
    %p193 = scmp.eq.s32.totalorder %s19, 1
    %p194 = por %p192, %p193
    %p196 = scmp.ne.s32.totalorder %s179, %s195
    %p197 = scmp.eq.s32.totalorder %s19, 0
    %p198 = por %p196, %p197
    %p199 = scmp.le.s32.totalorder 1, %s13
    %p200 = scmp.lt.s32.totalorder %s13, 3
    %p201 = pnand %p199, %p200
    %p202 = pneg %p201
    // Predicated region
    $region9: #{visual_encoder_forward.1} parent=5 // pred_check
      _
    $region10: #{visual_encoder_forward.1} parent=5 // pred_check_branch
      %204 = sbr.rel (%p201) target = $region12
    $region11: #{visual_encoder_forward.1} parent=5 // pred_region
      %s205 = ssub.s32 %s13, 1
      // Predicated region
      $region13: #{visual_encoder_forward.1} parent=11 // pred_check
        %p206 = pneg %p60
      $region14: #{visual_encoder_forward.1} parent=11 // pred_check_branch
        %208 = sbr.rel (%p206) target = $region16
      $region15: #{visual_encoder_forward.1} parent=11 // pred_region
        _
      $region16: #{visual_encoder_forward.1} parent=11 // pred_fallthru
        _
      // Predicated region
      $region17: #{visual_encoder_forward.1} parent=11 // pred_check
        %p209 = pneg %p81
      $region18: #{visual_encoder_forward.1} parent=11 // pred_check_branch
        %211 = sbr.rel (%p209) target = $region20
      $region19: #{visual_encoder_forward.1} parent=11 // pred_region
        _
      $region20: #{visual_encoder_forward.1} parent=11 // pred_fallthru
        _
      // Predicated region
      $region21: #{visual_encoder_forward.1} parent=11 // pred_check
        %p212 = pneg %p102
      $region22: #{visual_encoder_forward.1} parent=11 // pred_check_branch
        %214 = sbr.rel (%p212) target = $region24
      $region23: #{visual_encoder_forward.1} parent=11 // pred_region
        _
      $region24: #{visual_encoder_forward.1} parent=11 // pred_fallthru
        _
      // Predicated region
      $region25: #{visual_encoder_forward.1} parent=11 // pred_check
        %p215 = pneg %p123
      $region26: #{visual_encoder_forward.1} parent=11 // pred_check_branch
        %217 = sbr.rel (%p215) target = $region28
      $region27: #{visual_encoder_forward.1} parent=11 // pred_region
        _
      $region28: #{visual_encoder_forward.1} parent=11 // pred_fallthru
        _
      // Predicated region
      $region29: #{visual_encoder_forward.1} parent=11 // pred_check
        %p218 = pneg %p144
      $region30: #{visual_encoder_forward.1} parent=11 // pred_check_branch
        %220 = sbr.rel (%p218) target = $region32
      $region31: #{visual_encoder_forward.1} parent=11 // pred_region
        _
      $region32: #{visual_encoder_forward.1} parent=11 // pred_fallthru
        _
      // Predicated region
      $region33: #{visual_encoder_forward.1} parent=11 // pred_check
        %p221 = pneg %p165
      $region34: #{visual_encoder_forward.1} parent=11 // pred_check_branch
        %223 = sbr.rel (%p221) target = $region36
      $region35: #{visual_encoder_forward.1} parent=11 // pred_region
        _
      $region36: #{visual_encoder_forward.1} parent=11 // pred_fallthru
        _
    $region12: #{visual_encoder_forward.1} parent=5 // pred_fallthru
      _
    %p224 = scmp.lt.s32.totalorder %s13, 2
    // Predicated region
    $region37: #{visual_encoder_forward.1} parent=5 // pred_check
      %p225 = pneg %p224
    $region38: #{visual_encoder_forward.1} parent=5 // pred_check_branch
      %227 = sbr.rel (%p225) target = $region40
    $region39: #{visual_encoder_forward.1} parent=5 // pred_region
      // Predicated region
      $region41: #{visual_encoder_forward.1} parent=39 // pred_check
        %p228 = pneg %p33
      $region42: #{visual_encoder_forward.1} parent=39 // pred_check_branch
        %230 = sbr.rel (%p228) target = $region44
      $region43: #{visual_encoder_forward.1} parent=39 // pred_region
        %s231 = smul.u32 144, %s13
        %p232 = scmp.lt.s32.totalorder %s231, 287
        %s233 = scalar_select %p232, %s231, 287
        %s234 = smul.addr %s233, 2
        %s235 = smul.addr %s234, 8
        %s236 = scalar_lea.vmem %s0, %s235
        %s237 = smul.u32 144, %s13
      $region44: #{visual_encoder_forward.1} parent=39 // pred_fallthru
        _
    $region40: #{visual_encoder_forward.1} parent=5 // pred_fallthru
      _
    %p238 = scmp.le.s32.totalorder 1, %s13
    %p239 = scmp.lt.s32.totalorder %s13, 3
    %p240 = pnand %p238, %p239
    %p241 = pneg %p240
    // Predicated region
    $region45: #{visual_encoder_forward.1} parent=5 // pred_check
      _
    $region46: #{visual_encoder_forward.1} parent=5 // pred_check_branch
      %243 = sbr.rel (%p240) target = $region48
    $region47: #{visual_encoder_forward.1} parent=5 // pred_region
      %s244 = ssub.s32 %s13, 1
      %s245 = smul.u32 144, %s18
      %p246 = scmp.lt.s32.totalorder %s245, 287
      %s247 = scalar_select %p246, %s245, 287
      %s248 = smul.addr %s247, 2
      %s249 = smul.addr %s248, 8
      %s250 = scalar_lea.vmem %s0, %s249
      %p251 = pneg %p39
      %p252 = pneg %p36
      %p253 = pneg %p60
      %p254 = pneg %p57
      %p255 = pneg %p81
      %p256 = pneg %p78
      %p257 = pneg %p102
      %p258 = pneg %p99
      %p259 = pneg %p123
      %p260 = pneg %p120
      %p261 = pneg %p144
      %p262 = pneg %p141
      %p263 = pneg %p165
      %p264 = pneg %p162
      %p265 = pneg %p191
      %p266 = pneg %p188
      %s267 = smul.u32 9, %s18
      %p268 = scmp.lt.s32.totalorder %s267, 17
      %s269 = scalar_select %p268, %s267, 17
      %s270 = smul.addr %s269, 8
      %s271 = scalar_lea.vmem %s7, %s270
      %s272 = smul.u32 144, %s18
      %p273 = scmp.lt.s32.totalorder %s272, 287
      %s274 = scalar_select %p273, %s272, 287
      %s275 = smul.addr %s274, 2
      %s276 = smul.addr %s275, 8
      %s277 = scalar_lea.vmem %s0, %s276
      %s278 = smul.u32 144, %s18
      %s279 = smul.u32 9, %s18
      %p280 = scmp.lt.s32.totalorder %s279, 17
      %s281 = scalar_select %p280, %s279, 17
      %s282 = smul.addr %s281, 8
      %s283 = scalar_lea.vmem %s7, %s282
      %s284 = smul.u32 9, %s18
      %v285 = vld [vmem:[%s277] sm:$0xff]
      %v286 = vld [vmem:[%s277 + $0x8] sm:$0xff]
      %v287 = vld [vmem:[%s277 + $0x10] sm:$0xff]
      %v288 = vld [vmem:[%s277 + $0x18] sm:$0xff]
      %v289 = vld [vmem:[%s277 + $0x20] sm:$0xff]
      %v290 = vld [vmem:[%s277 + $0x28] sm:$0xff]
      %v291 = vld [vmem:[%s277 + $0x30] sm:$0xff]
      %v292 = vld [vmem:[%s277 + $0x38] sm:$0xff]
      %v293 = vld [vmem:[%s277 + $0x40] sm:$0xff]
      %v294 = vld [vmem:[%s277 + $0x48] sm:$0xff]
      %v295 = vld [vmem:[%s277 + $0x50] sm:$0xff]
      %v296 = vld [vmem:[%s277 + $0x58] sm:$0xff]
      %v297 = vld [vmem:[%s277 + $0x60] sm:$0xff]
      %v298 = vld [vmem:[%s277 + $0x68] sm:$0xff]
      %v299 = vld [vmem:[%s277 + $0x70] sm:$0xff]
      %v300 = vld [vmem:[%s277 + $0x78] sm:$0xff]
      %v301 = vld [vmem:[%s277 + $0x80] sm:$0xff]
      %v302 = vld [vmem:[%s277 + $0x88] sm:$0xff]
      %v303 = vld [vmem:[%s277 + $0x90] sm:$0xff]
      %v304 = vld [vmem:[%s277 + $0x98] sm:$0xff]
      %v305 = vld [vmem:[%s277 + $0xa0] sm:$0xff]
      %v306 = vld [vmem:[%s277 + $0xa8] sm:$0xff]
      %v307 = vld [vmem:[%s277 + $0xb0] sm:$0xff]
      %v308 = vld [vmem:[%s277 + $0xb8] sm:$0xff]
      %v309 = vld [vmem:[%s277 + $0xc0] sm:$0xff]
      %v310 = vld [vmem:[%s277 + $0xc8] sm:$0xff]
      %v311 = vld [vmem:[%s277 + $0xd0] sm:$0xff]
      %v312 = vld [vmem:[%s277 + $0xd8] sm:$0xff]
      %v313 = vld [vmem:[%s277 + $0xe0] sm:$0xff]
      %v314 = vld [vmem:[%s277 + $0xe8] sm:$0xff]
      %v315 = vld [vmem:[%s277 + $0xf0] sm:$0xff]
      %v316 = vld [vmem:[%s277 + $0xf8] sm:$0xff]
      %v317 = vld [vmem:[%s277 + $0x100] sm:$0xff]
      %v318 = vld [vmem:[%s277 + $0x108] sm:$0xff]
      %v319 = vld [vmem:[%s277 + $0x110] sm:$0xff]
      %v320 = vld [vmem:[%s277 + $0x118] sm:$0xff]
      %v321 = vld [vmem:[%s277 + $0x120] sm:$0xff]
      %v322 = vld [vmem:[%s277 + $0x128] sm:$0xff]
      %v323 = vld [vmem:[%s277 + $0x130] sm:$0xff]
      %v324 = vld [vmem:[%s277 + $0x138] sm:$0xff]
      %v325 = vld [vmem:[%s277 + $0x140] sm:$0xff]
      %v326 = vld [vmem:[%s277 + $0x148] sm:$0xff]
      %v327 = vld [vmem:[%s277 + $0x150] sm:$0xff]
      %v328 = vld [vmem:[%s277 + $0x158] sm:$0xff]
      %v329 = vld [vmem:[%s277 + $0x160] sm:$0xff]
      %v330 = vld [vmem:[%s277 + $0x168] sm:$0xff]
      %v331 = vld [vmem:[%s277 + $0x170] sm:$0xff]
      %v332 = vld [vmem:[%s277 + $0x178] sm:$0xff]
      %v333 = vld [vmem:[%s277 + $0x180] sm:$0xff]
      %v334 = vld [vmem:[%s277 + $0x188] sm:$0xff]
      %v335 = vld [vmem:[%s277 + $0x190] sm:$0xff]
      %v336 = vld [vmem:[%s277 + $0x198] sm:$0xff]
      %v337 = vld [vmem:[%s277 + $0x1a0] sm:$0xff]
      %v338 = vld [vmem:[%s277 + $0x1a8] sm:$0xff]
      %v339 = vld [vmem:[%s277 + $0x1b0] sm:$0xff]
      %v340 = vld [vmem:[%s277 + $0x1b8] sm:$0xff]
      %v341 = vld [vmem:[%s277 + $0x1c0] sm:$0xff]
      %v342 = vld [vmem:[%s277 + $0x1c8] sm:$0xff]
      %v343 = vld [vmem:[%s277 + $0x1d0] sm:$0xff]
      %v344 = vld [vmem:[%s277 + $0x1d8] sm:$0xff]
      %v345 = vld [vmem:[%s277 + $0x1e0] sm:$0xff]
      %v346 = vld [vmem:[%s277 + $0x1e8] sm:$0xff]
      %v347 = vld [vmem:[%s277 + $0x1f0] sm:$0xff]
      %v348 = vld [vmem:[%s277 + $0x1f8] sm:$0xff]
      %v349 = vld [vmem:[%s277 + $0x200] sm:$0xff]
      %v350 = vld [vmem:[%s277 + $0x208] sm:$0xff]
      %v351 = vld [vmem:[%s277 + $0x210] sm:$0xff]
      %v352 = vld [vmem:[%s277 + $0x218] sm:$0xff]
      %v353 = vld [vmem:[%s277 + $0x220] sm:$0xff]
      %v354 = vld [vmem:[%s277 + $0x228] sm:$0xff]
      %v355 = vld [vmem:[%s277 + $0x230] sm:$0xff]
      %v356 = vld [vmem:[%s277 + $0x238] sm:$0xff]
      %v357 = vld [vmem:[%s277 + $0x240] sm:$0xff]
      %v358 = vld [vmem:[%s277 + $0x248] sm:$0xff]
      %v359 = vld [vmem:[%s277 + $0x250] sm:$0xff]
      %v360 = vld [vmem:[%s277 + $0x258] sm:$0xff]
      %v361 = vld [vmem:[%s277 + $0x260] sm:$0xff]
      %v362 = vld [vmem:[%s277 + $0x268] sm:$0xff]
      %v363 = vld [vmem:[%s277 + $0x270] sm:$0xff]
      %v364 = vld [vmem:[%s277 + $0x278] sm:$0xff]
      %v365 = vld [vmem:[%s277 + $0x280] sm:$0xff]
      %v366 = vld [vmem:[%s277 + $0x288] sm:$0xff]
      %v367 = vld [vmem:[%s277 + $0x290] sm:$0xff]
      %v368 = vld [vmem:[%s277 + $0x298] sm:$0xff]
      %v369 = vld [vmem:[%s277 + $0x2a0] sm:$0xff]
      %v370 = vld [vmem:[%s277 + $0x2a8] sm:$0xff]
      %v371 = vld [vmem:[%s277 + $0x2b0] sm:$0xff]
      %v372 = vld [vmem:[%s277 + $0x2b8] sm:$0xff]
      %v373 = vld [vmem:[%s277 + $0x2c0] sm:$0xff]
      %v374 = vld [vmem:[%s277 + $0x2c8] sm:$0xff]
      %v375 = vld [vmem:[%s277 + $0x2d0] sm:$0xff]
      %v376 = vld [vmem:[%s277 + $0x2d8] sm:$0xff]
      %v377 = vld [vmem:[%s277 + $0x2e0] sm:$0xff]
      %v378 = vld [vmem:[%s277 + $0x2e8] sm:$0xff]
      %v379 = vld [vmem:[%s277 + $0x2f0] sm:$0xff]
      %v380 = vld [vmem:[%s277 + $0x2f8] sm:$0xff]
      %v381 = vld [vmem:[%s277 + $0x300] sm:$0xff]
      %v382 = vld [vmem:[%s277 + $0x308] sm:$0xff]
      %v383 = vld [vmem:[%s277 + $0x310] sm:$0xff]
      %v384 = vld [vmem:[%s277 + $0x318] sm:$0xff]
      %v385 = vld [vmem:[%s277 + $0x320] sm:$0xff]
      %v386 = vld [vmem:[%s277 + $0x328] sm:$0xff]
      %v387 = vld [vmem:[%s277 + $0x330] sm:$0xff]
      %v388 = vld [vmem:[%s277 + $0x338] sm:$0xff]
      %v389 = vld [vmem:[%s277 + $0x340] sm:$0xff]
      %v390 = vld [vmem:[%s277 + $0x348] sm:$0xff]
      %v391 = vld [vmem:[%s277 + $0x350] sm:$0xff]
      %v392 = vld [vmem:[%s277 + $0x358] sm:$0xff]
      %v393 = vld [vmem:[%s277 + $0x360] sm:$0xff]
      %v394 = vld [vmem:[%s277 + $0x368] sm:$0xff]
      %v395 = vld [vmem:[%s277 + $0x370] sm:$0xff]
      %v396 = vld [vmem:[%s277 + $0x378] sm:$0xff]
      %v397 = vld [vmem:[%s277 + $0x380] sm:$0xff]
      %v398 = vld [vmem:[%s277 + $0x388] sm:$0xff]
      %v399 = vld [vmem:[%s277 + $0x390] sm:$0xff]
      %v400 = vld [vmem:[%s277 + $0x398] sm:$0xff]
      %v401 = vld [vmem:[%s277 + $0x3a0] sm:$0xff]
      %v402 = vld [vmem:[%s277 + $0x3a8] sm:$0xff]
      %v403 = vld [vmem:[%s277 + $0x3b0] sm:$0xff]
      %v404 = vld [vmem:[%s277 + $0x3b8] sm:$0xff]
      %v405 = vld [vmem:[%s277 + $0x3c0] sm:$0xff]
      %v406 = vld [vmem:[%s277 + $0x3c8] sm:$0xff]
      %v407 = vld [vmem:[%s277 + $0x3d0] sm:$0xff]
      %v408 = vld [vmem:[%s277 + $0x3d8] sm:$0xff]
      %v409 = vld [vmem:[%s277 + $0x3e0] sm:$0xff]
      %v410 = vld [vmem:[%s277 + $0x3e8] sm:$0xff]
      %v411 = vld [vmem:[%s277 + $0x3f0] sm:$0xff]
      %v412 = vld [vmem:[%s277 + $0x3f8] sm:$0xff]
      %v413 = vld [vmem:[%s277 + $0x400] sm:$0xff]
      %v414 = vld [vmem:[%s277 + $0x408] sm:$0xff]
      %v415 = vld [vmem:[%s277 + $0x410] sm:$0xff]
      %v416 = vld [vmem:[%s277 + $0x418] sm:$0xff]
      %v417 = vld [vmem:[%s277 + $0x420] sm:$0xff]
      %v418 = vld [vmem:[%s277 + $0x428] sm:$0xff]
      %v419 = vld [vmem:[%s277 + $0x430] sm:$0xff]
      %v420 = vld [vmem:[%s277 + $0x438] sm:$0xff]
      %v421 = vld [vmem:[%s277 + $0x440] sm:$0xff]
      %v422 = vld [vmem:[%s277 + $0x448] sm:$0xff]
      %v423 = vld [vmem:[%s277 + $0x450] sm:$0xff]
      %v424 = vld [vmem:[%s277 + $0x458] sm:$0xff]
      %v425 = vld [vmem:[%s277 + $0x460] sm:$0xff]
      %v426 = vld [vmem:[%s277 + $0x468] sm:$0xff]
      %v427 = vld [vmem:[%s277 + $0x470] sm:$0xff]
      %v428 = vld [vmem:[%s277 + $0x478] sm:$0xff]
      %v429 = vld [vmem:[%s277 + $0x480] sm:$0xff]
      %v430 = vld [vmem:[%s277 + $0x488] sm:$0xff]
      %v431 = vld [vmem:[%s277 + $0x490] sm:$0xff]
      %v432 = vld [vmem:[%s277 + $0x498] sm:$0xff]
      %v433 = vld [vmem:[%s277 + $0x4a0] sm:$0xff]
      %v434 = vld [vmem:[%s277 + $0x4a8] sm:$0xff]
      %v435 = vld [vmem:[%s277 + $0x4b0] sm:$0xff]
      %v436 = vld [vmem:[%s277 + $0x4b8] sm:$0xff]
      %v437 = vld [vmem:[%s277 + $0x4c0] sm:$0xff]
      %v438 = vld [vmem:[%s277 + $0x4c8] sm:$0xff]
      %v439 = vld [vmem:[%s277 + $0x4d0] sm:$0xff]
      %v440 = vld [vmem:[%s277 + $0x4d8] sm:$0xff]
      %v441 = vld [vmem:[%s277 + $0x4e0] sm:$0xff]
      %v442 = vld [vmem:[%s277 + $0x4e8] sm:$0xff]
      %v443 = vld [vmem:[%s277 + $0x4f0] sm:$0xff]
      %v444 = vld [vmem:[%s277 + $0x4f8] sm:$0xff]
      %v445 = vld [vmem:[%s277 + $0x500] sm:$0xff]
      %v446 = vld [vmem:[%s277 + $0x508] sm:$0xff]
      %v447 = vld [vmem:[%s277 + $0x510] sm:$0xff]
      %v448 = vld [vmem:[%s277 + $0x518] sm:$0xff]
      %v449 = vld [vmem:[%s277 + $0x520] sm:$0xff]
      %v450 = vld [vmem:[%s277 + $0x528] sm:$0xff]
      %v451 = vld [vmem:[%s277 + $0x530] sm:$0xff]
      %v452 = vld [vmem:[%s277 + $0x538] sm:$0xff]
      %v453 = vld [vmem:[%s277 + $0x540] sm:$0xff]
      %v454 = vld [vmem:[%s277 + $0x548] sm:$0xff]
      %v455 = vld [vmem:[%s277 + $0x550] sm:$0xff]
      %v456 = vld [vmem:[%s277 + $0x558] sm:$0xff]
      %v457 = vld [vmem:[%s277 + $0x560] sm:$0xff]
      %v458 = vld [vmem:[%s277 + $0x568] sm:$0xff]
      %v459 = vld [vmem:[%s277 + $0x570] sm:$0xff]
      %v460 = vld [vmem:[%s277 + $0x578] sm:$0xff]
      %v461 = vld [vmem:[%s277 + $0x580] sm:$0xff]
      %v462 = vld [vmem:[%s277 + $0x588] sm:$0xff]
      %v463 = vld [vmem:[%s277 + $0x590] sm:$0xff]
      %v464 = vld [vmem:[%s277 + $0x598] sm:$0xff]
      %v465 = vld [vmem:[%s277 + $0x5a0] sm:$0xff]
      %v466 = vld [vmem:[%s277 + $0x5a8] sm:$0xff]
      %v467 = vld [vmem:[%s277 + $0x5b0] sm:$0xff]
      %v468 = vld [vmem:[%s277 + $0x5b8] sm:$0xff]
      %v469 = vld [vmem:[%s277 + $0x5c0] sm:$0xff]
      %v470 = vld [vmem:[%s277 + $0x5c8] sm:$0xff]
      %v471 = vld [vmem:[%s277 + $0x5d0] sm:$0xff]
      %v472 = vld [vmem:[%s277 + $0x5d8] sm:$0xff]
      %v473 = vld [vmem:[%s277 + $0x5e0] sm:$0xff]
      %v474 = vld [vmem:[%s277 + $0x5e8] sm:$0xff]
      %v475 = vld [vmem:[%s277 + $0x5f0] sm:$0xff]
      %v476 = vld [vmem:[%s277 + $0x5f8] sm:$0xff]
      %v477 = vld [vmem:[%s277 + $0x600] sm:$0xff]
      %v478 = vld [vmem:[%s277 + $0x608] sm:$0xff]
      %v479 = vld [vmem:[%s277 + $0x610] sm:$0xff]
      %v480 = vld [vmem:[%s277 + $0x618] sm:$0xff]
      %v481 = vld [vmem:[%s277 + $0x620] sm:$0xff]
      %v482 = vld [vmem:[%s277 + $0x628] sm:$0xff]
      %v483 = vld [vmem:[%s277 + $0x630] sm:$0xff]
      %v484 = vld [vmem:[%s277 + $0x638] sm:$0xff]
      %v485 = vld [vmem:[%s277 + $0x640] sm:$0xff]
      %v486 = vld [vmem:[%s277 + $0x648] sm:$0xff]
      %v487 = vld [vmem:[%s277 + $0x650] sm:$0xff]
      %v488 = vld [vmem:[%s277 + $0x658] sm:$0xff]
      %v489 = vld [vmem:[%s277 + $0x660] sm:$0xff]
      %v490 = vld [vmem:[%s277 + $0x668] sm:$0xff]
      %v491 = vld [vmem:[%s277 + $0x670] sm:$0xff]
      %v492 = vld [vmem:[%s277 + $0x678] sm:$0xff]
      %v493 = vld [vmem:[%s277 + $0x680] sm:$0xff]
      %v494 = vld [vmem:[%s277 + $0x688] sm:$0xff]
      %v495 = vld [vmem:[%s277 + $0x690] sm:$0xff]
      %v496 = vld [vmem:[%s277 + $0x698] sm:$0xff]
      %v497 = vld [vmem:[%s277 + $0x6a0] sm:$0xff]
      %v498 = vld [vmem:[%s277 + $0x6a8] sm:$0xff]
      %v499 = vld [vmem:[%s277 + $0x6b0] sm:$0xff]
      %v500 = vld [vmem:[%s277 + $0x6b8] sm:$0xff]
      %v501 = vld [vmem:[%s277 + $0x6c0] sm:$0xff]
      %v502 = vld [vmem:[%s277 + $0x6c8] sm:$0xff]
      %v503 = vld [vmem:[%s277 + $0x6d0] sm:$0xff]
      %v504 = vld [vmem:[%s277 + $0x6d8] sm:$0xff]
      %v505 = vld [vmem:[%s277 + $0x6e0] sm:$0xff]
      %v506 = vld [vmem:[%s277 + $0x6e8] sm:$0xff]
      %v507 = vld [vmem:[%s277 + $0x6f0] sm:$0xff]
      %v508 = vld [vmem:[%s277 + $0x6f8] sm:$0xff]
      %v509 = vld [vmem:[%s277 + $0x700] sm:$0xff]
      %v510 = vld [vmem:[%s277 + $0x708] sm:$0xff]
      %v511 = vld [vmem:[%s277 + $0x710] sm:$0xff]
      %v512 = vld [vmem:[%s277 + $0x718] sm:$0xff]
      %v513 = vld [vmem:[%s277 + $0x720] sm:$0xff]
      %v514 = vld [vmem:[%s277 + $0x728] sm:$0xff]
      %v515 = vld [vmem:[%s277 + $0x730] sm:$0xff]
      %v516 = vld [vmem:[%s277 + $0x738] sm:$0xff]
      %v517 = vld [vmem:[%s277 + $0x740] sm:$0xff]
      %v518 = vld [vmem:[%s277 + $0x748] sm:$0xff]
      %v519 = vld [vmem:[%s277 + $0x750] sm:$0xff]
      %v520 = vld [vmem:[%s277 + $0x758] sm:$0xff]
      %v521 = vld [vmem:[%s277 + $0x760] sm:$0xff]
      %v522 = vld [vmem:[%s277 + $0x768] sm:$0xff]
      %v523 = vld [vmem:[%s277 + $0x770] sm:$0xff]
      %v524 = vld [vmem:[%s277 + $0x778] sm:$0xff]
      %v525 = vld [vmem:[%s277 + $0x780] sm:$0xff]
      %v526 = vld [vmem:[%s277 + $0x788] sm:$0xff]
      %v527 = vld [vmem:[%s277 + $0x790] sm:$0xff]
      %v528 = vld [vmem:[%s277 + $0x798] sm:$0xff]
      %v529 = vld [vmem:[%s277 + $0x7a0] sm:$0xff]
      %v530 = vld [vmem:[%s277 + $0x7a8] sm:$0xff]
      %v531 = vld [vmem:[%s277 + $0x7b0] sm:$0xff]
      %v532 = vld [vmem:[%s277 + $0x7b8] sm:$0xff]
      %v533 = vld [vmem:[%s277 + $0x7c0] sm:$0xff]
      %v534 = vld [vmem:[%s277 + $0x7c8] sm:$0xff]
      %v535 = vld [vmem:[%s277 + $0x7d0] sm:$0xff]
      %v536 = vld [vmem:[%s277 + $0x7d8] sm:$0xff]
      %v537 = vld [vmem:[%s277 + $0x7e0] sm:$0xff]
      %v538 = vld [vmem:[%s277 + $0x7e8] sm:$0xff]
      %v539 = vld [vmem:[%s277 + $0x7f0] sm:$0xff]
      %v540 = vld [vmem:[%s277 + $0x7f8] sm:$0xff]
      %v541 = vld [vmem:[%s277 + $0x800] sm:$0xff]
      %v542 = vld [vmem:[%s277 + $0x808] sm:$0xff]
      %v543 = vld [vmem:[%s277 + $0x810] sm:$0xff]
      %v544 = vld [vmem:[%s277 + $0x818] sm:$0xff]
      %v545 = vld [vmem:[%s277 + $0x820] sm:$0xff]
      %v546 = vld [vmem:[%s277 + $0x828] sm:$0xff]
      %v547 = vld [vmem:[%s277 + $0x830] sm:$0xff]
      %v548 = vld [vmem:[%s277 + $0x838] sm:$0xff]
      %v549 = vld [vmem:[%s277 + $0x840] sm:$0xff]
      %v550 = vld [vmem:[%s277 + $0x848] sm:$0xff]
      %v551 = vld [vmem:[%s277 + $0x850] sm:$0xff]
      %v552 = vld [vmem:[%s277 + $0x858] sm:$0xff]
      %v553 = vld [vmem:[%s277 + $0x860] sm:$0xff]
      %v554 = vld [vmem:[%s277 + $0x868] sm:$0xff]
      %v555 = vld [vmem:[%s277 + $0x870] sm:$0xff]
      %v556 = vld [vmem:[%s277 + $0x878] sm:$0xff]
      %v557 = vld [vmem:[%s277 + $0x880] sm:$0xff]
      %v558 = vld [vmem:[%s277 + $0x888] sm:$0xff]
      %v559 = vld [vmem:[%s277 + $0x890] sm:$0xff]
      %v560 = vld [vmem:[%s277 + $0x898] sm:$0xff]
      %v561 = vld [vmem:[%s277 + $0x8a0] sm:$0xff]
      %v562 = vld [vmem:[%s277 + $0x8a8] sm:$0xff]
      %v563 = vld [vmem:[%s277 + $0x8b0] sm:$0xff]
      %v564 = vld [vmem:[%s277 + $0x8b8] sm:$0xff]
      %v565 = vld [vmem:[%s277 + $0x8c0] sm:$0xff]
      %v566 = vld [vmem:[%s277 + $0x8c8] sm:$0xff]
      %v567 = vld [vmem:[%s277 + $0x8d0] sm:$0xff]
      %v568 = vld [vmem:[%s277 + $0x8d8] sm:$0xff]
      %v569 = vld [vmem:[%s277 + $0x8e0] sm:$0xff]
      %v570 = vld [vmem:[%s277 + $0x8e8] sm:$0xff]
      %v571 = vld [vmem:[%s277 + $0x8f0] sm:$0xff]
      %v572 = vld [vmem:[%s277 + $0x8f8] sm:$0xff]
      %v573 = vld [vmem:[%s1] sm:$0xff]
      %v574 = vld [vmem:[%s1 + $0x8] sm:$0xff]
      %v575 = vld [vmem:[%s1 + $0x10] sm:$0xff]
      %v576 = vld [vmem:[%s1 + $0x18] sm:$0xff]
      %v577 = vld [vmem:[%s1 + $0x20] sm:$0xff]
      %v578 = vld [vmem:[%s1 + $0x28] sm:$0xff]
      %v579 = vld [vmem:[%s1 + $0x30] sm:$0xff]
      %v580 = vld [vmem:[%s1 + $0x38] sm:$0xff]
      %v581 = vld [vmem:[%s1 + $0x40] sm:$0xff]
      %v582 = vld [vmem:[%s1 + $0x48] sm:$0xff]
      %v583 = vld [vmem:[%s1 + $0x50] sm:$0xff]
      %v584 = vld [vmem:[%s1 + $0x58] sm:$0xff]
      %v585 = vld [vmem:[%s1 + $0x60] sm:$0xff]
      %v586 = vld [vmem:[%s1 + $0x68] sm:$0xff]
      %v587 = vld [vmem:[%s1 + $0x70] sm:$0xff]
      %v588 = vld [vmem:[%s1 + $0x78] sm:$0xff]
      %v589 = vld [vmem:[%s1 + $0x80] sm:$0xff]
      %v590 = vld [vmem:[%s1 + $0x88] sm:$0xff]
      %v591 = vld [vmem:[%s1 + $0x90] sm:$0xff]
      %v592 = vld [vmem:[%s1 + $0x98] sm:$0xff]
      %v593 = vld [vmem:[%s1 + $0xa0] sm:$0xff]
      %v594 = vld [vmem:[%s1 + $0xa8] sm:$0xff]
      %v595 = vld [vmem:[%s1 + $0xb0] sm:$0xff]
      %v596 = vld [vmem:[%s1 + $0xb8] sm:$0xff]
      %v597 = vld [vmem:[%s2] sm:$0x1]
      %v599 = vlaneseq
      %v600 = vshrl.u32 %v599, 7
      %v601 = vsub.s32 0, %v600
      %v602 = vrot.slane %v597, %v601
      %vm604 = vcmask 523264
      %v606 = vsel %vm604, %v286, 0
      %v609 = vsel %vm604, %v288, 0
      %v612 = vsel %vm604, %v290, 0
      %v615 = vsel %vm604, %v292, 0
      %v618 = vsel %vm604, %v294, 0
      %v621 = vsel %vm604, %v296, 0
      %v624 = vsel %vm604, %v298, 0
      %v627 = vsel %vm604, %v300, 0
      %v630 = vsel %vm604, %v302, 0
      %v633 = vsel %vm604, %v304, 0
      %v636 = vsel %vm604, %v306, 0
      %v639 = vsel %vm604, %v308, 0
      %v642 = vsel %vm604, %v310, 0
      %v645 = vsel %vm604, %v312, 0
      %v648 = vsel %vm604, %v314, 0
      %v651 = vsel %vm604, %v316, 0
      %v654 = vsel %vm604, %v318, 0
      %v657 = vsel %vm604, %v320, 0
      %v660 = vsel %vm604, %v322, 0
      %v663 = vsel %vm604, %v324, 0
      %v666 = vsel %vm604, %v326, 0
      %v669 = vsel %vm604, %v328, 0
      %v672 = vsel %vm604, %v330, 0
      %v675 = vsel %vm604, %v332, 0
      %v678 = vsel %vm604, %v334, 0
      %v681 = vsel %vm604, %v336, 0
      %v684 = vsel %vm604, %v338, 0
      %v687 = vsel %vm604, %v340, 0
      %v690 = vsel %vm604, %v342, 0
      %v693 = vsel %vm604, %v344, 0
      %v696 = vsel %vm604, %v346, 0
      %v699 = vsel %vm604, %v348, 0
      %v702 = vsel %vm604, %v350, 0
      %v705 = vsel %vm604, %v352, 0
      %v708 = vsel %vm604, %v354, 0
      %v711 = vsel %vm604, %v356, 0
      %v714 = vsel %vm604, %v358, 0
      %v717 = vsel %vm604, %v360, 0
      %v720 = vsel %vm604, %v362, 0
      %v723 = vsel %vm604, %v364, 0
      %v726 = vsel %vm604, %v366, 0
      %v729 = vsel %vm604, %v368, 0
      %v732 = vsel %vm604, %v370, 0
      %v735 = vsel %vm604, %v372, 0
      %v738 = vsel %vm604, %v374, 0
      %v741 = vsel %vm604, %v376, 0
      %v744 = vsel %vm604, %v378, 0
      %v747 = vsel %vm604, %v380, 0
      %v750 = vsel %vm604, %v382, 0
      %v753 = vsel %vm604, %v384, 0
      %v756 = vsel %vm604, %v386, 0
      %v759 = vsel %vm604, %v388, 0
      %v762 = vsel %vm604, %v390, 0
      %v765 = vsel %vm604, %v392, 0
      %v768 = vsel %vm604, %v394, 0
      %v771 = vsel %vm604, %v396, 0
      %v774 = vsel %vm604, %v398, 0
      %v777 = vsel %vm604, %v400, 0
      %v780 = vsel %vm604, %v402, 0
      %v783 = vsel %vm604, %v404, 0
      %v786 = vsel %vm604, %v406, 0
      %v789 = vsel %vm604, %v408, 0
      %v792 = vsel %vm604, %v410, 0
      %v795 = vsel %vm604, %v412, 0
      %v798 = vsel %vm604, %v414, 0
      %v801 = vsel %vm604, %v416, 0
      %v804 = vsel %vm604, %v418, 0
      %v807 = vsel %vm604, %v420, 0
      %v810 = vsel %vm604, %v422, 0
      %v813 = vsel %vm604, %v424, 0
      %v816 = vsel %vm604, %v426, 0
      %v819 = vsel %vm604, %v428, 0
      %v822 = vsel %vm604, %v430, 0
      %v825 = vsel %vm604, %v432, 0
      %v828 = vsel %vm604, %v434, 0
      %v831 = vsel %vm604, %v436, 0
      %v834 = vsel %vm604, %v438, 0
      %v837 = vsel %vm604, %v440, 0
      %v840 = vsel %vm604, %v442, 0
      %v843 = vsel %vm604, %v444, 0
      %v846 = vsel %vm604, %v446, 0
      %v849 = vsel %vm604, %v448, 0
      %v852 = vsel %vm604, %v450, 0
      %v855 = vsel %vm604, %v452, 0
      %v858 = vsel %vm604, %v454, 0
      %v861 = vsel %vm604, %v456, 0
      %v864 = vsel %vm604, %v458, 0
      %v867 = vsel %vm604, %v460, 0
      %v870 = vsel %vm604, %v462, 0
      %v873 = vsel %vm604, %v464, 0
      %v876 = vsel %vm604, %v466, 0
      %v879 = vsel %vm604, %v468, 0
      %v882 = vsel %vm604, %v470, 0
      %v885 = vsel %vm604, %v472, 0
      %v888 = vsel %vm604, %v474, 0
      %v891 = vsel %vm604, %v476, 0
      %v894 = vsel %vm604, %v478, 0
      %v897 = vsel %vm604, %v480, 0
      %v900 = vsel %vm604, %v482, 0
      %v903 = vsel %vm604, %v484, 0
      %v906 = vsel %vm604, %v486, 0
      %v909 = vsel %vm604, %v488, 0
      %v912 = vsel %vm604, %v490, 0
      %v915 = vsel %vm604, %v492, 0
      %v918 = vsel %vm604, %v494, 0
      %v921 = vsel %vm604, %v496, 0
      %v924 = vsel %vm604, %v498, 0
      %v927 = vsel %vm604, %v500, 0
      %v930 = vsel %vm604, %v502, 0
      %v933 = vsel %vm604, %v504, 0
      %v936 = vsel %vm604, %v506, 0
      %v939 = vsel %vm604, %v508, 0
      %v942 = vsel %vm604, %v510, 0
      %v945 = vsel %vm604, %v512, 0
      %v948 = vsel %vm604, %v514, 0
      %v951 = vsel %vm604, %v516, 0
      %v954 = vsel %vm604, %v518, 0
      %v957 = vsel %vm604, %v520, 0
      %v960 = vsel %vm604, %v522, 0
      %v963 = vsel %vm604, %v524, 0
      %v966 = vsel %vm604, %v526, 0
      %v969 = vsel %vm604, %v528, 0
      %v972 = vsel %vm604, %v530, 0
      %v975 = vsel %vm604, %v532, 0
      %v978 = vsel %vm604, %v534, 0
      %v981 = vsel %vm604, %v536, 0
      %v984 = vsel %vm604, %v538, 0
      %v987 = vsel %vm604, %v540, 0
      %v990 = vsel %vm604, %v542, 0
      %v993 = vsel %vm604, %v544, 0
      %v996 = vsel %vm604, %v546, 0
      %v999 = vsel %vm604, %v548, 0
      %v1002 = vsel %vm604, %v550, 0
      %v1005 = vsel %vm604, %v552, 0
      %v1008 = vsel %vm604, %v554, 0
      %v1011 = vsel %vm604, %v556, 0
      %v1014 = vsel %vm604, %v558, 0
      %v1017 = vsel %vm604, %v560, 0
      %v1020 = vsel %vm604, %v562, 0
      %v1023 = vsel %vm604, %v564, 0
      %v1026 = vsel %vm604, %v566, 0
      %v1029 = vsel %vm604, %v568, 0
      %v1032 = vsel %vm604, %v570, 0
      %v1035 = vsel %vm604, %v572, 0
      %1037 = vmatprep.subr.mxu0 0.0
      %1038 = vmatpush1.msra.mxu0 %v573
      %1039 = vmatprep.subr.mxu0 0.0
      %1040 = vmatpush1.msra.mxu0 %v574
      %1041 = vmatprep.subr.mxu0 0.0
      %1042 = vmatpush1.msra.mxu0 %v575
      %1043 = vmatprep.subr.mxu0 0.0
      %1044 = vmatpush1.msra.mxu0 %v576
      %1045 = vmatprep.subr.mxu0 0.0
      %1046 = vmatpush1.msra.mxu0 %v577
      %1047 = vmatprep.subr.mxu0 0.0
      %1048 = vmatpush1.msra.mxu0 %v578
      %1049 = vmatprep.subr.mxu0 0.0
      %1050 = vmatpush1.msra.mxu0 %v579
      %1051 = vmatprep.subr.mxu0 0.0
      %1052 = vmatpush1.msra.mxu0 %v580
      %1053 = vmatprep.subr.mxu0 0.0
      %1054 = vmatpush1.msra.mxu0 %v581
      %1055 = vmatprep.subr.mxu0 0.0
      %1056 = vmatpush1.msra.mxu0 %v582
      %1057 = vmatprep.subr.mxu0 0.0
      %1058 = vmatpush1.msra.mxu0 %v583
      %1059 = vmatprep.subr.mxu0 0.0
      %1060 = vmatpush1.msra.mxu0 %v584
      %1061 = vmatprep.subr.mxu0 0.0
      %1062 = vmatpush1.msra.mxu0 %v585
      %1063 = vmatprep.subr.mxu0 0.0
      %1064 = vmatpush1.msra.mxu0 %v586
      %1065 = vmatprep.subr.mxu0 0.0
      %1066 = vmatpush1.msra.mxu0 %v587
      %1067 = vmatprep.subr.mxu0 0.0
      %1068 = vmatpush1.msra.mxu0 %v588
      %1069 = vmatprep.subr.mxu0 0.0
      %1070 = vmatpush1.msra.mxu0 %v589
      %1071 = vmatprep.subr.mxu0 0.0
      %1072 = vmatpush1.msra.mxu0 %v590
      %1073 = vmatprep.subr.mxu0 0.0
      %1074 = vmatpush1.msra.mxu0 %v591
      %1075 = vmatprep.subr.mxu0 0.0
      %1076 = vmatpush1.msra.mxu0 %v592
      %1077 = vmatprep.subr.mxu0 0.0
      %1078 = vmatpush1.msra.mxu0 %v593
      %1079 = vmatprep.subr.mxu0 0.0
      %1080 = vmatpush1.msra.mxu0 %v594
      %1081 = vmatprep.subr.mxu0 0.0
      %1082 = vmatpush1.msra.mxu0 %v595
      %1083 = vmatprep.subr.mxu0 0.0
      %1084 = vmatpush1.msra.mxu0 %v596
      %1085 = vmatprep.subr.mxu0 0.0
      %1086 = vmatpush1.msra.mxu0 0.0
      %1087 = vmatprep.subr.mxu0 0.0
      %1088 = vmatpush1.msra.mxu0 0.0
      %1089 = vmatprep.subr.mxu0 0.0
      %1090 = vmatpush1.msra.mxu0 0.0
      %1091 = vmatprep.subr.mxu0 0.0
      %1092 = vmatpush1.msra.mxu0 0.0
      %1093 = vmatprep.subr.mxu0 0.0
      %1094 = vmatpush1.msra.mxu0 0.0
      %1095 = vmatprep.subr.mxu0 0.0
      %1096 = vmatpush1.msra.mxu0 0.0
      %1097 = vmatprep.subr.mxu0 0.0
      %1098 = vmatpush1.msra.mxu0 0.0
      %1099 = vmatprep.subr.mxu0 0.0
      %1100 = vmatpush1.msra.mxu0 0.0
      %1101 = vmatprep.mubr.f32.mxu0 %v606
      %1102 = vmatmul.mubr.f32.gmra.mrb[0].mxu0 %v285
      %v1103 = vpop.f32.mrb[0].mxu0
      %v1104 = vadd.f32 %v602, %v1103
      %v1105 = vpop.f32.mrb[0].mxu0
      %1106 = vmatprep.mubr.f32.mxu0 %v609
      %1107 = vmatmul.mubr.f32.gmra.mrb[0].mxu0 %v287
      %v1108 = vpop.f32.mrb[0].mxu0
      %v1109 = vadd.f32 %v602, %v1108
      %v1110 = vpop.f32.mrb[0].mxu0
      %1111 = vmatprep.mubr.f32.mxu0 %v612
      %1112 = vmatmul.mubr.f32.gmra.mrb[0].mxu0 %v289
      %v1113 = vpop.f32.mrb[0].mxu0
      %v1114 = vadd.f32 %v602, %v1113
      %v1115 = vpop.f32.mrb[0].mxu0
      %1116 = vmatprep.mubr.f32.mxu0 %v615
      %1117 = vmatmul.mubr.f32.gmra.mrb[0].mxu0 %v291
      %v1118 = vpop.f32.mrb[0].mxu0
      %v1119 = vadd.f32 %v602, %v1118
      %v1120 = vpop.f32.mrb[0].mxu0
      %1121 = vmatprep.mubr.f32.mxu0 %v618
      %1122 = vmatmul.mubr.f32.gmra.mrb[0].mxu0 %v293
      %v1123 = vpop.f32.mrb[0].mxu0
      %v1124 = vadd.f32 %v602, %v1123
      %v1125 = vpop.f32.mrb[0].mxu0
      %1126 = vmatprep.mubr.f32.mxu0 %v621
      %1127 = vmatmul.mubr.f32.gmra.mrb[0].mxu0 %v295
      %v1128 = vpop.f32.mrb[0].mxu0
      %v1129 = vadd.f32 %v602, %v1128
      %v1130 = vpop.f32.mrb[0].mxu0
      %1131 = vmatprep.mubr.f32.mxu0 %v624
      %1132 = vmatmul.mubr.f32.gmra.mrb[0].mxu0 %v297
      %v1133 = vpop.f32.mrb[0].mxu0
      %v1134 = vadd.f32 %v602, %v1133
      %v1135 = vpop.f32.mrb[0].mxu0
      %1136 = vmatprep.mubr.f32.mxu0 %v627
      %1137 = vmatmul.mubr.f32.gmra.mrb[0].mxu0 %v299
      %v1138 = vpop.f32.mrb[0].mxu0
      %v1139 = vadd.f32 %v602, %v1138
      %v1140 = vpop.f32.mrb[0].mxu0
      %1141 = vmatprep.mubr.f32.mxu0 %v630
      %1142 = vmatmul.mubr.f32.gmra.mrb[0].mxu0 %v301
      %v1143 = vpop.f32.mrb[0].mxu0
      %v1144 = vadd.f32 %v602, %v1143
      %v1145 = vpop.f32.mrb[0].mxu0
      %1146 = vmatprep.mubr.f32.mxu0 %v633
      %1147 = vmatmul.mubr.f32.gmra.mrb[0].mxu0 %v303
      %v1148 = vpop.f32.mrb[0].mxu0
      %v1149 = vadd.f32 %v602, %v1148
      %v1150 = vpop.f32.mrb[0].mxu0
      %1151 = vmatprep.mubr.f32.mxu0 %v636
      %1152 = vmatmul.mubr.f32.gmra.mrb[0].mxu0 %v305
      %v1153 = vpop.f32.mrb[0].mxu0
      %v1154 = vadd.f32 %v602, %v1153
      %v1155 = vpop.f32.mrb[0].mxu0
      %1156 = vmatprep.mubr.f32.mxu0 %v639
      %1157 = vmatmul.mubr.f32.gmra.mrb[0].mxu0 %v307
      %v1158 = vpop.f32.mrb[0].mxu0
      %v1159 = vadd.f32 %v602, %v1158
      %v1160 = vpop.f32.mrb[0].mxu0
      %1161 = vmatprep.mubr.f32.mxu0 %v642
      %1162 = vmatmul.mubr.f32.gmra.mrb[0].mxu0 %v309
      %v1163 = vpop.f32.mrb[0].mxu0
      %v1164 = vadd.f32 %v602, %v1163
      %v1165 = vpop.f32.mrb[0].mxu0
      %1166 = vmatprep.mubr.f32.mxu0 %v645
      %1167 = vmatmul.mubr.f32.gmra.mrb[0].mxu0 %v311
      %v1168 = vpop.f32.mrb[0].mxu0
      %v1169 = vadd.f32 %v602, %v1168
      %v1170 = vpop.f32.mrb[0].mxu0
      %1171 = vmatprep.mubr.f32.mxu0 %v648
      %1172 = vmatmul.mubr.f32.gmra.mrb[0].mxu0 %v313
      %v1173 = vpop.f32.mrb[0].mxu0
      %v1174 = vadd.f32 %v602, %v1173
      %v1175 = vpop.f32.mrb[0].mxu0
      %1176 = vmatprep.mubr.f32.mxu0 %v651
      %1177 = vmatmul.mubr.f32.gmra.mrb[0].mxu0 %v315
      %v1178 = vpop.f32.mrb[0].mxu0
      %v1179 = vadd.f32 %v602, %v1178
      %v1180 = vpop.f32.mrb[0].mxu0
      %1181 = vmatprep.mubr.f32.mxu0 %v654
      %1182 = vmatmul.mubr.f32.gmra.mrb[0].mxu0 %v317
      %v1183 = vpop.f32.mrb[0].mxu0
      %v1184 = vadd.f32 %v602, %v1183
      %v1185 = vpop.f32.mrb[0].mxu0
      %1186 = vmatprep.mubr.f32.mxu0 %v657
      %1187 = vmatmul.mubr.f32.gmra.mrb[0].mxu0 %v319
      %v1188 = vpop.f32.mrb[0].mxu0
      %v1189 = vadd.f32 %v602, %v1188
      %v1190 = vpop.f32.mrb[0].mxu0
      %1191 = vmatprep.mubr.f32.mxu0 %v660
      %1192 = vmatmul.mubr.f32.gmra.mrb[0].mxu0 %v321
      %v1193 = vpop.f32.mrb[0].mxu0
      %v1194 = vadd.f32 %v602, %v1193
      %v1195 = vpop.f32.mrb[0].mxu0
      %1196 = vmatprep.mubr.f32.mxu0 %v663
      %1197 = vmatmul.mubr.f32.gmra.mrb[0].mxu0 %v323
      %v1198 = vpop.f32.mrb[0].mxu0
      %v1199 = vadd.f32 %v602, %v1198
      %v1200 = vpop.f32.mrb[0].mxu0
      %1201 = vmatprep.mubr.f32.mxu0 %v666
      %1202 = vmatmul.mubr.f32.gmra.mrb[0].mxu0 %v325
      %v1203 = vpop.f32.mrb[0].mxu0
      %v1204 = vadd.f32 %v602, %v1203
      %v1205 = vpop.f32.mrb[0].mxu0
      %1206 = vmatprep.mubr.f32.mxu0 %v669
      %1207 = vmatmul.mubr.f32.gmra.mrb[0].mxu0 %v327
      %v1208 = vpop.f32.mrb[0].mxu0
      %v1209 = vadd.f32 %v602, %v1208
      %v1210 = vpop.f32.mrb[0].mxu0
      %1211 = vmatprep.mubr.f32.mxu0 %v672
      %1212 = vmatmul.mubr.f32.gmra.mrb[0].mxu0 %v329
      %v1213 = vpop.f32.mrb[0].mxu0
      %v1214 = vadd.f32 %v602, %v1213
      %v1215 = vpop.f32.mrb[0].mxu0
      %1216 = vmatprep.mubr.f32.mxu0 %v675
      %1217 = vmatmul.mubr.f32.gmra.mrb[0].mxu0 %v331
      %v1218 = vpop.f32.mrb[0].mxu0
      %v1219 = vadd.f32 %v602, %v1218
      %v1220 = vpop.f32.mrb[0].mxu0
      %1221 = vmatprep.mubr.f32.mxu0 %v678
      %1222 = vmatmul.mubr.f32.gmra.mrb[0].mxu0 %v333
      %v1223 = vpop.f32.mrb[0].mxu0
      %v1224 = vadd.f32 %v602, %v1223
      %v1225 = vpop.f32.mrb[0].mxu0
      %1226 = vmatprep.mubr.f32.mxu0 %v681
      %1227 = vmatmul.mubr.f32.gmra.mrb[0].mxu0 %v335
      %v1228 = vpop.f32.mrb[0].mxu0
      %v1229 = vadd.f32 %v602, %v1228
      %v1230 = vpop.f32.mrb[0].mxu0
      %1231 = vmatprep.mubr.f32.mxu0 %v684
      %1232 = vmatmul.mubr.f32.gmra.mrb[0].mxu0 %v337
      %v1233 = vpop.f32.mrb[0].mxu0
      %v1234 = vadd.f32 %v602, %v1233
      %v1235 = vpop.f32.mrb[0].mxu0
      %1236 = vmatprep.mubr.f32.mxu0 %v687
      %1237 = vmatmul.mubr.f32.gmra.mrb[0].mxu0 %v339
      %v1238 = vpop.f32.mrb[0].mxu0
      %v1239 = vadd.f32 %v602, %v1238
      %v1240 = vpop.f32.mrb[0].mxu0
      %1241 = vmatprep.mubr.f32.mxu0 %v690
      %1242 = vmatmul.mubr.f32.gmra.mrb[0].mxu0 %v341
      %v1243 = vpop.f32.mrb[0].mxu0
      %v1244 = vadd.f32 %v602, %v1243
      %v1245 = vpop.f32.mrb[0].mxu0
      %1246 = vmatprep.mubr.f32.mxu0 %v693
      %1247 = vmatmul.mubr.f32.gmra.mrb[0].mxu0 %v343
      %v1248 = vpop.f32.mrb[0].mxu0
      %v1249 = vadd.f32 %v602, %v1248
      %v1250 = vpop.f32.mrb[0].mxu0
      %1251 = vmatprep.mubr.f32.mxu0 %v696
      %1252 = vmatmul.mubr.f32.gmra.mrb[0].mxu0 %v345
      %v1253 = vpop.f32.mrb[0].mxu0
      %v1254 = vadd.f32 %v602, %v1253
      %v1255 = vpop.f32.mrb[0].mxu0
      %1256 = vmatprep.mubr.f32.mxu0 %v699
      %1257 = vmatmul.mubr.f32.gmra.mrb[0].mxu0 %v347
      %v1258 = vpop.f32.mrb[0].mxu0
      %v1259 = vadd.f32 %v602, %v1258
      %v1260 = vpop.f32.mrb[0].mxu0
      %1261 = vmatprep.mubr.f32.mxu0 %v702
      %1262 = vmatmul.mubr.f32.gmra.mrb[0].mxu0 %v349
      %v1263 = vpop.f32.mrb[0].mxu0
      %v1264 = vadd.f32 %v602, %v1263
      %v1265 = vpop.f32.mrb[0].mxu0
      %1266 = vmatprep.mubr.f32.mxu0 %v705
      %1267 = vmatmul.mubr.f32.gmra.mrb[0].mxu0 %v351
      %v1268 = vpop.f32.mrb[0].mxu0
      %v1269 = vadd.f32 %v602, %v1268
      %v1270 = vpop.f32.mrb[0].mxu0
      %1271 = vmatprep.mubr.f32.mxu0 %v708
      %1272 = vmatmul.mubr.f32.gmra.mrb[0].mxu0 %v353
      %v1273 = vpop.f32.mrb[0].mxu0
      %v1274 = vadd.f32 %v602, %v1273
      %v1275 = vpop.f32.mrb[0].mxu0
      %1276 = vmatprep.mubr.f32.mxu0 %v711
      %1277 = vmatmul.mubr.f32.gmra.mrb[0].mxu0 %v355
      %v1278 = vpop.f32.mrb[0].mxu0
      %v1279 = vadd.f32 %v602, %v1278
      %v1280 = vpop.f32.mrb[0].mxu0
      %1281 = vmatprep.mubr.f32.mxu0 %v714
      %1282 = vmatmul.mubr.f32.gmra.mrb[0].mxu0 %v357
      %v1283 = vpop.f32.mrb[0].mxu0
      %v1284 = vadd.f32 %v602, %v1283
      %v1285 = vpop.f32.mrb[0].mxu0
      %1286 = vmatprep.mubr.f32.mxu0 %v717
      %1287 = vmatmul.mubr.f32.gmra.mrb[0].mxu0 %v359
      %v1288 = vpop.f32.mrb[0].mxu0
      %v1289 = vadd.f32 %v602, %v1288
      %v1290 = vpop.f32.mrb[0].mxu0
      %1291 = vmatprep.mubr.f32.mxu0 %v720
      %1292 = vmatmul.mubr.f32.gmra.mrb[0].mxu0 %v361
      %v1293 = vpop.f32.mrb[0].mxu0
      %v1294 = vadd.f32 %v602, %v1293
      %v1295 = vpop.f32.mrb[0].mxu0
      %1296 = vmatprep.mubr.f32.mxu0 %v723
      %1297 = vmatmul.mubr.f32.gmra.mrb[0].mxu0 %v363
      %v1298 = vpop.f32.mrb[0].mxu0
      %v1299 = vadd.f32 %v602, %v1298
      %v1300 = vpop.f32.mrb[0].mxu0
      %1301 = vmatprep.mubr.f32.mxu0 %v726
      %1302 = vmatmul.mubr.f32.gmra.mrb[0].mxu0 %v365
      %v1303 = vpop.f32.mrb[0].mxu0
      %v1304 = vadd.f32 %v602, %v1303
      %v1305 = vpop.f32.mrb[0].mxu0
      %1306 = vmatprep.mubr.f32.mxu0 %v729
      %1307 = vmatmul.mubr.f32.gmra.mrb[0].mxu0 %v367
      %v1308 = vpop.f32.mrb[0].mxu0
      %v1309 = vadd.f32 %v602, %v1308
      %v1310 = vpop.f32.mrb[0].mxu0
      %1311 = vmatprep.mubr.f32.mxu0 %v732
      %1312 = vmatmul.mubr.f32.gmra.mrb[0].mxu0 %v369
      %v1313 = vpop.f32.mrb[0].mxu0
      %v1314 = vadd.f32 %v602, %v1313
      %v1315 = vpop.f32.mrb[0].mxu0
      %1316 = vmatprep.mubr.f32.mxu0 %v735
      %1317 = vmatmul.mubr.f32.gmra.mrb[0].mxu0 %v371
      %v1318 = vpop.f32.mrb[0].mxu0
      %v1319 = vadd.f32 %v602, %v1318
      %v1320 = vpop.f32.mrb[0].mxu0
      %1321 = vmatprep.mubr.f32.mxu0 %v738
      %1322 = vmatmul.mubr.f32.gmra.mrb[0].mxu0 %v373
      %v1323 = vpop.f32.mrb[0].mxu0
      %v1324 = vadd.f32 %v602, %v1323
      %v1325 = vpop.f32.mrb[0].mxu0
      %1326 = vmatprep.mubr.f32.mxu0 %v741
      %1327 = vmatmul.mubr.f32.gmra.mrb[0].mxu0 %v375
      %v1328 = vpop.f32.mrb[0].mxu0
      %v1329 = vadd.f32 %v602, %v1328
      %v1330 = vpop.f32.mrb[0].mxu0
      %1331 = vmatprep.mubr.f32.mxu0 %v744
      %1332 = vmatmul.mubr.f32.gmra.mrb[0].mxu0 %v377
      %v1333 = vpop.f32.mrb[0].mxu0
      %v1334 = vadd.f32 %v602, %v1333
      %v1335 = vpop.f32.mrb[0].mxu0
      %1336 = vmatprep.mubr.f32.mxu0 %v747
      %1337 = vmatmul.mubr.f32.gmra.mrb[0].mxu0 %v379
      %v1338 = vpop.f32.mrb[0].mxu0
      %v1339 = vadd.f32 %v602, %v1338
      %v1340 = vpop.f32.mrb[0].mxu0
      %1341 = vmatprep.mubr.f32.mxu0 %v750
      %1342 = vmatmul.mubr.f32.gmra.mrb[0].mxu0 %v381
      %v1343 = vpop.f32.mrb[0].mxu0
      %v1344 = vadd.f32 %v602, %v1343
      %v1345 = vpop.f32.mrb[0].mxu0
      %1346 = vmatprep.mubr.f32.mxu0 %v753
      %1347 = vmatmul.mubr.f32.gmra.mrb[0].mxu0 %v383
      %v1348 = vpop.f32.mrb[0].mxu0
      %v1349 = vadd.f32 %v602, %v1348
      %v1350 = vpop.f32.mrb[0].mxu0
      %1351 = vmatprep.mubr.f32.mxu0 %v756
      %1352 = vmatmul.mubr.f32.gmra.mrb[0].mxu0 %v385
      %v1353 = vpop.f32.mrb[0].mxu0
      %v1354 = vadd.f32 %v602, %v1353
      %v1355 = vpop.f32.mrb[0].mxu0
      %1356 = vmatprep.mubr.f32.mxu0 %v759
      %1357 = vmatmul.mubr.f32.gmra.mrb[0].mxu0 %v387
      %v1358 = vpop.f32.mrb[0].mxu0
      %v1359 = vadd.f32 %v602, %v1358
      %v1360 = vpop.f32.mrb[0].mxu0
      %1361 = vmatprep.mubr.f32.mxu0 %v762
      %1362 = vmatmul.mubr.f32.gmra.mrb[0].mxu0 %v389
      %v1363 = vpop.f32.mrb[0].mxu0
      %v1364 = vadd.f32 %v602, %v1363
      %v1365 = vpop.f32.mrb[0].mxu0
      %1366 = vmatprep.mubr.f32.mxu0 %v765
      %1367 = vmatmul.mubr.f32.gmra.mrb[0].mxu0 %v391
      %v1368 = vpop.f32.mrb[0].mxu0
      %v1369 = vadd.f32 %v602, %v1368
      %v1370 = vpop.f32.mrb[0].mxu0
      %1371 = vmatprep.mubr.f32.mxu0 %v768
      %1372 = vmatmul.mubr.f32.gmra.mrb[0].mxu0 %v393
      %v1373 = vpop.f32.mrb[0].mxu0
      %v1374 = vadd.f32 %v602, %v1373
      %v1375 = vpop.f32.mrb[0].mxu0
      %1376 = vmatprep.mubr.f32.mxu0 %v771
      %1377 = vmatmul.mubr.f32.gmra.mrb[0].mxu0 %v395
      %v1378 = vpop.f32.mrb[0].mxu0
      %v1379 = vadd.f32 %v602, %v1378
      %v1380 = vpop.f32.mrb[0].mxu0
      %1381 = vmatprep.mubr.f32.mxu0 %v774
      %1382 = vmatmul.mubr.f32.gmra.mrb[0].mxu0 %v397
      %v1383 = vpop.f32.mrb[0].mxu0
      %v1384 = vadd.f32 %v602, %v1383
      %v1385 = vpop.f32.mrb[0].mxu0
      %1386 = vmatprep.mubr.f32.mxu0 %v777
      %1387 = vmatmul.mubr.f32.gmra.mrb[0].mxu0 %v399
      %v1388 = vpop.f32.mrb[0].mxu0
      %v1389 = vadd.f32 %v602, %v1388
      %v1390 = vpop.f32.mrb[0].mxu0
      %1391 = vmatprep.mubr.f32.mxu0 %v780
      %1392 = vmatmul.mubr.f32.gmra.mrb[0].mxu0 %v401
      %v1393 = vpop.f32.mrb[0].mxu0
      %v1394 = vadd.f32 %v602, %v1393
      %v1395 = vpop.f32.mrb[0].mxu0
      %1396 = vmatprep.mubr.f32.mxu0 %v783
      %1397 = vmatmul.mubr.f32.gmra.mrb[0].mxu0 %v403
      %v1398 = vpop.f32.mrb[0].mxu0
      %v1399 = vadd.f32 %v602, %v1398
      %v1400 = vpop.f32.mrb[0].mxu0
      %1401 = vmatprep.mubr.f32.mxu0 %v786
      %1402 = vmatmul.mubr.f32.gmra.mrb[0].mxu0 %v405
      %v1403 = vpop.f32.mrb[0].mxu0
      %v1404 = vadd.f32 %v602, %v1403
      %v1405 = vpop.f32.mrb[0].mxu0
      %1406 = vmatprep.mubr.f32.mxu0 %v789
      %1407 = vmatmul.mubr.f32.gmra.mrb[0].mxu0 %v407
      %v1408 = vpop.f32.mrb[0].mxu0
      %v1409 = vadd.f32 %v602, %v1408
      %v1410 = vpop.f32.mrb[0].mxu0
      %1411 = vmatprep.mubr.f32.mxu0 %v792
      %1412 = vmatmul.mubr.f32.gmra.mrb[0].mxu0 %v409
      %v1413 = vpop.f32.mrb[0].mxu0
      %v1414 = vadd.f32 %v602, %v1413
      %v1415 = vpop.f32.mrb[0].mxu0
      %1416 = vmatprep.mubr.f32.mxu0 %v795
      %1417 = vmatmul.mubr.f32.gmra.mrb[0].mxu0 %v411
      %v1418 = vpop.f32.mrb[0].mxu0
      %v1419 = vadd.f32 %v602, %v1418
      %v1420 = vpop.f32.mrb[0].mxu0
      %1421 = vmatprep.mubr.f32.mxu0 %v798
      %1422 = vmatmul.mubr.f32.gmra.mrb[0].mxu0 %v413
      %v1423 = vpop.f32.mrb[0].mxu0
      %v1424 = vadd.f32 %v602, %v1423
      %v1425 = vpop.f32.mrb[0].mxu0
      %1426 = vmatprep.mubr.f32.mxu0 %v801
      %1427 = vmatmul.mubr.f32.gmra.mrb[0].mxu0 %v415
      %v1428 = vpop.f32.mrb[0].mxu0
      %v1429 = vadd.f32 %v602, %v1428
      %v1430 = vpop.f32.mrb[0].mxu0
      %1431 = vmatprep.mubr.f32.mxu0 %v804
      %1432 = vmatmul.mubr.f32.gmra.mrb[0].mxu0 %v417
      %v1433 = vpop.f32.mrb[0].mxu0
      %v1434 = vadd.f32 %v602, %v1433
      %v1435 = vpop.f32.mrb[0].mxu0
      %1436 = vmatprep.mubr.f32.mxu0 %v807
      %1437 = vmatmul.mubr.f32.gmra.mrb[0].mxu0 %v419
      %v1438 = vpop.f32.mrb[0].mxu0
      %v1439 = vadd.f32 %v602, %v1438
      %v1440 = vpop.f32.mrb[0].mxu0
      %1441 = vmatprep.mubr.f32.mxu0 %v810
      %1442 = vmatmul.mubr.f32.gmra.mrb[0].mxu0 %v421
      %v1443 = vpop.f32.mrb[0].mxu0
      %v1444 = vadd.f32 %v602, %v1443
      %v1445 = vpop.f32.mrb[0].mxu0
      %1446 = vmatprep.mubr.f32.mxu0 %v813
      %1447 = vmatmul.mubr.f32.gmra.mrb[0].mxu0 %v423
      %v1448 = vpop.f32.mrb[0].mxu0
      %v1449 = vadd.f32 %v602, %v1448
      %v1450 = vpop.f32.mrb[0].mxu0
      %1451 = vmatprep.mubr.f32.mxu0 %v816
      %1452 = vmatmul.mubr.f32.gmra.mrb[0].mxu0 %v425
      %v1453 = vpop.f32.mrb[0].mxu0
      %v1454 = vadd.f32 %v602, %v1453
      %v1455 = vpop.f32.mrb[0].mxu0
      %1456 = vmatprep.mubr.f32.mxu0 %v819
      %1457 = vmatmul.mubr.f32.gmra.mrb[0].mxu0 %v427
      %v1458 = vpop.f32.mrb[0].mxu0
      %v1459 = vadd.f32 %v602, %v1458
      %v1460 = vpop.f32.mrb[0].mxu0
      %1461 = vmatprep.mubr.f32.mxu0 %v822
      %1462 = vmatmul.mubr.f32.gmra.mrb[0].mxu0 %v429
      %v1463 = vpop.f32.mrb[0].mxu0
      %v1464 = vadd.f32 %v602, %v1463
      %v1465 = vpop.f32.mrb[0].mxu0
      %1466 = vmatprep.mubr.f32.mxu0 %v825
      %1467 = vmatmul.mubr.f32.gmra.mrb[0].mxu0 %v431
      %v1468 = vpop.f32.mrb[0].mxu0
      %v1469 = vadd.f32 %v602, %v1468
      %v1470 = vpop.f32.mrb[0].mxu0
      %1471 = vmatprep.mubr.f32.mxu0 %v828
      %1472 = vmatmul.mubr.f32.gmra.mrb[0].mxu0 %v433
      %v1473 = vpop.f32.mrb[0].mxu0
      %v1474 = vadd.f32 %v602, %v1473
      %v1475 = vpop.f32.mrb[0].mxu0
      %1476 = vmatprep.mubr.f32.mxu0 %v831
      %1477 = vmatmul.mubr.f32.gmra.mrb[0].mxu0 %v435
      %v1478 = vpop.f32.mrb[0].mxu0
      %v1479 = vadd.f32 %v602, %v1478
      %v1480 = vpop.f32.mrb[0].mxu0
      %1481 = vmatprep.mubr.f32.mxu0 %v834
      %1482 = vmatmul.mubr.f32.gmra.mrb[0].mxu0 %v437
      %v1483 = vpop.f32.mrb[0].mxu0
      %v1484 = vadd.f32 %v602, %v1483
      %v1485 = vpop.f32.mrb[0].mxu0
      %1486 = vmatprep.mubr.f32.mxu0 %v837
      %1487 = vmatmul.mubr.f32.gmra.mrb[0].mxu0 %v439
      %v1488 = vpop.f32.mrb[0].mxu0
      %v1489 = vadd.f32 %v602, %v1488
      %v1490 = vpop.f32.mrb[0].mxu0
      %1491 = vmatprep.mubr.f32.mxu0 %v840
      %1492 = vmatmul.mubr.f32.gmra.mrb[0].mxu0 %v441
      %v1493 = vpop.f32.mrb[0].mxu0
      %v1494 = vadd.f32 %v602, %v1493
      %v1495 = vpop.f32.mrb[0].mxu0
      %1496 = vmatprep.mubr.f32.mxu0 %v843
      %1497 = vmatmul.mubr.f32.gmra.mrb[0].mxu0 %v443
      %v1498 = vpop.f32.mrb[0].mxu0
      %v1499 = vadd.f32 %v602, %v1498
      %v1500 = vpop.f32.mrb[0].mxu0
      %1501 = vmatprep.mubr.f32.mxu0 %v846
      %1502 = vmatmul.mubr.f32.gmra.mrb[0].mxu0 %v445
      %v1503 = vpop.f32.mrb[0].mxu0
      %v1504 = vadd.f32 %v602, %v1503
      %v1505 = vpop.f32.mrb[0].mxu0
      %1506 = vmatprep.mubr.f32.mxu0 %v849
      %1507 = vmatmul.mubr.f32.gmra.mrb[0].mxu0 %v447
      %v1508 = vpop.f32.mrb[0].mxu0
      %v1509 = vadd.f32 %v602, %v1508
      %v1510 = vpop.f32.mrb[0].mxu0
      %1511 = vmatprep.mubr.f32.mxu0 %v852
      %1512 = vmatmul.mubr.f32.gmra.mrb[0].mxu0 %v449
      %v1513 = vpop.f32.mrb[0].mxu0
      %v1514 = vadd.f32 %v602, %v1513
      %v1515 = vpop.f32.mrb[0].mxu0
      %1516 = vmatprep.mubr.f32.mxu0 %v855
      %1517 = vmatmul.mubr.f32.gmra.mrb[0].mxu0 %v451
      %v1518 = vpop.f32.mrb[0].mxu0
      %v1519 = vadd.f32 %v602, %v1518
      %v1520 = vpop.f32.mrb[0].mxu0
      %1521 = vmatprep.mubr.f32.mxu0 %v858
      %1522 = vmatmul.mubr.f32.gmra.mrb[0].mxu0 %v453
      %v1523 = vpop.f32.mrb[0].mxu0
      %v1524 = vadd.f32 %v602, %v1523
      %v1525 = vpop.f32.mrb[0].mxu0
      %1526 = vmatprep.mubr.f32.mxu0 %v861
      %1527 = vmatmul.mubr.f32.gmra.mrb[0].mxu0 %v455
      %v1528 = vpop.f32.mrb[0].mxu0
      %v1529 = vadd.f32 %v602, %v1528
      %v1530 = vpop.f32.mrb[0].mxu0
      %1531 = vmatprep.mubr.f32.mxu0 %v864
      %1532 = vmatmul.mubr.f32.gmra.mrb[0].mxu0 %v457
      %v1533 = vpop.f32.mrb[0].mxu0
      %v1534 = vadd.f32 %v602, %v1533
      %v1535 = vpop.f32.mrb[0].mxu0
      %1536 = vmatprep.mubr.f32.mxu0 %v867
      %1537 = vmatmul.mubr.f32.gmra.mrb[0].mxu0 %v459
      %v1538 = vpop.f32.mrb[0].mxu0
      %v1539 = vadd.f32 %v602, %v1538
      %v1540 = vpop.f32.mrb[0].mxu0
      %1541 = vmatprep.mubr.f32.mxu0 %v870
      %1542 = vmatmul.mubr.f32.gmra.mrb[0].mxu0 %v461
      %v1543 = vpop.f32.mrb[0].mxu0
      %v1544 = vadd.f32 %v602, %v1543
      %v1545 = vpop.f32.mrb[0].mxu0
      %1546 = vmatprep.mubr.f32.mxu0 %v873
      %1547 = vmatmul.mubr.f32.gmra.mrb[0].mxu0 %v463
      %v1548 = vpop.f32.mrb[0].mxu0
      %v1549 = vadd.f32 %v602, %v1548
      %v1550 = vpop.f32.mrb[0].mxu0
      %1551 = vmatprep.mubr.f32.mxu0 %v876
      %1552 = vmatmul.mubr.f32.gmra.mrb[0].mxu0 %v465
      %v1553 = vpop.f32.mrb[0].mxu0
      %v1554 = vadd.f32 %v602, %v1553
      %v1555 = vpop.f32.mrb[0].mxu0
      %1556 = vmatprep.mubr.f32.mxu0 %v879
      %1557 = vmatmul.mubr.f32.gmra.mrb[0].mxu0 %v467
      %v1558 = vpop.f32.mrb[0].mxu0
      %v1559 = vadd.f32 %v602, %v1558
      %v1560 = vpop.f32.mrb[0].mxu0
      %1561 = vmatprep.mubr.f32.mxu0 %v882
      %1562 = vmatmul.mubr.f32.gmra.mrb[0].mxu0 %v469
      %v1563 = vpop.f32.mrb[0].mxu0
      %v1564 = vadd.f32 %v602, %v1563
      %v1565 = vpop.f32.mrb[0].mxu0
      %1566 = vmatprep.mubr.f32.mxu0 %v885
      %1567 = vmatmul.mubr.f32.gmra.mrb[0].mxu0 %v471
      %v1568 = vpop.f32.mrb[0].mxu0
      %v1569 = vadd.f32 %v602, %v1568
      %v1570 = vpop.f32.mrb[0].mxu0
      %1571 = vmatprep.mubr.f32.mxu0 %v888
      %1572 = vmatmul.mubr.f32.gmra.mrb[0].mxu0 %v473
      %v1573 = vpop.f32.mrb[0].mxu0
      %v1574 = vadd.f32 %v602, %v1573
      %v1575 = vpop.f32.mrb[0].mxu0
      %1576 = vmatprep.mubr.f32.mxu0 %v891
      %1577 = vmatmul.mubr.f32.gmra.mrb[0].mxu0 %v475
      %v1578 = vpop.f32.mrb[0].mxu0
      %v1579 = vadd.f32 %v602, %v1578
      %v1580 = vpop.f32.mrb[0].mxu0
      %1581 = vmatprep.mubr.f32.mxu0 %v894
      %1582 = vmatmul.mubr.f32.gmra.mrb[0].mxu0 %v477
      %v1583 = vpop.f32.mrb[0].mxu0
      %v1584 = vadd.f32 %v602, %v1583
      %v1585 = vpop.f32.mrb[0].mxu0
      %1586 = vmatprep.mubr.f32.mxu0 %v897
      %1587 = vmatmul.mubr.f32.gmra.mrb[0].mxu0 %v479
      %v1588 = vpop.f32.mrb[0].mxu0
      %v1589 = vadd.f32 %v602, %v1588
      %v1590 = vpop.f32.mrb[0].mxu0
      %1591 = vmatprep.mubr.f32.mxu0 %v900
      %1592 = vmatmul.mubr.f32.gmra.mrb[0].mxu0 %v481
      %v1593 = vpop.f32.mrb[0].mxu0
      %v1594 = vadd.f32 %v602, %v1593
      %v1595 = vpop.f32.mrb[0].mxu0
      %1596 = vmatprep.mubr.f32.mxu0 %v903
      %1597 = vmatmul.mubr.f32.gmra.mrb[0].mxu0 %v483
      %v1598 = vpop.f32.mrb[0].mxu0
      %v1599 = vadd.f32 %v602, %v1598
      %v1600 = vpop.f32.mrb[0].mxu0
      %1601 = vmatprep.mubr.f32.mxu0 %v906
      %1602 = vmatmul.mubr.f32.gmra.mrb[0].mxu0 %v485
      %v1603 = vpop.f32.mrb[0].mxu0
      %v1604 = vadd.f32 %v602, %v1603
      %v1605 = vpop.f32.mrb[0].mxu0
      %1606 = vmatprep.mubr.f32.mxu0 %v909
      %1607 = vmatmul.mubr.f32.gmra.mrb[0].mxu0 %v487
      %v1608 = vpop.f32.mrb[0].mxu0
      %v1609 = vadd.f32 %v602, %v1608
      %v1610 = vpop.f32.mrb[0].mxu0
      %1611 = vmatprep.mubr.f32.mxu0 %v912
      %1612 = vmatmul.mubr.f32.gmra.mrb[0].mxu0 %v489
      %v1613 = vpop.f32.mrb[0].mxu0
      %v1614 = vadd.f32 %v602, %v1613
      %v1615 = vpop.f32.mrb[0].mxu0
      %1616 = vmatprep.mubr.f32.mxu0 %v915
      %1617 = vmatmul.mubr.f32.gmra.mrb[0].mxu0 %v491
      %v1618 = vpop.f32.mrb[0].mxu0
      %v1619 = vadd.f32 %v602, %v1618
      %v1620 = vpop.f32.mrb[0].mxu0
      %1621 = vmatprep.mubr.f32.mxu0 %v918
      %1622 = vmatmul.mubr.f32.gmra.mrb[0].mxu0 %v493
      %v1623 = vpop.f32.mrb[0].mxu0
      %v1624 = vadd.f32 %v602, %v1623
      %v1625 = vpop.f32.mrb[0].mxu0
      %1626 = vmatprep.mubr.f32.mxu0 %v921
      %1627 = vmatmul.mubr.f32.gmra.mrb[0].mxu0 %v495
      %v1628 = vpop.f32.mrb[0].mxu0
      %v1629 = vadd.f32 %v602, %v1628
      %v1630 = vpop.f32.mrb[0].mxu0
      %1631 = vmatprep.mubr.f32.mxu0 %v924
      %1632 = vmatmul.mubr.f32.gmra.mrb[0].mxu0 %v497
      %v1633 = vpop.f32.mrb[0].mxu0
      %v1634 = vadd.f32 %v602, %v1633
      %v1635 = vpop.f32.mrb[0].mxu0
      %1636 = vmatprep.mubr.f32.mxu0 %v927
      %1637 = vmatmul.mubr.f32.gmra.mrb[0].mxu0 %v499
      %v1638 = vpop.f32.mrb[0].mxu0
      %v1639 = vadd.f32 %v602, %v1638
      %v1640 = vpop.f32.mrb[0].mxu0
      %1641 = vmatprep.mubr.f32.mxu0 %v930
      %1642 = vmatmul.mubr.f32.gmra.mrb[0].mxu0 %v501
      %v1643 = vpop.f32.mrb[0].mxu0
      %v1644 = vadd.f32 %v602, %v1643
      %v1645 = vpop.f32.mrb[0].mxu0
      %1646 = vmatprep.mubr.f32.mxu0 %v933
      %1647 = vmatmul.mubr.f32.gmra.mrb[0].mxu0 %v503
      %v1648 = vpop.f32.mrb[0].mxu0
      %v1649 = vadd.f32 %v602, %v1648
      %v1650 = vpop.f32.mrb[0].mxu0
      %1651 = vmatprep.mubr.f32.mxu0 %v936
      %1652 = vmatmul.mubr.f32.gmra.mrb[0].mxu0 %v505
      %v1653 = vpop.f32.mrb[0].mxu0
      %v1654 = vadd.f32 %v602, %v1653
      %v1655 = vpop.f32.mrb[0].mxu0
      %1656 = vmatprep.mubr.f32.mxu0 %v939
      %1657 = vmatmul.mubr.f32.gmra.mrb[0].mxu0 %v507
      %v1658 = vpop.f32.mrb[0].mxu0
      %v1659 = vadd.f32 %v602, %v1658
      %v1660 = vpop.f32.mrb[0].mxu0
      %1661 = vmatprep.mubr.f32.mxu0 %v942
      %1662 = vmatmul.mubr.f32.gmra.mrb[0].mxu0 %v509
      %v1663 = vpop.f32.mrb[0].mxu0
      %v1664 = vadd.f32 %v602, %v1663
      %v1665 = vpop.f32.mrb[0].mxu0
      %1666 = vmatprep.mubr.f32.mxu0 %v945
      %1667 = vmatmul.mubr.f32.gmra.mrb[0].mxu0 %v511
      %v1668 = vpop.f32.mrb[0].mxu0
      %v1669 = vadd.f32 %v602, %v1668
      %v1670 = vpop.f32.mrb[0].mxu0
      %1671 = vmatprep.mubr.f32.mxu0 %v948
      %1672 = vmatmul.mubr.f32.gmra.mrb[0].mxu0 %v513
      %v1673 = vpop.f32.mrb[0].mxu0
      %v1674 = vadd.f32 %v602, %v1673
      %v1675 = vpop.f32.mrb[0].mxu0
      %1676 = vmatprep.mubr.f32.mxu0 %v951
      %1677 = vmatmul.mubr.f32.gmra.mrb[0].mxu0 %v515
      %v1678 = vpop.f32.mrb[0].mxu0
      %v1679 = vadd.f32 %v602, %v1678
      %v1680 = vpop.f32.mrb[0].mxu0
      %1681 = vmatprep.mubr.f32.mxu0 %v954
      %1682 = vmatmul.mubr.f32.gmra.mrb[0].mxu0 %v517
      %v1683 = vpop.f32.mrb[0].mxu0
      %v1684 = vadd.f32 %v602, %v1683
      %v1685 = vpop.f32.mrb[0].mxu0
      %1686 = vmatprep.mubr.f32.mxu0 %v957
      %1687 = vmatmul.mubr.f32.gmra.mrb[0].mxu0 %v519
      %v1688 = vpop.f32.mrb[0].mxu0
      %v1689 = vadd.f32 %v602, %v1688
      %v1690 = vpop.f32.mrb[0].mxu0
      %1691 = vmatprep.mubr.f32.mxu0 %v960
      %1692 = vmatmul.mubr.f32.gmra.mrb[0].mxu0 %v521
      %v1693 = vpop.f32.mrb[0].mxu0
      %v1694 = vadd.f32 %v602, %v1693
      %v1695 = vpop.f32.mrb[0].mxu0
      %1696 = vmatprep.mubr.f32.mxu0 %v963
      %1697 = vmatmul.mubr.f32.gmra.mrb[0].mxu0 %v523
      %v1698 = vpop.f32.mrb[0].mxu0
      %v1699 = vadd.f32 %v602, %v1698
      %v1700 = vpop.f32.mrb[0].mxu0
      %1701 = vmatprep.mubr.f32.mxu0 %v966
      %1702 = vmatmul.mubr.f32.gmra.mrb[0].mxu0 %v525
      %v1703 = vpop.f32.mrb[0].mxu0
      %v1704 = vadd.f32 %v602, %v1703
      %v1705 = vpop.f32.mrb[0].mxu0
      %1706 = vmatprep.mubr.f32.mxu0 %v969
      %1707 = vmatmul.mubr.f32.gmra.mrb[0].mxu0 %v527
      %v1708 = vpop.f32.mrb[0].mxu0
      %v1709 = vadd.f32 %v602, %v1708
      %v1710 = vpop.f32.mrb[0].mxu0
      %1711 = vmatprep.mubr.f32.mxu0 %v972
      %1712 = vmatmul.mubr.f32.gmra.mrb[0].mxu0 %v529
      %v1713 = vpop.f32.mrb[0].mxu0
      %v1714 = vadd.f32 %v602, %v1713
      %v1715 = vpop.f32.mrb[0].mxu0
      %1716 = vmatprep.mubr.f32.mxu0 %v975
      %1717 = vmatmul.mubr.f32.gmra.mrb[0].mxu0 %v531
      %v1718 = vpop.f32.mrb[0].mxu0
      %v1719 = vadd.f32 %v602, %v1718
      %v1720 = vpop.f32.mrb[0].mxu0
      %1721 = vmatprep.mubr.f32.mxu0 %v978
      %1722 = vmatmul.mubr.f32.gmra.mrb[0].mxu0 %v533
      %v1723 = vpop.f32.mrb[0].mxu0
      %v1724 = vadd.f32 %v602, %v1723
      %v1725 = vpop.f32.mrb[0].mxu0
      %1726 = vmatprep.mubr.f32.mxu0 %v981
      %1727 = vmatmul.mubr.f32.gmra.mrb[0].mxu0 %v535
      %v1728 = vpop.f32.mrb[0].mxu0
      %v1729 = vadd.f32 %v602, %v1728
      %v1730 = vpop.f32.mrb[0].mxu0
      %1731 = vmatprep.mubr.f32.mxu0 %v984
      %1732 = vmatmul.mubr.f32.gmra.mrb[0].mxu0 %v537
      %v1733 = vpop.f32.mrb[0].mxu0
      %v1734 = vadd.f32 %v602, %v1733
      %v1735 = vpop.f32.mrb[0].mxu0
      %1736 = vmatprep.mubr.f32.mxu0 %v987
      %1737 = vmatmul.mubr.f32.gmra.mrb[0].mxu0 %v539
      %v1738 = vpop.f32.mrb[0].mxu0
      %v1739 = vadd.f32 %v602, %v1738
      %v1740 = vpop.f32.mrb[0].mxu0
      %1741 = vmatprep.mubr.f32.mxu0 %v990
      %1742 = vmatmul.mubr.f32.gmra.mrb[0].mxu0 %v541
      %v1743 = vpop.f32.mrb[0].mxu0
      %v1744 = vadd.f32 %v602, %v1743
      %v1745 = vpop.f32.mrb[0].mxu0
      %1746 = vmatprep.mubr.f32.mxu0 %v993
      %1747 = vmatmul.mubr.f32.gmra.mrb[0].mxu0 %v543
      %v1748 = vpop.f32.mrb[0].mxu0
      %v1749 = vadd.f32 %v602, %v1748
      %v1750 = vpop.f32.mrb[0].mxu0
      %1751 = vmatprep.mubr.f32.mxu0 %v996
      %1752 = vmatmul.mubr.f32.gmra.mrb[0].mxu0 %v545
      %v1753 = vpop.f32.mrb[0].mxu0
      %v1754 = vadd.f32 %v602, %v1753
      %v1755 = vpop.f32.mrb[0].mxu0
      %1756 = vmatprep.mubr.f32.mxu0 %v999
      %1757 = vmatmul.mubr.f32.gmra.mrb[0].mxu0 %v547
      %v1758 = vpop.f32.mrb[0].mxu0
      %v1759 = vadd.f32 %v602, %v1758
      %v1760 = vpop.f32.mrb[0].mxu0
      %1761 = vmatprep.mubr.f32.mxu0 %v1002
      %1762 = vmatmul.mubr.f32.gmra.mrb[0].mxu0 %v549
      %v1763 = vpop.f32.mrb[0].mxu0
      %v1764 = vadd.f32 %v602, %v1763
      %v1765 = vpop.f32.mrb[0].mxu0
      %1766 = vmatprep.mubr.f32.mxu0 %v1005
      %1767 = vmatmul.mubr.f32.gmra.mrb[0].mxu0 %v551
      %v1768 = vpop.f32.mrb[0].mxu0
      %v1769 = vadd.f32 %v602, %v1768
      %v1770 = vpop.f32.mrb[0].mxu0
      %1771 = vmatprep.mubr.f32.mxu0 %v1008
      %1772 = vmatmul.mubr.f32.gmra.mrb[0].mxu0 %v553
      %v1773 = vpop.f32.mrb[0].mxu0
      %v1774 = vadd.f32 %v602, %v1773
      %v1775 = vpop.f32.mrb[0].mxu0
      %1776 = vmatprep.mubr.f32.mxu0 %v1011
      %1777 = vmatmul.mubr.f32.gmra.mrb[0].mxu0 %v555
      %v1778 = vpop.f32.mrb[0].mxu0
      %v1779 = vadd.f32 %v602, %v1778
      %v1780 = vpop.f32.mrb[0].mxu0
      %1781 = vmatprep.mubr.f32.mxu0 %v1014
      %1782 = vmatmul.mubr.f32.gmra.mrb[0].mxu0 %v557
      %v1783 = vpop.f32.mrb[0].mxu0
      %v1784 = vadd.f32 %v602, %v1783
      %v1785 = vpop.f32.mrb[0].mxu0
      %1786 = vmatprep.mubr.f32.mxu0 %v1017
      %1787 = vmatmul.mubr.f32.gmra.mrb[0].mxu0 %v559
      %v1788 = vpop.f32.mrb[0].mxu0
      %v1789 = vadd.f32 %v602, %v1788
      %v1790 = vpop.f32.mrb[0].mxu0
      %1791 = vmatprep.mubr.f32.mxu0 %v1020
      %1792 = vmatmul.mubr.f32.gmra.mrb[0].mxu0 %v561
      %v1793 = vpop.f32.mrb[0].mxu0
      %v1794 = vadd.f32 %v602, %v1793
      %v1795 = vpop.f32.mrb[0].mxu0
      %1796 = vmatprep.mubr.f32.mxu0 %v1023
      %1797 = vmatmul.mubr.f32.gmra.mrb[0].mxu0 %v563
      %v1798 = vpop.f32.mrb[0].mxu0
      %v1799 = vadd.f32 %v602, %v1798
      %v1800 = vpop.f32.mrb[0].mxu0
      %1801 = vmatprep.mubr.f32.mxu0 %v1026
      %1802 = vmatmul.mubr.f32.gmra.mrb[0].mxu0 %v565
      %v1803 = vpop.f32.mrb[0].mxu0
      %v1804 = vadd.f32 %v602, %v1803
      %v1805 = vpop.f32.mrb[0].mxu0
      %1806 = vmatprep.mubr.f32.mxu0 %v1029
      %1807 = vmatmul.mubr.f32.gmra.mrb[0].mxu0 %v567
      %v1808 = vpop.f32.mrb[0].mxu0
      %v1809 = vadd.f32 %v602, %v1808
      %v1810 = vpop.f32.mrb[0].mxu0
      %1811 = vmatprep.mubr.f32.mxu0 %v1032
      %1812 = vmatmul.mubr.f32.gmra.mrb[0].mxu0 %v569
      %v1813 = vpop.f32.mrb[0].mxu0
      %v1814 = vadd.f32 %v602, %v1813
      %v1815 = vpop.f32.mrb[0].mxu0
      %1816 = vmatprep.mubr.f32.mxu0 %v1035
      %1817 = vmatmul.mubr.f32.gmra.mrb[0].mxu0 %v571
      %v1818 = vpop.f32.mrb[0].mxu0
      %v1819 = vadd.f32 %v602, %v1818
      %v1820 = vpop.f32.mrb[0].mxu0
      %1821 = vdwg.mxu0
      %v1822 = vmax.f32 %v1104, 0.0
      %v1823 = vmax.f32 %v1109, 0.0
      %v1824 = vmax.f32 %v1114, 0.0
      %v1825 = vmax.f32 %v1119, 0.0
      %v1826 = vmax.f32 %v1124, 0.0
      %v1827 = vmax.f32 %v1129, 0.0
      %v1828 = vmax.f32 %v1134, 0.0
      %v1829 = vmax.f32 %v1139, 0.0
      %v1830 = vmax.f32 %v1144, 0.0
      %v1831 = vmax.f32 %v1149, 0.0
      %v1832 = vmax.f32 %v1154, 0.0
      %v1833 = vmax.f32 %v1159, 0.0
      %v1834 = vmax.f32 %v1164, 0.0
      %v1835 = vmax.f32 %v1169, 0.0
      %v1836 = vmax.f32 %v1174, 0.0
      %v1837 = vmax.f32 %v1179, 0.0
      %v1838 = vmax.f32 %v1184, 0.0
      %v1839 = vmax.f32 %v1189, 0.0
      %v1840 = vmax.f32 %v1194, 0.0
      %v1841 = vmax.f32 %v1199, 0.0
      %v1842 = vmax.f32 %v1204, 0.0
      %v1843 = vmax.f32 %v1209, 0.0
      %v1844 = vmax.f32 %v1214, 0.0
      %v1845 = vmax.f32 %v1219, 0.0
      %v1846 = vmax.f32 %v1224, 0.0
      %v1847 = vmax.f32 %v1229, 0.0
      %v1848 = vmax.f32 %v1234, 0.0
      %v1849 = vmax.f32 %v1239, 0.0
      %v1850 = vmax.f32 %v1244, 0.0
      %v1851 = vmax.f32 %v1249, 0.0
      %v1852 = vmax.f32 %v1254, 0.0
      %v1853 = vmax.f32 %v1259, 0.0
      %v1854 = vmax.f32 %v1264, 0.0
      %v1855 = vmax.f32 %v1269, 0.0
      %v1856 = vmax.f32 %v1274, 0.0
      %v1857 = vmax.f32 %v1279, 0.0
      %v1858 = vmax.f32 %v1284, 0.0
      %v1859 = vmax.f32 %v1289, 0.0
      %v1860 = vmax.f32 %v1294, 0.0
      %v1861 = vmax.f32 %v1299, 0.0
      %v1862 = vmax.f32 %v1304, 0.0
      %v1863 = vmax.f32 %v1309, 0.0
      %v1864 = vmax.f32 %v1314, 0.0
      %v1865 = vmax.f32 %v1319, 0.0
      %v1866 = vmax.f32 %v1324, 0.0
      %v1867 = vmax.f32 %v1329, 0.0
      %v1868 = vmax.f32 %v1334, 0.0
      %v1869 = vmax.f32 %v1339, 0.0
      %v1870 = vmax.f32 %v1344, 0.0
      %v1871 = vmax.f32 %v1349, 0.0
      %v1872 = vmax.f32 %v1354, 0.0
      %v1873 = vmax.f32 %v1359, 0.0
      %v1874 = vmax.f32 %v1364, 0.0
      %v1875 = vmax.f32 %v1369, 0.0
      %v1876 = vmax.f32 %v1374, 0.0
      %v1877 = vmax.f32 %v1379, 0.0
      %v1878 = vmax.f32 %v1384, 0.0
      %v1879 = vmax.f32 %v1389, 0.0
      %v1880 = vmax.f32 %v1394, 0.0
      %v1881 = vmax.f32 %v1399, 0.0
      %v1882 = vmax.f32 %v1404, 0.0
      %v1883 = vmax.f32 %v1409, 0.0
      %v1884 = vmax.f32 %v1414, 0.0
      %v1885 = vmax.f32 %v1419, 0.0
      %v1886 = vmax.f32 %v1424, 0.0
      %v1887 = vmax.f32 %v1429, 0.0
      %v1888 = vmax.f32 %v1434, 0.0
      %v1889 = vmax.f32 %v1439, 0.0
      %v1890 = vmax.f32 %v1444, 0.0
      %v1891 = vmax.f32 %v1449, 0.0
      %v1892 = vmax.f32 %v1454, 0.0
      %v1893 = vmax.f32 %v1459, 0.0
      %v1894 = vmax.f32 %v1464, 0.0
      %v1895 = vmax.f32 %v1469, 0.0
      %v1896 = vmax.f32 %v1474, 0.0
      %v1897 = vmax.f32 %v1479, 0.0
      %v1898 = vmax.f32 %v1484, 0.0
      %v1899 = vmax.f32 %v1489, 0.0
      %v1900 = vmax.f32 %v1494, 0.0
      %v1901 = vmax.f32 %v1499, 0.0
      %v1902 = vmax.f32 %v1504, 0.0
      %v1903 = vmax.f32 %v1509, 0.0
      %v1904 = vmax.f32 %v1514, 0.0
      %v1905 = vmax.f32 %v1519, 0.0
      %v1906 = vmax.f32 %v1524, 0.0
      %v1907 = vmax.f32 %v1529, 0.0
      %v1908 = vmax.f32 %v1534, 0.0
      %v1909 = vmax.f32 %v1539, 0.0
      %v1910 = vmax.f32 %v1544, 0.0
      %v1911 = vmax.f32 %v1549, 0.0
      %v1912 = vmax.f32 %v1554, 0.0
      %v1913 = vmax.f32 %v1559, 0.0
      %v1914 = vmax.f32 %v1564, 0.0
      %v1915 = vmax.f32 %v1569, 0.0
      %v1916 = vmax.f32 %v1574, 0.0
      %v1917 = vmax.f32 %v1579, 0.0
      %v1918 = vmax.f32 %v1584, 0.0
      %v1919 = vmax.f32 %v1589, 0.0
      %v1920 = vmax.f32 %v1594, 0.0
      %v1921 = vmax.f32 %v1599, 0.0
      %v1922 = vmax.f32 %v1604, 0.0
      %v1923 = vmax.f32 %v1609, 0.0
      %v1924 = vmax.f32 %v1614, 0.0
      %v1925 = vmax.f32 %v1619, 0.0
      %v1926 = vmax.f32 %v1624, 0.0
      %v1927 = vmax.f32 %v1629, 0.0
      %v1928 = vmax.f32 %v1634, 0.0
      %v1929 = vmax.f32 %v1639, 0.0
      %v1930 = vmax.f32 %v1644, 0.0
      %v1931 = vmax.f32 %v1649, 0.0
      %v1932 = vmax.f32 %v1654, 0.0
      %v1933 = vmax.f32 %v1659, 0.0
      %v1934 = vmax.f32 %v1664, 0.0
      %v1935 = vmax.f32 %v1669, 0.0
      %v1936 = vmax.f32 %v1674, 0.0
      %v1937 = vmax.f32 %v1679, 0.0
      %v1938 = vmax.f32 %v1684, 0.0
      %v1939 = vmax.f32 %v1689, 0.0
      %v1940 = vmax.f32 %v1694, 0.0
      %v1941 = vmax.f32 %v1699, 0.0
      %v1942 = vmax.f32 %v1704, 0.0
      %v1943 = vmax.f32 %v1709, 0.0
      %v1944 = vmax.f32 %v1714, 0.0
      %v1945 = vmax.f32 %v1719, 0.0
      %v1946 = vmax.f32 %v1724, 0.0
      %v1947 = vmax.f32 %v1729, 0.0
      %v1948 = vmax.f32 %v1734, 0.0
      %v1949 = vmax.f32 %v1739, 0.0
      %v1950 = vmax.f32 %v1744, 0.0
      %v1951 = vmax.f32 %v1749, 0.0
      %v1952 = vmax.f32 %v1754, 0.0
      %v1953 = vmax.f32 %v1759, 0.0
      %v1954 = vmax.f32 %v1764, 0.0
      %v1955 = vmax.f32 %v1769, 0.0
      %v1956 = vmax.f32 %v1774, 0.0
      %v1957 = vmax.f32 %v1779, 0.0
      %v1958 = vmax.f32 %v1784, 0.0
      %v1959 = vmax.f32 %v1789, 0.0
      %v1960 = vmax.f32 %v1794, 0.0
      %v1961 = vmax.f32 %v1799, 0.0
      %v1962 = vmax.f32 %v1804, 0.0
      %v1963 = vmax.f32 %v1809, 0.0
      %v1964 = vmax.f32 %v1814, 0.0
      %v1965 = vmax.f32 %v1819, 0.0
      %1966 = vst [vmem:[#allocation2] sm:$0xff] %v1822
      %1967 = vst [vmem:[#allocation2 + $0x8] sm:$0xff] %v1823
      %1968 = vst [vmem:[#allocation2 + $0x10] sm:$0xff] %v1824
      %1969 = vst [vmem:[#allocation2 + $0x18] sm:$0xff] %v1825
      %1970 = vst [vmem:[#allocation2 + $0x20] sm:$0xff] %v1826
      %1971 = vst [vmem:[#allocation2 + $0x28] sm:$0xff] %v1827
      %1972 = vst [vmem:[#allocation2 + $0x30] sm:$0xff] %v1828
      %1973 = vst [vmem:[#allocation2 + $0x38] sm:$0xff] %v1829
      %1974 = vst [vmem:[#allocation2 + $0x40] sm:$0xff] %v1830
      %1975 = vst [vmem:[#allocation2 + $0x48] sm:$0xff] %v1831
      %1976 = vst [vmem:[#allocation2 + $0x50] sm:$0xff] %v1832
      %1977 = vst [vmem:[#allocation2 + $0x58] sm:$0xff] %v1833
      %1978 = vst [vmem:[#allocation2 + $0x60] sm:$0xff] %v1834
      %1979 = vst [vmem:[#allocation2 + $0x68] sm:$0xff] %v1835
      %1980 = vst [vmem:[#allocation2 + $0x70] sm:$0xff] %v1836
      %1981 = vst [vmem:[#allocation2 + $0x78] sm:$0xff] %v1837
      %1982 = vst [vmem:[#allocation2 + $0x80] sm:$0xff] %v1838
      %1983 = vst [vmem:[#allocation2 + $0x88] sm:$0xff] %v1839
      %1984 = vst [vmem:[#allocation2 + $0x90] sm:$0xff] %v1840
      %1985 = vst [vmem:[#allocation2 + $0x98] sm:$0xff] %v1841
      %1986 = vst [vmem:[#allocation2 + $0xa0] sm:$0xff] %v1842
      %1987 = vst [vmem:[#allocation2 + $0xa8] sm:$0xff] %v1843
      %1988 = vst [vmem:[#allocation2 + $0xb0] sm:$0xff] %v1844
      %1989 = vst [vmem:[#allocation2 + $0xb8] sm:$0xff] %v1845
      %1990 = vst [vmem:[#allocation2 + $0xc0] sm:$0xff] %v1846
      %1991 = vst [vmem:[#allocation2 + $0xc8] sm:$0xff] %v1847
      %1992 = vst [vmem:[#allocation2 + $0xd0] sm:$0xff] %v1848
      %1993 = vst [vmem:[#allocation2 + $0xd8] sm:$0xff] %v1849
      %1994 = vst [vmem:[#allocation2 + $0xe0] sm:$0xff] %v1850
      %1995 = vst [vmem:[#allocation2 + $0xe8] sm:$0xff] %v1851
      %1996 = vst [vmem:[#allocation2 + $0xf0] sm:$0xff] %v1852
      %1997 = vst [vmem:[#allocation2 + $0xf8] sm:$0xff] %v1853
      %1998 = vst [vmem:[#allocation2 + $0x100] sm:$0xff] %v1854
      %1999 = vst [vmem:[#allocation2 + $0x108] sm:$0xff] %v1855
      %2000 = vst [vmem:[#allocation2 + $0x110] sm:$0xff] %v1856
      %2001 = vst [vmem:[#allocation2 + $0x118] sm:$0xff] %v1857
      %2002 = vst [vmem:[#allocation2 + $0x120] sm:$0xff] %v1858
      %2003 = vst [vmem:[#allocation2 + $0x128] sm:$0xff] %v1859
      %2004 = vst [vmem:[#allocation2 + $0x130] sm:$0xff] %v1860
      %2005 = vst [vmem:[#allocation2 + $0x138] sm:$0xff] %v1861
      %2006 = vst [vmem:[#allocation2 + $0x140] sm:$0xff] %v1862
      %2007 = vst [vmem:[#allocation2 + $0x148] sm:$0xff] %v1863
      %2008 = vst [vmem:[#allocation2 + $0x150] sm:$0xff] %v1864
      %2009 = vst [vmem:[#allocation2 + $0x158] sm:$0xff] %v1865
      %2010 = vst [vmem:[#allocation2 + $0x160] sm:$0xff] %v1866
      %2011 = vst [vmem:[#allocation2 + $0x168] sm:$0xff] %v1867
      %2012 = vst [vmem:[#allocation2 + $0x170] sm:$0xff] %v1868
      %2013 = vst [vmem:[#allocation2 + $0x178] sm:$0xff] %v1869
      %2014 = vst [vmem:[#allocation2 + $0x180] sm:$0xff] %v1870
      %2015 = vst [vmem:[#allocation2 + $0x188] sm:$0xff] %v1871
      %2016 = vst [vmem:[#allocation2 + $0x190] sm:$0xff] %v1872
      %2017 = vst [vmem:[#allocation2 + $0x198] sm:$0xff] %v1873
      %2018 = vst [vmem:[#allocation2 + $0x1a0] sm:$0xff] %v1874
      %2019 = vst [vmem:[#allocation2 + $0x1a8] sm:$0xff] %v1875
      %2020 = vst [vmem:[#allocation2 + $0x1b0] sm:$0xff] %v1876
      %2021 = vst [vmem:[#allocation2 + $0x1b8] sm:$0xff] %v1877
      %2022 = vst [vmem:[#allocation2 + $0x1c0] sm:$0xff] %v1878
      %2023 = vst [vmem:[#allocation2 + $0x1c8] sm:$0xff] %v1879
      %2024 = vst [vmem:[#allocation2 + $0x1d0] sm:$0xff] %v1880
      %2025 = vst [vmem:[#allocation2 + $0x1d8] sm:$0xff] %v1881
      %2026 = vst [vmem:[#allocation2 + $0x1e0] sm:$0xff] %v1882
      %2027 = vst [vmem:[#allocation2 + $0x1e8] sm:$0xff] %v1883
      %2028 = vst [vmem:[#allocation2 + $0x1f0] sm:$0xff] %v1884
      %2029 = vst [vmem:[#allocation2 + $0x1f8] sm:$0xff] %v1885
      %2030 = vst [vmem:[#allocation2 + $0x200] sm:$0xff] %v1886
      %2031 = vst [vmem:[#allocation2 + $0x208] sm:$0xff] %v1887
      %2032 = vst [vmem:[#allocation2 + $0x210] sm:$0xff] %v1888
      %2033 = vst [vmem:[#allocation2 + $0x218] sm:$0xff] %v1889
      %2034 = vst [vmem:[#allocation2 + $0x220] sm:$0xff] %v1890
      %2035 = vst [vmem:[#allocation2 + $0x228] sm:$0xff] %v1891
      %2036 = vst [vmem:[#allocation2 + $0x230] sm:$0xff] %v1892
      %2037 = vst [vmem:[#allocation2 + $0x238] sm:$0xff] %v1893
      %2038 = vst [vmem:[#allocation2 + $0x240] sm:$0xff] %v1894
      %2039 = vst [vmem:[#allocation2 + $0x248] sm:$0xff] %v1895
      %2040 = vst [vmem:[#allocation2 + $0x250] sm:$0xff] %v1896
      %2041 = vst [vmem:[#allocation2 + $0x258] sm:$0xff] %v1897
      %2042 = vst [vmem:[#allocation2 + $0x260] sm:$0xff] %v1898
      %2043 = vst [vmem:[#allocation2 + $0x268] sm:$0xff] %v1899
      %2044 = vst [vmem:[#allocation2 + $0x270] sm:$0xff] %v1900
      %2045 = vst [vmem:[#allocation2 + $0x278] sm:$0xff] %v1901
      %2046 = vst [vmem:[#allocation2 + $0x280] sm:$0xff] %v1902
      %2047 = vst [vmem:[#allocation2 + $0x288] sm:$0xff] %v1903
      %2048 = vst [vmem:[#allocation2 + $0x290] sm:$0xff] %v1904
      %2049 = vst [vmem:[#allocation2 + $0x298] sm:$0xff] %v1905
      %2050 = vst [vmem:[#allocation2 + $0x2a0] sm:$0xff] %v1906
      %2051 = vst [vmem:[#allocation2 + $0x2a8] sm:$0xff] %v1907
      %2052 = vst [vmem:[#allocation2 + $0x2b0] sm:$0xff] %v1908
      %2053 = vst [vmem:[#allocation2 + $0x2b8] sm:$0xff] %v1909
      %2054 = vst [vmem:[#allocation2 + $0x2c0] sm:$0xff] %v1910
      %2055 = vst [vmem:[#allocation2 + $0x2c8] sm:$0xff] %v1911
      %2056 = vst [vmem:[#allocation2 + $0x2d0] sm:$0xff] %v1912
      %2057 = vst [vmem:[#allocation2 + $0x2d8] sm:$0xff] %v1913
      %2058 = vst [vmem:[#allocation2 + $0x2e0] sm:$0xff] %v1914
      %2059 = vst [vmem:[#allocation2 + $0x2e8] sm:$0xff] %v1915
      %2060 = vst [vmem:[#allocation2 + $0x2f0] sm:$0xff] %v1916
      %2061 = vst [vmem:[#allocation2 + $0x2f8] sm:$0xff] %v1917
      %2062 = vst [vmem:[#allocation2 + $0x300] sm:$0xff] %v1918
      %2063 = vst [vmem:[#allocation2 + $0x308] sm:$0xff] %v1919
      %2064 = vst [vmem:[#allocation2 + $0x310] sm:$0xff] %v1920
      %2065 = vst [vmem:[#allocation2 + $0x318] sm:$0xff] %v1921
      %2066 = vst [vmem:[#allocation2 + $0x320] sm:$0xff] %v1922
      %2067 = vst [vmem:[#allocation2 + $0x328] sm:$0xff] %v1923
      %2068 = vst [vmem:[#allocation2 + $0x330] sm:$0xff] %v1924
      %2069 = vst [vmem:[#allocation2 + $0x338] sm:$0xff] %v1925
      %2070 = vst [vmem:[#allocation2 + $0x340] sm:$0xff] %v1926
      %2071 = vst [vmem:[#allocation2 + $0x348] sm:$0xff] %v1927
      %2072 = vst [vmem:[#allocation2 + $0x350] sm:$0xff] %v1928
      %2073 = vst [vmem:[#allocation2 + $0x358] sm:$0xff] %v1929
      %2074 = vst [vmem:[#allocation2 + $0x360] sm:$0xff] %v1930
      %2075 = vst [vmem:[#allocation2 + $0x368] sm:$0xff] %v1931
      %2076 = vst [vmem:[#allocation2 + $0x370] sm:$0xff] %v1932
      %2077 = vst [vmem:[#allocation2 + $0x378] sm:$0xff] %v1933
      %2078 = vst [vmem:[#allocation2 + $0x380] sm:$0xff] %v1934
      %2079 = vst [vmem:[#allocation2 + $0x388] sm:$0xff] %v1935
      %2080 = vst [vmem:[#allocation2 + $0x390] sm:$0xff] %v1936
      %2081 = vst [vmem:[#allocation2 + $0x398] sm:$0xff] %v1937
      %2082 = vst [vmem:[#allocation2 + $0x3a0] sm:$0xff] %v1938
      %2083 = vst [vmem:[#allocation2 + $0x3a8] sm:$0xff] %v1939
      %2084 = vst [vmem:[#allocation2 + $0x3b0] sm:$0xff] %v1940
      %2085 = vst [vmem:[#allocation2 + $0x3b8] sm:$0xff] %v1941
      %2086 = vst [vmem:[#allocation2 + $0x3c0] sm:$0xff] %v1942
      %2087 = vst [vmem:[#allocation2 + $0x3c8] sm:$0xff] %v1943
      %2088 = vst [vmem:[#allocation2 + $0x3d0] sm:$0xff] %v1944
      %2089 = vst [vmem:[#allocation2 + $0x3d8] sm:$0xff] %v1945
      %2090 = vst [vmem:[#allocation2 + $0x3e0] sm:$0xff] %v1946
      %2091 = vst [vmem:[#allocation2 + $0x3e8] sm:$0xff] %v1947
      %2092 = vst [vmem:[#allocation2 + $0x3f0] sm:$0xff] %v1948
      %2093 = vst [vmem:[#allocation2 + $0x3f8] sm:$0xff] %v1949
      %2094 = vst [vmem:[#allocation2 + $0x400] sm:$0xff] %v1950
      %2095 = vst [vmem:[#allocation2 + $0x408] sm:$0xff] %v1951
      %2096 = vst [vmem:[#allocation2 + $0x410] sm:$0xff] %v1952
      %2097 = vst [vmem:[#allocation2 + $0x418] sm:$0xff] %v1953
      %2098 = vst [vmem:[#allocation2 + $0x420] sm:$0xff] %v1954
      %2099 = vst [vmem:[#allocation2 + $0x428] sm:$0xff] %v1955
      %2100 = vst [vmem:[#allocation2 + $0x430] sm:$0xff] %v1956
      %2101 = vst [vmem:[#allocation2 + $0x438] sm:$0xff] %v1957
      %2102 = vst [vmem:[#allocation2 + $0x440] sm:$0xff] %v1958
      %2103 = vst [vmem:[#allocation2 + $0x448] sm:$0xff] %v1959
      %2104 = vst [vmem:[#allocation2 + $0x450] sm:$0xff] %v1960
      %2105 = vst [vmem:[#allocation2 + $0x458] sm:$0xff] %v1961
      %2106 = vst [vmem:[#allocation2 + $0x460] sm:$0xff] %v1962
      %2107 = vst [vmem:[#allocation2 + $0x468] sm:$0xff] %v1963
      %2108 = vst [vmem:[#allocation2 + $0x470] sm:$0xff] %v1964
      %2109 = vst [vmem:[#allocation2 + $0x478] sm:$0xff] %v1965
      %v2110 = vld [vmem:[%s4] sm:$0x1]
      %v2112 = vlaneseq
      %v2113 = vshrl.u32 %v2112, 7
      %v2114 = vsub.s32 0, %v2113
      %v2115 = vrot.slane %v2110, %v2114
      %v2117 = vld [vmem:[#allocation2] sm:$0xff]
      %v2118 = vld [vmem:[#allocation2 + $0x8] sm:$0xff]
      %v2119 = vld [vmem:[#allocation2 + $0x10] sm:$0xff]
      %v2120 = vld [vmem:[#allocation2 + $0x18] sm:$0xff]
      %v2121 = vld [vmem:[#allocation2 + $0x20] sm:$0xff]
      %v2122 = vld [vmem:[#allocation2 + $0x60] sm:$0xff]
      %v2123 = vld [vmem:[#allocation2 + $0x68] sm:$0xff]
      %v2124 = vld [vmem:[#allocation2 + $0x70] sm:$0xff]
      %v2125 = vld [vmem:[#allocation2 + $0x78] sm:$0xff]
      %v2126 = vld [vmem:[#allocation2 + $0x80] sm:$0xff]
      %v2127 = vld [vmem:[#allocation2 + $0xc0] sm:$0xff]
      %v2128 = vld [vmem:[#allocation2 + $0xc8] sm:$0xff]
      %v2129 = vld [vmem:[#allocation2 + $0xd0] sm:$0xff]
      %v2130 = vld [vmem:[#allocation2 + $0xd8] sm:$0xff]
      %v2131 = vld [vmem:[#allocation2 + $0xe0] sm:$0xff]
      %v2132 = vld [vmem:[#allocation2 + $0x120] sm:$0xff]
      %v2133 = vld [vmem:[#allocation2 + $0x128] sm:$0xff]
      %v2134 = vld [vmem:[#allocation2 + $0x130] sm:$0xff]
      %v2135 = vld [vmem:[#allocation2 + $0x138] sm:$0xff]
      %v2136 = vld [vmem:[#allocation2 + $0x140] sm:$0xff]
      %v2137 = vld [vmem:[#allocation2 + $0x180] sm:$0xff]
      %v2138 = vld [vmem:[#allocation2 + $0x188] sm:$0xff]
      %v2139 = vld [vmem:[#allocation2 + $0x190] sm:$0xff]
      %v2140 = vld [vmem:[#allocation2 + $0x198] sm:$0xff]
      %v2141 = vld [vmem:[#allocation2 + $0x1a0] sm:$0xff]
      %v2142 = vld [vmem:[%s3] sm:$0xff]
      %v2143 = vld [vmem:[%s3 + $0x8] sm:$0xff]
      %v2144 = vld [vmem:[%s3 + $0x10] sm:$0xff]
      %v2145 = vld [vmem:[%s3 + $0x18] sm:$0xff]
      %v2146 = vld [vmem:[%s3 + $0x20] sm:$0xff]
      %v2147 = vld [vmem:[%s3 + $0x28] sm:$0xff]
      %v2148 = vld [vmem:[%s3 + $0x30] sm:$0xff]
      %v2149 = vld [vmem:[%s3 + $0x38] sm:$0xff]
      %v2150 = vld [vmem:[%s3 + $0x40] sm:$0xff]
      %v2151 = vld [vmem:[%s3 + $0x48] sm:$0xff]
      %v2152 = vld [vmem:[%s3 + $0x50] sm:$0xff]
      %v2153 = vld [vmem:[%s3 + $0x58] sm:$0xff]
      %v2154 = vld [vmem:[%s3 + $0x60] sm:$0xff]
      %v2155 = vld [vmem:[%s3 + $0x68] sm:$0xff]
      %v2156 = vld [vmem:[%s3 + $0x70] sm:$0xff]
      %v2157 = vld [vmem:[%s3 + $0x78] sm:$0xff]
      %2158 = vmatprep.subr.mxu0 0.0
      %2159 = vmatpush1.msra.mxu0 %v2142
      %2160 = vmatprep.subr.mxu0 0.0
      %2161 = vmatpush1.msra.mxu0 %v2143
      %2162 = vmatprep.subr.mxu0 0.0
      %2163 = vmatpush1.msra.mxu0 %v2144
      %2164 = vmatprep.subr.mxu0 0.0
      %2165 = vmatpush1.msra.mxu0 %v2145
      %2166 = vmatprep.subr.mxu0 0.0
      %2167 = vmatpush1.msra.mxu0 %v2146
      %2168 = vmatprep.subr.mxu0 0.0
      %2169 = vmatpush1.msra.mxu0 %v2147
      %2170 = vmatprep.subr.mxu0 0.0
      %2171 = vmatpush1.msra.mxu0 %v2148
      %2172 = vmatprep.subr.mxu0 0.0
      %2173 = vmatpush1.msra.mxu0 %v2149
      %2174 = vmatprep.subr.mxu0 0.0
      %2175 = vmatpush1.msra.mxu0 %v2150
      %2176 = vmatprep.subr.mxu0 0.0
      %2177 = vmatpush1.msra.mxu0 %v2151
      %2178 = vmatprep.subr.mxu0 0.0
      %2179 = vmatpush1.msra.mxu0 %v2152
      %2180 = vmatprep.subr.mxu0 0.0
      %2181 = vmatpush1.msra.mxu0 %v2153
      %2182 = vmatprep.subr.mxu0 0.0
      %2183 = vmatpush1.msra.mxu0 %v2154
      %2184 = vmatprep.subr.mxu0 0.0
      %2185 = vmatpush1.msra.mxu0 %v2155
      %2186 = vmatprep.subr.mxu0 0.0
      %2187 = vmatpush1.msra.mxu0 %v2156
      %2188 = vmatprep.subr.mxu0 0.0
      %2189 = vmatpush1.msra.mxu0 %v2157
      %2190 = vmatprep.subr.mxu0 0.0
      %2191 = vmatpush1.msra.mxu0 0.0
      %2192 = vmatprep.subr.mxu0 0.0
      %2193 = vmatpush1.msra.mxu0 0.0
      %2194 = vmatprep.subr.mxu0 0.0
      %2195 = vmatpush1.msra.mxu0 0.0
      %2196 = vmatprep.subr.mxu0 0.0
      %2197 = vmatpush1.msra.mxu0 0.0
      %2198 = vmatprep.subr.mxu0 0.0
      %2199 = vmatpush1.msra.mxu0 0.0
      %2200 = vmatprep.subr.mxu0 0.0
      %2201 = vmatpush1.msra.mxu0 0.0
      %2202 = vmatprep.subr.mxu0 0.0
      %2203 = vmatpush1.msra.mxu0 0.0
      %2204 = vmatprep.subr.mxu0 0.0
      %2205 = vmatpush1.msra.mxu0 0.0
      %2206 = vmatprep.subr.mxu0 0.0
      %2207 = vmatpush1.msra.mxu0 0.0
      %2208 = vmatprep.subr.mxu0 0.0
      %2209 = vmatpush1.msra.mxu0 0.0
      %2210 = vmatprep.subr.mxu0 0.0
      %2211 = vmatpush1.msra.mxu0 0.0
      %2212 = vmatprep.subr.mxu0 0.0
      %2213 = vmatpush1.msra.mxu0 0.0
      %2214 = vmatprep.subr.mxu0 0.0
      %2215 = vmatpush1.msra.mxu0 0.0
      %2216 = vmatprep.subr.mxu0 0.0
      %2217 = vmatpush1.msra.mxu0 0.0
      %2218 = vmatprep.subr.mxu0 0.0
      %2219 = vmatpush1.msra.mxu0 0.0
      %2220 = vmatprep.subr.mxu0 0.0
      %2221 = vmatpush1.msra.mxu0 0.0
      %2222 = vmatprep.mubr.f32.mxu0 0.0
      %2223 = vmatmul.mubr.f32.gmra.mrb[0].mxu0 %v2117
      %v2224 = vpop.f32.mrb[0].mxu0
      %v2225 = vadd.f32 0.0, %v2224
      %v2226 = vpop.f32.mrb[0].mxu0
      %2227 = vmatprep.mubr.f32.mxu0 0.0
      %2228 = vmatmul.mubr.f32.gmra.mrb[0].mxu0 %v2118
      %v2229 = vpop.f32.mrb[0].mxu0
      %v2230 = vadd.f32 0.0, %v2229
      %v2231 = vpop.f32.mrb[0].mxu0
      %2232 = vmatprep.mubr.f32.mxu0 0.0
      %2233 = vmatmul.mubr.f32.gmra.mrb[0].mxu0 %v2119
      %v2234 = vpop.f32.mrb[0].mxu0
      %v2235 = vadd.f32 0.0, %v2234
      %v2236 = vpop.f32.mrb[0].mxu0
      %2237 = vmatprep.mubr.f32.mxu0 0.0
      %2238 = vmatmul.mubr.f32.gmra.mrb[0].mxu0 %v2120
      %v2239 = vpop.f32.mrb[0].mxu0
      %v2240 = vadd.f32 0.0, %v2239
      %v2241 = vpop.f32.mrb[0].mxu0
      %2242 = vmatprep.mubr.f32.mxu0 0.0
      %2243 = vmatmul.mubr.f32.gmra.mrb[0].mxu0 %v2121
      %v2244 = vpop.f32.mrb[0].mxu0
      %v2245 = vadd.f32 0.0, %v2244
      %v2246 = vpop.f32.mrb[0].mxu0
      %2247 = vmatprep.mubr.f32.mxu0 0.0
      %2248 = vmatmul.mubr.f32.gmra.mrb[0].mxu0 %v2122
      %v2249 = vpop.f32.mrb[0].mxu0
      %v2250 = vadd.f32 0.0, %v2249
      %v2251 = vpop.f32.mrb[0].mxu0
      %2252 = vmatprep.mubr.f32.mxu0 0.0
      %2253 = vmatmul.mubr.f32.gmra.mrb[0].mxu0 %v2123
      %v2254 = vpop.f32.mrb[0].mxu0
      %v2255 = vadd.f32 0.0, %v2254
      %v2256 = vpop.f32.mrb[0].mxu0
      %2257 = vmatprep.mubr.f32.mxu0 0.0
      %2258 = vmatmul.mubr.f32.gmra.mrb[0].mxu0 %v2124
      %v2259 = vpop.f32.mrb[0].mxu0
      %v2260 = vadd.f32 0.0, %v2259
      %v2261 = vpop.f32.mrb[0].mxu0
      %2262 = vmatprep.mubr.f32.mxu0 0.0
      %2263 = vmatmul.mubr.f32.gmra.mrb[0].mxu0 %v2125
      %v2264 = vpop.f32.mrb[0].mxu0
      %v2265 = vadd.f32 0.0, %v2264
      %v2266 = vpop.f32.mrb[0].mxu0
      %2267 = vmatprep.mubr.f32.mxu0 0.0
      %2268 = vmatmul.mubr.f32.gmra.mrb[0].mxu0 %v2126
      %v2269 = vpop.f32.mrb[0].mxu0
      %v2270 = vadd.f32 0.0, %v2269
      %v2271 = vpop.f32.mrb[0].mxu0
      %2272 = vmatprep.mubr.f32.mxu0 0.0
      %2273 = vmatmul.mubr.f32.gmra.mrb[0].mxu0 %v2127
      %v2274 = vpop.f32.mrb[0].mxu0
      %v2275 = vadd.f32 0.0, %v2274
      %v2276 = vpop.f32.mrb[0].mxu0
      %2277 = vmatprep.mubr.f32.mxu0 0.0
      %2278 = vmatmul.mubr.f32.gmra.mrb[0].mxu0 %v2128
      %v2279 = vpop.f32.mrb[0].mxu0
      %v2280 = vadd.f32 0.0, %v2279
      %v2281 = vpop.f32.mrb[0].mxu0
      %2282 = vmatprep.mubr.f32.mxu0 0.0
      %2283 = vmatmul.mubr.f32.gmra.mrb[0].mxu0 %v2129
      %v2284 = vpop.f32.mrb[0].mxu0
      %v2285 = vadd.f32 0.0, %v2284
      %v2286 = vpop.f32.mrb[0].mxu0
      %2287 = vmatprep.mubr.f32.mxu0 0.0
      %2288 = vmatmul.mubr.f32.gmra.mrb[0].mxu0 %v2130
      %v2289 = vpop.f32.mrb[0].mxu0
      %v2290 = vadd.f32 0.0, %v2289
      %v2291 = vpop.f32.mrb[0].mxu0
      %2292 = vmatprep.mubr.f32.mxu0 0.0
      %2293 = vmatmul.mubr.f32.gmra.mrb[0].mxu0 %v2131
      %v2294 = vpop.f32.mrb[0].mxu0
      %v2295 = vadd.f32 0.0, %v2294
      %v2296 = vpop.f32.mrb[0].mxu0
      %2297 = vmatprep.mubr.f32.mxu0 0.0
      %2298 = vmatmul.mubr.f32.gmra.mrb[0].mxu0 %v2132
      %v2299 = vpop.f32.mrb[0].mxu0
      %v2300 = vadd.f32 0.0, %v2299
      %v2301 = vpop.f32.mrb[0].mxu0
      %2302 = vmatprep.mubr.f32.mxu0 0.0
      %2303 = vmatmul.mubr.f32.gmra.mrb[0].mxu0 %v2133
      %v2304 = vpop.f32.mrb[0].mxu0
      %v2305 = vadd.f32 0.0, %v2304
      %v2306 = vpop.f32.mrb[0].mxu0
      %2307 = vmatprep.mubr.f32.mxu0 0.0
      %2308 = vmatmul.mubr.f32.gmra.mrb[0].mxu0 %v2134
      %v2309 = vpop.f32.mrb[0].mxu0
      %v2310 = vadd.f32 0.0, %v2309
      %v2311 = vpop.f32.mrb[0].mxu0
      %2312 = vmatprep.mubr.f32.mxu0 0.0
      %2313 = vmatmul.mubr.f32.gmra.mrb[0].mxu0 %v2135
      %v2314 = vpop.f32.mrb[0].mxu0
      %v2315 = vadd.f32 0.0, %v2314
      %v2316 = vpop.f32.mrb[0].mxu0
      %2317 = vmatprep.mubr.f32.mxu0 0.0
      %2318 = vmatmul.mubr.f32.gmra.mrb[0].mxu0 %v2136
      %v2319 = vpop.f32.mrb[0].mxu0
      %v2320 = vadd.f32 0.0, %v2319
      %v2321 = vpop.f32.mrb[0].mxu0
      %2322 = vmatprep.mubr.f32.mxu0 0.0
      %2323 = vmatmul.mubr.f32.gmra.mrb[0].mxu0 %v2137
      %v2324 = vpop.f32.mrb[0].mxu0
      %v2325 = vadd.f32 0.0, %v2324
      %v2326 = vpop.f32.mrb[0].mxu0
      %2327 = vmatprep.mubr.f32.mxu0 0.0
      %2328 = vmatmul.mubr.f32.gmra.mrb[0].mxu0 %v2138
      %v2329 = vpop.f32.mrb[0].mxu0
      %v2330 = vadd.f32 0.0, %v2329
      %v2331 = vpop.f32.mrb[0].mxu0
      %2332 = vmatprep.mubr.f32.mxu0 0.0
      %2333 = vmatmul.mubr.f32.gmra.mrb[0].mxu0 %v2139
      %v2334 = vpop.f32.mrb[0].mxu0
      %v2335 = vadd.f32 0.0, %v2334
      %v2336 = vpop.f32.mrb[0].mxu0
      %2337 = vmatprep.mubr.f32.mxu0 0.0
      %2338 = vmatmul.mubr.f32.gmra.mrb[0].mxu0 %v2140
      %v2339 = vpop.f32.mrb[0].mxu0
      %v2340 = vadd.f32 0.0, %v2339
      %v2341 = vpop.f32.mrb[0].mxu0
      %2342 = vmatprep.mubr.f32.mxu0 0.0
      %2343 = vmatmul.mubr.f32.gmra.mrb[0].mxu0 %v2141
      %v2344 = vpop.f32.mrb[0].mxu0
      %v2345 = vadd.f32 0.0, %v2344
      %v2346 = vpop.f32.mrb[0].mxu0
      %2347 = vdwg.mxu0
      %v2348 = vadd.f32 %v2115, %v2225
      %v2349 = vadd.f32 %v2115, %v2230
      %v2350 = vadd.f32 %v2115, %v2235
      %v2351 = vadd.f32 %v2115, %v2240
      %v2352 = vadd.f32 %v2115, %v2245
      %v2353 = vadd.f32 %v2115, %v2250
      %v2354 = vadd.f32 %v2115, %v2255
      %v2355 = vadd.f32 %v2115, %v2260
      %v2356 = vadd.f32 %v2115, %v2265
      %v2357 = vadd.f32 %v2115, %v2270
      %v2358 = vadd.f32 %v2115, %v2275
      %v2359 = vadd.f32 %v2115, %v2280
      %v2360 = vadd.f32 %v2115, %v2285
      %v2361 = vadd.f32 %v2115, %v2290
      %v2362 = vadd.f32 %v2115, %v2295
      %v2363 = vadd.f32 %v2115, %v2300
      %v2364 = vadd.f32 %v2115, %v2305
      %v2365 = vadd.f32 %v2115, %v2310
      %v2366 = vadd.f32 %v2115, %v2315
      %v2367 = vadd.f32 %v2115, %v2320
      %v2368 = vadd.f32 %v2115, %v2325
      %v2369 = vadd.f32 %v2115, %v2330
      %v2370 = vadd.f32 %v2115, %v2335
      %v2371 = vadd.f32 %v2115, %v2340
      %v2372 = vadd.f32 %v2115, %v2345
      %s2373 = scalar_lea.vmem [#allocation2], 48
      %v2374 = vld [vmem:[%s2373] sm:$0xff]
      %v2375 = vld [vmem:[%s2373 + $0x8] sm:$0xff]
      %v2376 = vld [vmem:[%s2373 + $0x10] sm:$0xff]
      %v2377 = vld [vmem:[%s2373 + $0x18] sm:$0xff]
      %v2378 = vld [vmem:[%s2373 + $0x20] sm:$0xff]
      %v2379 = vld [vmem:[%s2373 + $0x60] sm:$0xff]
      %v2380 = vld [vmem:[%s2373 + $0x68] sm:$0xff]
      %v2381 = vld [vmem:[%s2373 + $0x70] sm:$0xff]
      %v2382 = vld [vmem:[%s2373 + $0x78] sm:$0xff]
      %v2383 = vld [vmem:[%s2373 + $0x80] sm:$0xff]
      %v2384 = vld [vmem:[%s2373 + $0xc0] sm:$0xff]
      %v2385 = vld [vmem:[%s2373 + $0xc8] sm:$0xff]
      %v2386 = vld [vmem:[%s2373 + $0xd0] sm:$0xff]
      %v2387 = vld [vmem:[%s2373 + $0xd8] sm:$0xff]
      %v2388 = vld [vmem:[%s2373 + $0xe0] sm:$0xff]
      %v2389 = vld [vmem:[%s2373 + $0x120] sm:$0xff]
      %v2390 = vld [vmem:[%s2373 + $0x128] sm:$0xff]
      %v2391 = vld [vmem:[%s2373 + $0x130] sm:$0xff]
      %v2392 = vld [vmem:[%s2373 + $0x138] sm:$0xff]
      %v2393 = vld [vmem:[%s2373 + $0x140] sm:$0xff]
      %v2394 = vld [vmem:[%s2373 + $0x180] sm:$0xff]
      %v2395 = vld [vmem:[%s2373 + $0x188] sm:$0xff]
      %v2396 = vld [vmem:[%s2373 + $0x190] sm:$0xff]
      %v2397 = vld [vmem:[%s2373 + $0x198] sm:$0xff]
      %v2398 = vld [vmem:[%s2373 + $0x1a0] sm:$0xff]
      %s2399 = scalar_lea.vmem %s3, 128
      %v2400 = vld [vmem:[%s2399] sm:$0xff]
      %v2401 = vld [vmem:[%s2399 + $0x8] sm:$0xff]
      %v2402 = vld [vmem:[%s2399 + $0x10] sm:$0xff]
      %v2403 = vld [vmem:[%s2399 + $0x18] sm:$0xff]
      %v2404 = vld [vmem:[%s2399 + $0x20] sm:$0xff]
      %v2405 = vld [vmem:[%s2399 + $0x28] sm:$0xff]
      %v2406 = vld [vmem:[%s2399 + $0x30] sm:$0xff]
      %v2407 = vld [vmem:[%s2399 + $0x38] sm:$0xff]
      %v2408 = vld [vmem:[%s2399 + $0x40] sm:$0xff]
      %v2409 = vld [vmem:[%s2399 + $0x48] sm:$0xff]
      %v2410 = vld [vmem:[%s2399 + $0x50] sm:$0xff]
      %v2411 = vld [vmem:[%s2399 + $0x58] sm:$0xff]
      %v2412 = vld [vmem:[%s2399 + $0x60] sm:$0xff]
      %v2413 = vld [vmem:[%s2399 + $0x68] sm:$0xff]
      %v2414 = vld [vmem:[%s2399 + $0x70] sm:$0xff]
      %v2415 = vld [vmem:[%s2399 + $0x78] sm:$0xff]
      %s2416 = scalar_lea.vmem [#allocation2], 8
      %v2417 = vld [vmem:[%s2416] sm:$0xff]
      %v2418 = vld [vmem:[%s2416 + $0x8] sm:$0xff]
      %v2419 = vld [vmem:[%s2416 + $0x10] sm:$0xff]
      %v2420 = vld [vmem:[%s2416 + $0x18] sm:$0xff]
      %v2421 = vld [vmem:[%s2416 + $0x20] sm:$0xff]
      %v2422 = vld [vmem:[%s2416 + $0x60] sm:$0xff]
      %v2423 = vld [vmem:[%s2416 + $0x68] sm:$0xff]
      %v2424 = vld [vmem:[%s2416 + $0x70] sm:$0xff]
      %v2425 = vld [vmem:[%s2416 + $0x78] sm:$0xff]
      %v2426 = vld [vmem:[%s2416 + $0x80] sm:$0xff]
      %v2427 = vld [vmem:[%s2416 + $0xc0] sm:$0xff]
      %v2428 = vld [vmem:[%s2416 + $0xc8] sm:$0xff]
      %v2429 = vld [vmem:[%s2416 + $0xd0] sm:$0xff]
      %v2430 = vld [vmem:[%s2416 + $0xd8] sm:$0xff]
      %v2431 = vld [vmem:[%s2416 + $0xe0] sm:$0xff]
      %v2432 = vld [vmem:[%s2416 + $0x120] sm:$0xff]
      %v2433 = vld [vmem:[%s2416 + $0x128] sm:$0xff]
      %v2434 = vld [vmem:[%s2416 + $0x130] sm:$0xff]
      %v2435 = vld [vmem:[%s2416 + $0x138] sm:$0xff]
      %v2436 = vld [vmem:[%s2416 + $0x140] sm:$0xff]
      %v2437 = vld [vmem:[%s2416 + $0x180] sm:$0xff]
      %v2438 = vld [vmem:[%s2416 + $0x188] sm:$0xff]
      %v2439 = vld [vmem:[%s2416 + $0x190] sm:$0xff]
      %v2440 = vld [vmem:[%s2416 + $0x198] sm:$0xff]
      %v2441 = vld [vmem:[%s2416 + $0x1a0] sm:$0xff]
      %s2442 = scalar_lea.vmem %s3, 256
      %v2443 = vld [vmem:[%s2442] sm:$0xff]
      %v2444 = vld [vmem:[%s2442 + $0x8] sm:$0xff]
      %v2445 = vld [vmem:[%s2442 + $0x10] sm:$0xff]
      %v2446 = vld [vmem:[%s2442 + $0x18] sm:$0xff]
      %v2447 = vld [vmem:[%s2442 + $0x20] sm:$0xff]
      %v2448 = vld [vmem:[%s2442 + $0x28] sm:$0xff]
      %v2449 = vld [vmem:[%s2442 + $0x30] sm:$0xff]
      %v2450 = vld [vmem:[%s2442 + $0x38] sm:$0xff]
      %v2451 = vld [vmem:[%s2442 + $0x40] sm:$0xff]
      %v2452 = vld [vmem:[%s2442 + $0x48] sm:$0xff]
      %v2453 = vld [vmem:[%s2442 + $0x50] sm:$0xff]
      %v2454 = vld [vmem:[%s2442 + $0x58] sm:$0xff]
      %v2455 = vld [vmem:[%s2442 + $0x60] sm:$0xff]
      %v2456 = vld [vmem:[%s2442 + $0x68] sm:$0xff]
      %v2457 = vld [vmem:[%s2442 + $0x70] sm:$0xff]
      %v2458 = vld [vmem:[%s2442 + $0x78] sm:$0xff]
      %2459 = vmatprep.subr.mxu0 0.0
      %2460 = vmatpush1.msra.mxu0 %v2443
      %2461 = vmatprep.subr.mxu0 0.0
      %2462 = vmatpush1.msra.mxu0 %v2444
      %2463 = vmatprep.subr.mxu0 0.0
      %2464 = vmatpush1.msra.mxu0 %v2445
      %2465 = vmatprep.subr.mxu0 0.0
      %2466 = vmatpush1.msra.mxu0 %v2446
      %2467 = vmatprep.subr.mxu0 0.0
      %2468 = vmatpush1.msra.mxu0 %v2447
      %2469 = vmatprep.subr.mxu0 0.0
      %2470 = vmatpush1.msra.mxu0 %v2448
      %2471 = vmatprep.subr.mxu0 0.0
      %2472 = vmatpush1.msra.mxu0 %v2449
      %2473 = vmatprep.subr.mxu0 0.0
      %2474 = vmatpush1.msra.mxu0 %v2450
      %2475 = vmatprep.subr.mxu0 0.0
      %2476 = vmatpush1.msra.mxu0 %v2451
      %2477 = vmatprep.subr.mxu0 0.0
      %2478 = vmatpush1.msra.mxu0 %v2452
      %2479 = vmatprep.subr.mxu0 0.0
      %2480 = vmatpush1.msra.mxu0 %v2453
      %2481 = vmatprep.subr.mxu0 0.0
      %2482 = vmatpush1.msra.mxu0 %v2454
      %2483 = vmatprep.subr.mxu0 0.0
      %2484 = vmatpush1.msra.mxu0 %v2455
      %2485 = vmatprep.subr.mxu0 0.0
      %2486 = vmatpush1.msra.mxu0 %v2456
      %2487 = vmatprep.subr.mxu0 0.0
      %2488 = vmatpush1.msra.mxu0 %v2457
      %2489 = vmatprep.subr.mxu0 0.0
      %2490 = vmatpush1.msra.mxu0 %v2458
      %2491 = vmatprep.subr.mxu0 0.0
      %2492 = vmatpush1.msra.mxu0 0.0
      %2493 = vmatprep.subr.mxu0 0.0
      %2494 = vmatpush1.msra.mxu0 0.0
      %2495 = vmatprep.subr.mxu0 0.0
      %2496 = vmatpush1.msra.mxu0 0.0
      %2497 = vmatprep.subr.mxu0 0.0
      %2498 = vmatpush1.msra.mxu0 0.0
      %2499 = vmatprep.subr.mxu0 0.0
      %2500 = vmatpush1.msra.mxu0 0.0
      %2501 = vmatprep.subr.mxu0 0.0
      %2502 = vmatpush1.msra.mxu0 0.0
      %2503 = vmatprep.subr.mxu0 0.0
      %2504 = vmatpush1.msra.mxu0 0.0
      %2505 = vmatprep.subr.mxu0 0.0
      %2506 = vmatpush1.msra.mxu0 0.0
      %2507 = vmatprep.subr.mxu0 0.0
      %2508 = vmatpush1.msra.mxu0 0.0
      %2509 = vmatprep.subr.mxu0 0.0
      %2510 = vmatpush1.msra.mxu0 0.0
      %2511 = vmatprep.subr.mxu0 0.0
      %2512 = vmatpush1.msra.mxu0 0.0
      %2513 = vmatprep.subr.mxu0 0.0
      %2514 = vmatpush1.msra.mxu0 0.0
      %2515 = vmatprep.subr.mxu0 0.0
      %2516 = vmatpush1.msra.mxu0 0.0
      %2517 = vmatprep.subr.mxu0 0.0
      %2518 = vmatpush1.msra.mxu0 0.0
      %2519 = vmatprep.subr.mxu0 0.0
      %2520 = vmatpush1.msra.mxu0 0.0
      %2521 = vmatprep.subr.mxu0 0.0
      %2522 = vmatpush1.msra.mxu0 0.0
      %2523 = vmatprep.mubr.f32.mxu0 0.0
      %2524 = vmatmul.mubr.f32.gmra.mrb[0].mxu0 %v2417
      %v2525 = vpop.f32.mrb[0].mxu0
      %v2526 = vadd.f32 0.0, %v2525
      %v2527 = vpop.f32.mrb[0].mxu0
      %2528 = vmatprep.mubr.f32.mxu0 0.0
      %2529 = vmatmul.mubr.f32.gmra.mrb[0].mxu0 %v2418
      %v2530 = vpop.f32.mrb[0].mxu0
      %v2531 = vadd.f32 0.0, %v2530
      %v2532 = vpop.f32.mrb[0].mxu0
      %2533 = vmatprep.mubr.f32.mxu0 0.0
      %2534 = vmatmul.mubr.f32.gmra.mrb[0].mxu0 %v2419
      %v2535 = vpop.f32.mrb[0].mxu0
      %v2536 = vadd.f32 0.0, %v2535
      %v2537 = vpop.f32.mrb[0].mxu0
      %2538 = vmatprep.mubr.f32.mxu0 0.0
      %2539 = vmatmul.mubr.f32.gmra.mrb[0].mxu0 %v2420
      %v2540 = vpop.f32.mrb[0].mxu0
      %v2541 = vadd.f32 0.0, %v2540
      %v2542 = vpop.f32.mrb[0].mxu0
      %2543 = vmatprep.mubr.f32.mxu0 0.0
      %2544 = vmatmul.mubr.f32.gmra.mrb[0].mxu0 %v2421
      %v2545 = vpop.f32.mrb[0].mxu0
      %v2546 = vadd.f32 0.0, %v2545
      %v2547 = vpop.f32.mrb[0].mxu0
      %2548 = vmatprep.mubr.f32.mxu0 0.0
      %2549 = vmatmul.mubr.f32.gmra.mrb[0].mxu0 %v2422
      %v2550 = vpop.f32.mrb[0].mxu0
      %v2551 = vadd.f32 0.0, %v2550
      %v2552 = vpop.f32.mrb[0].mxu0
      %2553 = vmatprep.mubr.f32.mxu0 0.0
      %2554 = vmatmul.mubr.f32.gmra.mrb[0].mxu0 %v2423
      %v2555 = vpop.f32.mrb[0].mxu0
      %v2556 = vadd.f32 0.0, %v2555
      %v2557 = vpop.f32.mrb[0].mxu0
      %2558 = vmatprep.mubr.f32.mxu0 0.0
      %2559 = vmatmul.mubr.f32.gmra.mrb[0].mxu0 %v2424
      %v2560 = vpop.f32.mrb[0].mxu0
      %v2561 = vadd.f32 0.0, %v2560
      %v2562 = vpop.f32.mrb[0].mxu0
      %2563 = vmatprep.mubr.f32.mxu0 0.0
      %2564 = vmatmul.mubr.f32.gmra.mrb[0].mxu0 %v2425
      %v2565 = vpop.f32.mrb[0].mxu0
      %v2566 = vadd.f32 0.0, %v2565
      %v2567 = vpop.f32.mrb[0].mxu0
      %2568 = vmatprep.mubr.f32.mxu0 0.0
      %2569 = vmatmul.mubr.f32.gmra.mrb[0].mxu0 %v2426
      %v2570 = vpop.f32.mrb[0].mxu0
      %v2571 = vadd.f32 0.0, %v2570
      %v2572 = vpop.f32.mrb[0].mxu0
      %2573 = vmatprep.mubr.f32.mxu0 0.0
      %2574 = vmatmul.mubr.f32.gmra.mrb[0].mxu0 %v2427
      %v2575 = vpop.f32.mrb[0].mxu0
      %v2576 = vadd.f32 0.0, %v2575
      %v2577 = vpop.f32.mrb[0].mxu0
      %2578 = vmatprep.mubr.f32.mxu0 0.0
      %2579 = vmatmul.mubr.f32.gmra.mrb[0].mxu0 %v2428
      %v2580 = vpop.f32.mrb[0].mxu0
      %v2581 = vadd.f32 0.0, %v2580
      %v2582 = vpop.f32.mrb[0].mxu0
      %2583 = vmatprep.mubr.f32.mxu0 0.0
      %2584 = vmatmul.mubr.f32.gmra.mrb[0].mxu0 %v2429
      %v2585 = vpop.f32.mrb[0].mxu0
      %v2586 = vadd.f32 0.0, %v2585
      %v2587 = vpop.f32.mrb[0].mxu0
      %2588 = vmatprep.mubr.f32.mxu0 0.0
      %2589 = vmatmul.mubr.f32.gmra.mrb[0].mxu0 %v2430
      %v2590 = vpop.f32.mrb[0].mxu0
      %v2591 = vadd.f32 0.0, %v2590
      %v2592 = vpop.f32.mrb[0].mxu0
      %2593 = vmatprep.mubr.f32.mxu0 0.0
      %2594 = vmatmul.mubr.f32.gmra.mrb[0].mxu0 %v2431
      %v2595 = vpop.f32.mrb[0].mxu0
      %v2596 = vadd.f32 0.0, %v2595
      %v2597 = vpop.f32.mrb[0].mxu0
      %2598 = vmatprep.mubr.f32.mxu0 0.0
      %2599 = vmatmul.mubr.f32.gmra.mrb[0].mxu0 %v2432
      %v2600 = vpop.f32.mrb[0].mxu0
      %v2601 = vadd.f32 0.0, %v2600
      %v2602 = vpop.f32.mrb[0].mxu0
      %2603 = vmatprep.mubr.f32.mxu0 0.0
      %2604 = vmatmul.mubr.f32.gmra.mrb[0].mxu0 %v2433
      %v2605 = vpop.f32.mrb[0].mxu0
      %v2606 = vadd.f32 0.0, %v2605
      %v2607 = vpop.f32.mrb[0].mxu0
      %2608 = vmatprep.mubr.f32.mxu0 0.0
      %2609 = vmatmul.mubr.f32.gmra.mrb[0].mxu0 %v2434
      %v2610 = vpop.f32.mrb[0].mxu0
      %v2611 = vadd.f32 0.0, %v2610
      %v2612 = vpop.f32.mrb[0].mxu0
      %2613 = vmatprep.mubr.f32.mxu0 0.0
      %2614 = vmatmul.mubr.f32.gmra.mrb[0].mxu0 %v2435
      %v2615 = vpop.f32.mrb[0].mxu0
      %v2616 = vadd.f32 0.0, %v2615
      %v2617 = vpop.f32.mrb[0].mxu0
      %2618 = vmatprep.mubr.f32.mxu0 0.0
      %2619 = vmatmul.mubr.f32.gmra.mrb[0].mxu0 %v2436
      %v2620 = vpop.f32.mrb[0].mxu0
      %v2621 = vadd.f32 0.0, %v2620
      %v2622 = vpop.f32.mrb[0].mxu0
      %2623 = vmatprep.mubr.f32.mxu0 0.0
      %2624 = vmatmul.mubr.f32.gmra.mrb[0].mxu0 %v2437
      %v2625 = vpop.f32.mrb[0].mxu0
      %v2626 = vadd.f32 0.0, %v2625
      %v2627 = vpop.f32.mrb[0].mxu0
      %2628 = vmatprep.mubr.f32.mxu0 0.0
      %2629 = vmatmul.mubr.f32.gmra.mrb[0].mxu0 %v2438
      %v2630 = vpop.f32.mrb[0].mxu0
      %v2631 = vadd.f32 0.0, %v2630
      %v2632 = vpop.f32.mrb[0].mxu0
      %2633 = vmatprep.mubr.f32.mxu0 0.0
      %2634 = vmatmul.mubr.f32.gmra.mrb[0].mxu0 %v2439
      %v2635 = vpop.f32.mrb[0].mxu0
      %v2636 = vadd.f32 0.0, %v2635
      %v2637 = vpop.f32.mrb[0].mxu0
      %2638 = vmatprep.mubr.f32.mxu0 0.0
      %2639 = vmatmul.mubr.f32.gmra.mrb[0].mxu0 %v2440
      %v2640 = vpop.f32.mrb[0].mxu0
      %v2641 = vadd.f32 0.0, %v2640
      %v2642 = vpop.f32.mrb[0].mxu0
      %2643 = vmatprep.mubr.f32.mxu0 0.0
      %2644 = vmatmul.mubr.f32.gmra.mrb[0].mxu0 %v2441
      %v2645 = vpop.f32.mrb[0].mxu0
      %v2646 = vadd.f32 0.0, %v2645
      %v2647 = vpop.f32.mrb[0].mxu0
      %2648 = vdwg.mxu0
      %v2649 = vadd.f32 %v2348, %v2526
      %v2650 = vadd.f32 %v2349, %v2531
      %v2651 = vadd.f32 %v2350, %v2536
      %v2652 = vadd.f32 %v2351, %v2541
      %v2653 = vadd.f32 %v2352, %v2546
      %v2654 = vadd.f32 %v2353, %v2551
      %v2655 = vadd.f32 %v2354, %v2556
      %v2656 = vadd.f32 %v2355, %v2561
      %v2657 = vadd.f32 %v2356, %v2566
      %v2658 = vadd.f32 %v2357, %v2571
      %v2659 = vadd.f32 %v2358, %v2576
      %v2660 = vadd.f32 %v2359, %v2581
      %v2661 = vadd.f32 %v2360, %v2586
      %v2662 = vadd.f32 %v2361, %v2591
      %v2663 = vadd.f32 %v2362, %v2596
      %v2664 = vadd.f32 %v2363, %v2601
      %v2665 = vadd.f32 %v2364, %v2606
      %v2666 = vadd.f32 %v2365, %v2611
      %v2667 = vadd.f32 %v2366, %v2616
      %v2668 = vadd.f32 %v2367, %v2621
      %v2669 = vadd.f32 %v2368, %v2626
      %v2670 = vadd.f32 %v2369, %v2631
      %v2671 = vadd.f32 %v2370, %v2636
      %v2672 = vadd.f32 %v2371, %v2641
      %v2673 = vadd.f32 %v2372, %v2646
      %s2674 = scalar_lea.vmem [#allocation2], 56
      %v2675 = vld [vmem:[%s2674] sm:$0xff]
      %v2676 = vld [vmem:[%s2674 + $0x8] sm:$0xff]
      %v2677 = vld [vmem:[%s2674 + $0x10] sm:$0xff]
      %v2678 = vld [vmem:[%s2674 + $0x18] sm:$0xff]
      %v2679 = vld [vmem:[%s2674 + $0x20] sm:$0xff]
      %v2680 = vld [vmem:[%s2674 + $0x60] sm:$0xff]
      %v2681 = vld [vmem:[%s2674 + $0x68] sm:$0xff]
      %v2682 = vld [vmem:[%s2674 + $0x70] sm:$0xff]
      %v2683 = vld [vmem:[%s2674 + $0x78] sm:$0xff]
      %v2684 = vld [vmem:[%s2674 + $0x80] sm:$0xff]
      %v2685 = vld [vmem:[%s2674 + $0xc0] sm:$0xff]
      %v2686 = vld [vmem:[%s2674 + $0xc8] sm:$0xff]
      %v2687 = vld [vmem:[%s2674 + $0xd0] sm:$0xff]
      %v2688 = vld [vmem:[%s2674 + $0xd8] sm:$0xff]
      %v2689 = vld [vmem:[%s2674 + $0xe0] sm:$0xff]
      %v2690 = vld [vmem:[%s2674 + $0x120] sm:$0xff]
      %v2691 = vld [vmem:[%s2674 + $0x128] sm:$0xff]
      %v2692 = vld [vmem:[%s2674 + $0x130] sm:$0xff]
      %v2693 = vld [vmem:[%s2674 + $0x138] sm:$0xff]
      %v2694 = vld [vmem:[%s2674 + $0x140] sm:$0xff]
      %v2695 = vld [vmem:[%s2674 + $0x180] sm:$0xff]
      %v2696 = vld [vmem:[%s2674 + $0x188] sm:$0xff]
      %v2697 = vld [vmem:[%s2674 + $0x190] sm:$0xff]
      %v2698 = vld [vmem:[%s2674 + $0x198] sm:$0xff]
      %v2699 = vld [vmem:[%s2674 + $0x1a0] sm:$0xff]
      %s2700 = scalar_lea.vmem %s3, 384
      %v2701 = vld [vmem:[%s2700] sm:$0xff]
      %v2702 = vld [vmem:[%s2700 + $0x8] sm:$0xff]
      %v2703 = vld [vmem:[%s2700 + $0x10] sm:$0xff]
      %v2704 = vld [vmem:[%s2700 + $0x18] sm:$0xff]
      %v2705 = vld [vmem:[%s2700 + $0x20] sm:$0xff]
      %v2706 = vld [vmem:[%s2700 + $0x28] sm:$0xff]
      %v2707 = vld [vmem:[%s2700 + $0x30] sm:$0xff]
      %v2708 = vld [vmem:[%s2700 + $0x38] sm:$0xff]
      %v2709 = vld [vmem:[%s2700 + $0x40] sm:$0xff]
      %v2710 = vld [vmem:[%s2700 + $0x48] sm:$0xff]
      %v2711 = vld [vmem:[%s2700 + $0x50] sm:$0xff]
      %v2712 = vld [vmem:[%s2700 + $0x58] sm:$0xff]
      %v2713 = vld [vmem:[%s2700 + $0x60] sm:$0xff]
      %v2714 = vld [vmem:[%s2700 + $0x68] sm:$0xff]
      %v2715 = vld [vmem:[%s2700 + $0x70] sm:$0xff]
      %v2716 = vld [vmem:[%s2700 + $0x78] sm:$0xff]
      %2717 = vmatprep.subr.mxu0 0.0
      %2718 = vmatpush1.msra.mxu0 %v2701
      %2719 = vmatprep.subr.mxu0 0.0
      %2720 = vmatpush1.msra.mxu0 %v2702
      %2721 = vmatprep.subr.mxu0 0.0
      %2722 = vmatpush1.msra.mxu0 %v2703
      %2723 = vmatprep.subr.mxu0 0.0
      %2724 = vmatpush1.msra.mxu0 %v2704
      %2725 = vmatprep.subr.mxu0 0.0
      %2726 = vmatpush1.msra.mxu0 %v2705
      %2727 = vmatprep.subr.mxu0 0.0
      %2728 = vmatpush1.msra.mxu0 %v2706
      %2729 = vmatprep.subr.mxu0 0.0
      %2730 = vmatpush1.msra.mxu0 %v2707
      %2731 = vmatprep.subr.mxu0 0.0
      %2732 = vmatpush1.msra.mxu0 %v2708
      %2733 = vmatprep.subr.mxu0 0.0
      %2734 = vmatpush1.msra.mxu0 %v2709
      %2735 = vmatprep.subr.mxu0 0.0
      %2736 = vmatpush1.msra.mxu0 %v2710
      %2737 = vmatprep.subr.mxu0 0.0
      %2738 = vmatpush1.msra.mxu0 %v2711
      %2739 = vmatprep.subr.mxu0 0.0
      %2740 = vmatpush1.msra.mxu0 %v2712
      %2741 = vmatprep.subr.mxu0 0.0
      %2742 = vmatpush1.msra.mxu0 %v2713
      %2743 = vmatprep.subr.mxu0 0.0
      %2744 = vmatpush1.msra.mxu0 %v2714
      %2745 = vmatprep.subr.mxu0 0.0
      %2746 = vmatpush1.msra.mxu0 %v2715
      %2747 = vmatprep.subr.mxu0 0.0
      %2748 = vmatpush1.msra.mxu0 %v2716
      %2749 = vmatprep.subr.mxu0 0.0
      %2750 = vmatpush1.msra.mxu0 0.0
      %2751 = vmatprep.subr.mxu0 0.0
      %2752 = vmatpush1.msra.mxu0 0.0
      %2753 = vmatprep.subr.mxu0 0.0
      %2754 = vmatpush1.msra.mxu0 0.0
      %2755 = vmatprep.subr.mxu0 0.0
      %2756 = vmatpush1.msra.mxu0 0.0
      %2757 = vmatprep.subr.mxu0 0.0
      %2758 = vmatpush1.msra.mxu0 0.0
      %2759 = vmatprep.subr.mxu0 0.0
      %2760 = vmatpush1.msra.mxu0 0.0
      %2761 = vmatprep.subr.mxu0 0.0
      %2762 = vmatpush1.msra.mxu0 0.0
      %2763 = vmatprep.subr.mxu0 0.0
      %2764 = vmatpush1.msra.mxu0 0.0
      %2765 = vmatprep.subr.mxu0 0.0
      %2766 = vmatpush1.msra.mxu0 0.0
      %2767 = vmatprep.subr.mxu0 0.0
      %2768 = vmatpush1.msra.mxu0 0.0
      %2769 = vmatprep.subr.mxu0 0.0
      %2770 = vmatpush1.msra.mxu0 0.0
      %2771 = vmatprep.subr.mxu0 0.0
      %2772 = vmatpush1.msra.mxu0 0.0
      %2773 = vmatprep.subr.mxu0 0.0
      %2774 = vmatpush1.msra.mxu0 0.0
      %2775 = vmatprep.subr.mxu0 0.0
      %2776 = vmatpush1.msra.mxu0 0.0
      %2777 = vmatprep.subr.mxu0 0.0
      %2778 = vmatpush1.msra.mxu0 0.0
      %2779 = vmatprep.subr.mxu0 0.0
      %2780 = vmatpush1.msra.mxu0 0.0
      %2781 = vmatprep.mubr.f32.mxu0 0.0
      %2782 = vmatmul.mubr.f32.gmra.mrb[0].mxu0 %v2675
      %v2783 = vpop.f32.mrb[0].mxu0
      %v2784 = vadd.f32 0.0, %v2783
      %v2785 = vpop.f32.mrb[0].mxu0
      %2786 = vmatprep.mubr.f32.mxu0 0.0
      %2787 = vmatmul.mubr.f32.gmra.mrb[0].mxu0 %v2676
      %v2788 = vpop.f32.mrb[0].mxu0
      %v2789 = vadd.f32 0.0, %v2788
      %v2790 = vpop.f32.mrb[0].mxu0
      %2791 = vmatprep.mubr.f32.mxu0 0.0
      %2792 = vmatmul.mubr.f32.gmra.mrb[0].mxu0 %v2677
      %v2793 = vpop.f32.mrb[0].mxu0
      %v2794 = vadd.f32 0.0, %v2793
      %v2795 = vpop.f32.mrb[0].mxu0
      %2796 = vmatprep.mubr.f32.mxu0 0.0
      %2797 = vmatmul.mubr.f32.gmra.mrb[0].mxu0 %v2678
      %v2798 = vpop.f32.mrb[0].mxu0
      %v2799 = vadd.f32 0.0, %v2798
      %v2800 = vpop.f32.mrb[0].mxu0
      %2801 = vmatprep.mubr.f32.mxu0 0.0
      %2802 = vmatmul.mubr.f32.gmra.mrb[0].mxu0 %v2679
      %v2803 = vpop.f32.mrb[0].mxu0
      %v2804 = vadd.f32 0.0, %v2803
      %v2805 = vpop.f32.mrb[0].mxu0
      %2806 = vmatprep.mubr.f32.mxu0 0.0
      %2807 = vmatmul.mubr.f32.gmra.mrb[0].mxu0 %v2680
      %v2808 = vpop.f32.mrb[0].mxu0
      %v2809 = vadd.f32 0.0, %v2808
      %v2810 = vpop.f32.mrb[0].mxu0
      %2811 = vmatprep.mubr.f32.mxu0 0.0
      %2812 = vmatmul.mubr.f32.gmra.mrb[0].mxu0 %v2681
      %v2813 = vpop.f32.mrb[0].mxu0
      %v2814 = vadd.f32 0.0, %v2813
      %v2815 = vpop.f32.mrb[0].mxu0
      %2816 = vmatprep.mubr.f32.mxu0 0.0
      %2817 = vmatmul.mubr.f32.gmra.mrb[0].mxu0 %v2682
      %v2818 = vpop.f32.mrb[0].mxu0
      %v2819 = vadd.f32 0.0, %v2818
      %v2820 = vpop.f32.mrb[0].mxu0
      %2821 = vmatprep.mubr.f32.mxu0 0.0
      %2822 = vmatmul.mubr.f32.gmra.mrb[0].mxu0 %v2683
      %v2823 = vpop.f32.mrb[0].mxu0
      %v2824 = vadd.f32 0.0, %v2823
      %v2825 = vpop.f32.mrb[0].mxu0
      %2826 = vmatprep.mubr.f32.mxu0 0.0
      %2827 = vmatmul.mubr.f32.gmra.mrb[0].mxu0 %v2684
      %v2828 = vpop.f32.mrb[0].mxu0
      %v2829 = vadd.f32 0.0, %v2828
      %v2830 = vpop.f32.mrb[0].mxu0
      %2831 = vmatprep.mubr.f32.mxu0 0.0
      %2832 = vmatmul.mubr.f32.gmra.mrb[0].mxu0 %v2685
      %v2833 = vpop.f32.mrb[0].mxu0
      %v2834 = vadd.f32 0.0, %v2833
      %v2835 = vpop.f32.mrb[0].mxu0
      %2836 = vmatprep.mubr.f32.mxu0 0.0
      %2837 = vmatmul.mubr.f32.gmra.mrb[0].mxu0 %v2686
      %v2838 = vpop.f32.mrb[0].mxu0
      %v2839 = vadd.f32 0.0, %v2838
      %v2840 = vpop.f32.mrb[0].mxu0
      %2841 = vmatprep.mubr.f32.mxu0 0.0
      %2842 = vmatmul.mubr.f32.gmra.mrb[0].mxu0 %v2687
      %v2843 = vpop.f32.mrb[0].mxu0
      %v2844 = vadd.f32 0.0, %v2843
      %v2845 = vpop.f32.mrb[0].mxu0
      %2846 = vmatprep.mubr.f32.mxu0 0.0
      %2847 = vmatmul.mubr.f32.gmra.mrb[0].mxu0 %v2688
      %v2848 = vpop.f32.mrb[0].mxu0
      %v2849 = vadd.f32 0.0, %v2848
      %v2850 = vpop.f32.mrb[0].mxu0
      %2851 = vmatprep.mubr.f32.mxu0 0.0
      %2852 = vmatmul.mubr.f32.gmra.mrb[0].mxu0 %v2689
      %v2853 = vpop.f32.mrb[0].mxu0
      %v2854 = vadd.f32 0.0, %v2853
      %v2855 = vpop.f32.mrb[0].mxu0
      %2856 = vmatprep.mubr.f32.mxu0 0.0
      %2857 = vmatmul.mubr.f32.gmra.mrb[0].mxu0 %v2690
      %v2858 = vpop.f32.mrb[0].mxu0
      %v2859 = vadd.f32 0.0, %v2858
      %v2860 = vpop.f32.mrb[0].mxu0
      %2861 = vmatprep.mubr.f32.mxu0 0.0
      %2862 = vmatmul.mubr.f32.gmra.mrb[0].mxu0 %v2691
      %v2863 = vpop.f32.mrb[0].mxu0
      %v2864 = vadd.f32 0.0, %v2863
      %v2865 = vpop.f32.mrb[0].mxu0
      %2866 = vmatprep.mubr.f32.mxu0 0.0
      %2867 = vmatmul.mubr.f32.gmra.mrb[0].mxu0 %v2692
      %v2868 = vpop.f32.mrb[0].mxu0
      %v2869 = vadd.f32 0.0, %v2868
      %v2870 = vpop.f32.mrb[0].mxu0
      %2871 = vmatprep.mubr.f32.mxu0 0.0
      %2872 = vmatmul.mubr.f32.gmra.mrb[0].mxu0 %v2693
      %v2873 = vpop.f32.mrb[0].mxu0
      %v2874 = vadd.f32 0.0, %v2873
      %v2875 = vpop.f32.mrb[0].mxu0
      %2876 = vmatprep.mubr.f32.mxu0 0.0
      %2877 = vmatmul.mubr.f32.gmra.mrb[0].mxu0 %v2694
      %v2878 = vpop.f32.mrb[0].mxu0
      %v2879 = vadd.f32 0.0, %v2878
      %v2880 = vpop.f32.mrb[0].mxu0
      %2881 = vmatprep.mubr.f32.mxu0 0.0
      %2882 = vmatmul.mubr.f32.gmra.mrb[0].mxu0 %v2695
      %v2883 = vpop.f32.mrb[0].mxu0
      %v2884 = vadd.f32 0.0, %v2883
      %v2885 = vpop.f32.mrb[0].mxu0
      %2886 = vmatprep.mubr.f32.mxu0 0.0
      %2887 = vmatmul.mubr.f32.gmra.mrb[0].mxu0 %v2696
      %v2888 = vpop.f32.mrb[0].mxu0
      %v2889 = vadd.f32 0.0, %v2888
      %v2890 = vpop.f32.mrb[0].mxu0
      %2891 = vmatprep.mubr.f32.mxu0 0.0
      %2892 = vmatmul.mubr.f32.gmra.mrb[0].mxu0 %v2697
      %v2893 = vpop.f32.mrb[0].mxu0
      %v2894 = vadd.f32 0.0, %v2893
      %v2895 = vpop.f32.mrb[0].mxu0
      %2896 = vmatprep.mubr.f32.mxu0 0.0
      %2897 = vmatmul.mubr.f32.gmra.mrb[0].mxu0 %v2698
      %v2898 = vpop.f32.mrb[0].mxu0
      %v2899 = vadd.f32 0.0, %v2898
      %v2900 = vpop.f32.mrb[0].mxu0
      %2901 = vmatprep.mubr.f32.mxu0 0.0
      %2902 = vmatmul.mubr.f32.gmra.mrb[0].mxu0 %v2699
      %v2903 = vpop.f32.mrb[0].mxu0
      %v2904 = vadd.f32 0.0, %v2903
      %v2905 = vpop.f32.mrb[0].mxu0
      %2906 = vdwg.mxu0
      %2907 = vmatprep.subr.mxu0 0.0
      %2908 = vmatpush1.msra.mxu0 %v2400
      %2909 = vmatprep.subr.mxu0 0.0
      %2910 = vmatpush1.msra.mxu0 %v2401
      %2911 = vmatprep.subr.mxu0 0.0
      %2912 = vmatpush1.msra.mxu0 %v2402
      %2913 = vmatprep.subr.mxu0 0.0
      %2914 = vmatpush1.msra.mxu0 %v2403
      %2915 = vmatprep.subr.mxu0 0.0
      %2916 = vmatpush1.msra.mxu0 %v2404
      %2917 = vmatprep.subr.mxu0 0.0
      %2918 = vmatpush1.msra.mxu0 %v2405
      %2919 = vmatprep.subr.mxu0 0.0
      %2920 = vmatpush1.msra.mxu0 %v2406
      %2921 = vmatprep.subr.mxu0 0.0
      %2922 = vmatpush1.msra.mxu0 %v2407
      %2923 = vmatprep.subr.mxu0 0.0
      %2924 = vmatpush1.msra.mxu0 %v2408
      %2925 = vmatprep.subr.mxu0 0.0
      %2926 = vmatpush1.msra.mxu0 %v2409
      %2927 = vmatprep.subr.mxu0 0.0
      %2928 = vmatpush1.msra.mxu0 %v2410
      %2929 = vmatprep.subr.mxu0 0.0
      %2930 = vmatpush1.msra.mxu0 %v2411
      %2931 = vmatprep.subr.mxu0 0.0
      %2932 = vmatpush1.msra.mxu0 %v2412
      %2933 = vmatprep.subr.mxu0 0.0
      %2934 = vmatpush1.msra.mxu0 %v2413
      %2935 = vmatprep.subr.mxu0 0.0
      %2936 = vmatpush1.msra.mxu0 %v2414
      %2937 = vmatprep.subr.mxu0 0.0
      %2938 = vmatpush1.msra.mxu0 %v2415
      %2939 = vmatprep.subr.mxu0 0.0
      %2940 = vmatpush1.msra.mxu0 0.0
      %2941 = vmatprep.subr.mxu0 0.0
      %2942 = vmatpush1.msra.mxu0 0.0
      %2943 = vmatprep.subr.mxu0 0.0
      %2944 = vmatpush1.msra.mxu0 0.0
      %2945 = vmatprep.subr.mxu0 0.0
      %2946 = vmatpush1.msra.mxu0 0.0
      %2947 = vmatprep.subr.mxu0 0.0
      %2948 = vmatpush1.msra.mxu0 0.0
      %2949 = vmatprep.subr.mxu0 0.0
      %2950 = vmatpush1.msra.mxu0 0.0
      %2951 = vmatprep.subr.mxu0 0.0
      %2952 = vmatpush1.msra.mxu0 0.0
      %2953 = vmatprep.subr.mxu0 0.0
      %2954 = vmatpush1.msra.mxu0 0.0
      %2955 = vmatprep.subr.mxu0 0.0
      %2956 = vmatpush1.msra.mxu0 0.0
      %2957 = vmatprep.subr.mxu0 0.0
      %2958 = vmatpush1.msra.mxu0 0.0
      %2959 = vmatprep.subr.mxu0 0.0
      %2960 = vmatpush1.msra.mxu0 0.0
      %2961 = vmatprep.subr.mxu0 0.0
      %2962 = vmatpush1.msra.mxu0 0.0
      %2963 = vmatprep.subr.mxu0 0.0
      %2964 = vmatpush1.msra.mxu0 0.0
      %2965 = vmatprep.subr.mxu0 0.0
      %2966 = vmatpush1.msra.mxu0 0.0
      %2967 = vmatprep.subr.mxu0 0.0
      %2968 = vmatpush1.msra.mxu0 0.0
      %2969 = vmatprep.subr.mxu0 0.0
      %2970 = vmatpush1.msra.mxu0 0.0
      %2971 = vmatprep.mubr.f32.mxu0 0.0
      %2972 = vmatmul.mubr.f32.gmra.mrb[0].mxu0 %v2374
      %v2973 = vpop.f32.mrb[0].mxu0
      %v2974 = vadd.f32 %v2784, %v2973
      %v2975 = vpop.f32.mrb[0].mxu0
      %2976 = vmatprep.mubr.f32.mxu0 0.0
      %2977 = vmatmul.mubr.f32.gmra.mrb[0].mxu0 %v2375
      %v2978 = vpop.f32.mrb[0].mxu0
      %v2979 = vadd.f32 %v2789, %v2978
      %v2980 = vpop.f32.mrb[0].mxu0
      %2981 = vmatprep.mubr.f32.mxu0 0.0
      %2982 = vmatmul.mubr.f32.gmra.mrb[0].mxu0 %v2376
      %v2983 = vpop.f32.mrb[0].mxu0
      %v2984 = vadd.f32 %v2794, %v2983
      %v2985 = vpop.f32.mrb[0].mxu0
      %2986 = vmatprep.mubr.f32.mxu0 0.0
      %2987 = vmatmul.mubr.f32.gmra.mrb[0].mxu0 %v2377
      %v2988 = vpop.f32.mrb[0].mxu0
      %v2989 = vadd.f32 %v2799, %v2988
      %v2990 = vpop.f32.mrb[0].mxu0
      %2991 = vmatprep.mubr.f32.mxu0 0.0
      %2992 = vmatmul.mubr.f32.gmra.mrb[0].mxu0 %v2378
      %v2993 = vpop.f32.mrb[0].mxu0
      %v2994 = vadd.f32 %v2804, %v2993
      %v2995 = vpop.f32.mrb[0].mxu0
      %2996 = vmatprep.mubr.f32.mxu0 0.0
      %2997 = vmatmul.mubr.f32.gmra.mrb[0].mxu0 %v2379
      %v2998 = vpop.f32.mrb[0].mxu0
      %v2999 = vadd.f32 %v2809, %v2998
      %v3000 = vpop.f32.mrb[0].mxu0
      %3001 = vmatprep.mubr.f32.mxu0 0.0
      %3002 = vmatmul.mubr.f32.gmra.mrb[0].mxu0 %v2380
      %v3003 = vpop.f32.mrb[0].mxu0
      %v3004 = vadd.f32 %v2814, %v3003
      %v3005 = vpop.f32.mrb[0].mxu0
      %3006 = vmatprep.mubr.f32.mxu0 0.0
      %3007 = vmatmul.mubr.f32.gmra.mrb[0].mxu0 %v2381
      %v3008 = vpop.f32.mrb[0].mxu0
      %v3009 = vadd.f32 %v2819, %v3008
      %v3010 = vpop.f32.mrb[0].mxu0
      %3011 = vmatprep.mubr.f32.mxu0 0.0
      %3012 = vmatmul.mubr.f32.gmra.mrb[0].mxu0 %v2382
      %v3013 = vpop.f32.mrb[0].mxu0
      %v3014 = vadd.f32 %v2824, %v3013
      %v3015 = vpop.f32.mrb[0].mxu0
      %3016 = vmatprep.mubr.f32.mxu0 0.0
      %3017 = vmatmul.mubr.f32.gmra.mrb[0].mxu0 %v2383
      %v3018 = vpop.f32.mrb[0].mxu0
      %v3019 = vadd.f32 %v2829, %v3018
      %v3020 = vpop.f32.mrb[0].mxu0
      %3021 = vmatprep.mubr.f32.mxu0 0.0
      %3022 = vmatmul.mubr.f32.gmra.mrb[0].mxu0 %v2384
      %v3023 = vpop.f32.mrb[0].mxu0
      %v3024 = vadd.f32 %v2834, %v3023
      %v3025 = vpop.f32.mrb[0].mxu0
      %3026 = vmatprep.mubr.f32.mxu0 0.0
      %3027 = vmatmul.mubr.f32.gmra.mrb[0].mxu0 %v2385
      %v3028 = vpop.f32.mrb[0].mxu0
      %v3029 = vadd.f32 %v2839, %v3028
      %v3030 = vpop.f32.mrb[0].mxu0
      %3031 = vmatprep.mubr.f32.mxu0 0.0
      %3032 = vmatmul.mubr.f32.gmra.mrb[0].mxu0 %v2386
      %v3033 = vpop.f32.mrb[0].mxu0
      %v3034 = vadd.f32 %v2844, %v3033
      %v3035 = vpop.f32.mrb[0].mxu0
      %3036 = vmatprep.mubr.f32.mxu0 0.0
      %3037 = vmatmul.mubr.f32.gmra.mrb[0].mxu0 %v2387
      %v3038 = vpop.f32.mrb[0].mxu0
      %v3039 = vadd.f32 %v2849, %v3038
      %v3040 = vpop.f32.mrb[0].mxu0
      %3041 = vmatprep.mubr.f32.mxu0 0.0
      %3042 = vmatmul.mubr.f32.gmra.mrb[0].mxu0 %v2388
      %v3043 = vpop.f32.mrb[0].mxu0
      %v3044 = vadd.f32 %v2854, %v3043
      %v3045 = vpop.f32.mrb[0].mxu0
      %3046 = vmatprep.mubr.f32.mxu0 0.0
      %3047 = vmatmul.mubr.f32.gmra.mrb[0].mxu0 %v2389
      %v3048 = vpop.f32.mrb[0].mxu0
      %v3049 = vadd.f32 %v2859, %v3048
      %v3050 = vpop.f32.mrb[0].mxu0
      %3051 = vmatprep.mubr.f32.mxu0 0.0
      %3052 = vmatmul.mubr.f32.gmra.mrb[0].mxu0 %v2390
      %v3053 = vpop.f32.mrb[0].mxu0
      %v3054 = vadd.f32 %v2864, %v3053
      %v3055 = vpop.f32.mrb[0].mxu0
      %3056 = vmatprep.mubr.f32.mxu0 0.0
      %3057 = vmatmul.mubr.f32.gmra.mrb[0].mxu0 %v2391
      %v3058 = vpop.f32.mrb[0].mxu0
      %v3059 = vadd.f32 %v2869, %v3058
      %v3060 = vpop.f32.mrb[0].mxu0
      %3061 = vmatprep.mubr.f32.mxu0 0.0
      %3062 = vmatmul.mubr.f32.gmra.mrb[0].mxu0 %v2392
      %v3063 = vpop.f32.mrb[0].mxu0
      %v3064 = vadd.f32 %v2874, %v3063
      %v3065 = vpop.f32.mrb[0].mxu0
      %3066 = vmatprep.mubr.f32.mxu0 0.0
      %3067 = vmatmul.mubr.f32.gmra.mrb[0].mxu0 %v2393
      %v3068 = vpop.f32.mrb[0].mxu0
      %v3069 = vadd.f32 %v2879, %v3068
      %v3070 = vpop.f32.mrb[0].mxu0
      %3071 = vmatprep.mubr.f32.mxu0 0.0
      %3072 = vmatmul.mubr.f32.gmra.mrb[0].mxu0 %v2394
      %v3073 = vpop.f32.mrb[0].mxu0
      %v3074 = vadd.f32 %v2884, %v3073
      %v3075 = vpop.f32.mrb[0].mxu0
      %3076 = vmatprep.mubr.f32.mxu0 0.0
      %3077 = vmatmul.mubr.f32.gmra.mrb[0].mxu0 %v2395
      %v3078 = vpop.f32.mrb[0].mxu0
      %v3079 = vadd.f32 %v2889, %v3078
      %v3080 = vpop.f32.mrb[0].mxu0
      %3081 = vmatprep.mubr.f32.mxu0 0.0
      %3082 = vmatmul.mubr.f32.gmra.mrb[0].mxu0 %v2396
      %v3083 = vpop.f32.mrb[0].mxu0
      %v3084 = vadd.f32 %v2894, %v3083
      %v3085 = vpop.f32.mrb[0].mxu0
      %3086 = vmatprep.mubr.f32.mxu0 0.0
      %3087 = vmatmul.mubr.f32.gmra.mrb[0].mxu0 %v2397
      %v3088 = vpop.f32.mrb[0].mxu0
      %v3089 = vadd.f32 %v2899, %v3088
      %v3090 = vpop.f32.mrb[0].mxu0
      %3091 = vmatprep.mubr.f32.mxu0 0.0
      %3092 = vmatmul.mubr.f32.gmra.mrb[0].mxu0 %v2398
      %v3093 = vpop.f32.mrb[0].mxu0
      %v3094 = vadd.f32 %v2904, %v3093
      %v3095 = vpop.f32.mrb[0].mxu0
      %3096 = vdwg.mxu0
      %s3097 = scalar_lea.vmem [#allocation2], 576
      %v3098 = vld [vmem:[%s3097] sm:$0xff]
      %v3099 = vld [vmem:[%s3097 + $0x8] sm:$0xff]
      %v3100 = vld [vmem:[%s3097 + $0x10] sm:$0xff]
      %v3101 = vld [vmem:[%s3097 + $0x18] sm:$0xff]
      %v3102 = vld [vmem:[%s3097 + $0x20] sm:$0xff]
      %v3103 = vld [vmem:[%s3097 + $0x60] sm:$0xff]
      %v3104 = vld [vmem:[%s3097 + $0x68] sm:$0xff]
      %v3105 = vld [vmem:[%s3097 + $0x70] sm:$0xff]
      %v3106 = vld [vmem:[%s3097 + $0x78] sm:$0xff]
      %v3107 = vld [vmem:[%s3097 + $0x80] sm:$0xff]
      %v3108 = vld [vmem:[%s3097 + $0xc0] sm:$0xff]
      %v3109 = vld [vmem:[%s3097 + $0xc8] sm:$0xff]
      %v3110 = vld [vmem:[%s3097 + $0xd0] sm:$0xff]
      %v3111 = vld [vmem:[%s3097 + $0xd8] sm:$0xff]
      %v3112 = vld [vmem:[%s3097 + $0xe0] sm:$0xff]
      %v3113 = vld [vmem:[%s3097 + $0x120] sm:$0xff]
      %v3114 = vld [vmem:[%s3097 + $0x128] sm:$0xff]
      %v3115 = vld [vmem:[%s3097 + $0x130] sm:$0xff]
      %v3116 = vld [vmem:[%s3097 + $0x138] sm:$0xff]
      %v3117 = vld [vmem:[%s3097 + $0x140] sm:$0xff]
      %v3118 = vld [vmem:[%s3097 + $0x180] sm:$0xff]
      %v3119 = vld [vmem:[%s3097 + $0x188] sm:$0xff]
      %v3120 = vld [vmem:[%s3097 + $0x190] sm:$0xff]
      %v3121 = vld [vmem:[%s3097 + $0x198] sm:$0xff]
      %v3122 = vld [vmem:[%s3097 + $0x1a0] sm:$0xff]
      %s3123 = scalar_lea.vmem %s3, 512
      %v3124 = vld [vmem:[%s3123] sm:$0xff]
      %v3125 = vld [vmem:[%s3123 + $0x8] sm:$0xff]
      %v3126 = vld [vmem:[%s3123 + $0x10] sm:$0xff]
      %v3127 = vld [vmem:[%s3123 + $0x18] sm:$0xff]
      %v3128 = vld [vmem:[%s3123 + $0x20] sm:$0xff]
      %v3129 = vld [vmem:[%s3123 + $0x28] sm:$0xff]
      %v3130 = vld [vmem:[%s3123 + $0x30] sm:$0xff]
      %v3131 = vld [vmem:[%s3123 + $0x38] sm:$0xff]
      %v3132 = vld [vmem:[%s3123 + $0x40] sm:$0xff]
      %v3133 = vld [vmem:[%s3123 + $0x48] sm:$0xff]
      %v3134 = vld [vmem:[%s3123 + $0x50] sm:$0xff]
      %v3135 = vld [vmem:[%s3123 + $0x58] sm:$0xff]
      %v3136 = vld [vmem:[%s3123 + $0x60] sm:$0xff]
      %v3137 = vld [vmem:[%s3123 + $0x68] sm:$0xff]
      %v3138 = vld [vmem:[%s3123 + $0x70] sm:$0xff]
      %v3139 = vld [vmem:[%s3123 + $0x78] sm:$0xff]
      %3140 = vmatprep.subr.mxu0 0.0
      %3141 = vmatpush1.msra.mxu0 %v3124
      %3142 = vmatprep.subr.mxu0 0.0
      %3143 = vmatpush1.msra.mxu0 %v3125
      %3144 = vmatprep.subr.mxu0 0.0
      %3145 = vmatpush1.msra.mxu0 %v3126
      %3146 = vmatprep.subr.mxu0 0.0
      %3147 = vmatpush1.msra.mxu0 %v3127
      %3148 = vmatprep.subr.mxu0 0.0
      %3149 = vmatpush1.msra.mxu0 %v3128
      %3150 = vmatprep.subr.mxu0 0.0
      %3151 = vmatpush1.msra.mxu0 %v3129
      %3152 = vmatprep.subr.mxu0 0.0
      %3153 = vmatpush1.msra.mxu0 %v3130
      %3154 = vmatprep.subr.mxu0 0.0
      %3155 = vmatpush1.msra.mxu0 %v3131
      %3156 = vmatprep.subr.mxu0 0.0
      %3157 = vmatpush1.msra.mxu0 %v3132
      %3158 = vmatprep.subr.mxu0 0.0
      %3159 = vmatpush1.msra.mxu0 %v3133
      %3160 = vmatprep.subr.mxu0 0.0
      %3161 = vmatpush1.msra.mxu0 %v3134
      %3162 = vmatprep.subr.mxu0 0.0
      %3163 = vmatpush1.msra.mxu0 %v3135
      %3164 = vmatprep.subr.mxu0 0.0
      %3165 = vmatpush1.msra.mxu0 %v3136
      %3166 = vmatprep.subr.mxu0 0.0
      %3167 = vmatpush1.msra.mxu0 %v3137
      %3168 = vmatprep.subr.mxu0 0.0
      %3169 = vmatpush1.msra.mxu0 %v3138
      %3170 = vmatprep.subr.mxu0 0.0
      %3171 = vmatpush1.msra.mxu0 %v3139
      %3172 = vmatprep.subr.mxu0 0.0
      %3173 = vmatpush1.msra.mxu0 0.0
      %3174 = vmatprep.subr.mxu0 0.0
      %3175 = vmatpush1.msra.mxu0 0.0
      %3176 = vmatprep.subr.mxu0 0.0
      %3177 = vmatpush1.msra.mxu0 0.0
      %3178 = vmatprep.subr.mxu0 0.0
      %3179 = vmatpush1.msra.mxu0 0.0
      %3180 = vmatprep.subr.mxu0 0.0
      %3181 = vmatpush1.msra.mxu0 0.0
      %3182 = vmatprep.subr.mxu0 0.0
      %3183 = vmatpush1.msra.mxu0 0.0
      %3184 = vmatprep.subr.mxu0 0.0
      %3185 = vmatpush1.msra.mxu0 0.0
      %3186 = vmatprep.subr.mxu0 0.0
      %3187 = vmatpush1.msra.mxu0 0.0
      %3188 = vmatprep.subr.mxu0 0.0
      %3189 = vmatpush1.msra.mxu0 0.0
      %3190 = vmatprep.subr.mxu0 0.0
      %3191 = vmatpush1.msra.mxu0 0.0
      %3192 = vmatprep.subr.mxu0 0.0
      %3193 = vmatpush1.msra.mxu0 0.0
      %3194 = vmatprep.subr.mxu0 0.0
      %3195 = vmatpush1.msra.mxu0 0.0
      %3196 = vmatprep.subr.mxu0 0.0
      %3197 = vmatpush1.msra.mxu0 0.0
      %3198 = vmatprep.subr.mxu0 0.0
      %3199 = vmatpush1.msra.mxu0 0.0
      %3200 = vmatprep.subr.mxu0 0.0
      %3201 = vmatpush1.msra.mxu0 0.0
      %3202 = vmatprep.subr.mxu0 0.0
      %3203 = vmatpush1.msra.mxu0 0.0
      %3204 = vmatprep.mubr.f32.mxu0 0.0
      %3205 = vmatmul.mubr.f32.gmra.mrb[0].mxu0 %v3098
      %v3206 = vpop.f32.mrb[0].mxu0
      %v3207 = vadd.f32 0.0, %v3206
      %v3208 = vpop.f32.mrb[0].mxu0
      %3209 = vmatprep.mubr.f32.mxu0 0.0
      %3210 = vmatmul.mubr.f32.gmra.mrb[0].mxu0 %v3099
      %v3211 = vpop.f32.mrb[0].mxu0
      %v3212 = vadd.f32 0.0, %v3211
      %v3213 = vpop.f32.mrb[0].mxu0
      %3214 = vmatprep.mubr.f32.mxu0 0.0
      %3215 = vmatmul.mubr.f32.gmra.mrb[0].mxu0 %v3100
      %v3216 = vpop.f32.mrb[0].mxu0
      %v3217 = vadd.f32 0.0, %v3216
      %v3218 = vpop.f32.mrb[0].mxu0
      %3219 = vmatprep.mubr.f32.mxu0 0.0
      %3220 = vmatmul.mubr.f32.gmra.mrb[0].mxu0 %v3101
      %v3221 = vpop.f32.mrb[0].mxu0
      %v3222 = vadd.f32 0.0, %v3221
      %v3223 = vpop.f32.mrb[0].mxu0
      %3224 = vmatprep.mubr.f32.mxu0 0.0
      %3225 = vmatmul.mubr.f32.gmra.mrb[0].mxu0 %v3102
      %v3226 = vpop.f32.mrb[0].mxu0
      %v3227 = vadd.f32 0.0, %v3226
      %v3228 = vpop.f32.mrb[0].mxu0
      %3229 = vmatprep.mubr.f32.mxu0 0.0
      %3230 = vmatmul.mubr.f32.gmra.mrb[0].mxu0 %v3103
      %v3231 = vpop.f32.mrb[0].mxu0
      %v3232 = vadd.f32 0.0, %v3231
      %v3233 = vpop.f32.mrb[0].mxu0
      %3234 = vmatprep.mubr.f32.mxu0 0.0
      %3235 = vmatmul.mubr.f32.gmra.mrb[0].mxu0 %v3104
      %v3236 = vpop.f32.mrb[0].mxu0
      %v3237 = vadd.f32 0.0, %v3236
      %v3238 = vpop.f32.mrb[0].mxu0
      %3239 = vmatprep.mubr.f32.mxu0 0.0
      %3240 = vmatmul.mubr.f32.gmra.mrb[0].mxu0 %v3105
      %v3241 = vpop.f32.mrb[0].mxu0
      %v3242 = vadd.f32 0.0, %v3241
      %v3243 = vpop.f32.mrb[0].mxu0
      %3244 = vmatprep.mubr.f32.mxu0 0.0
      %3245 = vmatmul.mubr.f32.gmra.mrb[0].mxu0 %v3106
      %v3246 = vpop.f32.mrb[0].mxu0
      %v3247 = vadd.f32 0.0, %v3246
      %v3248 = vpop.f32.mrb[0].mxu0
      %3249 = vmatprep.mubr.f32.mxu0 0.0
      %3250 = vmatmul.mubr.f32.gmra.mrb[0].mxu0 %v3107
      %v3251 = vpop.f32.mrb[0].mxu0
      %v3252 = vadd.f32 0.0, %v3251
      %v3253 = vpop.f32.mrb[0].mxu0
      %3254 = vmatprep.mubr.f32.mxu0 0.0
      %3255 = vmatmul.mubr.f32.gmra.mrb[0].mxu0 %v3108
      %v3256 = vpop.f32.mrb[0].mxu0
      %v3257 = vadd.f32 0.0, %v3256
      %v3258 = vpop.f32.mrb[0].mxu0
      %3259 = vmatprep.mubr.f32.mxu0 0.0
      %3260 = vmatmul.mubr.f32.gmra.mrb[0].mxu0 %v3109
      %v3261 = vpop.f32.mrb[0].mxu0
      %v3262 = vadd.f32 0.0, %v3261
      %v3263 = vpop.f32.mrb[0].mxu0
      %3264 = vmatprep.mubr.f32.mxu0 0.0
      %3265 = vmatmul.mubr.f32.gmra.mrb[0].mxu0 %v3110
      %v3266 = vpop.f32.mrb[0].mxu0
      %v3267 = vadd.f32 0.0, %v3266
      %v3268 = vpop.f32.mrb[0].mxu0
      %3269 = vmatprep.mubr.f32.mxu0 0.0
      %3270 = vmatmul.mubr.f32.gmra.mrb[0].mxu0 %v3111
      %v3271 = vpop.f32.mrb[0].mxu0
      %v3272 = vadd.f32 0.0, %v3271
      %v3273 = vpop.f32.mrb[0].mxu0
      %3274 = vmatprep.mubr.f32.mxu0 0.0
      %3275 = vmatmul.mubr.f32.gmra.mrb[0].mxu0 %v3112
      %v3276 = vpop.f32.mrb[0].mxu0
      %v3277 = vadd.f32 0.0, %v3276
      %v3278 = vpop.f32.mrb[0].mxu0
      %3279 = vmatprep.mubr.f32.mxu0 0.0
      %3280 = vmatmul.mubr.f32.gmra.mrb[0].mxu0 %v3113
      %v3281 = vpop.f32.mrb[0].mxu0
      %v3282 = vadd.f32 0.0, %v3281
      %v3283 = vpop.f32.mrb[0].mxu0
      %3284 = vmatprep.mubr.f32.mxu0 0.0
      %3285 = vmatmul.mubr.f32.gmra.mrb[0].mxu0 %v3114
      %v3286 = vpop.f32.mrb[0].mxu0
      %v3287 = vadd.f32 0.0, %v3286
      %v3288 = vpop.f32.mrb[0].mxu0
      %3289 = vmatprep.mubr.f32.mxu0 0.0
      %3290 = vmatmul.mubr.f32.gmra.mrb[0].mxu0 %v3115
      %v3291 = vpop.f32.mrb[0].mxu0
      %v3292 = vadd.f32 0.0, %v3291
      %v3293 = vpop.f32.mrb[0].mxu0
      %3294 = vmatprep.mubr.f32.mxu0 0.0
      %3295 = vmatmul.mubr.f32.gmra.mrb[0].mxu0 %v3116
      %v3296 = vpop.f32.mrb[0].mxu0
      %v3297 = vadd.f32 0.0, %v3296
      %v3298 = vpop.f32.mrb[0].mxu0
      %3299 = vmatprep.mubr.f32.mxu0 0.0
      %3300 = vmatmul.mubr.f32.gmra.mrb[0].mxu0 %v3117
      %v3301 = vpop.f32.mrb[0].mxu0
      %v3302 = vadd.f32 0.0, %v3301
      %v3303 = vpop.f32.mrb[0].mxu0
      %3304 = vmatprep.mubr.f32.mxu0 0.0
      %3305 = vmatmul.mubr.f32.gmra.mrb[0].mxu0 %v3118
      %v3306 = vpop.f32.mrb[0].mxu0
      %v3307 = vadd.f32 0.0, %v3306
      %v3308 = vpop.f32.mrb[0].mxu0
      %3309 = vmatprep.mubr.f32.mxu0 0.0
      %3310 = vmatmul.mubr.f32.gmra.mrb[0].mxu0 %v3119
      %v3311 = vpop.f32.mrb[0].mxu0
      %v3312 = vadd.f32 0.0, %v3311
      %v3313 = vpop.f32.mrb[0].mxu0
      %3314 = vmatprep.mubr.f32.mxu0 0.0
      %3315 = vmatmul.mubr.f32.gmra.mrb[0].mxu0 %v3120
      %v3316 = vpop.f32.mrb[0].mxu0
      %v3317 = vadd.f32 0.0, %v3316
      %v3318 = vpop.f32.mrb[0].mxu0
      %3319 = vmatprep.mubr.f32.mxu0 0.0
      %3320 = vmatmul.mubr.f32.gmra.mrb[0].mxu0 %v3121
      %v3321 = vpop.f32.mrb[0].mxu0
      %v3322 = vadd.f32 0.0, %v3321
      %v3323 = vpop.f32.mrb[0].mxu0
      %3324 = vmatprep.mubr.f32.mxu0 0.0
      %3325 = vmatmul.mubr.f32.gmra.mrb[0].mxu0 %v3122
      %v3326 = vpop.f32.mrb[0].mxu0
      %v3327 = vadd.f32 0.0, %v3326
      %v3328 = vpop.f32.mrb[0].mxu0
      %3329 = vdwg.mxu0
      %v3330 = vadd.f32 %v2649, %v3207
      %v3331 = vadd.f32 %v2650, %v3212
      %v3332 = vadd.f32 %v2651, %v3217
      %v3333 = vadd.f32 %v2652, %v3222
      %v3334 = vadd.f32 %v2653, %v3227
      %v3335 = vadd.f32 %v2654, %v3232
      %v3336 = vadd.f32 %v2655, %v3237
      %v3337 = vadd.f32 %v2656, %v3242
      %v3338 = vadd.f32 %v2657, %v3247
      %v3339 = vadd.f32 %v2658, %v3252
      %v3340 = vadd.f32 %v2659, %v3257
      %v3341 = vadd.f32 %v2660, %v3262
      %v3342 = vadd.f32 %v2661, %v3267
      %v3343 = vadd.f32 %v2662, %v3272
      %v3344 = vadd.f32 %v2663, %v3277
      %v3345 = vadd.f32 %v2664, %v3282
      %v3346 = vadd.f32 %v2665, %v3287
      %v3347 = vadd.f32 %v2666, %v3292
      %v3348 = vadd.f32 %v2667, %v3297
      %v3349 = vadd.f32 %v2668, %v3302
      %v3350 = vadd.f32 %v2669, %v3307
      %v3351 = vadd.f32 %v2670, %v3312
      %v3352 = vadd.f32 %v2671, %v3317
      %v3353 = vadd.f32 %v2672, %v3322
      %v3354 = vadd.f32 %v2673, %v3327
      %s3355 = scalar_lea.vmem [#allocation2], 624
      %v3356 = vld [vmem:[%s3355] sm:$0xff]
      %v3357 = vld [vmem:[%s3355 + $0x8] sm:$0xff]
      %v3358 = vld [vmem:[%s3355 + $0x10] sm:$0xff]
      %v3359 = vld [vmem:[%s3355 + $0x18] sm:$0xff]
      %v3360 = vld [vmem:[%s3355 + $0x20] sm:$0xff]
      %v3361 = vld [vmem:[%s3355 + $0x60] sm:$0xff]
      %v3362 = vld [vmem:[%s3355 + $0x68] sm:$0xff]
      %v3363 = vld [vmem:[%s3355 + $0x70] sm:$0xff]
      %v3364 = vld [vmem:[%s3355 + $0x78] sm:$0xff]
      %v3365 = vld [vmem:[%s3355 + $0x80] sm:$0xff]
      %v3366 = vld [vmem:[%s3355 + $0xc0] sm:$0xff]
      %v3367 = vld [vmem:[%s3355 + $0xc8] sm:$0xff]
      %v3368 = vld [vmem:[%s3355 + $0xd0] sm:$0xff]
      %v3369 = vld [vmem:[%s3355 + $0xd8] sm:$0xff]
      %v3370 = vld [vmem:[%s3355 + $0xe0] sm:$0xff]
      %v3371 = vld [vmem:[%s3355 + $0x120] sm:$0xff]
      %v3372 = vld [vmem:[%s3355 + $0x128] sm:$0xff]
      %v3373 = vld [vmem:[%s3355 + $0x130] sm:$0xff]
      %v3374 = vld [vmem:[%s3355 + $0x138] sm:$0xff]
      %v3375 = vld [vmem:[%s3355 + $0x140] sm:$0xff]
      %v3376 = vld [vmem:[%s3355 + $0x180] sm:$0xff]
      %v3377 = vld [vmem:[%s3355 + $0x188] sm:$0xff]
      %v3378 = vld [vmem:[%s3355 + $0x190] sm:$0xff]
      %v3379 = vld [vmem:[%s3355 + $0x198] sm:$0xff]
      %v3380 = vld [vmem:[%s3355 + $0x1a0] sm:$0xff]
      %s3381 = scalar_lea.vmem %s3, 640
      %v3382 = vld [vmem:[%s3381] sm:$0xff]
      %v3383 = vld [vmem:[%s3381 + $0x8] sm:$0xff]
      %v3384 = vld [vmem:[%s3381 + $0x10] sm:$0xff]
      %v3385 = vld [vmem:[%s3381 + $0x18] sm:$0xff]
      %v3386 = vld [vmem:[%s3381 + $0x20] sm:$0xff]
      %v3387 = vld [vmem:[%s3381 + $0x28] sm:$0xff]
      %v3388 = vld [vmem:[%s3381 + $0x30] sm:$0xff]
      %v3389 = vld [vmem:[%s3381 + $0x38] sm:$0xff]
      %v3390 = vld [vmem:[%s3381 + $0x40] sm:$0xff]
      %v3391 = vld [vmem:[%s3381 + $0x48] sm:$0xff]
      %v3392 = vld [vmem:[%s3381 + $0x50] sm:$0xff]
      %v3393 = vld [vmem:[%s3381 + $0x58] sm:$0xff]
      %v3394 = vld [vmem:[%s3381 + $0x60] sm:$0xff]
      %v3395 = vld [vmem:[%s3381 + $0x68] sm:$0xff]
      %v3396 = vld [vmem:[%s3381 + $0x70] sm:$0xff]
      %v3397 = vld [vmem:[%s3381 + $0x78] sm:$0xff]
      %3398 = vmatprep.subr.mxu0 0.0
      %3399 = vmatpush1.msra.mxu0 %v3382
      %3400 = vmatprep.subr.mxu0 0.0
      %3401 = vmatpush1.msra.mxu0 %v3383
      %3402 = vmatprep.subr.mxu0 0.0
      %3403 = vmatpush1.msra.mxu0 %v3384
      %3404 = vmatprep.subr.mxu0 0.0
      %3405 = vmatpush1.msra.mxu0 %v3385
      %3406 = vmatprep.subr.mxu0 0.0
      %3407 = vmatpush1.msra.mxu0 %v3386
      %3408 = vmatprep.subr.mxu0 0.0
      %3409 = vmatpush1.msra.mxu0 %v3387
      %3410 = vmatprep.subr.mxu0 0.0
      %3411 = vmatpush1.msra.mxu0 %v3388
      %3412 = vmatprep.subr.mxu0 0.0
      %3413 = vmatpush1.msra.mxu0 %v3389
      %3414 = vmatprep.subr.mxu0 0.0
      %3415 = vmatpush1.msra.mxu0 %v3390
      %3416 = vmatprep.subr.mxu0 0.0
      %3417 = vmatpush1.msra.mxu0 %v3391
      %3418 = vmatprep.subr.mxu0 0.0
      %3419 = vmatpush1.msra.mxu0 %v3392
      %3420 = vmatprep.subr.mxu0 0.0
      %3421 = vmatpush1.msra.mxu0 %v3393
      %3422 = vmatprep.subr.mxu0 0.0
      %3423 = vmatpush1.msra.mxu0 %v3394
      %3424 = vmatprep.subr.mxu0 0.0
      %3425 = vmatpush1.msra.mxu0 %v3395
      %3426 = vmatprep.subr.mxu0 0.0
      %3427 = vmatpush1.msra.mxu0 %v3396
      %3428 = vmatprep.subr.mxu0 0.0
      %3429 = vmatpush1.msra.mxu0 %v3397
      %3430 = vmatprep.subr.mxu0 0.0
      %3431 = vmatpush1.msra.mxu0 0.0
      %3432 = vmatprep.subr.mxu0 0.0
      %3433 = vmatpush1.msra.mxu0 0.0
      %3434 = vmatprep.subr.mxu0 0.0
      %3435 = vmatpush1.msra.mxu0 0.0
      %3436 = vmatprep.subr.mxu0 0.0
      %3437 = vmatpush1.msra.mxu0 0.0
      %3438 = vmatprep.subr.mxu0 0.0
      %3439 = vmatpush1.msra.mxu0 0.0
      %3440 = vmatprep.subr.mxu0 0.0
      %3441 = vmatpush1.msra.mxu0 0.0
      %3442 = vmatprep.subr.mxu0 0.0
      %3443 = vmatpush1.msra.mxu0 0.0
      %3444 = vmatprep.subr.mxu0 0.0
      %3445 = vmatpush1.msra.mxu0 0.0
      %3446 = vmatprep.subr.mxu0 0.0
      %3447 = vmatpush1.msra.mxu0 0.0
      %3448 = vmatprep.subr.mxu0 0.0
      %3449 = vmatpush1.msra.mxu0 0.0
      %3450 = vmatprep.subr.mxu0 0.0
      %3451 = vmatpush1.msra.mxu0 0.0
      %3452 = vmatprep.subr.mxu0 0.0
      %3453 = vmatpush1.msra.mxu0 0.0
      %3454 = vmatprep.subr.mxu0 0.0
      %3455 = vmatpush1.msra.mxu0 0.0
      %3456 = vmatprep.subr.mxu0 0.0
      %3457 = vmatpush1.msra.mxu0 0.0
      %3458 = vmatprep.subr.mxu0 0.0
      %3459 = vmatpush1.msra.mxu0 0.0
      %3460 = vmatprep.subr.mxu0 0.0
      %3461 = vmatpush1.msra.mxu0 0.0
      %3462 = vmatprep.mubr.f32.mxu0 0.0
      %3463 = vmatmul.mubr.f32.gmra.mrb[0].mxu0 %v3356
      %v3464 = vpop.f32.mrb[0].mxu0
      %v3465 = vadd.f32 0.0, %v3464
      %v3466 = vpop.f32.mrb[0].mxu0
      %3467 = vmatprep.mubr.f32.mxu0 0.0
      %3468 = vmatmul.mubr.f32.gmra.mrb[0].mxu0 %v3357
      %v3469 = vpop.f32.mrb[0].mxu0
      %v3470 = vadd.f32 0.0, %v3469
      %v3471 = vpop.f32.mrb[0].mxu0
      %3472 = vmatprep.mubr.f32.mxu0 0.0
      %3473 = vmatmul.mubr.f32.gmra.mrb[0].mxu0 %v3358
      %v3474 = vpop.f32.mrb[0].mxu0
      %v3475 = vadd.f32 0.0, %v3474
      %v3476 = vpop.f32.mrb[0].mxu0
      %3477 = vmatprep.mubr.f32.mxu0 0.0
      %3478 = vmatmul.mubr.f32.gmra.mrb[0].mxu0 %v3359
      %v3479 = vpop.f32.mrb[0].mxu0
      %v3480 = vadd.f32 0.0, %v3479
      %v3481 = vpop.f32.mrb[0].mxu0
      %3482 = vmatprep.mubr.f32.mxu0 0.0
      %3483 = vmatmul.mubr.f32.gmra.mrb[0].mxu0 %v3360
      %v3484 = vpop.f32.mrb[0].mxu0
      %v3485 = vadd.f32 0.0, %v3484
      %v3486 = vpop.f32.mrb[0].mxu0
      %3487 = vmatprep.mubr.f32.mxu0 0.0
      %3488 = vmatmul.mubr.f32.gmra.mrb[0].mxu0 %v3361
      %v3489 = vpop.f32.mrb[0].mxu0
      %v3490 = vadd.f32 0.0, %v3489
      %v3491 = vpop.f32.mrb[0].mxu0
      %3492 = vmatprep.mubr.f32.mxu0 0.0
      %3493 = vmatmul.mubr.f32.gmra.mrb[0].mxu0 %v3362
      %v3494 = vpop.f32.mrb[0].mxu0
      %v3495 = vadd.f32 0.0, %v3494
      %v3496 = vpop.f32.mrb[0].mxu0
      %3497 = vmatprep.mubr.f32.mxu0 0.0
      %3498 = vmatmul.mubr.f32.gmra.mrb[0].mxu0 %v3363
      %v3499 = vpop.f32.mrb[0].mxu0
      %v3500 = vadd.f32 0.0, %v3499
      %v3501 = vpop.f32.mrb[0].mxu0
      %3502 = vmatprep.mubr.f32.mxu0 0.0
      %3503 = vmatmul.mubr.f32.gmra.mrb[0].mxu0 %v3364
      %v3504 = vpop.f32.mrb[0].mxu0
      %v3505 = vadd.f32 0.0, %v3504
      %v3506 = vpop.f32.mrb[0].mxu0
      %3507 = vmatprep.mubr.f32.mxu0 0.0
      %3508 = vmatmul.mubr.f32.gmra.mrb[0].mxu0 %v3365
      %v3509 = vpop.f32.mrb[0].mxu0
      %v3510 = vadd.f32 0.0, %v3509
      %v3511 = vpop.f32.mrb[0].mxu0
      %3512 = vmatprep.mubr.f32.mxu0 0.0
      %3513 = vmatmul.mubr.f32.gmra.mrb[0].mxu0 %v3366
      %v3514 = vpop.f32.mrb[0].mxu0
      %v3515 = vadd.f32 0.0, %v3514
      %v3516 = vpop.f32.mrb[0].mxu0
      %3517 = vmatprep.mubr.f32.mxu0 0.0
      %3518 = vmatmul.mubr.f32.gmra.mrb[0].mxu0 %v3367
      %v3519 = vpop.f32.mrb[0].mxu0
      %v3520 = vadd.f32 0.0, %v3519
      %v3521 = vpop.f32.mrb[0].mxu0
      %3522 = vmatprep.mubr.f32.mxu0 0.0
      %3523 = vmatmul.mubr.f32.gmra.mrb[0].mxu0 %v3368
      %v3524 = vpop.f32.mrb[0].mxu0
      %v3525 = vadd.f32 0.0, %v3524
      %v3526 = vpop.f32.mrb[0].mxu0
      %3527 = vmatprep.mubr.f32.mxu0 0.0
      %3528 = vmatmul.mubr.f32.gmra.mrb[0].mxu0 %v3369
      %v3529 = vpop.f32.mrb[0].mxu0
      %v3530 = vadd.f32 0.0, %v3529
      %v3531 = vpop.f32.mrb[0].mxu0
      %3532 = vmatprep.mubr.f32.mxu0 0.0
      %3533 = vmatmul.mubr.f32.gmra.mrb[0].mxu0 %v3370
      %v3534 = vpop.f32.mrb[0].mxu0
      %v3535 = vadd.f32 0.0, %v3534
      %v3536 = vpop.f32.mrb[0].mxu0
      %3537 = vmatprep.mubr.f32.mxu0 0.0
      %3538 = vmatmul.mubr.f32.gmra.mrb[0].mxu0 %v3371
      %v3539 = vpop.f32.mrb[0].mxu0
      %v3540 = vadd.f32 0.0, %v3539
      %v3541 = vpop.f32.mrb[0].mxu0
      %3542 = vmatprep.mubr.f32.mxu0 0.0
      %3543 = vmatmul.mubr.f32.gmra.mrb[0].mxu0 %v3372
      %v3544 = vpop.f32.mrb[0].mxu0
      %v3545 = vadd.f32 0.0, %v3544
      %v3546 = vpop.f32.mrb[0].mxu0
      %3547 = vmatprep.mubr.f32.mxu0 0.0
      %3548 = vmatmul.mubr.f32.gmra.mrb[0].mxu0 %v3373
      %v3549 = vpop.f32.mrb[0].mxu0
      %v3550 = vadd.f32 0.0, %v3549
      %v3551 = vpop.f32.mrb[0].mxu0
      %3552 = vmatprep.mubr.f32.mxu0 0.0
      %3553 = vmatmul.mubr.f32.gmra.mrb[0].mxu0 %v3374
      %v3554 = vpop.f32.mrb[0].mxu0
      %v3555 = vadd.f32 0.0, %v3554
      %v3556 = vpop.f32.mrb[0].mxu0
      %3557 = vmatprep.mubr.f32.mxu0 0.0
      %3558 = vmatmul.mubr.f32.gmra.mrb[0].mxu0 %v3375
      %v3559 = vpop.f32.mrb[0].mxu0
      %v3560 = vadd.f32 0.0, %v3559
      %v3561 = vpop.f32.mrb[0].mxu0
      %3562 = vmatprep.mubr.f32.mxu0 0.0
      %3563 = vmatmul.mubr.f32.gmra.mrb[0].mxu0 %v3376
      %v3564 = vpop.f32.mrb[0].mxu0
      %v3565 = vadd.f32 0.0, %v3564
      %v3566 = vpop.f32.mrb[0].mxu0
      %3567 = vmatprep.mubr.f32.mxu0 0.0
      %3568 = vmatmul.mubr.f32.gmra.mrb[0].mxu0 %v3377
      %v3569 = vpop.f32.mrb[0].mxu0
      %v3570 = vadd.f32 0.0, %v3569
      %v3571 = vpop.f32.mrb[0].mxu0
      %3572 = vmatprep.mubr.f32.mxu0 0.0
      %3573 = vmatmul.mubr.f32.gmra.mrb[0].mxu0 %v3378
      %v3574 = vpop.f32.mrb[0].mxu0
      %v3575 = vadd.f32 0.0, %v3574
      %v3576 = vpop.f32.mrb[0].mxu0
      %3577 = vmatprep.mubr.f32.mxu0 0.0
      %3578 = vmatmul.mubr.f32.gmra.mrb[0].mxu0 %v3379
      %v3579 = vpop.f32.mrb[0].mxu0
      %v3580 = vadd.f32 0.0, %v3579
      %v3581 = vpop.f32.mrb[0].mxu0
      %3582 = vmatprep.mubr.f32.mxu0 0.0
      %3583 = vmatmul.mubr.f32.gmra.mrb[0].mxu0 %v3380
      %v3584 = vpop.f32.mrb[0].mxu0
      %v3585 = vadd.f32 0.0, %v3584
      %v3586 = vpop.f32.mrb[0].mxu0
      %3587 = vdwg.mxu0
      %v3588 = vadd.f32 %v2974, %v3465
      %v3589 = vadd.f32 %v2979, %v3470
      %v3590 = vadd.f32 %v2984, %v3475
      %v3591 = vadd.f32 %v2989, %v3480
      %v3592 = vadd.f32 %v2994, %v3485
      %v3593 = vadd.f32 %v2999, %v3490
      %v3594 = vadd.f32 %v3004, %v3495
      %v3595 = vadd.f32 %v3009, %v3500
      %v3596 = vadd.f32 %v3014, %v3505
      %v3597 = vadd.f32 %v3019, %v3510
      %v3598 = vadd.f32 %v3024, %v3515
      %v3599 = vadd.f32 %v3029, %v3520
      %v3600 = vadd.f32 %v3034, %v3525
      %v3601 = vadd.f32 %v3039, %v3530
      %v3602 = vadd.f32 %v3044, %v3535
      %v3603 = vadd.f32 %v3049, %v3540
      %v3604 = vadd.f32 %v3054, %v3545
      %v3605 = vadd.f32 %v3059, %v3550
      %v3606 = vadd.f32 %v3064, %v3555
      %v3607 = vadd.f32 %v3069, %v3560
      %v3608 = vadd.f32 %v3074, %v3565
      %v3609 = vadd.f32 %v3079, %v3570
      %v3610 = vadd.f32 %v3084, %v3575
      %v3611 = vadd.f32 %v3089, %v3580
      %v3612 = vadd.f32 %v3094, %v3585
      %s3613 = scalar_lea.vmem [#allocation2], 584
      %v3614 = vld [vmem:[%s3613] sm:$0xff]
      %v3615 = vld [vmem:[%s3613 + $0x8] sm:$0xff]
      %v3616 = vld [vmem:[%s3613 + $0x10] sm:$0xff]
      %v3617 = vld [vmem:[%s3613 + $0x18] sm:$0xff]
      %v3618 = vld [vmem:[%s3613 + $0x20] sm:$0xff]
      %v3619 = vld [vmem:[%s3613 + $0x60] sm:$0xff]
      %v3620 = vld [vmem:[%s3613 + $0x68] sm:$0xff]
      %v3621 = vld [vmem:[%s3613 + $0x70] sm:$0xff]
      %v3622 = vld [vmem:[%s3613 + $0x78] sm:$0xff]
      %v3623 = vld [vmem:[%s3613 + $0x80] sm:$0xff]
      %v3624 = vld [vmem:[%s3613 + $0xc0] sm:$0xff]
      %v3625 = vld [vmem:[%s3613 + $0xc8] sm:$0xff]
      %v3626 = vld [vmem:[%s3613 + $0xd0] sm:$0xff]
      %v3627 = vld [vmem:[%s3613 + $0xd8] sm:$0xff]
      %v3628 = vld [vmem:[%s3613 + $0xe0] sm:$0xff]
      %v3629 = vld [vmem:[%s3613 + $0x120] sm:$0xff]
      %v3630 = vld [vmem:[%s3613 + $0x128] sm:$0xff]
      %v3631 = vld [vmem:[%s3613 + $0x130] sm:$0xff]
      %v3632 = vld [vmem:[%s3613 + $0x138] sm:$0xff]
      %v3633 = vld [vmem:[%s3613 + $0x140] sm:$0xff]
      %v3634 = vld [vmem:[%s3613 + $0x180] sm:$0xff]
      %v3635 = vld [vmem:[%s3613 + $0x188] sm:$0xff]
      %v3636 = vld [vmem:[%s3613 + $0x190] sm:$0xff]
      %v3637 = vld [vmem:[%s3613 + $0x198] sm:$0xff]
      %v3638 = vld [vmem:[%s3613 + $0x1a0] sm:$0xff]
      %s3639 = scalar_lea.vmem %s3, 768
      %v3640 = vld [vmem:[%s3639] sm:$0xff]
      %v3641 = vld [vmem:[%s3639 + $0x8] sm:$0xff]
      %v3642 = vld [vmem:[%s3639 + $0x10] sm:$0xff]
      %v3643 = vld [vmem:[%s3639 + $0x18] sm:$0xff]
      %v3644 = vld [vmem:[%s3639 + $0x20] sm:$0xff]
      %v3645 = vld [vmem:[%s3639 + $0x28] sm:$0xff]
      %v3646 = vld [vmem:[%s3639 + $0x30] sm:$0xff]
      %v3647 = vld [vmem:[%s3639 + $0x38] sm:$0xff]
      %v3648 = vld [vmem:[%s3639 + $0x40] sm:$0xff]
      %v3649 = vld [vmem:[%s3639 + $0x48] sm:$0xff]
      %v3650 = vld [vmem:[%s3639 + $0x50] sm:$0xff]
      %v3651 = vld [vmem:[%s3639 + $0x58] sm:$0xff]
      %v3652 = vld [vmem:[%s3639 + $0x60] sm:$0xff]
      %v3653 = vld [vmem:[%s3639 + $0x68] sm:$0xff]
      %v3654 = vld [vmem:[%s3639 + $0x70] sm:$0xff]
      %v3655 = vld [vmem:[%s3639 + $0x78] sm:$0xff]
      %3656 = vmatprep.subr.mxu0 0.0
      %3657 = vmatpush1.msra.mxu0 %v3640
      %3658 = vmatprep.subr.mxu0 0.0
      %3659 = vmatpush1.msra.mxu0 %v3641
      %3660 = vmatprep.subr.mxu0 0.0
      %3661 = vmatpush1.msra.mxu0 %v3642
      %3662 = vmatprep.subr.mxu0 0.0
      %3663 = vmatpush1.msra.mxu0 %v3643
      %3664 = vmatprep.subr.mxu0 0.0
      %3665 = vmatpush1.msra.mxu0 %v3644
      %3666 = vmatprep.subr.mxu0 0.0
      %3667 = vmatpush1.msra.mxu0 %v3645
      %3668 = vmatprep.subr.mxu0 0.0
      %3669 = vmatpush1.msra.mxu0 %v3646
      %3670 = vmatprep.subr.mxu0 0.0
      %3671 = vmatpush1.msra.mxu0 %v3647
      %3672 = vmatprep.subr.mxu0 0.0
      %3673 = vmatpush1.msra.mxu0 %v3648
      %3674 = vmatprep.subr.mxu0 0.0
      %3675 = vmatpush1.msra.mxu0 %v3649
      %3676 = vmatprep.subr.mxu0 0.0
      %3677 = vmatpush1.msra.mxu0 %v3650
      %3678 = vmatprep.subr.mxu0 0.0
      %3679 = vmatpush1.msra.mxu0 %v3651
      %3680 = vmatprep.subr.mxu0 0.0
      %3681 = vmatpush1.msra.mxu0 %v3652
      %3682 = vmatprep.subr.mxu0 0.0
      %3683 = vmatpush1.msra.mxu0 %v3653
      %3684 = vmatprep.subr.mxu0 0.0
      %3685 = vmatpush1.msra.mxu0 %v3654
      %3686 = vmatprep.subr.mxu0 0.0
      %3687 = vmatpush1.msra.mxu0 %v3655
      %3688 = vmatprep.subr.mxu0 0.0
      %3689 = vmatpush1.msra.mxu0 0.0
      %3690 = vmatprep.subr.mxu0 0.0
      %3691 = vmatpush1.msra.mxu0 0.0
      %3692 = vmatprep.subr.mxu0 0.0
      %3693 = vmatpush1.msra.mxu0 0.0
      %3694 = vmatprep.subr.mxu0 0.0
      %3695 = vmatpush1.msra.mxu0 0.0
      %3696 = vmatprep.subr.mxu0 0.0
      %3697 = vmatpush1.msra.mxu0 0.0
      %3698 = vmatprep.subr.mxu0 0.0
      %3699 = vmatpush1.msra.mxu0 0.0
      %3700 = vmatprep.subr.mxu0 0.0
      %3701 = vmatpush1.msra.mxu0 0.0
      %3702 = vmatprep.subr.mxu0 0.0
      %3703 = vmatpush1.msra.mxu0 0.0
      %3704 = vmatprep.subr.mxu0 0.0
      %3705 = vmatpush1.msra.mxu0 0.0
      %3706 = vmatprep.subr.mxu0 0.0
      %3707 = vmatpush1.msra.mxu0 0.0
      %3708 = vmatprep.subr.mxu0 0.0
      %3709 = vmatpush1.msra.mxu0 0.0
      %3710 = vmatprep.subr.mxu0 0.0
      %3711 = vmatpush1.msra.mxu0 0.0
      %3712 = vmatprep.subr.mxu0 0.0
      %3713 = vmatpush1.msra.mxu0 0.0
      %3714 = vmatprep.subr.mxu0 0.0
      %3715 = vmatpush1.msra.mxu0 0.0
      %3716 = vmatprep.subr.mxu0 0.0
      %3717 = vmatpush1.msra.mxu0 0.0
      %3718 = vmatprep.subr.mxu0 0.0
      %3719 = vmatpush1.msra.mxu0 0.0
      %3720 = vmatprep.mubr.f32.mxu0 0.0
      %3721 = vmatmul.mubr.f32.gmra.mrb[0].mxu0 %v3614
      %v3722 = vpop.f32.mrb[0].mxu0
      %v3723 = vadd.f32 0.0, %v3722
      %v3724 = vpop.f32.mrb[0].mxu0
      %3725 = vmatprep.mubr.f32.mxu0 0.0
      %3726 = vmatmul.mubr.f32.gmra.mrb[0].mxu0 %v3615
      %v3727 = vpop.f32.mrb[0].mxu0
      %v3728 = vadd.f32 0.0, %v3727
      %v3729 = vpop.f32.mrb[0].mxu0
      %3730 = vmatprep.mubr.f32.mxu0 0.0
      %3731 = vmatmul.mubr.f32.gmra.mrb[0].mxu0 %v3616
      %v3732 = vpop.f32.mrb[0].mxu0
      %v3733 = vadd.f32 0.0, %v3732
      %v3734 = vpop.f32.mrb[0].mxu0
      %3735 = vmatprep.mubr.f32.mxu0 0.0
      %3736 = vmatmul.mubr.f32.gmra.mrb[0].mxu0 %v3617
      %v3737 = vpop.f32.mrb[0].mxu0
      %v3738 = vadd.f32 0.0, %v3737
      %v3739 = vpop.f32.mrb[0].mxu0
      %3740 = vmatprep.mubr.f32.mxu0 0.0
      %3741 = vmatmul.mubr.f32.gmra.mrb[0].mxu0 %v3618
      %v3742 = vpop.f32.mrb[0].mxu0
      %v3743 = vadd.f32 0.0, %v3742
      %v3744 = vpop.f32.mrb[0].mxu0
      %3745 = vmatprep.mubr.f32.mxu0 0.0
      %3746 = vmatmul.mubr.f32.gmra.mrb[0].mxu0 %v3619
      %v3747 = vpop.f32.mrb[0].mxu0
      %v3748 = vadd.f32 0.0, %v3747
      %v3749 = vpop.f32.mrb[0].mxu0
      %3750 = vmatprep.mubr.f32.mxu0 0.0
      %3751 = vmatmul.mubr.f32.gmra.mrb[0].mxu0 %v3620
      %v3752 = vpop.f32.mrb[0].mxu0
      %v3753 = vadd.f32 0.0, %v3752
      %v3754 = vpop.f32.mrb[0].mxu0
      %3755 = vmatprep.mubr.f32.mxu0 0.0
      %3756 = vmatmul.mubr.f32.gmra.mrb[0].mxu0 %v3621
      %v3757 = vpop.f32.mrb[0].mxu0
      %v3758 = vadd.f32 0.0, %v3757
      %v3759 = vpop.f32.mrb[0].mxu0
      %3760 = vmatprep.mubr.f32.mxu0 0.0
      %3761 = vmatmul.mubr.f32.gmra.mrb[0].mxu0 %v3622
      %v3762 = vpop.f32.mrb[0].mxu0
      %v3763 = vadd.f32 0.0, %v3762
      %v3764 = vpop.f32.mrb[0].mxu0
      %3765 = vmatprep.mubr.f32.mxu0 0.0
      %3766 = vmatmul.mubr.f32.gmra.mrb[0].mxu0 %v3623
      %v3767 = vpop.f32.mrb[0].mxu0
      %v3768 = vadd.f32 0.0, %v3767
      %v3769 = vpop.f32.mrb[0].mxu0
      %3770 = vmatprep.mubr.f32.mxu0 0.0
      %3771 = vmatmul.mubr.f32.gmra.mrb[0].mxu0 %v3624
      %v3772 = vpop.f32.mrb[0].mxu0
      %v3773 = vadd.f32 0.0, %v3772
      %v3774 = vpop.f32.mrb[0].mxu0
      %3775 = vmatprep.mubr.f32.mxu0 0.0
      %3776 = vmatmul.mubr.f32.gmra.mrb[0].mxu0 %v3625
      %v3777 = vpop.f32.mrb[0].mxu0
      %v3778 = vadd.f32 0.0, %v3777
      %v3779 = vpop.f32.mrb[0].mxu0
      %3780 = vmatprep.mubr.f32.mxu0 0.0
      %3781 = vmatmul.mubr.f32.gmra.mrb[0].mxu0 %v3626
      %v3782 = vpop.f32.mrb[0].mxu0
      %v3783 = vadd.f32 0.0, %v3782
      %v3784 = vpop.f32.mrb[0].mxu0
      %3785 = vmatprep.mubr.f32.mxu0 0.0
      %3786 = vmatmul.mubr.f32.gmra.mrb[0].mxu0 %v3627
      %v3787 = vpop.f32.mrb[0].mxu0
      %v3788 = vadd.f32 0.0, %v3787
      %v3789 = vpop.f32.mrb[0].mxu0
      %3790 = vmatprep.mubr.f32.mxu0 0.0
      %3791 = vmatmul.mubr.f32.gmra.mrb[0].mxu0 %v3628
      %v3792 = vpop.f32.mrb[0].mxu0
      %v3793 = vadd.f32 0.0, %v3792
      %v3794 = vpop.f32.mrb[0].mxu0
      %3795 = vmatprep.mubr.f32.mxu0 0.0
      %3796 = vmatmul.mubr.f32.gmra.mrb[0].mxu0 %v3629
      %v3797 = vpop.f32.mrb[0].mxu0
      %v3798 = vadd.f32 0.0, %v3797
      %v3799 = vpop.f32.mrb[0].mxu0
      %3800 = vmatprep.mubr.f32.mxu0 0.0
      %3801 = vmatmul.mubr.f32.gmra.mrb[0].mxu0 %v3630
      %v3802 = vpop.f32.mrb[0].mxu0
      %v3803 = vadd.f32 0.0, %v3802
      %v3804 = vpop.f32.mrb[0].mxu0
      %3805 = vmatprep.mubr.f32.mxu0 0.0
      %3806 = vmatmul.mubr.f32.gmra.mrb[0].mxu0 %v3631
      %v3807 = vpop.f32.mrb[0].mxu0
      %v3808 = vadd.f32 0.0, %v3807
      %v3809 = vpop.f32.mrb[0].mxu0
      %3810 = vmatprep.mubr.f32.mxu0 0.0
      %3811 = vmatmul.mubr.f32.gmra.mrb[0].mxu0 %v3632
      %v3812 = vpop.f32.mrb[0].mxu0
      %v3813 = vadd.f32 0.0, %v3812
      %v3814 = vpop.f32.mrb[0].mxu0
      %3815 = vmatprep.mubr.f32.mxu0 0.0
      %3816 = vmatmul.mubr.f32.gmra.mrb[0].mxu0 %v3633
      %v3817 = vpop.f32.mrb[0].mxu0
      %v3818 = vadd.f32 0.0, %v3817
      %v3819 = vpop.f32.mrb[0].mxu0
      %3820 = vmatprep.mubr.f32.mxu0 0.0
      %3821 = vmatmul.mubr.f32.gmra.mrb[0].mxu0 %v3634
      %v3822 = vpop.f32.mrb[0].mxu0
      %v3823 = vadd.f32 0.0, %v3822
      %v3824 = vpop.f32.mrb[0].mxu0
      %3825 = vmatprep.mubr.f32.mxu0 0.0
      %3826 = vmatmul.mubr.f32.gmra.mrb[0].mxu0 %v3635
      %v3827 = vpop.f32.mrb[0].mxu0
      %v3828 = vadd.f32 0.0, %v3827
      %v3829 = vpop.f32.mrb[0].mxu0
      %3830 = vmatprep.mubr.f32.mxu0 0.0
      %3831 = vmatmul.mubr.f32.gmra.mrb[0].mxu0 %v3636
      %v3832 = vpop.f32.mrb[0].mxu0
      %v3833 = vadd.f32 0.0, %v3832
      %v3834 = vpop.f32.mrb[0].mxu0
      %3835 = vmatprep.mubr.f32.mxu0 0.0
      %3836 = vmatmul.mubr.f32.gmra.mrb[0].mxu0 %v3637
      %v3837 = vpop.f32.mrb[0].mxu0
      %v3838 = vadd.f32 0.0, %v3837
      %v3839 = vpop.f32.mrb[0].mxu0
      %3840 = vmatprep.mubr.f32.mxu0 0.0
      %3841 = vmatmul.mubr.f32.gmra.mrb[0].mxu0 %v3638
      %v3842 = vpop.f32.mrb[0].mxu0
      %v3843 = vadd.f32 0.0, %v3842
      %v3844 = vpop.f32.mrb[0].mxu0
      %3845 = vdwg.mxu0
      %v3846 = vadd.f32 %v3330, %v3723
      %v3847 = vadd.f32 %v3331, %v3728
      %v3848 = vadd.f32 %v3332, %v3733
      %v3849 = vadd.f32 %v3333, %v3738
      %v3850 = vadd.f32 %v3334, %v3743
      %v3851 = vadd.f32 %v3335, %v3748
      %v3852 = vadd.f32 %v3336, %v3753
      %v3853 = vadd.f32 %v3337, %v3758
      %v3854 = vadd.f32 %v3338, %v3763
      %v3855 = vadd.f32 %v3339, %v3768
      %v3856 = vadd.f32 %v3340, %v3773
      %v3857 = vadd.f32 %v3341, %v3778
      %v3858 = vadd.f32 %v3342, %v3783
      %v3859 = vadd.f32 %v3343, %v3788
      %v3860 = vadd.f32 %v3344, %v3793
      %v3861 = vadd.f32 %v3345, %v3798
      %v3862 = vadd.f32 %v3346, %v3803
      %v3863 = vadd.f32 %v3347, %v3808
      %v3864 = vadd.f32 %v3348, %v3813
      %v3865 = vadd.f32 %v3349, %v3818
      %v3866 = vadd.f32 %v3350, %v3823
      %v3867 = vadd.f32 %v3351, %v3828
      %v3868 = vadd.f32 %v3352, %v3833
      %v3869 = vadd.f32 %v3353, %v3838
      %v3870 = vadd.f32 %v3354, %v3843
      %s3871 = scalar_lea.vmem [#allocation2], 632
      %v3872 = vld [vmem:[%s3871] sm:$0xff]
      %v3873 = vld [vmem:[%s3871 + $0x8] sm:$0xff]
      %v3874 = vld [vmem:[%s3871 + $0x10] sm:$0xff]
      %v3875 = vld [vmem:[%s3871 + $0x18] sm:$0xff]
      %v3876 = vld [vmem:[%s3871 + $0x20] sm:$0xff]
      %v3877 = vld [vmem:[%s3871 + $0x60] sm:$0xff]
      %v3878 = vld [vmem:[%s3871 + $0x68] sm:$0xff]
      %v3879 = vld [vmem:[%s3871 + $0x70] sm:$0xff]
      %v3880 = vld [vmem:[%s3871 + $0x78] sm:$0xff]
      %v3881 = vld [vmem:[%s3871 + $0x80] sm:$0xff]
      %v3882 = vld [vmem:[%s3871 + $0xc0] sm:$0xff]
      %v3883 = vld [vmem:[%s3871 + $0xc8] sm:$0xff]
      %v3884 = vld [vmem:[%s3871 + $0xd0] sm:$0xff]
      %v3885 = vld [vmem:[%s3871 + $0xd8] sm:$0xff]
      %v3886 = vld [vmem:[%s3871 + $0xe0] sm:$0xff]
      %v3887 = vld [vmem:[%s3871 + $0x120] sm:$0xff]
      %v3888 = vld [vmem:[%s3871 + $0x128] sm:$0xff]
      %v3889 = vld [vmem:[%s3871 + $0x130] sm:$0xff]
      %v3890 = vld [vmem:[%s3871 + $0x138] sm:$0xff]
      %v3891 = vld [vmem:[%s3871 + $0x140] sm:$0xff]
      %v3892 = vld [vmem:[%s3871 + $0x180] sm:$0xff]
      %v3893 = vld [vmem:[%s3871 + $0x188] sm:$0xff]
      %v3894 = vld [vmem:[%s3871 + $0x190] sm:$0xff]
      %v3895 = vld [vmem:[%s3871 + $0x198] sm:$0xff]
      %v3896 = vld [vmem:[%s3871 + $0x1a0] sm:$0xff]
      %s3897 = scalar_lea.vmem %s3, 896
      %v3898 = vld [vmem:[%s3897] sm:$0xff]
      %v3899 = vld [vmem:[%s3897 + $0x8] sm:$0xff]
      %v3900 = vld [vmem:[%s3897 + $0x10] sm:$0xff]
      %v3901 = vld [vmem:[%s3897 + $0x18] sm:$0xff]
      %v3902 = vld [vmem:[%s3897 + $0x20] sm:$0xff]
      %v3903 = vld [vmem:[%s3897 + $0x28] sm:$0xff]
      %v3904 = vld [vmem:[%s3897 + $0x30] sm:$0xff]
      %v3905 = vld [vmem:[%s3897 + $0x38] sm:$0xff]
      %v3906 = vld [vmem:[%s3897 + $0x40] sm:$0xff]
      %v3907 = vld [vmem:[%s3897 + $0x48] sm:$0xff]
      %v3908 = vld [vmem:[%s3897 + $0x50] sm:$0xff]
      %v3909 = vld [vmem:[%s3897 + $0x58] sm:$0xff]
      %v3910 = vld [vmem:[%s3897 + $0x60] sm:$0xff]
      %v3911 = vld [vmem:[%s3897 + $0x68] sm:$0xff]
      %v3912 = vld [vmem:[%s3897 + $0x70] sm:$0xff]
      %v3913 = vld [vmem:[%s3897 + $0x78] sm:$0xff]
      %3914 = vmatprep.subr.mxu0 0.0
      %3915 = vmatpush1.msra.mxu0 %v3898
      %3916 = vmatprep.subr.mxu0 0.0
      %3917 = vmatpush1.msra.mxu0 %v3899
      %3918 = vmatprep.subr.mxu0 0.0
      %3919 = vmatpush1.msra.mxu0 %v3900
      %3920 = vmatprep.subr.mxu0 0.0
      %3921 = vmatpush1.msra.mxu0 %v3901
      %3922 = vmatprep.subr.mxu0 0.0
      %3923 = vmatpush1.msra.mxu0 %v3902
      %3924 = vmatprep.subr.mxu0 0.0
      %3925 = vmatpush1.msra.mxu0 %v3903
      %3926 = vmatprep.subr.mxu0 0.0
      %3927 = vmatpush1.msra.mxu0 %v3904
      %3928 = vmatprep.subr.mxu0 0.0
      %3929 = vmatpush1.msra.mxu0 %v3905
      %3930 = vmatprep.subr.mxu0 0.0
      %3931 = vmatpush1.msra.mxu0 %v3906
      %3932 = vmatprep.subr.mxu0 0.0
      %3933 = vmatpush1.msra.mxu0 %v3907
      %3934 = vmatprep.subr.mxu0 0.0
      %3935 = vmatpush1.msra.mxu0 %v3908
      %3936 = vmatprep.subr.mxu0 0.0
      %3937 = vmatpush1.msra.mxu0 %v3909
      %3938 = vmatprep.subr.mxu0 0.0
      %3939 = vmatpush1.msra.mxu0 %v3910
      %3940 = vmatprep.subr.mxu0 0.0
      %3941 = vmatpush1.msra.mxu0 %v3911
      %3942 = vmatprep.subr.mxu0 0.0
      %3943 = vmatpush1.msra.mxu0 %v3912
      %3944 = vmatprep.subr.mxu0 0.0
      %3945 = vmatpush1.msra.mxu0 %v3913
      %3946 = vmatprep.subr.mxu0 0.0
      %3947 = vmatpush1.msra.mxu0 0.0
      %3948 = vmatprep.subr.mxu0 0.0
      %3949 = vmatpush1.msra.mxu0 0.0
      %3950 = vmatprep.subr.mxu0 0.0
      %3951 = vmatpush1.msra.mxu0 0.0
      %3952 = vmatprep.subr.mxu0 0.0
      %3953 = vmatpush1.msra.mxu0 0.0
      %3954 = vmatprep.subr.mxu0 0.0
      %3955 = vmatpush1.msra.mxu0 0.0
      %3956 = vmatprep.subr.mxu0 0.0
      %3957 = vmatpush1.msra.mxu0 0.0
      %3958 = vmatprep.subr.mxu0 0.0
      %3959 = vmatpush1.msra.mxu0 0.0
      %3960 = vmatprep.subr.mxu0 0.0
      %3961 = vmatpush1.msra.mxu0 0.0
      %3962 = vmatprep.subr.mxu0 0.0
      %3963 = vmatpush1.msra.mxu0 0.0
      %3964 = vmatprep.subr.mxu0 0.0
      %3965 = vmatpush1.msra.mxu0 0.0
      %3966 = vmatprep.subr.mxu0 0.0
      %3967 = vmatpush1.msra.mxu0 0.0
      %3968 = vmatprep.subr.mxu0 0.0
      %3969 = vmatpush1.msra.mxu0 0.0
      %3970 = vmatprep.subr.mxu0 0.0
      %3971 = vmatpush1.msra.mxu0 0.0
      %3972 = vmatprep.subr.mxu0 0.0
      %3973 = vmatpush1.msra.mxu0 0.0
      %3974 = vmatprep.subr.mxu0 0.0
      %3975 = vmatpush1.msra.mxu0 0.0
      %3976 = vmatprep.subr.mxu0 0.0
      %3977 = vmatpush1.msra.mxu0 0.0
      %3978 = vmatprep.mubr.f32.mxu0 0.0
      %3979 = vmatmul.mubr.f32.gmra.mrb[0].mxu0 %v3872
      %v3980 = vpop.f32.mrb[0].mxu0
      %v3981 = vadd.f32 0.0, %v3980
      %v3982 = vpop.f32.mrb[0].mxu0
      %3983 = vmatprep.mubr.f32.mxu0 0.0
      %3984 = vmatmul.mubr.f32.gmra.mrb[0].mxu0 %v3873
      %v3985 = vpop.f32.mrb[0].mxu0
      %v3986 = vadd.f32 0.0, %v3985
      %v3987 = vpop.f32.mrb[0].mxu0
      %3988 = vmatprep.mubr.f32.mxu0 0.0
      %3989 = vmatmul.mubr.f32.gmra.mrb[0].mxu0 %v3874
      %v3990 = vpop.f32.mrb[0].mxu0
      %v3991 = vadd.f32 0.0, %v3990
      %v3992 = vpop.f32.mrb[0].mxu0
      %3993 = vmatprep.mubr.f32.mxu0 0.0
      %3994 = vmatmul.mubr.f32.gmra.mrb[0].mxu0 %v3875
      %v3995 = vpop.f32.mrb[0].mxu0
      %v3996 = vadd.f32 0.0, %v3995
      %v3997 = vpop.f32.mrb[0].mxu0
      %3998 = vmatprep.mubr.f32.mxu0 0.0
      %3999 = vmatmul.mubr.f32.gmra.mrb[0].mxu0 %v3876
      %v4000 = vpop.f32.mrb[0].mxu0
      %v4001 = vadd.f32 0.0, %v4000
      %v4002 = vpop.f32.mrb[0].mxu0
      %4003 = vmatprep.mubr.f32.mxu0 0.0
      %4004 = vmatmul.mubr.f32.gmra.mrb[0].mxu0 %v3877
      %v4005 = vpop.f32.mrb[0].mxu0
      %v4006 = vadd.f32 0.0, %v4005
      %v4007 = vpop.f32.mrb[0].mxu0
      %4008 = vmatprep.mubr.f32.mxu0 0.0
      %4009 = vmatmul.mubr.f32.gmra.mrb[0].mxu0 %v3878
      %v4010 = vpop.f32.mrb[0].mxu0
      %v4011 = vadd.f32 0.0, %v4010
      %v4012 = vpop.f32.mrb[0].mxu0
      %4013 = vmatprep.mubr.f32.mxu0 0.0
      %4014 = vmatmul.mubr.f32.gmra.mrb[0].mxu0 %v3879
      %v4015 = vpop.f32.mrb[0].mxu0
      %v4016 = vadd.f32 0.0, %v4015
      %v4017 = vpop.f32.mrb[0].mxu0
      %4018 = vmatprep.mubr.f32.mxu0 0.0
      %4019 = vmatmul.mubr.f32.gmra.mrb[0].mxu0 %v3880
      %v4020 = vpop.f32.mrb[0].mxu0
      %v4021 = vadd.f32 0.0, %v4020
      %v4022 = vpop.f32.mrb[0].mxu0
      %4023 = vmatprep.mubr.f32.mxu0 0.0
      %4024 = vmatmul.mubr.f32.gmra.mrb[0].mxu0 %v3881
      %v4025 = vpop.f32.mrb[0].mxu0
      %v4026 = vadd.f32 0.0, %v4025
      %v4027 = vpop.f32.mrb[0].mxu0
      %4028 = vmatprep.mubr.f32.mxu0 0.0
      %4029 = vmatmul.mubr.f32.gmra.mrb[0].mxu0 %v3882
      %v4030 = vpop.f32.mrb[0].mxu0
      %v4031 = vadd.f32 0.0, %v4030
      %v4032 = vpop.f32.mrb[0].mxu0
      %4033 = vmatprep.mubr.f32.mxu0 0.0
      %4034 = vmatmul.mubr.f32.gmra.mrb[0].mxu0 %v3883
      %v4035 = vpop.f32.mrb[0].mxu0
      %v4036 = vadd.f32 0.0, %v4035
      %v4037 = vpop.f32.mrb[0].mxu0
      %4038 = vmatprep.mubr.f32.mxu0 0.0
      %4039 = vmatmul.mubr.f32.gmra.mrb[0].mxu0 %v3884
      %v4040 = vpop.f32.mrb[0].mxu0
      %v4041 = vadd.f32 0.0, %v4040
      %v4042 = vpop.f32.mrb[0].mxu0
      %4043 = vmatprep.mubr.f32.mxu0 0.0
      %4044 = vmatmul.mubr.f32.gmra.mrb[0].mxu0 %v3885
      %v4045 = vpop.f32.mrb[0].mxu0
      %v4046 = vadd.f32 0.0, %v4045
      %v4047 = vpop.f32.mrb[0].mxu0
      %4048 = vmatprep.mubr.f32.mxu0 0.0
      %4049 = vmatmul.mubr.f32.gmra.mrb[0].mxu0 %v3886
      %v4050 = vpop.f32.mrb[0].mxu0
      %v4051 = vadd.f32 0.0, %v4050
      %v4052 = vpop.f32.mrb[0].mxu0
      %4053 = vmatprep.mubr.f32.mxu0 0.0
      %4054 = vmatmul.mubr.f32.gmra.mrb[0].mxu0 %v3887
      %v4055 = vpop.f32.mrb[0].mxu0
      %v4056 = vadd.f32 0.0, %v4055
      %v4057 = vpop.f32.mrb[0].mxu0
      %4058 = vmatprep.mubr.f32.mxu0 0.0
      %4059 = vmatmul.mubr.f32.gmra.mrb[0].mxu0 %v3888
      %v4060 = vpop.f32.mrb[0].mxu0
      %v4061 = vadd.f32 0.0, %v4060
      %v4062 = vpop.f32.mrb[0].mxu0
      %4063 = vmatprep.mubr.f32.mxu0 0.0
      %4064 = vmatmul.mubr.f32.gmra.mrb[0].mxu0 %v3889
      %v4065 = vpop.f32.mrb[0].mxu0
      %v4066 = vadd.f32 0.0, %v4065
      %v4067 = vpop.f32.mrb[0].mxu0
      %4068 = vmatprep.mubr.f32.mxu0 0.0
      %4069 = vmatmul.mubr.f32.gmra.mrb[0].mxu0 %v3890
      %v4070 = vpop.f32.mrb[0].mxu0
      %v4071 = vadd.f32 0.0, %v4070
      %v4072 = vpop.f32.mrb[0].mxu0
      %4073 = vmatprep.mubr.f32.mxu0 0.0
      %4074 = vmatmul.mubr.f32.gmra.mrb[0].mxu0 %v3891
      %v4075 = vpop.f32.mrb[0].mxu0
      %v4076 = vadd.f32 0.0, %v4075
      %v4077 = vpop.f32.mrb[0].mxu0
      %4078 = vmatprep.mubr.f32.mxu0 0.0
      %4079 = vmatmul.mubr.f32.gmra.mrb[0].mxu0 %v3892
      %v4080 = vpop.f32.mrb[0].mxu0
      %v4081 = vadd.f32 0.0, %v4080
      %v4082 = vpop.f32.mrb[0].mxu0
      %4083 = vmatprep.mubr.f32.mxu0 0.0
      %4084 = vmatmul.mubr.f32.gmra.mrb[0].mxu0 %v3893
      %v4085 = vpop.f32.mrb[0].mxu0
      %v4086 = vadd.f32 0.0, %v4085
      %v4087 = vpop.f32.mrb[0].mxu0
      %4088 = vmatprep.mubr.f32.mxu0 0.0
      %4089 = vmatmul.mubr.f32.gmra.mrb[0].mxu0 %v3894
      %v4090 = vpop.f32.mrb[0].mxu0
      %v4091 = vadd.f32 0.0, %v4090
      %v4092 = vpop.f32.mrb[0].mxu0
      %4093 = vmatprep.mubr.f32.mxu0 0.0
      %4094 = vmatmul.mubr.f32.gmra.mrb[0].mxu0 %v3895
      %v4095 = vpop.f32.mrb[0].mxu0
      %v4096 = vadd.f32 0.0, %v4095
      %v4097 = vpop.f32.mrb[0].mxu0
      %4098 = vmatprep.mubr.f32.mxu0 0.0
      %4099 = vmatmul.mubr.f32.gmra.mrb[0].mxu0 %v3896
      %v4100 = vpop.f32.mrb[0].mxu0
      %v4101 = vadd.f32 0.0, %v4100
      %v4102 = vpop.f32.mrb[0].mxu0
      %4103 = vdwg.mxu0
      %v4104 = vadd.f32 %v3588, %v3981
      %v4105 = vadd.f32 %v3589, %v3986
      %v4106 = vadd.f32 %v3590, %v3991
      %v4107 = vadd.f32 %v3591, %v3996
      %v4108 = vadd.f32 %v3592, %v4001
      %v4109 = vadd.f32 %v3593, %v4006
      %v4110 = vadd.f32 %v3594, %v4011
      %v4111 = vadd.f32 %v3595, %v4016
      %v4112 = vadd.f32 %v3596, %v4021
      %v4113 = vadd.f32 %v3597, %v4026
      %v4114 = vadd.f32 %v3598, %v4031
      %v4115 = vadd.f32 %v3599, %v4036
      %v4116 = vadd.f32 %v3600, %v4041
      %v4117 = vadd.f32 %v3601, %v4046
      %v4118 = vadd.f32 %v3602, %v4051
      %v4119 = vadd.f32 %v3603, %v4056
      %v4120 = vadd.f32 %v3604, %v4061
      %v4121 = vadd.f32 %v3605, %v4066
      %v4122 = vadd.f32 %v3606, %v4071
      %v4123 = vadd.f32 %v3607, %v4076
      %v4124 = vadd.f32 %v3608, %v4081
      %v4125 = vadd.f32 %v3609, %v4086
      %v4126 = vadd.f32 %v3610, %v4091
      %v4127 = vadd.f32 %v3611, %v4096
      %v4128 = vadd.f32 %v3612, %v4101
      %s4129 = scalar_lea.vmem [#allocation2], 96
      %v4130 = vld [vmem:[%s4129] sm:$0xff]
      %v4131 = vld [vmem:[%s4129 + $0x8] sm:$0xff]
      %v4132 = vld [vmem:[%s4129 + $0x10] sm:$0xff]
      %v4133 = vld [vmem:[%s4129 + $0x18] sm:$0xff]
      %v4134 = vld [vmem:[%s4129 + $0x20] sm:$0xff]
      %v4135 = vld [vmem:[%s4129 + $0x60] sm:$0xff]
      %v4136 = vld [vmem:[%s4129 + $0x68] sm:$0xff]
      %v4137 = vld [vmem:[%s4129 + $0x70] sm:$0xff]
      %v4138 = vld [vmem:[%s4129 + $0x78] sm:$0xff]
      %v4139 = vld [vmem:[%s4129 + $0x80] sm:$0xff]
      %v4140 = vld [vmem:[%s4129 + $0xc0] sm:$0xff]
      %v4141 = vld [vmem:[%s4129 + $0xc8] sm:$0xff]
      %v4142 = vld [vmem:[%s4129 + $0xd0] sm:$0xff]
      %v4143 = vld [vmem:[%s4129 + $0xd8] sm:$0xff]
      %v4144 = vld [vmem:[%s4129 + $0xe0] sm:$0xff]
      %v4145 = vld [vmem:[%s4129 + $0x120] sm:$0xff]
      %v4146 = vld [vmem:[%s4129 + $0x128] sm:$0xff]
      %v4147 = vld [vmem:[%s4129 + $0x130] sm:$0xff]
      %v4148 = vld [vmem:[%s4129 + $0x138] sm:$0xff]
      %v4149 = vld [vmem:[%s4129 + $0x140] sm:$0xff]
      %v4150 = vld [vmem:[%s4129 + $0x180] sm:$0xff]
      %v4151 = vld [vmem:[%s4129 + $0x188] sm:$0xff]
      %v4152 = vld [vmem:[%s4129 + $0x190] sm:$0xff]
      %v4153 = vld [vmem:[%s4129 + $0x198] sm:$0xff]
      %v4154 = vld [vmem:[%s4129 + $0x1a0] sm:$0xff]
      %s4155 = scalar_lea.vmem %s3, 1024
      %v4156 = vld [vmem:[%s4155] sm:$0xff]
      %v4157 = vld [vmem:[%s4155 + $0x8] sm:$0xff]
      %v4158 = vld [vmem:[%s4155 + $0x10] sm:$0xff]
      %v4159 = vld [vmem:[%s4155 + $0x18] sm:$0xff]
      %v4160 = vld [vmem:[%s4155 + $0x20] sm:$0xff]
      %v4161 = vld [vmem:[%s4155 + $0x28] sm:$0xff]
      %v4162 = vld [vmem:[%s4155 + $0x30] sm:$0xff]
      %v4163 = vld [vmem:[%s4155 + $0x38] sm:$0xff]
      %v4164 = vld [vmem:[%s4155 + $0x40] sm:$0xff]
      %v4165 = vld [vmem:[%s4155 + $0x48] sm:$0xff]
      %v4166 = vld [vmem:[%s4155 + $0x50] sm:$0xff]
      %v4167 = vld [vmem:[%s4155 + $0x58] sm:$0xff]
      %v4168 = vld [vmem:[%s4155 + $0x60] sm:$0xff]
      %v4169 = vld [vmem:[%s4155 + $0x68] sm:$0xff]
      %v4170 = vld [vmem:[%s4155 + $0x70] sm:$0xff]
      %v4171 = vld [vmem:[%s4155 + $0x78] sm:$0xff]
      %4172 = vmatprep.subr.mxu0 0.0
      %4173 = vmatpush1.msra.mxu0 %v4156
      %4174 = vmatprep.subr.mxu0 0.0
      %4175 = vmatpush1.msra.mxu0 %v4157
      %4176 = vmatprep.subr.mxu0 0.0
      %4177 = vmatpush1.msra.mxu0 %v4158
      %4178 = vmatprep.subr.mxu0 0.0
      %4179 = vmatpush1.msra.mxu0 %v4159
      %4180 = vmatprep.subr.mxu0 0.0
      %4181 = vmatpush1.msra.mxu0 %v4160
      %4182 = vmatprep.subr.mxu0 0.0
      %4183 = vmatpush1.msra.mxu0 %v4161
      %4184 = vmatprep.subr.mxu0 0.0
      %4185 = vmatpush1.msra.mxu0 %v4162
      %4186 = vmatprep.subr.mxu0 0.0
      %4187 = vmatpush1.msra.mxu0 %v4163
      %4188 = vmatprep.subr.mxu0 0.0
      %4189 = vmatpush1.msra.mxu0 %v4164
      %4190 = vmatprep.subr.mxu0 0.0
      %4191 = vmatpush1.msra.mxu0 %v4165
      %4192 = vmatprep.subr.mxu0 0.0
      %4193 = vmatpush1.msra.mxu0 %v4166
      %4194 = vmatprep.subr.mxu0 0.0
      %4195 = vmatpush1.msra.mxu0 %v4167
      %4196 = vmatprep.subr.mxu0 0.0
      %4197 = vmatpush1.msra.mxu0 %v4168
      %4198 = vmatprep.subr.mxu0 0.0
      %4199 = vmatpush1.msra.mxu0 %v4169
      %4200 = vmatprep.subr.mxu0 0.0
      %4201 = vmatpush1.msra.mxu0 %v4170
      %4202 = vmatprep.subr.mxu0 0.0
      %4203 = vmatpush1.msra.mxu0 %v4171
      %4204 = vmatprep.subr.mxu0 0.0
      %4205 = vmatpush1.msra.mxu0 0.0
      %4206 = vmatprep.subr.mxu0 0.0
      %4207 = vmatpush1.msra.mxu0 0.0
      %4208 = vmatprep.subr.mxu0 0.0
      %4209 = vmatpush1.msra.mxu0 0.0
      %4210 = vmatprep.subr.mxu0 0.0
      %4211 = vmatpush1.msra.mxu0 0.0
      %4212 = vmatprep.subr.mxu0 0.0
      %4213 = vmatpush1.msra.mxu0 0.0
      %4214 = vmatprep.subr.mxu0 0.0
      %4215 = vmatpush1.msra.mxu0 0.0
      %4216 = vmatprep.subr.mxu0 0.0
      %4217 = vmatpush1.msra.mxu0 0.0
      %4218 = vmatprep.subr.mxu0 0.0
      %4219 = vmatpush1.msra.mxu0 0.0
      %4220 = vmatprep.subr.mxu0 0.0
      %4221 = vmatpush1.msra.mxu0 0.0
      %4222 = vmatprep.subr.mxu0 0.0
      %4223 = vmatpush1.msra.mxu0 0.0
      %4224 = vmatprep.subr.mxu0 0.0
      %4225 = vmatpush1.msra.mxu0 0.0
      %4226 = vmatprep.subr.mxu0 0.0
      %4227 = vmatpush1.msra.mxu0 0.0
      %4228 = vmatprep.subr.mxu0 0.0
      %4229 = vmatpush1.msra.mxu0 0.0
      %4230 = vmatprep.subr.mxu0 0.0
      %4231 = vmatpush1.msra.mxu0 0.0
      %4232 = vmatprep.subr.mxu0 0.0
      %4233 = vmatpush1.msra.mxu0 0.0
      %4234 = vmatprep.subr.mxu0 0.0
      %4235 = vmatpush1.msra.mxu0 0.0
      %4236 = vmatprep.mubr.f32.mxu0 0.0
      %4237 = vmatmul.mubr.f32.gmra.mrb[0].mxu0 %v4130
      %v4238 = vpop.f32.mrb[0].mxu0
      %v4239 = vadd.f32 0.0, %v4238
      %v4240 = vpop.f32.mrb[0].mxu0
      %4241 = vmatprep.mubr.f32.mxu0 0.0
      %4242 = vmatmul.mubr.f32.gmra.mrb[0].mxu0 %v4131
      %v4243 = vpop.f32.mrb[0].mxu0
      %v4244 = vadd.f32 0.0, %v4243
      %v4245 = vpop.f32.mrb[0].mxu0
      %4246 = vmatprep.mubr.f32.mxu0 0.0
      %4247 = vmatmul.mubr.f32.gmra.mrb[0].mxu0 %v4132
      %v4248 = vpop.f32.mrb[0].mxu0
      %v4249 = vadd.f32 0.0, %v4248
      %v4250 = vpop.f32.mrb[0].mxu0
      %4251 = vmatprep.mubr.f32.mxu0 0.0
      %4252 = vmatmul.mubr.f32.gmra.mrb[0].mxu0 %v4133
      %v4253 = vpop.f32.mrb[0].mxu0
      %v4254 = vadd.f32 0.0, %v4253
      %v4255 = vpop.f32.mrb[0].mxu0
      %4256 = vmatprep.mubr.f32.mxu0 0.0
      %4257 = vmatmul.mubr.f32.gmra.mrb[0].mxu0 %v4134
      %v4258 = vpop.f32.mrb[0].mxu0
      %v4259 = vadd.f32 0.0, %v4258
      %v4260 = vpop.f32.mrb[0].mxu0
      %4261 = vmatprep.mubr.f32.mxu0 0.0
      %4262 = vmatmul.mubr.f32.gmra.mrb[0].mxu0 %v4135
      %v4263 = vpop.f32.mrb[0].mxu0
      %v4264 = vadd.f32 0.0, %v4263
      %v4265 = vpop.f32.mrb[0].mxu0
      %4266 = vmatprep.mubr.f32.mxu0 0.0
      %4267 = vmatmul.mubr.f32.gmra.mrb[0].mxu0 %v4136
      %v4268 = vpop.f32.mrb[0].mxu0
      %v4269 = vadd.f32 0.0, %v4268
      %v4270 = vpop.f32.mrb[0].mxu0
      %4271 = vmatprep.mubr.f32.mxu0 0.0
      %4272 = vmatmul.mubr.f32.gmra.mrb[0].mxu0 %v4137
      %v4273 = vpop.f32.mrb[0].mxu0
      %v4274 = vadd.f32 0.0, %v4273
      %v4275 = vpop.f32.mrb[0].mxu0
      %4276 = vmatprep.mubr.f32.mxu0 0.0
      %4277 = vmatmul.mubr.f32.gmra.mrb[0].mxu0 %v4138
      %v4278 = vpop.f32.mrb[0].mxu0
      %v4279 = vadd.f32 0.0, %v4278
      %v4280 = vpop.f32.mrb[0].mxu0
      %4281 = vmatprep.mubr.f32.mxu0 0.0
      %4282 = vmatmul.mubr.f32.gmra.mrb[0].mxu0 %v4139
      %v4283 = vpop.f32.mrb[0].mxu0
      %v4284 = vadd.f32 0.0, %v4283
      %v4285 = vpop.f32.mrb[0].mxu0
      %4286 = vmatprep.mubr.f32.mxu0 0.0
      %4287 = vmatmul.mubr.f32.gmra.mrb[0].mxu0 %v4140
      %v4288 = vpop.f32.mrb[0].mxu0
      %v4289 = vadd.f32 0.0, %v4288
      %v4290 = vpop.f32.mrb[0].mxu0
      %4291 = vmatprep.mubr.f32.mxu0 0.0
      %4292 = vmatmul.mubr.f32.gmra.mrb[0].mxu0 %v4141
      %v4293 = vpop.f32.mrb[0].mxu0
      %v4294 = vadd.f32 0.0, %v4293
      %v4295 = vpop.f32.mrb[0].mxu0
      %4296 = vmatprep.mubr.f32.mxu0 0.0
      %4297 = vmatmul.mubr.f32.gmra.mrb[0].mxu0 %v4142
      %v4298 = vpop.f32.mrb[0].mxu0
      %v4299 = vadd.f32 0.0, %v4298
      %v4300 = vpop.f32.mrb[0].mxu0
      %4301 = vmatprep.mubr.f32.mxu0 0.0
      %4302 = vmatmul.mubr.f32.gmra.mrb[0].mxu0 %v4143
      %v4303 = vpop.f32.mrb[0].mxu0
      %v4304 = vadd.f32 0.0, %v4303
      %v4305 = vpop.f32.mrb[0].mxu0
      %4306 = vmatprep.mubr.f32.mxu0 0.0
      %4307 = vmatmul.mubr.f32.gmra.mrb[0].mxu0 %v4144
      %v4308 = vpop.f32.mrb[0].mxu0
      %v4309 = vadd.f32 0.0, %v4308
      %v4310 = vpop.f32.mrb[0].mxu0
      %4311 = vmatprep.mubr.f32.mxu0 0.0
      %4312 = vmatmul.mubr.f32.gmra.mrb[0].mxu0 %v4145
      %v4313 = vpop.f32.mrb[0].mxu0
      %v4314 = vadd.f32 0.0, %v4313
      %v4315 = vpop.f32.mrb[0].mxu0
      %4316 = vmatprep.mubr.f32.mxu0 0.0
      %4317 = vmatmul.mubr.f32.gmra.mrb[0].mxu0 %v4146
      %v4318 = vpop.f32.mrb[0].mxu0
      %v4319 = vadd.f32 0.0, %v4318
      %v4320 = vpop.f32.mrb[0].mxu0
      %4321 = vmatprep.mubr.f32.mxu0 0.0
      %4322 = vmatmul.mubr.f32.gmra.mrb[0].mxu0 %v4147
      %v4323 = vpop.f32.mrb[0].mxu0
      %v4324 = vadd.f32 0.0, %v4323
      %v4325 = vpop.f32.mrb[0].mxu0
      %4326 = vmatprep.mubr.f32.mxu0 0.0
      %4327 = vmatmul.mubr.f32.gmra.mrb[0].mxu0 %v4148
      %v4328 = vpop.f32.mrb[0].mxu0
      %v4329 = vadd.f32 0.0, %v4328
      %v4330 = vpop.f32.mrb[0].mxu0
      %4331 = vmatprep.mubr.f32.mxu0 0.0
      %4332 = vmatmul.mubr.f32.gmra.mrb[0].mxu0 %v4149
      %v4333 = vpop.f32.mrb[0].mxu0
      %v4334 = vadd.f32 0.0, %v4333
      %v4335 = vpop.f32.mrb[0].mxu0
      %4336 = vmatprep.mubr.f32.mxu0 0.0
      %4337 = vmatmul.mubr.f32.gmra.mrb[0].mxu0 %v4150
      %v4338 = vpop.f32.mrb[0].mxu0
      %v4339 = vadd.f32 0.0, %v4338
      %v4340 = vpop.f32.mrb[0].mxu0
      %4341 = vmatprep.mubr.f32.mxu0 0.0
      %4342 = vmatmul.mubr.f32.gmra.mrb[0].mxu0 %v4151
      %v4343 = vpop.f32.mrb[0].mxu0
      %v4344 = vadd.f32 0.0, %v4343
      %v4345 = vpop.f32.mrb[0].mxu0
      %4346 = vmatprep.mubr.f32.mxu0 0.0
      %4347 = vmatmul.mubr.f32.gmra.mrb[0].mxu0 %v4152
      %v4348 = vpop.f32.mrb[0].mxu0
      %v4349 = vadd.f32 0.0, %v4348
      %v4350 = vpop.f32.mrb[0].mxu0
      %4351 = vmatprep.mubr.f32.mxu0 0.0
      %4352 = vmatmul.mubr.f32.gmra.mrb[0].mxu0 %v4153
      %v4353 = vpop.f32.mrb[0].mxu0
      %v4354 = vadd.f32 0.0, %v4353
      %v4355 = vpop.f32.mrb[0].mxu0
      %4356 = vmatprep.mubr.f32.mxu0 0.0
      %4357 = vmatmul.mubr.f32.gmra.mrb[0].mxu0 %v4154
      %v4358 = vpop.f32.mrb[0].mxu0
      %v4359 = vadd.f32 0.0, %v4358
      %v4360 = vpop.f32.mrb[0].mxu0
      %4361 = vdwg.mxu0
      %v4362 = vadd.f32 %v3846, %v4239
      %v4363 = vadd.f32 %v3847, %v4244
      %v4364 = vadd.f32 %v3848, %v4249
      %v4365 = vadd.f32 %v3849, %v4254
      %v4366 = vadd.f32 %v3850, %v4259
      %v4367 = vadd.f32 %v3851, %v4264
      %v4368 = vadd.f32 %v3852, %v4269
      %v4369 = vadd.f32 %v3853, %v4274
      %v4370 = vadd.f32 %v3854, %v4279
      %v4371 = vadd.f32 %v3855, %v4284
      %v4372 = vadd.f32 %v3856, %v4289
      %v4373 = vadd.f32 %v3857, %v4294
      %v4374 = vadd.f32 %v3858, %v4299
      %v4375 = vadd.f32 %v3859, %v4304
      %v4376 = vadd.f32 %v3860, %v4309
      %v4377 = vadd.f32 %v3861, %v4314
      %v4378 = vadd.f32 %v3862, %v4319
      %v4379 = vadd.f32 %v3863, %v4324
      %v4380 = vadd.f32 %v3864, %v4329
      %v4381 = vadd.f32 %v3865, %v4334
      %v4382 = vadd.f32 %v3866, %v4339
      %v4383 = vadd.f32 %v3867, %v4344
      %v4384 = vadd.f32 %v3868, %v4349
      %v4385 = vadd.f32 %v3869, %v4354
      %v4386 = vadd.f32 %v3870, %v4359
      %s4387 = scalar_lea.vmem [#allocation2], 144
      %v4388 = vld [vmem:[%s4387] sm:$0xff]
      %v4389 = vld [vmem:[%s4387 + $0x8] sm:$0xff]
      %v4390 = vld [vmem:[%s4387 + $0x10] sm:$0xff]
      %v4391 = vld [vmem:[%s4387 + $0x18] sm:$0xff]
      %v4392 = vld [vmem:[%s4387 + $0x20] sm:$0xff]
      %v4393 = vld [vmem:[%s4387 + $0x60] sm:$0xff]
      %v4394 = vld [vmem:[%s4387 + $0x68] sm:$0xff]
      %v4395 = vld [vmem:[%s4387 + $0x70] sm:$0xff]
      %v4396 = vld [vmem:[%s4387 + $0x78] sm:$0xff]
      %v4397 = vld [vmem:[%s4387 + $0x80] sm:$0xff]
      %v4398 = vld [vmem:[%s4387 + $0xc0] sm:$0xff]
      %v4399 = vld [vmem:[%s4387 + $0xc8] sm:$0xff]
      %v4400 = vld [vmem:[%s4387 + $0xd0] sm:$0xff]
      %v4401 = vld [vmem:[%s4387 + $0xd8] sm:$0xff]
      %v4402 = vld [vmem:[%s4387 + $0xe0] sm:$0xff]
      %v4403 = vld [vmem:[%s4387 + $0x120] sm:$0xff]
      %v4404 = vld [vmem:[%s4387 + $0x128] sm:$0xff]
      %v4405 = vld [vmem:[%s4387 + $0x130] sm:$0xff]
      %v4406 = vld [vmem:[%s4387 + $0x138] sm:$0xff]
      %v4407 = vld [vmem:[%s4387 + $0x140] sm:$0xff]
      %v4408 = vld [vmem:[%s4387 + $0x180] sm:$0xff]
      %v4409 = vld [vmem:[%s4387 + $0x188] sm:$0xff]
      %v4410 = vld [vmem:[%s4387 + $0x190] sm:$0xff]
      %v4411 = vld [vmem:[%s4387 + $0x198] sm:$0xff]
      %v4412 = vld [vmem:[%s4387 + $0x1a0] sm:$0xff]
      %s4413 = scalar_lea.vmem %s3, 1152
      %v4414 = vld [vmem:[%s4413] sm:$0xff]
      %v4415 = vld [vmem:[%s4413 + $0x8] sm:$0xff]
      %v4416 = vld [vmem:[%s4413 + $0x10] sm:$0xff]
      %v4417 = vld [vmem:[%s4413 + $0x18] sm:$0xff]
      %v4418 = vld [vmem:[%s4413 + $0x20] sm:$0xff]
      %v4419 = vld [vmem:[%s4413 + $0x28] sm:$0xff]
      %v4420 = vld [vmem:[%s4413 + $0x30] sm:$0xff]
      %v4421 = vld [vmem:[%s4413 + $0x38] sm:$0xff]
      %v4422 = vld [vmem:[%s4413 + $0x40] sm:$0xff]
      %v4423 = vld [vmem:[%s4413 + $0x48] sm:$0xff]
      %v4424 = vld [vmem:[%s4413 + $0x50] sm:$0xff]
      %v4425 = vld [vmem:[%s4413 + $0x58] sm:$0xff]
      %v4426 = vld [vmem:[%s4413 + $0x60] sm:$0xff]
      %v4427 = vld [vmem:[%s4413 + $0x68] sm:$0xff]
      %v4428 = vld [vmem:[%s4413 + $0x70] sm:$0xff]
      %v4429 = vld [vmem:[%s4413 + $0x78] sm:$0xff]
      %4430 = vmatprep.subr.mxu0 0.0
      %4431 = vmatpush1.msra.mxu0 %v4414
      %4432 = vmatprep.subr.mxu0 0.0
      %4433 = vmatpush1.msra.mxu0 %v4415
      %4434 = vmatprep.subr.mxu0 0.0
      %4435 = vmatpush1.msra.mxu0 %v4416
      %4436 = vmatprep.subr.mxu0 0.0
      %4437 = vmatpush1.msra.mxu0 %v4417
      %4438 = vmatprep.subr.mxu0 0.0
      %4439 = vmatpush1.msra.mxu0 %v4418
      %4440 = vmatprep.subr.mxu0 0.0
      %4441 = vmatpush1.msra.mxu0 %v4419
      %4442 = vmatprep.subr.mxu0 0.0
      %4443 = vmatpush1.msra.mxu0 %v4420
      %4444 = vmatprep.subr.mxu0 0.0
      %4445 = vmatpush1.msra.mxu0 %v4421
      %4446 = vmatprep.subr.mxu0 0.0
      %4447 = vmatpush1.msra.mxu0 %v4422
      %4448 = vmatprep.subr.mxu0 0.0
      %4449 = vmatpush1.msra.mxu0 %v4423
      %4450 = vmatprep.subr.mxu0 0.0
      %4451 = vmatpush1.msra.mxu0 %v4424
      %4452 = vmatprep.subr.mxu0 0.0
      %4453 = vmatpush1.msra.mxu0 %v4425
      %4454 = vmatprep.subr.mxu0 0.0
      %4455 = vmatpush1.msra.mxu0 %v4426
      %4456 = vmatprep.subr.mxu0 0.0
      %4457 = vmatpush1.msra.mxu0 %v4427
      %4458 = vmatprep.subr.mxu0 0.0
      %4459 = vmatpush1.msra.mxu0 %v4428
      %4460 = vmatprep.subr.mxu0 0.0
      %4461 = vmatpush1.msra.mxu0 %v4429
      %4462 = vmatprep.subr.mxu0 0.0
      %4463 = vmatpush1.msra.mxu0 0.0
      %4464 = vmatprep.subr.mxu0 0.0
      %4465 = vmatpush1.msra.mxu0 0.0
      %4466 = vmatprep.subr.mxu0 0.0
      %4467 = vmatpush1.msra.mxu0 0.0
      %4468 = vmatprep.subr.mxu0 0.0
      %4469 = vmatpush1.msra.mxu0 0.0
      %4470 = vmatprep.subr.mxu0 0.0
      %4471 = vmatpush1.msra.mxu0 0.0
      %4472 = vmatprep.subr.mxu0 0.0
      %4473 = vmatpush1.msra.mxu0 0.0
      %4474 = vmatprep.subr.mxu0 0.0
      %4475 = vmatpush1.msra.mxu0 0.0
      %4476 = vmatprep.subr.mxu0 0.0
      %4477 = vmatpush1.msra.mxu0 0.0
      %4478 = vmatprep.subr.mxu0 0.0
      %4479 = vmatpush1.msra.mxu0 0.0
      %4480 = vmatprep.subr.mxu0 0.0
      %4481 = vmatpush1.msra.mxu0 0.0
      %4482 = vmatprep.subr.mxu0 0.0
      %4483 = vmatpush1.msra.mxu0 0.0
      %4484 = vmatprep.subr.mxu0 0.0
      %4485 = vmatpush1.msra.mxu0 0.0
      %4486 = vmatprep.subr.mxu0 0.0
      %4487 = vmatpush1.msra.mxu0 0.0
      %4488 = vmatprep.subr.mxu0 0.0
      %4489 = vmatpush1.msra.mxu0 0.0
      %4490 = vmatprep.subr.mxu0 0.0
      %4491 = vmatpush1.msra.mxu0 0.0
      %4492 = vmatprep.subr.mxu0 0.0
      %4493 = vmatpush1.msra.mxu0 0.0
      %4494 = vmatprep.mubr.f32.mxu0 0.0
      %4495 = vmatmul.mubr.f32.gmra.mrb[0].mxu0 %v4388
      %v4496 = vpop.f32.mrb[0].mxu0
      %v4497 = vadd.f32 0.0, %v4496
      %v4498 = vpop.f32.mrb[0].mxu0
      %4499 = vmatprep.mubr.f32.mxu0 0.0
      %4500 = vmatmul.mubr.f32.gmra.mrb[0].mxu0 %v4389
      %v4501 = vpop.f32.mrb[0].mxu0
      %v4502 = vadd.f32 0.0, %v4501
      %v4503 = vpop.f32.mrb[0].mxu0
      %4504 = vmatprep.mubr.f32.mxu0 0.0
      %4505 = vmatmul.mubr.f32.gmra.mrb[0].mxu0 %v4390
      %v4506 = vpop.f32.mrb[0].mxu0
      %v4507 = vadd.f32 0.0, %v4506
      %v4508 = vpop.f32.mrb[0].mxu0
      %4509 = vmatprep.mubr.f32.mxu0 0.0
      %4510 = vmatmul.mubr.f32.gmra.mrb[0].mxu0 %v4391
      %v4511 = vpop.f32.mrb[0].mxu0
      %v4512 = vadd.f32 0.0, %v4511
      %v4513 = vpop.f32.mrb[0].mxu0
      %4514 = vmatprep.mubr.f32.mxu0 0.0
      %4515 = vmatmul.mubr.f32.gmra.mrb[0].mxu0 %v4392
      %v4516 = vpop.f32.mrb[0].mxu0
      %v4517 = vadd.f32 0.0, %v4516
      %v4518 = vpop.f32.mrb[0].mxu0
      %4519 = vmatprep.mubr.f32.mxu0 0.0
      %4520 = vmatmul.mubr.f32.gmra.mrb[0].mxu0 %v4393
      %v4521 = vpop.f32.mrb[0].mxu0
      %v4522 = vadd.f32 0.0, %v4521
      %v4523 = vpop.f32.mrb[0].mxu0
      %4524 = vmatprep.mubr.f32.mxu0 0.0
      %4525 = vmatmul.mubr.f32.gmra.mrb[0].mxu0 %v4394
      %v4526 = vpop.f32.mrb[0].mxu0
      %v4527 = vadd.f32 0.0, %v4526
      %v4528 = vpop.f32.mrb[0].mxu0
      %4529 = vmatprep.mubr.f32.mxu0 0.0
      %4530 = vmatmul.mubr.f32.gmra.mrb[0].mxu0 %v4395
      %v4531 = vpop.f32.mrb[0].mxu0
      %v4532 = vadd.f32 0.0, %v4531
      %v4533 = vpop.f32.mrb[0].mxu0
      %4534 = vmatprep.mubr.f32.mxu0 0.0
      %4535 = vmatmul.mubr.f32.gmra.mrb[0].mxu0 %v4396
      %v4536 = vpop.f32.mrb[0].mxu0
      %v4537 = vadd.f32 0.0, %v4536
      %v4538 = vpop.f32.mrb[0].mxu0
      %4539 = vmatprep.mubr.f32.mxu0 0.0
      %4540 = vmatmul.mubr.f32.gmra.mrb[0].mxu0 %v4397
      %v4541 = vpop.f32.mrb[0].mxu0
      %v4542 = vadd.f32 0.0, %v4541
      %v4543 = vpop.f32.mrb[0].mxu0
      %4544 = vmatprep.mubr.f32.mxu0 0.0
      %4545 = vmatmul.mubr.f32.gmra.mrb[0].mxu0 %v4398
      %v4546 = vpop.f32.mrb[0].mxu0
      %v4547 = vadd.f32 0.0, %v4546
      %v4548 = vpop.f32.mrb[0].mxu0
      %4549 = vmatprep.mubr.f32.mxu0 0.0
      %4550 = vmatmul.mubr.f32.gmra.mrb[0].mxu0 %v4399
      %v4551 = vpop.f32.mrb[0].mxu0
      %v4552 = vadd.f32 0.0, %v4551
      %v4553 = vpop.f32.mrb[0].mxu0
      %4554 = vmatprep.mubr.f32.mxu0 0.0
      %4555 = vmatmul.mubr.f32.gmra.mrb[0].mxu0 %v4400
      %v4556 = vpop.f32.mrb[0].mxu0
      %v4557 = vadd.f32 0.0, %v4556
      %v4558 = vpop.f32.mrb[0].mxu0
      %4559 = vmatprep.mubr.f32.mxu0 0.0
      %4560 = vmatmul.mubr.f32.gmra.mrb[0].mxu0 %v4401
      %v4561 = vpop.f32.mrb[0].mxu0
      %v4562 = vadd.f32 0.0, %v4561
      %v4563 = vpop.f32.mrb[0].mxu0
      %4564 = vmatprep.mubr.f32.mxu0 0.0
      %4565 = vmatmul.mubr.f32.gmra.mrb[0].mxu0 %v4402
      %v4566 = vpop.f32.mrb[0].mxu0
      %v4567 = vadd.f32 0.0, %v4566
      %v4568 = vpop.f32.mrb[0].mxu0
      %4569 = vmatprep.mubr.f32.mxu0 0.0
      %4570 = vmatmul.mubr.f32.gmra.mrb[0].mxu0 %v4403
      %v4571 = vpop.f32.mrb[0].mxu0
      %v4572 = vadd.f32 0.0, %v4571
      %v4573 = vpop.f32.mrb[0].mxu0
      %4574 = vmatprep.mubr.f32.mxu0 0.0
      %4575 = vmatmul.mubr.f32.gmra.mrb[0].mxu0 %v4404
      %v4576 = vpop.f32.mrb[0].mxu0
      %v4577 = vadd.f32 0.0, %v4576
      %v4578 = vpop.f32.mrb[0].mxu0
      %4579 = vmatprep.mubr.f32.mxu0 0.0
      %4580 = vmatmul.mubr.f32.gmra.mrb[0].mxu0 %v4405
      %v4581 = vpop.f32.mrb[0].mxu0
      %v4582 = vadd.f32 0.0, %v4581
      %v4583 = vpop.f32.mrb[0].mxu0
      %4584 = vmatprep.mubr.f32.mxu0 0.0
      %4585 = vmatmul.mubr.f32.gmra.mrb[0].mxu0 %v4406
      %v4586 = vpop.f32.mrb[0].mxu0
      %v4587 = vadd.f32 0.0, %v4586
      %v4588 = vpop.f32.mrb[0].mxu0
      %4589 = vmatprep.mubr.f32.mxu0 0.0
      %4590 = vmatmul.mubr.f32.gmra.mrb[0].mxu0 %v4407
      %v4591 = vpop.f32.mrb[0].mxu0
      %v4592 = vadd.f32 0.0, %v4591
      %v4593 = vpop.f32.mrb[0].mxu0
      %4594 = vmatprep.mubr.f32.mxu0 0.0
      %4595 = vmatmul.mubr.f32.gmra.mrb[0].mxu0 %v4408
      %v4596 = vpop.f32.mrb[0].mxu0
      %v4597 = vadd.f32 0.0, %v4596
      %v4598 = vpop.f32.mrb[0].mxu0
      %4599 = vmatprep.mubr.f32.mxu0 0.0
      %4600 = vmatmul.mubr.f32.gmra.mrb[0].mxu0 %v4409
      %v4601 = vpop.f32.mrb[0].mxu0
      %v4602 = vadd.f32 0.0, %v4601
      %v4603 = vpop.f32.mrb[0].mxu0
      %4604 = vmatprep.mubr.f32.mxu0 0.0
      %4605 = vmatmul.mubr.f32.gmra.mrb[0].mxu0 %v4410
      %v4606 = vpop.f32.mrb[0].mxu0
      %v4607 = vadd.f32 0.0, %v4606
      %v4608 = vpop.f32.mrb[0].mxu0
      %4609 = vmatprep.mubr.f32.mxu0 0.0
      %4610 = vmatmul.mubr.f32.gmra.mrb[0].mxu0 %v4411
      %v4611 = vpop.f32.mrb[0].mxu0
      %v4612 = vadd.f32 0.0, %v4611
      %v4613 = vpop.f32.mrb[0].mxu0
      %4614 = vmatprep.mubr.f32.mxu0 0.0
      %4615 = vmatmul.mubr.f32.gmra.mrb[0].mxu0 %v4412
      %v4616 = vpop.f32.mrb[0].mxu0
      %v4617 = vadd.f32 0.0, %v4616
      %v4618 = vpop.f32.mrb[0].mxu0
      %4619 = vdwg.mxu0
      %v4620 = vadd.f32 %v4104, %v4497
      %v4621 = vadd.f32 %v4105, %v4502
      %v4622 = vadd.f32 %v4106, %v4507
      %v4623 = vadd.f32 %v4107, %v4512
      %v4624 = vadd.f32 %v4108, %v4517
      %v4625 = vadd.f32 %v4109, %v4522
      %v4626 = vadd.f32 %v4110, %v4527
      %v4627 = vadd.f32 %v4111, %v4532
      %v4628 = vadd.f32 %v4112, %v4537
      %v4629 = vadd.f32 %v4113, %v4542
      %v4630 = vadd.f32 %v4114, %v4547
      %v4631 = vadd.f32 %v4115, %v4552
      %v4632 = vadd.f32 %v4116, %v4557
      %v4633 = vadd.f32 %v4117, %v4562
      %v4634 = vadd.f32 %v4118, %v4567
      %v4635 = vadd.f32 %v4119, %v4572
      %v4636 = vadd.f32 %v4120, %v4577
      %v4637 = vadd.f32 %v4121, %v4582
      %v4638 = vadd.f32 %v4122, %v4587
      %v4639 = vadd.f32 %v4123, %v4592
      %v4640 = vadd.f32 %v4124, %v4597
      %v4641 = vadd.f32 %v4125, %v4602
      %v4642 = vadd.f32 %v4126, %v4607
      %v4643 = vadd.f32 %v4127, %v4612
      %v4644 = vadd.f32 %v4128, %v4617
      %s4645 = scalar_lea.vmem [#allocation2], 104
      %v4646 = vld [vmem:[%s4645] sm:$0xff]
      %v4647 = vld [vmem:[%s4645 + $0x8] sm:$0xff]
      %v4648 = vld [vmem:[%s4645 + $0x10] sm:$0xff]
      %v4649 = vld [vmem:[%s4645 + $0x18] sm:$0xff]
      %v4650 = vld [vmem:[%s4645 + $0x20] sm:$0xff]
      %v4651 = vld [vmem:[%s4645 + $0x60] sm:$0xff]
      %v4652 = vld [vmem:[%s4645 + $0x68] sm:$0xff]
      %v4653 = vld [vmem:[%s4645 + $0x70] sm:$0xff]
      %v4654 = vld [vmem:[%s4645 + $0x78] sm:$0xff]
      %v4655 = vld [vmem:[%s4645 + $0x80] sm:$0xff]
      %v4656 = vld [vmem:[%s4645 + $0xc0] sm:$0xff]
      %v4657 = vld [vmem:[%s4645 + $0xc8] sm:$0xff]
      %v4658 = vld [vmem:[%s4645 + $0xd0] sm:$0xff]
      %v4659 = vld [vmem:[%s4645 + $0xd8] sm:$0xff]
      %v4660 = vld [vmem:[%s4645 + $0xe0] sm:$0xff]
      %v4661 = vld [vmem:[%s4645 + $0x120] sm:$0xff]
      %v4662 = vld [vmem:[%s4645 + $0x128] sm:$0xff]
      %v4663 = vld [vmem:[%s4645 + $0x130] sm:$0xff]
      %v4664 = vld [vmem:[%s4645 + $0x138] sm:$0xff]
      %v4665 = vld [vmem:[%s4645 + $0x140] sm:$0xff]
      %v4666 = vld [vmem:[%s4645 + $0x180] sm:$0xff]
      %v4667 = vld [vmem:[%s4645 + $0x188] sm:$0xff]
      %v4668 = vld [vmem:[%s4645 + $0x190] sm:$0xff]
      %v4669 = vld [vmem:[%s4645 + $0x198] sm:$0xff]
      %v4670 = vld [vmem:[%s4645 + $0x1a0] sm:$0xff]
      %s4671 = scalar_lea.vmem %s3, 1280
      %v4672 = vld [vmem:[%s4671] sm:$0xff]
      %v4673 = vld [vmem:[%s4671 + $0x8] sm:$0xff]
      %v4674 = vld [vmem:[%s4671 + $0x10] sm:$0xff]
      %v4675 = vld [vmem:[%s4671 + $0x18] sm:$0xff]
      %v4676 = vld [vmem:[%s4671 + $0x20] sm:$0xff]
      %v4677 = vld [vmem:[%s4671 + $0x28] sm:$0xff]
      %v4678 = vld [vmem:[%s4671 + $0x30] sm:$0xff]
      %v4679 = vld [vmem:[%s4671 + $0x38] sm:$0xff]
      %v4680 = vld [vmem:[%s4671 + $0x40] sm:$0xff]
      %v4681 = vld [vmem:[%s4671 + $0x48] sm:$0xff]
      %v4682 = vld [vmem:[%s4671 + $0x50] sm:$0xff]
      %v4683 = vld [vmem:[%s4671 + $0x58] sm:$0xff]
      %v4684 = vld [vmem:[%s4671 + $0x60] sm:$0xff]
      %v4685 = vld [vmem:[%s4671 + $0x68] sm:$0xff]
      %v4686 = vld [vmem:[%s4671 + $0x70] sm:$0xff]
      %v4687 = vld [vmem:[%s4671 + $0x78] sm:$0xff]
      %4688 = vmatprep.subr.mxu0 0.0
      %4689 = vmatpush1.msra.mxu0 %v4672
      %4690 = vmatprep.subr.mxu0 0.0
      %4691 = vmatpush1.msra.mxu0 %v4673
      %4692 = vmatprep.subr.mxu0 0.0
      %4693 = vmatpush1.msra.mxu0 %v4674
      %4694 = vmatprep.subr.mxu0 0.0
      %4695 = vmatpush1.msra.mxu0 %v4675
      %4696 = vmatprep.subr.mxu0 0.0
      %4697 = vmatpush1.msra.mxu0 %v4676
      %4698 = vmatprep.subr.mxu0 0.0
      %4699 = vmatpush1.msra.mxu0 %v4677
      %4700 = vmatprep.subr.mxu0 0.0
      %4701 = vmatpush1.msra.mxu0 %v4678
      %4702 = vmatprep.subr.mxu0 0.0
      %4703 = vmatpush1.msra.mxu0 %v4679
      %4704 = vmatprep.subr.mxu0 0.0
      %4705 = vmatpush1.msra.mxu0 %v4680
      %4706 = vmatprep.subr.mxu0 0.0
      %4707 = vmatpush1.msra.mxu0 %v4681
      %4708 = vmatprep.subr.mxu0 0.0
      %4709 = vmatpush1.msra.mxu0 %v4682
      %4710 = vmatprep.subr.mxu0 0.0
      %4711 = vmatpush1.msra.mxu0 %v4683
      %4712 = vmatprep.subr.mxu0 0.0
      %4713 = vmatpush1.msra.mxu0 %v4684
      %4714 = vmatprep.subr.mxu0 0.0
      %4715 = vmatpush1.msra.mxu0 %v4685
      %4716 = vmatprep.subr.mxu0 0.0
      %4717 = vmatpush1.msra.mxu0 %v4686
      %4718 = vmatprep.subr.mxu0 0.0
      %4719 = vmatpush1.msra.mxu0 %v4687
      %4720 = vmatprep.subr.mxu0 0.0
      %4721 = vmatpush1.msra.mxu0 0.0
      %4722 = vmatprep.subr.mxu0 0.0
      %4723 = vmatpush1.msra.mxu0 0.0
      %4724 = vmatprep.subr.mxu0 0.0
      %4725 = vmatpush1.msra.mxu0 0.0
      %4726 = vmatprep.subr.mxu0 0.0
      %4727 = vmatpush1.msra.mxu0 0.0
      %4728 = vmatprep.subr.mxu0 0.0
      %4729 = vmatpush1.msra.mxu0 0.0
      %4730 = vmatprep.subr.mxu0 0.0
      %4731 = vmatpush1.msra.mxu0 0.0
      %4732 = vmatprep.subr.mxu0 0.0
      %4733 = vmatpush1.msra.mxu0 0.0
      %4734 = vmatprep.subr.mxu0 0.0
      %4735 = vmatpush1.msra.mxu0 0.0
      %4736 = vmatprep.subr.mxu0 0.0
      %4737 = vmatpush1.msra.mxu0 0.0
      %4738 = vmatprep.subr.mxu0 0.0
      %4739 = vmatpush1.msra.mxu0 0.0
      %4740 = vmatprep.subr.mxu0 0.0
      %4741 = vmatpush1.msra.mxu0 0.0
      %4742 = vmatprep.subr.mxu0 0.0
      %4743 = vmatpush1.msra.mxu0 0.0
      %4744 = vmatprep.subr.mxu0 0.0
      %4745 = vmatpush1.msra.mxu0 0.0
      %4746 = vmatprep.subr.mxu0 0.0
      %4747 = vmatpush1.msra.mxu0 0.0
      %4748 = vmatprep.subr.mxu0 0.0
      %4749 = vmatpush1.msra.mxu0 0.0
      %4750 = vmatprep.subr.mxu0 0.0
      %4751 = vmatpush1.msra.mxu0 0.0
      %4752 = vmatprep.mubr.f32.mxu0 0.0
      %4753 = vmatmul.mubr.f32.gmra.mrb[0].mxu0 %v4646
      %v4754 = vpop.f32.mrb[0].mxu0
      %v4755 = vadd.f32 0.0, %v4754
      %v4756 = vpop.f32.mrb[0].mxu0
      %4757 = vmatprep.mubr.f32.mxu0 0.0
      %4758 = vmatmul.mubr.f32.gmra.mrb[0].mxu0 %v4647
      %v4759 = vpop.f32.mrb[0].mxu0
      %v4760 = vadd.f32 0.0, %v4759
      %v4761 = vpop.f32.mrb[0].mxu0
      %4762 = vmatprep.mubr.f32.mxu0 0.0
      %4763 = vmatmul.mubr.f32.gmra.mrb[0].mxu0 %v4648
      %v4764 = vpop.f32.mrb[0].mxu0
      %v4765 = vadd.f32 0.0, %v4764
      %v4766 = vpop.f32.mrb[0].mxu0
      %4767 = vmatprep.mubr.f32.mxu0 0.0
      %4768 = vmatmul.mubr.f32.gmra.mrb[0].mxu0 %v4649
      %v4769 = vpop.f32.mrb[0].mxu0
      %v4770 = vadd.f32 0.0, %v4769
      %v4771 = vpop.f32.mrb[0].mxu0
      %4772 = vmatprep.mubr.f32.mxu0 0.0
      %4773 = vmatmul.mubr.f32.gmra.mrb[0].mxu0 %v4650
      %v4774 = vpop.f32.mrb[0].mxu0
      %v4775 = vadd.f32 0.0, %v4774
      %v4776 = vpop.f32.mrb[0].mxu0
      %4777 = vmatprep.mubr.f32.mxu0 0.0
      %4778 = vmatmul.mubr.f32.gmra.mrb[0].mxu0 %v4651
      %v4779 = vpop.f32.mrb[0].mxu0
      %v4780 = vadd.f32 0.0, %v4779
      %v4781 = vpop.f32.mrb[0].mxu0
      %4782 = vmatprep.mubr.f32.mxu0 0.0
      %4783 = vmatmul.mubr.f32.gmra.mrb[0].mxu0 %v4652
      %v4784 = vpop.f32.mrb[0].mxu0
      %v4785 = vadd.f32 0.0, %v4784
      %v4786 = vpop.f32.mrb[0].mxu0
      %4787 = vmatprep.mubr.f32.mxu0 0.0
      %4788 = vmatmul.mubr.f32.gmra.mrb[0].mxu0 %v4653
      %v4789 = vpop.f32.mrb[0].mxu0
      %v4790 = vadd.f32 0.0, %v4789
      %v4791 = vpop.f32.mrb[0].mxu0
      %4792 = vmatprep.mubr.f32.mxu0 0.0
      %4793 = vmatmul.mubr.f32.gmra.mrb[0].mxu0 %v4654
      %v4794 = vpop.f32.mrb[0].mxu0
      %v4795 = vadd.f32 0.0, %v4794
      %v4796 = vpop.f32.mrb[0].mxu0
      %4797 = vmatprep.mubr.f32.mxu0 0.0
      %4798 = vmatmul.mubr.f32.gmra.mrb[0].mxu0 %v4655
      %v4799 = vpop.f32.mrb[0].mxu0
      %v4800 = vadd.f32 0.0, %v4799
      %v4801 = vpop.f32.mrb[0].mxu0
      %4802 = vmatprep.mubr.f32.mxu0 0.0
      %4803 = vmatmul.mubr.f32.gmra.mrb[0].mxu0 %v4656
      %v4804 = vpop.f32.mrb[0].mxu0
      %v4805 = vadd.f32 0.0, %v4804
      %v4806 = vpop.f32.mrb[0].mxu0
      %4807 = vmatprep.mubr.f32.mxu0 0.0
      %4808 = vmatmul.mubr.f32.gmra.mrb[0].mxu0 %v4657
      %v4809 = vpop.f32.mrb[0].mxu0
      %v4810 = vadd.f32 0.0, %v4809
      %v4811 = vpop.f32.mrb[0].mxu0
      %4812 = vmatprep.mubr.f32.mxu0 0.0
      %4813 = vmatmul.mubr.f32.gmra.mrb[0].mxu0 %v4658
      %v4814 = vpop.f32.mrb[0].mxu0
      %v4815 = vadd.f32 0.0, %v4814
      %v4816 = vpop.f32.mrb[0].mxu0
      %4817 = vmatprep.mubr.f32.mxu0 0.0
      %4818 = vmatmul.mubr.f32.gmra.mrb[0].mxu0 %v4659
      %v4819 = vpop.f32.mrb[0].mxu0
      %v4820 = vadd.f32 0.0, %v4819
      %v4821 = vpop.f32.mrb[0].mxu0
      %4822 = vmatprep.mubr.f32.mxu0 0.0
      %4823 = vmatmul.mubr.f32.gmra.mrb[0].mxu0 %v4660
      %v4824 = vpop.f32.mrb[0].mxu0
      %v4825 = vadd.f32 0.0, %v4824
      %v4826 = vpop.f32.mrb[0].mxu0
      %4827 = vmatprep.mubr.f32.mxu0 0.0
      %4828 = vmatmul.mubr.f32.gmra.mrb[0].mxu0 %v4661
      %v4829 = vpop.f32.mrb[0].mxu0
      %v4830 = vadd.f32 0.0, %v4829
      %v4831 = vpop.f32.mrb[0].mxu0
      %4832 = vmatprep.mubr.f32.mxu0 0.0
      %4833 = vmatmul.mubr.f32.gmra.mrb[0].mxu0 %v4662
      %v4834 = vpop.f32.mrb[0].mxu0
      %v4835 = vadd.f32 0.0, %v4834
      %v4836 = vpop.f32.mrb[0].mxu0
      %4837 = vmatprep.mubr.f32.mxu0 0.0
      %4838 = vmatmul.mubr.f32.gmra.mrb[0].mxu0 %v4663
      %v4839 = vpop.f32.mrb[0].mxu0
      %v4840 = vadd.f32 0.0, %v4839
      %v4841 = vpop.f32.mrb[0].mxu0
      %4842 = vmatprep.mubr.f32.mxu0 0.0
      %4843 = vmatmul.mubr.f32.gmra.mrb[0].mxu0 %v4664
      %v4844 = vpop.f32.mrb[0].mxu0
      %v4845 = vadd.f32 0.0, %v4844
      %v4846 = vpop.f32.mrb[0].mxu0
      %4847 = vmatprep.mubr.f32.mxu0 0.0
      %4848 = vmatmul.mubr.f32.gmra.mrb[0].mxu0 %v4665
      %v4849 = vpop.f32.mrb[0].mxu0
      %v4850 = vadd.f32 0.0, %v4849
      %v4851 = vpop.f32.mrb[0].mxu0
      %4852 = vmatprep.mubr.f32.mxu0 0.0
      %4853 = vmatmul.mubr.f32.gmra.mrb[0].mxu0 %v4666
      %v4854 = vpop.f32.mrb[0].mxu0
      %v4855 = vadd.f32 0.0, %v4854
      %v4856 = vpop.f32.mrb[0].mxu0
      %4857 = vmatprep.mubr.f32.mxu0 0.0
      %4858 = vmatmul.mubr.f32.gmra.mrb[0].mxu0 %v4667
      %v4859 = vpop.f32.mrb[0].mxu0
      %v4860 = vadd.f32 0.0, %v4859
      %v4861 = vpop.f32.mrb[0].mxu0
      %4862 = vmatprep.mubr.f32.mxu0 0.0
      %4863 = vmatmul.mubr.f32.gmra.mrb[0].mxu0 %v4668
      %v4864 = vpop.f32.mrb[0].mxu0
      %v4865 = vadd.f32 0.0, %v4864
      %v4866 = vpop.f32.mrb[0].mxu0
      %4867 = vmatprep.mubr.f32.mxu0 0.0
      %4868 = vmatmul.mubr.f32.gmra.mrb[0].mxu0 %v4669
      %v4869 = vpop.f32.mrb[0].mxu0
      %v4870 = vadd.f32 0.0, %v4869
      %v4871 = vpop.f32.mrb[0].mxu0
      %4872 = vmatprep.mubr.f32.mxu0 0.0
      %4873 = vmatmul.mubr.f32.gmra.mrb[0].mxu0 %v4670
      %v4874 = vpop.f32.mrb[0].mxu0
      %v4875 = vadd.f32 0.0, %v4874
      %v4876 = vpop.f32.mrb[0].mxu0
      %4877 = vdwg.mxu0
      %v4878 = vadd.f32 %v4362, %v4755
      %v4879 = vadd.f32 %v4363, %v4760
      %v4880 = vadd.f32 %v4364, %v4765
      %v4881 = vadd.f32 %v4365, %v4770
      %v4882 = vadd.f32 %v4366, %v4775
      %v4883 = vadd.f32 %v4367, %v4780
      %v4884 = vadd.f32 %v4368, %v4785
      %v4885 = vadd.f32 %v4369, %v4790
      %v4886 = vadd.f32 %v4370, %v4795
      %v4887 = vadd.f32 %v4371, %v4800
      %v4888 = vadd.f32 %v4372, %v4805
      %v4889 = vadd.f32 %v4373, %v4810
      %v4890 = vadd.f32 %v4374, %v4815
      %v4891 = vadd.f32 %v4375, %v4820
      %v4892 = vadd.f32 %v4376, %v4825
      %v4893 = vadd.f32 %v4377, %v4830
      %v4894 = vadd.f32 %v4378, %v4835
      %v4895 = vadd.f32 %v4379, %v4840
      %v4896 = vadd.f32 %v4380, %v4845
      %v4897 = vadd.f32 %v4381, %v4850
      %v4898 = vadd.f32 %v4382, %v4855
      %v4899 = vadd.f32 %v4383, %v4860
      %v4900 = vadd.f32 %v4384, %v4865
      %v4901 = vadd.f32 %v4385, %v4870
      %v4902 = vadd.f32 %v4386, %v4875
      %s4903 = scalar_lea.vmem [#allocation2], 152
      %v4904 = vld [vmem:[%s4903] sm:$0xff]
      %v4905 = vld [vmem:[%s4903 + $0x8] sm:$0xff]
      %v4906 = vld [vmem:[%s4903 + $0x10] sm:$0xff]
      %v4907 = vld [vmem:[%s4903 + $0x18] sm:$0xff]
      %v4908 = vld [vmem:[%s4903 + $0x20] sm:$0xff]
      %v4909 = vld [vmem:[%s4903 + $0x60] sm:$0xff]
      %v4910 = vld [vmem:[%s4903 + $0x68] sm:$0xff]
      %v4911 = vld [vmem:[%s4903 + $0x70] sm:$0xff]
      %v4912 = vld [vmem:[%s4903 + $0x78] sm:$0xff]
      %v4913 = vld [vmem:[%s4903 + $0x80] sm:$0xff]
      %v4914 = vld [vmem:[%s4903 + $0xc0] sm:$0xff]
      %v4915 = vld [vmem:[%s4903 + $0xc8] sm:$0xff]
      %v4916 = vld [vmem:[%s4903 + $0xd0] sm:$0xff]
      %v4917 = vld [vmem:[%s4903 + $0xd8] sm:$0xff]
      %v4918 = vld [vmem:[%s4903 + $0xe0] sm:$0xff]
      %v4919 = vld [vmem:[%s4903 + $0x120] sm:$0xff]
      %v4920 = vld [vmem:[%s4903 + $0x128] sm:$0xff]
      %v4921 = vld [vmem:[%s4903 + $0x130] sm:$0xff]
      %v4922 = vld [vmem:[%s4903 + $0x138] sm:$0xff]
      %v4923 = vld [vmem:[%s4903 + $0x140] sm:$0xff]
      %v4924 = vld [vmem:[%s4903 + $0x180] sm:$0xff]
      %v4925 = vld [vmem:[%s4903 + $0x188] sm:$0xff]
      %v4926 = vld [vmem:[%s4903 + $0x190] sm:$0xff]
      %v4927 = vld [vmem:[%s4903 + $0x198] sm:$0xff]
      %v4928 = vld [vmem:[%s4903 + $0x1a0] sm:$0xff]
      %s4929 = scalar_lea.vmem %s3, 1408
      %v4930 = vld [vmem:[%s4929] sm:$0xff]
      %v4931 = vld [vmem:[%s4929 + $0x8] sm:$0xff]
      %v4932 = vld [vmem:[%s4929 + $0x10] sm:$0xff]
      %v4933 = vld [vmem:[%s4929 + $0x18] sm:$0xff]
      %v4934 = vld [vmem:[%s4929 + $0x20] sm:$0xff]
      %v4935 = vld [vmem:[%s4929 + $0x28] sm:$0xff]
      %v4936 = vld [vmem:[%s4929 + $0x30] sm:$0xff]
      %v4937 = vld [vmem:[%s4929 + $0x38] sm:$0xff]
      %v4938 = vld [vmem:[%s4929 + $0x40] sm:$0xff]
      %v4939 = vld [vmem:[%s4929 + $0x48] sm:$0xff]
      %v4940 = vld [vmem:[%s4929 + $0x50] sm:$0xff]
      %v4941 = vld [vmem:[%s4929 + $0x58] sm:$0xff]
      %v4942 = vld [vmem:[%s4929 + $0x60] sm:$0xff]
      %v4943 = vld [vmem:[%s4929 + $0x68] sm:$0xff]
      %v4944 = vld [vmem:[%s4929 + $0x70] sm:$0xff]
      %v4945 = vld [vmem:[%s4929 + $0x78] sm:$0xff]
      %4946 = vmatprep.subr.mxu0 0.0
      %4947 = vmatpush1.msra.mxu0 %v4930
      %4948 = vmatprep.subr.mxu0 0.0
      %4949 = vmatpush1.msra.mxu0 %v4931
      %4950 = vmatprep.subr.mxu0 0.0
      %4951 = vmatpush1.msra.mxu0 %v4932
      %4952 = vmatprep.subr.mxu0 0.0
      %4953 = vmatpush1.msra.mxu0 %v4933
      %4954 = vmatprep.subr.mxu0 0.0
      %4955 = vmatpush1.msra.mxu0 %v4934
      %4956 = vmatprep.subr.mxu0 0.0
      %4957 = vmatpush1.msra.mxu0 %v4935
      %4958 = vmatprep.subr.mxu0 0.0
      %4959 = vmatpush1.msra.mxu0 %v4936
      %4960 = vmatprep.subr.mxu0 0.0
      %4961 = vmatpush1.msra.mxu0 %v4937
      %4962 = vmatprep.subr.mxu0 0.0
      %4963 = vmatpush1.msra.mxu0 %v4938
      %4964 = vmatprep.subr.mxu0 0.0
      %4965 = vmatpush1.msra.mxu0 %v4939
      %4966 = vmatprep.subr.mxu0 0.0
      %4967 = vmatpush1.msra.mxu0 %v4940
      %4968 = vmatprep.subr.mxu0 0.0
      %4969 = vmatpush1.msra.mxu0 %v4941
      %4970 = vmatprep.subr.mxu0 0.0
      %4971 = vmatpush1.msra.mxu0 %v4942
      %4972 = vmatprep.subr.mxu0 0.0
      %4973 = vmatpush1.msra.mxu0 %v4943
      %4974 = vmatprep.subr.mxu0 0.0
      %4975 = vmatpush1.msra.mxu0 %v4944
      %4976 = vmatprep.subr.mxu0 0.0
      %4977 = vmatpush1.msra.mxu0 %v4945
      %4978 = vmatprep.subr.mxu0 0.0
      %4979 = vmatpush1.msra.mxu0 0.0
      %4980 = vmatprep.subr.mxu0 0.0
      %4981 = vmatpush1.msra.mxu0 0.0
      %4982 = vmatprep.subr.mxu0 0.0
      %4983 = vmatpush1.msra.mxu0 0.0
      %4984 = vmatprep.subr.mxu0 0.0
      %4985 = vmatpush1.msra.mxu0 0.0
      %4986 = vmatprep.subr.mxu0 0.0
      %4987 = vmatpush1.msra.mxu0 0.0
      %4988 = vmatprep.subr.mxu0 0.0
      %4989 = vmatpush1.msra.mxu0 0.0
      %4990 = vmatprep.subr.mxu0 0.0
      %4991 = vmatpush1.msra.mxu0 0.0
      %4992 = vmatprep.subr.mxu0 0.0
      %4993 = vmatpush1.msra.mxu0 0.0
      %4994 = vmatprep.subr.mxu0 0.0
      %4995 = vmatpush1.msra.mxu0 0.0
      %4996 = vmatprep.subr.mxu0 0.0
      %4997 = vmatpush1.msra.mxu0 0.0
      %4998 = vmatprep.subr.mxu0 0.0
      %4999 = vmatpush1.msra.mxu0 0.0
      %5000 = vmatprep.subr.mxu0 0.0
      %5001 = vmatpush1.msra.mxu0 0.0
      %5002 = vmatprep.subr.mxu0 0.0
      %5003 = vmatpush1.msra.mxu0 0.0
      %5004 = vmatprep.subr.mxu0 0.0
      %5005 = vmatpush1.msra.mxu0 0.0
      %5006 = vmatprep.subr.mxu0 0.0
      %5007 = vmatpush1.msra.mxu0 0.0
      %5008 = vmatprep.subr.mxu0 0.0
      %5009 = vmatpush1.msra.mxu0 0.0
      %5010 = vmatprep.mubr.f32.mxu0 0.0
      %5011 = vmatmul.mubr.f32.gmra.mrb[0].mxu0 %v4904
      %v5012 = vpop.f32.mrb[0].mxu0
      %v5013 = vadd.f32 0.0, %v5012
      %v5014 = vpop.f32.mrb[0].mxu0
      %5015 = vmatprep.mubr.f32.mxu0 0.0
      %5016 = vmatmul.mubr.f32.gmra.mrb[0].mxu0 %v4905
      %v5017 = vpop.f32.mrb[0].mxu0
      %v5018 = vadd.f32 0.0, %v5017
      %v5019 = vpop.f32.mrb[0].mxu0
      %5020 = vmatprep.mubr.f32.mxu0 0.0
      %5021 = vmatmul.mubr.f32.gmra.mrb[0].mxu0 %v4906
      %v5022 = vpop.f32.mrb[0].mxu0
      %v5023 = vadd.f32 0.0, %v5022
      %v5024 = vpop.f32.mrb[0].mxu0
      %5025 = vmatprep.mubr.f32.mxu0 0.0
      %5026 = vmatmul.mubr.f32.gmra.mrb[0].mxu0 %v4907
      %v5027 = vpop.f32.mrb[0].mxu0
      %v5028 = vadd.f32 0.0, %v5027
      %v5029 = vpop.f32.mrb[0].mxu0
      %5030 = vmatprep.mubr.f32.mxu0 0.0
      %5031 = vmatmul.mubr.f32.gmra.mrb[0].mxu0 %v4908
      %v5032 = vpop.f32.mrb[0].mxu0
      %v5033 = vadd.f32 0.0, %v5032
      %v5034 = vpop.f32.mrb[0].mxu0
      %5035 = vmatprep.mubr.f32.mxu0 0.0
      %5036 = vmatmul.mubr.f32.gmra.mrb[0].mxu0 %v4909
      %v5037 = vpop.f32.mrb[0].mxu0
      %v5038 = vadd.f32 0.0, %v5037
      %v5039 = vpop.f32.mrb[0].mxu0
      %5040 = vmatprep.mubr.f32.mxu0 0.0
      %5041 = vmatmul.mubr.f32.gmra.mrb[0].mxu0 %v4910
      %v5042 = vpop.f32.mrb[0].mxu0
      %v5043 = vadd.f32 0.0, %v5042
      %v5044 = vpop.f32.mrb[0].mxu0
      %5045 = vmatprep.mubr.f32.mxu0 0.0
      %5046 = vmatmul.mubr.f32.gmra.mrb[0].mxu0 %v4911
      %v5047 = vpop.f32.mrb[0].mxu0
      %v5048 = vadd.f32 0.0, %v5047
      %v5049 = vpop.f32.mrb[0].mxu0
      %5050 = vmatprep.mubr.f32.mxu0 0.0
      %5051 = vmatmul.mubr.f32.gmra.mrb[0].mxu0 %v4912
      %v5052 = vpop.f32.mrb[0].mxu0
      %v5053 = vadd.f32 0.0, %v5052
      %v5054 = vpop.f32.mrb[0].mxu0
      %5055 = vmatprep.mubr.f32.mxu0 0.0
      %5056 = vmatmul.mubr.f32.gmra.mrb[0].mxu0 %v4913
      %v5057 = vpop.f32.mrb[0].mxu0
      %v5058 = vadd.f32 0.0, %v5057
      %v5059 = vpop.f32.mrb[0].mxu0
      %5060 = vmatprep.mubr.f32.mxu0 0.0
      %5061 = vmatmul.mubr.f32.gmra.mrb[0].mxu0 %v4914
      %v5062 = vpop.f32.mrb[0].mxu0
      %v5063 = vadd.f32 0.0, %v5062
      %v5064 = vpop.f32.mrb[0].mxu0
      %5065 = vmatprep.mubr.f32.mxu0 0.0
      %5066 = vmatmul.mubr.f32.gmra.mrb[0].mxu0 %v4915
      %v5067 = vpop.f32.mrb[0].mxu0
      %v5068 = vadd.f32 0.0, %v5067
      %v5069 = vpop.f32.mrb[0].mxu0
      %5070 = vmatprep.mubr.f32.mxu0 0.0
      %5071 = vmatmul.mubr.f32.gmra.mrb[0].mxu0 %v4916
      %v5072 = vpop.f32.mrb[0].mxu0
      %v5073 = vadd.f32 0.0, %v5072
      %v5074 = vpop.f32.mrb[0].mxu0
      %5075 = vmatprep.mubr.f32.mxu0 0.0
      %5076 = vmatmul.mubr.f32.gmra.mrb[0].mxu0 %v4917
      %v5077 = vpop.f32.mrb[0].mxu0
      %v5078 = vadd.f32 0.0, %v5077
      %v5079 = vpop.f32.mrb[0].mxu0
      %5080 = vmatprep.mubr.f32.mxu0 0.0
      %5081 = vmatmul.mubr.f32.gmra.mrb[0].mxu0 %v4918
      %v5082 = vpop.f32.mrb[0].mxu0
      %v5083 = vadd.f32 0.0, %v5082
      %v5084 = vpop.f32.mrb[0].mxu0
      %5085 = vmatprep.mubr.f32.mxu0 0.0
      %5086 = vmatmul.mubr.f32.gmra.mrb[0].mxu0 %v4919
      %v5087 = vpop.f32.mrb[0].mxu0
      %v5088 = vadd.f32 0.0, %v5087
      %v5089 = vpop.f32.mrb[0].mxu0
      %5090 = vmatprep.mubr.f32.mxu0 0.0
      %5091 = vmatmul.mubr.f32.gmra.mrb[0].mxu0 %v4920
      %v5092 = vpop.f32.mrb[0].mxu0
      %v5093 = vadd.f32 0.0, %v5092
      %v5094 = vpop.f32.mrb[0].mxu0
      %5095 = vmatprep.mubr.f32.mxu0 0.0
      %5096 = vmatmul.mubr.f32.gmra.mrb[0].mxu0 %v4921
      %v5097 = vpop.f32.mrb[0].mxu0
      %v5098 = vadd.f32 0.0, %v5097
      %v5099 = vpop.f32.mrb[0].mxu0
      %5100 = vmatprep.mubr.f32.mxu0 0.0
      %5101 = vmatmul.mubr.f32.gmra.mrb[0].mxu0 %v4922
      %v5102 = vpop.f32.mrb[0].mxu0
      %v5103 = vadd.f32 0.0, %v5102
      %v5104 = vpop.f32.mrb[0].mxu0
      %5105 = vmatprep.mubr.f32.mxu0 0.0
      %5106 = vmatmul.mubr.f32.gmra.mrb[0].mxu0 %v4923
      %v5107 = vpop.f32.mrb[0].mxu0
      %v5108 = vadd.f32 0.0, %v5107
      %v5109 = vpop.f32.mrb[0].mxu0
      %5110 = vmatprep.mubr.f32.mxu0 0.0
      %5111 = vmatmul.mubr.f32.gmra.mrb[0].mxu0 %v4924
      %v5112 = vpop.f32.mrb[0].mxu0
      %v5113 = vadd.f32 0.0, %v5112
      %v5114 = vpop.f32.mrb[0].mxu0
      %5115 = vmatprep.mubr.f32.mxu0 0.0
      %5116 = vmatmul.mubr.f32.gmra.mrb[0].mxu0 %v4925
      %v5117 = vpop.f32.mrb[0].mxu0
      %v5118 = vadd.f32 0.0, %v5117
      %v5119 = vpop.f32.mrb[0].mxu0
      %5120 = vmatprep.mubr.f32.mxu0 0.0
      %5121 = vmatmul.mubr.f32.gmra.mrb[0].mxu0 %v4926
      %v5122 = vpop.f32.mrb[0].mxu0
      %v5123 = vadd.f32 0.0, %v5122
      %v5124 = vpop.f32.mrb[0].mxu0
      %5125 = vmatprep.mubr.f32.mxu0 0.0
      %5126 = vmatmul.mubr.f32.gmra.mrb[0].mxu0 %v4927
      %v5127 = vpop.f32.mrb[0].mxu0
      %v5128 = vadd.f32 0.0, %v5127
      %v5129 = vpop.f32.mrb[0].mxu0
      %5130 = vmatprep.mubr.f32.mxu0 0.0
      %5131 = vmatmul.mubr.f32.gmra.mrb[0].mxu0 %v4928
      %v5132 = vpop.f32.mrb[0].mxu0
      %v5133 = vadd.f32 0.0, %v5132
      %v5134 = vpop.f32.mrb[0].mxu0
      %5135 = vdwg.mxu0
      %v5136 = vadd.f32 %v4620, %v5013
      %v5137 = vadd.f32 %v4621, %v5018
      %v5138 = vadd.f32 %v4622, %v5023
      %v5139 = vadd.f32 %v4623, %v5028
      %v5140 = vadd.f32 %v4624, %v5033
      %v5141 = vadd.f32 %v4625, %v5038
      %v5142 = vadd.f32 %v4626, %v5043
      %v5143 = vadd.f32 %v4627, %v5048
      %v5144 = vadd.f32 %v4628, %v5053
      %v5145 = vadd.f32 %v4629, %v5058
      %v5146 = vadd.f32 %v4630, %v5063
      %v5147 = vadd.f32 %v4631, %v5068
      %v5148 = vadd.f32 %v4632, %v5073
      %v5149 = vadd.f32 %v4633, %v5078
      %v5150 = vadd.f32 %v4634, %v5083
      %v5151 = vadd.f32 %v4635, %v5088
      %v5152 = vadd.f32 %v4636, %v5093
      %v5153 = vadd.f32 %v4637, %v5098
      %v5154 = vadd.f32 %v4638, %v5103
      %v5155 = vadd.f32 %v4639, %v5108
      %v5156 = vadd.f32 %v4640, %v5113
      %v5157 = vadd.f32 %v4641, %v5118
      %v5158 = vadd.f32 %v4642, %v5123
      %v5159 = vadd.f32 %v4643, %v5128
      %v5160 = vadd.f32 %v4644, %v5133
      %s5161 = scalar_lea.vmem [#allocation2], 672
      %v5162 = vld [vmem:[%s5161] sm:$0xff]
      %v5163 = vld [vmem:[%s5161 + $0x8] sm:$0xff]
      %v5164 = vld [vmem:[%s5161 + $0x10] sm:$0xff]
      %v5165 = vld [vmem:[%s5161 + $0x18] sm:$0xff]
      %v5166 = vld [vmem:[%s5161 + $0x20] sm:$0xff]
      %v5167 = vld [vmem:[%s5161 + $0x60] sm:$0xff]
      %v5168 = vld [vmem:[%s5161 + $0x68] sm:$0xff]
      %v5169 = vld [vmem:[%s5161 + $0x70] sm:$0xff]
      %v5170 = vld [vmem:[%s5161 + $0x78] sm:$0xff]
      %v5171 = vld [vmem:[%s5161 + $0x80] sm:$0xff]
      %v5172 = vld [vmem:[%s5161 + $0xc0] sm:$0xff]
      %v5173 = vld [vmem:[%s5161 + $0xc8] sm:$0xff]
      %v5174 = vld [vmem:[%s5161 + $0xd0] sm:$0xff]
      %v5175 = vld [vmem:[%s5161 + $0xd8] sm:$0xff]
      %v5176 = vld [vmem:[%s5161 + $0xe0] sm:$0xff]
      %v5177 = vld [vmem:[%s5161 + $0x120] sm:$0xff]
      %v5178 = vld [vmem:[%s5161 + $0x128] sm:$0xff]
      %v5179 = vld [vmem:[%s5161 + $0x130] sm:$0xff]
      %v5180 = vld [vmem:[%s5161 + $0x138] sm:$0xff]
      %v5181 = vld [vmem:[%s5161 + $0x140] sm:$0xff]
      %v5182 = vld [vmem:[%s5161 + $0x180] sm:$0xff]
      %v5183 = vld [vmem:[%s5161 + $0x188] sm:$0xff]
      %v5184 = vld [vmem:[%s5161 + $0x190] sm:$0xff]
      %v5185 = vld [vmem:[%s5161 + $0x198] sm:$0xff]
      %v5186 = vld [vmem:[%s5161 + $0x1a0] sm:$0xff]
      %s5187 = scalar_lea.vmem %s3, 1536
      %v5188 = vld [vmem:[%s5187] sm:$0xff]
      %v5189 = vld [vmem:[%s5187 + $0x8] sm:$0xff]
      %v5190 = vld [vmem:[%s5187 + $0x10] sm:$0xff]
      %v5191 = vld [vmem:[%s5187 + $0x18] sm:$0xff]
      %v5192 = vld [vmem:[%s5187 + $0x20] sm:$0xff]
      %v5193 = vld [vmem:[%s5187 + $0x28] sm:$0xff]
      %v5194 = vld [vmem:[%s5187 + $0x30] sm:$0xff]
      %v5195 = vld [vmem:[%s5187 + $0x38] sm:$0xff]
      %v5196 = vld [vmem:[%s5187 + $0x40] sm:$0xff]
      %v5197 = vld [vmem:[%s5187 + $0x48] sm:$0xff]
      %v5198 = vld [vmem:[%s5187 + $0x50] sm:$0xff]
      %v5199 = vld [vmem:[%s5187 + $0x58] sm:$0xff]
      %v5200 = vld [vmem:[%s5187 + $0x60] sm:$0xff]
      %v5201 = vld [vmem:[%s5187 + $0x68] sm:$0xff]
      %v5202 = vld [vmem:[%s5187 + $0x70] sm:$0xff]
      %v5203 = vld [vmem:[%s5187 + $0x78] sm:$0xff]
      %5204 = vmatprep.subr.mxu0 0.0
      %5205 = vmatpush1.msra.mxu0 %v5188
      %5206 = vmatprep.subr.mxu0 0.0
      %5207 = vmatpush1.msra.mxu0 %v5189
      %5208 = vmatprep.subr.mxu0 0.0
      %5209 = vmatpush1.msra.mxu0 %v5190
      %5210 = vmatprep.subr.mxu0 0.0
      %5211 = vmatpush1.msra.mxu0 %v5191
      %5212 = vmatprep.subr.mxu0 0.0
      %5213 = vmatpush1.msra.mxu0 %v5192
      %5214 = vmatprep.subr.mxu0 0.0
      %5215 = vmatpush1.msra.mxu0 %v5193
      %5216 = vmatprep.subr.mxu0 0.0
      %5217 = vmatpush1.msra.mxu0 %v5194
      %5218 = vmatprep.subr.mxu0 0.0
      %5219 = vmatpush1.msra.mxu0 %v5195
      %5220 = vmatprep.subr.mxu0 0.0
      %5221 = vmatpush1.msra.mxu0 %v5196
      %5222 = vmatprep.subr.mxu0 0.0
      %5223 = vmatpush1.msra.mxu0 %v5197
      %5224 = vmatprep.subr.mxu0 0.0
      %5225 = vmatpush1.msra.mxu0 %v5198
      %5226 = vmatprep.subr.mxu0 0.0
      %5227 = vmatpush1.msra.mxu0 %v5199
      %5228 = vmatprep.subr.mxu0 0.0
      %5229 = vmatpush1.msra.mxu0 %v5200
      %5230 = vmatprep.subr.mxu0 0.0
      %5231 = vmatpush1.msra.mxu0 %v5201
      %5232 = vmatprep.subr.mxu0 0.0
      %5233 = vmatpush1.msra.mxu0 %v5202
      %5234 = vmatprep.subr.mxu0 0.0
      %5235 = vmatpush1.msra.mxu0 %v5203
      %5236 = vmatprep.subr.mxu0 0.0
      %5237 = vmatpush1.msra.mxu0 0.0
      %5238 = vmatprep.subr.mxu0 0.0
      %5239 = vmatpush1.msra.mxu0 0.0
      %5240 = vmatprep.subr.mxu0 0.0
      %5241 = vmatpush1.msra.mxu0 0.0
      %5242 = vmatprep.subr.mxu0 0.0
      %5243 = vmatpush1.msra.mxu0 0.0
      %5244 = vmatprep.subr.mxu0 0.0
      %5245 = vmatpush1.msra.mxu0 0.0
      %5246 = vmatprep.subr.mxu0 0.0
      %5247 = vmatpush1.msra.mxu0 0.0
      %5248 = vmatprep.subr.mxu0 0.0
      %5249 = vmatpush1.msra.mxu0 0.0
      %5250 = vmatprep.subr.mxu0 0.0
      %5251 = vmatpush1.msra.mxu0 0.0
      %5252 = vmatprep.subr.mxu0 0.0
      %5253 = vmatpush1.msra.mxu0 0.0
      %5254 = vmatprep.subr.mxu0 0.0
      %5255 = vmatpush1.msra.mxu0 0.0
      %5256 = vmatprep.subr.mxu0 0.0
      %5257 = vmatpush1.msra.mxu0 0.0
      %5258 = vmatprep.subr.mxu0 0.0
      %5259 = vmatpush1.msra.mxu0 0.0
      %5260 = vmatprep.subr.mxu0 0.0
      %5261 = vmatpush1.msra.mxu0 0.0
      %5262 = vmatprep.subr.mxu0 0.0
      %5263 = vmatpush1.msra.mxu0 0.0
      %5264 = vmatprep.subr.mxu0 0.0
      %5265 = vmatpush1.msra.mxu0 0.0
      %5266 = vmatprep.subr.mxu0 0.0
      %5267 = vmatpush1.msra.mxu0 0.0
      %5268 = vmatprep.mubr.f32.mxu0 0.0
      %5269 = vmatmul.mubr.f32.gmra.mrb[0].mxu0 %v5162
      %v5270 = vpop.f32.mrb[0].mxu0
      %v5271 = vadd.f32 0.0, %v5270
      %v5272 = vpop.f32.mrb[0].mxu0
      %5273 = vmatprep.mubr.f32.mxu0 0.0
      %5274 = vmatmul.mubr.f32.gmra.mrb[0].mxu0 %v5163
      %v5275 = vpop.f32.mrb[0].mxu0
      %v5276 = vadd.f32 0.0, %v5275
      %v5277 = vpop.f32.mrb[0].mxu0
      %5278 = vmatprep.mubr.f32.mxu0 0.0
      %5279 = vmatmul.mubr.f32.gmra.mrb[0].mxu0 %v5164
      %v5280 = vpop.f32.mrb[0].mxu0
      %v5281 = vadd.f32 0.0, %v5280
      %v5282 = vpop.f32.mrb[0].mxu0
      %5283 = vmatprep.mubr.f32.mxu0 0.0
      %5284 = vmatmul.mubr.f32.gmra.mrb[0].mxu0 %v5165
      %v5285 = vpop.f32.mrb[0].mxu0
      %v5286 = vadd.f32 0.0, %v5285
      %v5287 = vpop.f32.mrb[0].mxu0
      %5288 = vmatprep.mubr.f32.mxu0 0.0
      %5289 = vmatmul.mubr.f32.gmra.mrb[0].mxu0 %v5166
      %v5290 = vpop.f32.mrb[0].mxu0
      %v5291 = vadd.f32 0.0, %v5290
      %v5292 = vpop.f32.mrb[0].mxu0
      %5293 = vmatprep.mubr.f32.mxu0 0.0
      %5294 = vmatmul.mubr.f32.gmra.mrb[0].mxu0 %v5167
      %v5295 = vpop.f32.mrb[0].mxu0
      %v5296 = vadd.f32 0.0, %v5295
      %v5297 = vpop.f32.mrb[0].mxu0
      %5298 = vmatprep.mubr.f32.mxu0 0.0
      %5299 = vmatmul.mubr.f32.gmra.mrb[0].mxu0 %v5168
      %v5300 = vpop.f32.mrb[0].mxu0
      %v5301 = vadd.f32 0.0, %v5300
      %v5302 = vpop.f32.mrb[0].mxu0
      %5303 = vmatprep.mubr.f32.mxu0 0.0
      %5304 = vmatmul.mubr.f32.gmra.mrb[0].mxu0 %v5169
      %v5305 = vpop.f32.mrb[0].mxu0
      %v5306 = vadd.f32 0.0, %v5305
      %v5307 = vpop.f32.mrb[0].mxu0
      %5308 = vmatprep.mubr.f32.mxu0 0.0
      %5309 = vmatmul.mubr.f32.gmra.mrb[0].mxu0 %v5170
      %v5310 = vpop.f32.mrb[0].mxu0
      %v5311 = vadd.f32 0.0, %v5310
      %v5312 = vpop.f32.mrb[0].mxu0
      %5313 = vmatprep.mubr.f32.mxu0 0.0
      %5314 = vmatmul.mubr.f32.gmra.mrb[0].mxu0 %v5171
      %v5315 = vpop.f32.mrb[0].mxu0
      %v5316 = vadd.f32 0.0, %v5315
      %v5317 = vpop.f32.mrb[0].mxu0
      %5318 = vmatprep.mubr.f32.mxu0 0.0
      %5319 = vmatmul.mubr.f32.gmra.mrb[0].mxu0 %v5172
      %v5320 = vpop.f32.mrb[0].mxu0
      %v5321 = vadd.f32 0.0, %v5320
      %v5322 = vpop.f32.mrb[0].mxu0
      %5323 = vmatprep.mubr.f32.mxu0 0.0
      %5324 = vmatmul.mubr.f32.gmra.mrb[0].mxu0 %v5173
      %v5325 = vpop.f32.mrb[0].mxu0
      %v5326 = vadd.f32 0.0, %v5325
      %v5327 = vpop.f32.mrb[0].mxu0
      %5328 = vmatprep.mubr.f32.mxu0 0.0
      %5329 = vmatmul.mubr.f32.gmra.mrb[0].mxu0 %v5174
      %v5330 = vpop.f32.mrb[0].mxu0
      %v5331 = vadd.f32 0.0, %v5330
      %v5332 = vpop.f32.mrb[0].mxu0
      %5333 = vmatprep.mubr.f32.mxu0 0.0
      %5334 = vmatmul.mubr.f32.gmra.mrb[0].mxu0 %v5175
      %v5335 = vpop.f32.mrb[0].mxu0
      %v5336 = vadd.f32 0.0, %v5335
      %v5337 = vpop.f32.mrb[0].mxu0
      %5338 = vmatprep.mubr.f32.mxu0 0.0
      %5339 = vmatmul.mubr.f32.gmra.mrb[0].mxu0 %v5176
      %v5340 = vpop.f32.mrb[0].mxu0
      %v5341 = vadd.f32 0.0, %v5340
      %v5342 = vpop.f32.mrb[0].mxu0
      %5343 = vmatprep.mubr.f32.mxu0 0.0
      %5344 = vmatmul.mubr.f32.gmra.mrb[0].mxu0 %v5177
      %v5345 = vpop.f32.mrb[0].mxu0
      %v5346 = vadd.f32 0.0, %v5345
      %v5347 = vpop.f32.mrb[0].mxu0
      %5348 = vmatprep.mubr.f32.mxu0 0.0
      %5349 = vmatmul.mubr.f32.gmra.mrb[0].mxu0 %v5178
      %v5350 = vpop.f32.mrb[0].mxu0
      %v5351 = vadd.f32 0.0, %v5350
      %v5352 = vpop.f32.mrb[0].mxu0
      %5353 = vmatprep.mubr.f32.mxu0 0.0
      %5354 = vmatmul.mubr.f32.gmra.mrb[0].mxu0 %v5179
      %v5355 = vpop.f32.mrb[0].mxu0
      %v5356 = vadd.f32 0.0, %v5355
      %v5357 = vpop.f32.mrb[0].mxu0
      %5358 = vmatprep.mubr.f32.mxu0 0.0
      %5359 = vmatmul.mubr.f32.gmra.mrb[0].mxu0 %v5180
      %v5360 = vpop.f32.mrb[0].mxu0
      %v5361 = vadd.f32 0.0, %v5360
      %v5362 = vpop.f32.mrb[0].mxu0
      %5363 = vmatprep.mubr.f32.mxu0 0.0
      %5364 = vmatmul.mubr.f32.gmra.mrb[0].mxu0 %v5181
      %v5365 = vpop.f32.mrb[0].mxu0
      %v5366 = vadd.f32 0.0, %v5365
      %v5367 = vpop.f32.mrb[0].mxu0
      %5368 = vmatprep.mubr.f32.mxu0 0.0
      %5369 = vmatmul.mubr.f32.gmra.mrb[0].mxu0 %v5182
      %v5370 = vpop.f32.mrb[0].mxu0
      %v5371 = vadd.f32 0.0, %v5370
      %v5372 = vpop.f32.mrb[0].mxu0
      %5373 = vmatprep.mubr.f32.mxu0 0.0
      %5374 = vmatmul.mubr.f32.gmra.mrb[0].mxu0 %v5183
      %v5375 = vpop.f32.mrb[0].mxu0
      %v5376 = vadd.f32 0.0, %v5375
      %v5377 = vpop.f32.mrb[0].mxu0
      %5378 = vmatprep.mubr.f32.mxu0 0.0
      %5379 = vmatmul.mubr.f32.gmra.mrb[0].mxu0 %v5184
      %v5380 = vpop.f32.mrb[0].mxu0
      %v5381 = vadd.f32 0.0, %v5380
      %v5382 = vpop.f32.mrb[0].mxu0
      %5383 = vmatprep.mubr.f32.mxu0 0.0
      %5384 = vmatmul.mubr.f32.gmra.mrb[0].mxu0 %v5185
      %v5385 = vpop.f32.mrb[0].mxu0
      %v5386 = vadd.f32 0.0, %v5385
      %v5387 = vpop.f32.mrb[0].mxu0
      %5388 = vmatprep.mubr.f32.mxu0 0.0
      %5389 = vmatmul.mubr.f32.gmra.mrb[0].mxu0 %v5186
      %v5390 = vpop.f32.mrb[0].mxu0
      %v5391 = vadd.f32 0.0, %v5390
      %v5392 = vpop.f32.mrb[0].mxu0
      %5393 = vdwg.mxu0
      %v5394 = vadd.f32 %v4878, %v5271
      %v5395 = vadd.f32 %v4879, %v5276
      %v5396 = vadd.f32 %v4880, %v5281
      %v5397 = vadd.f32 %v4881, %v5286
      %v5398 = vadd.f32 %v4882, %v5291
      %v5399 = vadd.f32 %v4883, %v5296
      %v5400 = vadd.f32 %v4884, %v5301
      %v5401 = vadd.f32 %v4885, %v5306
      %v5402 = vadd.f32 %v4886, %v5311
      %v5403 = vadd.f32 %v4887, %v5316
      %v5404 = vadd.f32 %v4888, %v5321
      %v5405 = vadd.f32 %v4889, %v5326
      %v5406 = vadd.f32 %v4890, %v5331
      %v5407 = vadd.f32 %v4891, %v5336
      %v5408 = vadd.f32 %v4892, %v5341
      %v5409 = vadd.f32 %v4893, %v5346
      %v5410 = vadd.f32 %v4894, %v5351
      %v5411 = vadd.f32 %v4895, %v5356
      %v5412 = vadd.f32 %v4896, %v5361
      %v5413 = vadd.f32 %v4897, %v5366
      %v5414 = vadd.f32 %v4898, %v5371
      %v5415 = vadd.f32 %v4899, %v5376
      %v5416 = vadd.f32 %v4900, %v5381
      %v5417 = vadd.f32 %v4901, %v5386
      %v5418 = vadd.f32 %v4902, %v5391
      %s5419 = scalar_lea.vmem [#allocation2], 720
      %v5420 = vld [vmem:[%s5419] sm:$0xff]
      %v5421 = vld [vmem:[%s5419 + $0x8] sm:$0xff]
      %v5422 = vld [vmem:[%s5419 + $0x10] sm:$0xff]
      %v5423 = vld [vmem:[%s5419 + $0x18] sm:$0xff]
      %v5424 = vld [vmem:[%s5419 + $0x20] sm:$0xff]
      %v5425 = vld [vmem:[%s5419 + $0x60] sm:$0xff]
      %v5426 = vld [vmem:[%s5419 + $0x68] sm:$0xff]
      %v5427 = vld [vmem:[%s5419 + $0x70] sm:$0xff]
      %v5428 = vld [vmem:[%s5419 + $0x78] sm:$0xff]
      %v5429 = vld [vmem:[%s5419 + $0x80] sm:$0xff]
      %v5430 = vld [vmem:[%s5419 + $0xc0] sm:$0xff]
      %v5431 = vld [vmem:[%s5419 + $0xc8] sm:$0xff]
      %v5432 = vld [vmem:[%s5419 + $0xd0] sm:$0xff]
      %v5433 = vld [vmem:[%s5419 + $0xd8] sm:$0xff]
      %v5434 = vld [vmem:[%s5419 + $0xe0] sm:$0xff]
      %v5435 = vld [vmem:[%s5419 + $0x120] sm:$0xff]
      %v5436 = vld [vmem:[%s5419 + $0x128] sm:$0xff]
      %v5437 = vld [vmem:[%s5419 + $0x130] sm:$0xff]
      %v5438 = vld [vmem:[%s5419 + $0x138] sm:$0xff]
      %v5439 = vld [vmem:[%s5419 + $0x140] sm:$0xff]
      %v5440 = vld [vmem:[%s5419 + $0x180] sm:$0xff]
      %v5441 = vld [vmem:[%s5419 + $0x188] sm:$0xff]
      %v5442 = vld [vmem:[%s5419 + $0x190] sm:$0xff]
      %v5443 = vld [vmem:[%s5419 + $0x198] sm:$0xff]
      %v5444 = vld [vmem:[%s5419 + $0x1a0] sm:$0xff]
      %s5445 = scalar_lea.vmem %s3, 1664
      %v5446 = vld [vmem:[%s5445] sm:$0xff]
      %v5447 = vld [vmem:[%s5445 + $0x8] sm:$0xff]
      %v5448 = vld [vmem:[%s5445 + $0x10] sm:$0xff]
      %v5449 = vld [vmem:[%s5445 + $0x18] sm:$0xff]
      %v5450 = vld [vmem:[%s5445 + $0x20] sm:$0xff]
      %v5451 = vld [vmem:[%s5445 + $0x28] sm:$0xff]
      %v5452 = vld [vmem:[%s5445 + $0x30] sm:$0xff]
      %v5453 = vld [vmem:[%s5445 + $0x38] sm:$0xff]
      %v5454 = vld [vmem:[%s5445 + $0x40] sm:$0xff]
      %v5455 = vld [vmem:[%s5445 + $0x48] sm:$0xff]
      %v5456 = vld [vmem:[%s5445 + $0x50] sm:$0xff]
      %v5457 = vld [vmem:[%s5445 + $0x58] sm:$0xff]
      %v5458 = vld [vmem:[%s5445 + $0x60] sm:$0xff]
      %v5459 = vld [vmem:[%s5445 + $0x68] sm:$0xff]
      %v5460 = vld [vmem:[%s5445 + $0x70] sm:$0xff]
      %v5461 = vld [vmem:[%s5445 + $0x78] sm:$0xff]
      %5462 = vmatprep.subr.mxu0 0.0
      %5463 = vmatpush1.msra.mxu0 %v5446
      %5464 = vmatprep.subr.mxu0 0.0
      %5465 = vmatpush1.msra.mxu0 %v5447
      %5466 = vmatprep.subr.mxu0 0.0
      %5467 = vmatpush1.msra.mxu0 %v5448
      %5468 = vmatprep.subr.mxu0 0.0
      %5469 = vmatpush1.msra.mxu0 %v5449
      %5470 = vmatprep.subr.mxu0 0.0
      %5471 = vmatpush1.msra.mxu0 %v5450
      %5472 = vmatprep.subr.mxu0 0.0
      %5473 = vmatpush1.msra.mxu0 %v5451
      %5474 = vmatprep.subr.mxu0 0.0
      %5475 = vmatpush1.msra.mxu0 %v5452
      %5476 = vmatprep.subr.mxu0 0.0
      %5477 = vmatpush1.msra.mxu0 %v5453
      %5478 = vmatprep.subr.mxu0 0.0
      %5479 = vmatpush1.msra.mxu0 %v5454
      %5480 = vmatprep.subr.mxu0 0.0
      %5481 = vmatpush1.msra.mxu0 %v5455
      %5482 = vmatprep.subr.mxu0 0.0
      %5483 = vmatpush1.msra.mxu0 %v5456
      %5484 = vmatprep.subr.mxu0 0.0
      %5485 = vmatpush1.msra.mxu0 %v5457
      %5486 = vmatprep.subr.mxu0 0.0
      %5487 = vmatpush1.msra.mxu0 %v5458
      %5488 = vmatprep.subr.mxu0 0.0
      %5489 = vmatpush1.msra.mxu0 %v5459
      %5490 = vmatprep.subr.mxu0 0.0
      %5491 = vmatpush1.msra.mxu0 %v5460
      %5492 = vmatprep.subr.mxu0 0.0
      %5493 = vmatpush1.msra.mxu0 %v5461
      %5494 = vmatprep.subr.mxu0 0.0
      %5495 = vmatpush1.msra.mxu0 0.0
      %5496 = vmatprep.subr.mxu0 0.0
      %5497 = vmatpush1.msra.mxu0 0.0
      %5498 = vmatprep.subr.mxu0 0.0
      %5499 = vmatpush1.msra.mxu0 0.0
      %5500 = vmatprep.subr.mxu0 0.0
      %5501 = vmatpush1.msra.mxu0 0.0
      %5502 = vmatprep.subr.mxu0 0.0
      %5503 = vmatpush1.msra.mxu0 0.0
      %5504 = vmatprep.subr.mxu0 0.0
      %5505 = vmatpush1.msra.mxu0 0.0
      %5506 = vmatprep.subr.mxu0 0.0
      %5507 = vmatpush1.msra.mxu0 0.0
      %5508 = vmatprep.subr.mxu0 0.0
      %5509 = vmatpush1.msra.mxu0 0.0
      %5510 = vmatprep.subr.mxu0 0.0
      %5511 = vmatpush1.msra.mxu0 0.0
      %5512 = vmatprep.subr.mxu0 0.0
      %5513 = vmatpush1.msra.mxu0 0.0
      %5514 = vmatprep.subr.mxu0 0.0
      %5515 = vmatpush1.msra.mxu0 0.0
      %5516 = vmatprep.subr.mxu0 0.0
      %5517 = vmatpush1.msra.mxu0 0.0
      %5518 = vmatprep.subr.mxu0 0.0
      %5519 = vmatpush1.msra.mxu0 0.0
      %5520 = vmatprep.subr.mxu0 0.0
      %5521 = vmatpush1.msra.mxu0 0.0
      %5522 = vmatprep.subr.mxu0 0.0
      %5523 = vmatpush1.msra.mxu0 0.0
      %5524 = vmatprep.subr.mxu0 0.0
      %5525 = vmatpush1.msra.mxu0 0.0
      %5526 = vmatprep.mubr.f32.mxu0 0.0
      %5527 = vmatmul.mubr.f32.gmra.mrb[0].mxu0 %v5420
      %v5528 = vpop.f32.mrb[0].mxu0
      %v5529 = vadd.f32 0.0, %v5528
      %v5530 = vpop.f32.mrb[0].mxu0
      %5531 = vmatprep.mubr.f32.mxu0 0.0
      %5532 = vmatmul.mubr.f32.gmra.mrb[0].mxu0 %v5421
      %v5533 = vpop.f32.mrb[0].mxu0
      %v5534 = vadd.f32 0.0, %v5533
      %v5535 = vpop.f32.mrb[0].mxu0
      %5536 = vmatprep.mubr.f32.mxu0 0.0
      %5537 = vmatmul.mubr.f32.gmra.mrb[0].mxu0 %v5422
      %v5538 = vpop.f32.mrb[0].mxu0
      %v5539 = vadd.f32 0.0, %v5538
      %v5540 = vpop.f32.mrb[0].mxu0
      %5541 = vmatprep.mubr.f32.mxu0 0.0
      %5542 = vmatmul.mubr.f32.gmra.mrb[0].mxu0 %v5423
      %v5543 = vpop.f32.mrb[0].mxu0
      %v5544 = vadd.f32 0.0, %v5543
      %v5545 = vpop.f32.mrb[0].mxu0
      %5546 = vmatprep.mubr.f32.mxu0 0.0
      %5547 = vmatmul.mubr.f32.gmra.mrb[0].mxu0 %v5424
      %v5548 = vpop.f32.mrb[0].mxu0
      %v5549 = vadd.f32 0.0, %v5548
      %v5550 = vpop.f32.mrb[0].mxu0
      %5551 = vmatprep.mubr.f32.mxu0 0.0
      %5552 = vmatmul.mubr.f32.gmra.mrb[0].mxu0 %v5425
      %v5553 = vpop.f32.mrb[0].mxu0
      %v5554 = vadd.f32 0.0, %v5553
      %v5555 = vpop.f32.mrb[0].mxu0
      %5556 = vmatprep.mubr.f32.mxu0 0.0
      %5557 = vmatmul.mubr.f32.gmra.mrb[0].mxu0 %v5426
      %v5558 = vpop.f32.mrb[0].mxu0
      %v5559 = vadd.f32 0.0, %v5558
      %v5560 = vpop.f32.mrb[0].mxu0
      %5561 = vmatprep.mubr.f32.mxu0 0.0
      %5562 = vmatmul.mubr.f32.gmra.mrb[0].mxu0 %v5427
      %v5563 = vpop.f32.mrb[0].mxu0
      %v5564 = vadd.f32 0.0, %v5563
      %v5565 = vpop.f32.mrb[0].mxu0
      %5566 = vmatprep.mubr.f32.mxu0 0.0
      %5567 = vmatmul.mubr.f32.gmra.mrb[0].mxu0 %v5428
      %v5568 = vpop.f32.mrb[0].mxu0
      %v5569 = vadd.f32 0.0, %v5568
      %v5570 = vpop.f32.mrb[0].mxu0
      %5571 = vmatprep.mubr.f32.mxu0 0.0
      %5572 = vmatmul.mubr.f32.gmra.mrb[0].mxu0 %v5429
      %v5573 = vpop.f32.mrb[0].mxu0
      %v5574 = vadd.f32 0.0, %v5573
      %v5575 = vpop.f32.mrb[0].mxu0
      %5576 = vmatprep.mubr.f32.mxu0 0.0
      %5577 = vmatmul.mubr.f32.gmra.mrb[0].mxu0 %v5430
      %v5578 = vpop.f32.mrb[0].mxu0
      %v5579 = vadd.f32 0.0, %v5578
      %v5580 = vpop.f32.mrb[0].mxu0
      %5581 = vmatprep.mubr.f32.mxu0 0.0
      %5582 = vmatmul.mubr.f32.gmra.mrb[0].mxu0 %v5431
      %v5583 = vpop.f32.mrb[0].mxu0
      %v5584 = vadd.f32 0.0, %v5583
      %v5585 = vpop.f32.mrb[0].mxu0
      %5586 = vmatprep.mubr.f32.mxu0 0.0
      %5587 = vmatmul.mubr.f32.gmra.mrb[0].mxu0 %v5432
      %v5588 = vpop.f32.mrb[0].mxu0
      %v5589 = vadd.f32 0.0, %v5588
      %v5590 = vpop.f32.mrb[0].mxu0
      %5591 = vmatprep.mubr.f32.mxu0 0.0
      %5592 = vmatmul.mubr.f32.gmra.mrb[0].mxu0 %v5433
      %v5593 = vpop.f32.mrb[0].mxu0
      %v5594 = vadd.f32 0.0, %v5593
      %v5595 = vpop.f32.mrb[0].mxu0
      %5596 = vmatprep.mubr.f32.mxu0 0.0
      %5597 = vmatmul.mubr.f32.gmra.mrb[0].mxu0 %v5434
      %v5598 = vpop.f32.mrb[0].mxu0
      %v5599 = vadd.f32 0.0, %v5598
      %v5600 = vpop.f32.mrb[0].mxu0
      %5601 = vmatprep.mubr.f32.mxu0 0.0
      %5602 = vmatmul.mubr.f32.gmra.mrb[0].mxu0 %v5435
      %v5603 = vpop.f32.mrb[0].mxu0
      %v5604 = vadd.f32 0.0, %v5603
      %v5605 = vpop.f32.mrb[0].mxu0
      %5606 = vmatprep.mubr.f32.mxu0 0.0
      %5607 = vmatmul.mubr.f32.gmra.mrb[0].mxu0 %v5436
      %v5608 = vpop.f32.mrb[0].mxu0
      %v5609 = vadd.f32 0.0, %v5608
      %v5610 = vpop.f32.mrb[0].mxu0
      %5611 = vmatprep.mubr.f32.mxu0 0.0
      %5612 = vmatmul.mubr.f32.gmra.mrb[0].mxu0 %v5437
      %v5613 = vpop.f32.mrb[0].mxu0
      %v5614 = vadd.f32 0.0, %v5613
      %v5615 = vpop.f32.mrb[0].mxu0
      %5616 = vmatprep.mubr.f32.mxu0 0.0
      %5617 = vmatmul.mubr.f32.gmra.mrb[0].mxu0 %v5438
      %v5618 = vpop.f32.mrb[0].mxu0
      %v5619 = vadd.f32 0.0, %v5618
      %v5620 = vpop.f32.mrb[0].mxu0
      %5621 = vmatprep.mubr.f32.mxu0 0.0
      %5622 = vmatmul.mubr.f32.gmra.mrb[0].mxu0 %v5439
      %v5623 = vpop.f32.mrb[0].mxu0
      %v5624 = vadd.f32 0.0, %v5623
      %v5625 = vpop.f32.mrb[0].mxu0
      %5626 = vmatprep.mubr.f32.mxu0 0.0
      %5627 = vmatmul.mubr.f32.gmra.mrb[0].mxu0 %v5440
      %v5628 = vpop.f32.mrb[0].mxu0
      %v5629 = vadd.f32 0.0, %v5628
      %v5630 = vpop.f32.mrb[0].mxu0
      %5631 = vmatprep.mubr.f32.mxu0 0.0
      %5632 = vmatmul.mubr.f32.gmra.mrb[0].mxu0 %v5441
      %v5633 = vpop.f32.mrb[0].mxu0
      %v5634 = vadd.f32 0.0, %v5633
      %v5635 = vpop.f32.mrb[0].mxu0
      %5636 = vmatprep.mubr.f32.mxu0 0.0
      %5637 = vmatmul.mubr.f32.gmra.mrb[0].mxu0 %v5442
      %v5638 = vpop.f32.mrb[0].mxu0
      %v5639 = vadd.f32 0.0, %v5638
      %v5640 = vpop.f32.mrb[0].mxu0
      %5641 = vmatprep.mubr.f32.mxu0 0.0
      %5642 = vmatmul.mubr.f32.gmra.mrb[0].mxu0 %v5443
      %v5643 = vpop.f32.mrb[0].mxu0
      %v5644 = vadd.f32 0.0, %v5643
      %v5645 = vpop.f32.mrb[0].mxu0
      %5646 = vmatprep.mubr.f32.mxu0 0.0
      %5647 = vmatmul.mubr.f32.gmra.mrb[0].mxu0 %v5444
      %v5648 = vpop.f32.mrb[0].mxu0
      %v5649 = vadd.f32 0.0, %v5648
      %v5650 = vpop.f32.mrb[0].mxu0
      %5651 = vdwg.mxu0
      %v5652 = vadd.f32 %v5136, %v5529
      %v5653 = vadd.f32 %v5137, %v5534
      %v5654 = vadd.f32 %v5138, %v5539
      %v5655 = vadd.f32 %v5139, %v5544
      %v5656 = vadd.f32 %v5140, %v5549
      %v5657 = vadd.f32 %v5141, %v5554
      %v5658 = vadd.f32 %v5142, %v5559
      %v5659 = vadd.f32 %v5143, %v5564
      %v5660 = vadd.f32 %v5144, %v5569
      %v5661 = vadd.f32 %v5145, %v5574
      %v5662 = vadd.f32 %v5146, %v5579
      %v5663 = vadd.f32 %v5147, %v5584
      %v5664 = vadd.f32 %v5148, %v5589
      %v5665 = vadd.f32 %v5149, %v5594
      %v5666 = vadd.f32 %v5150, %v5599
      %v5667 = vadd.f32 %v5151, %v5604
      %v5668 = vadd.f32 %v5152, %v5609
      %v5669 = vadd.f32 %v5153, %v5614
      %v5670 = vadd.f32 %v5154, %v5619
      %v5671 = vadd.f32 %v5155, %v5624
      %v5672 = vadd.f32 %v5156, %v5629
      %v5673 = vadd.f32 %v5157, %v5634
      %v5674 = vadd.f32 %v5158, %v5639
      %v5675 = vadd.f32 %v5159, %v5644
      %v5676 = vadd.f32 %v5160, %v5649
      %s5677 = scalar_lea.vmem [#allocation2], 680
      %v5678 = vld [vmem:[%s5677] sm:$0xff]
      %v5679 = vld [vmem:[%s5677 + $0x8] sm:$0xff]
      %v5680 = vld [vmem:[%s5677 + $0x10] sm:$0xff]
      %v5681 = vld [vmem:[%s5677 + $0x18] sm:$0xff]
      %v5682 = vld [vmem:[%s5677 + $0x20] sm:$0xff]
      %v5683 = vld [vmem:[%s5677 + $0x60] sm:$0xff]
      %v5684 = vld [vmem:[%s5677 + $0x68] sm:$0xff]
      %v5685 = vld [vmem:[%s5677 + $0x70] sm:$0xff]
      %v5686 = vld [vmem:[%s5677 + $0x78] sm:$0xff]
      %v5687 = vld [vmem:[%s5677 + $0x80] sm:$0xff]
      %v5688 = vld [vmem:[%s5677 + $0xc0] sm:$0xff]
      %v5689 = vld [vmem:[%s5677 + $0xc8] sm:$0xff]
      %v5690 = vld [vmem:[%s5677 + $0xd0] sm:$0xff]
      %v5691 = vld [vmem:[%s5677 + $0xd8] sm:$0xff]
      %v5692 = vld [vmem:[%s5677 + $0xe0] sm:$0xff]
      %v5693 = vld [vmem:[%s5677 + $0x120] sm:$0xff]
      %v5694 = vld [vmem:[%s5677 + $0x128] sm:$0xff]
      %v5695 = vld [vmem:[%s5677 + $0x130] sm:$0xff]
      %v5696 = vld [vmem:[%s5677 + $0x138] sm:$0xff]
      %v5697 = vld [vmem:[%s5677 + $0x140] sm:$0xff]
      %v5698 = vld [vmem:[%s5677 + $0x180] sm:$0xff]
      %v5699 = vld [vmem:[%s5677 + $0x188] sm:$0xff]
      %v5700 = vld [vmem:[%s5677 + $0x190] sm:$0xff]
      %v5701 = vld [vmem:[%s5677 + $0x198] sm:$0xff]
      %v5702 = vld [vmem:[%s5677 + $0x1a0] sm:$0xff]
      %s5703 = scalar_lea.vmem %s3, 1792
      %v5704 = vld [vmem:[%s5703] sm:$0xff]
      %v5705 = vld [vmem:[%s5703 + $0x8] sm:$0xff]
      %v5706 = vld [vmem:[%s5703 + $0x10] sm:$0xff]
      %v5707 = vld [vmem:[%s5703 + $0x18] sm:$0xff]
      %v5708 = vld [vmem:[%s5703 + $0x20] sm:$0xff]
      %v5709 = vld [vmem:[%s5703 + $0x28] sm:$0xff]
      %v5710 = vld [vmem:[%s5703 + $0x30] sm:$0xff]
      %v5711 = vld [vmem:[%s5703 + $0x38] sm:$0xff]
      %v5712 = vld [vmem:[%s5703 + $0x40] sm:$0xff]
      %v5713 = vld [vmem:[%s5703 + $0x48] sm:$0xff]
      %v5714 = vld [vmem:[%s5703 + $0x50] sm:$0xff]
      %v5715 = vld [vmem:[%s5703 + $0x58] sm:$0xff]
      %v5716 = vld [vmem:[%s5703 + $0x60] sm:$0xff]
      %v5717 = vld [vmem:[%s5703 + $0x68] sm:$0xff]
      %v5718 = vld [vmem:[%s5703 + $0x70] sm:$0xff]
      %v5719 = vld [vmem:[%s5703 + $0x78] sm:$0xff]
      %5720 = vmatprep.subr.mxu0 0.0
      %5721 = vmatpush1.msra.mxu0 %v5704
      %5722 = vmatprep.subr.mxu0 0.0
      %5723 = vmatpush1.msra.mxu0 %v5705
      %5724 = vmatprep.subr.mxu0 0.0
      %5725 = vmatpush1.msra.mxu0 %v5706
      %5726 = vmatprep.subr.mxu0 0.0
      %5727 = vmatpush1.msra.mxu0 %v5707
      %5728 = vmatprep.subr.mxu0 0.0
      %5729 = vmatpush1.msra.mxu0 %v5708
      %5730 = vmatprep.subr.mxu0 0.0
      %5731 = vmatpush1.msra.mxu0 %v5709
      %5732 = vmatprep.subr.mxu0 0.0
      %5733 = vmatpush1.msra.mxu0 %v5710
      %5734 = vmatprep.subr.mxu0 0.0
      %5735 = vmatpush1.msra.mxu0 %v5711
      %5736 = vmatprep.subr.mxu0 0.0
      %5737 = vmatpush1.msra.mxu0 %v5712
      %5738 = vmatprep.subr.mxu0 0.0
      %5739 = vmatpush1.msra.mxu0 %v5713
      %5740 = vmatprep.subr.mxu0 0.0
      %5741 = vmatpush1.msra.mxu0 %v5714
      %5742 = vmatprep.subr.mxu0 0.0
      %5743 = vmatpush1.msra.mxu0 %v5715
      %5744 = vmatprep.subr.mxu0 0.0
      %5745 = vmatpush1.msra.mxu0 %v5716
      %5746 = vmatprep.subr.mxu0 0.0
      %5747 = vmatpush1.msra.mxu0 %v5717
      %5748 = vmatprep.subr.mxu0 0.0
      %5749 = vmatpush1.msra.mxu0 %v5718
      %5750 = vmatprep.subr.mxu0 0.0
      %5751 = vmatpush1.msra.mxu0 %v5719
      %5752 = vmatprep.subr.mxu0 0.0
      %5753 = vmatpush1.msra.mxu0 0.0
      %5754 = vmatprep.subr.mxu0 0.0
      %5755 = vmatpush1.msra.mxu0 0.0
      %5756 = vmatprep.subr.mxu0 0.0
      %5757 = vmatpush1.msra.mxu0 0.0
      %5758 = vmatprep.subr.mxu0 0.0
      %5759 = vmatpush1.msra.mxu0 0.0
      %5760 = vmatprep.subr.mxu0 0.0
      %5761 = vmatpush1.msra.mxu0 0.0
      %5762 = vmatprep.subr.mxu0 0.0
      %5763 = vmatpush1.msra.mxu0 0.0
      %5764 = vmatprep.subr.mxu0 0.0
      %5765 = vmatpush1.msra.mxu0 0.0
      %5766 = vmatprep.subr.mxu0 0.0
      %5767 = vmatpush1.msra.mxu0 0.0
      %5768 = vmatprep.subr.mxu0 0.0
      %5769 = vmatpush1.msra.mxu0 0.0
      %5770 = vmatprep.subr.mxu0 0.0
      %5771 = vmatpush1.msra.mxu0 0.0
      %5772 = vmatprep.subr.mxu0 0.0
      %5773 = vmatpush1.msra.mxu0 0.0
      %5774 = vmatprep.subr.mxu0 0.0
      %5775 = vmatpush1.msra.mxu0 0.0
      %5776 = vmatprep.subr.mxu0 0.0
      %5777 = vmatpush1.msra.mxu0 0.0
      %5778 = vmatprep.subr.mxu0 0.0
      %5779 = vmatpush1.msra.mxu0 0.0
      %5780 = vmatprep.subr.mxu0 0.0
      %5781 = vmatpush1.msra.mxu0 0.0
      %5782 = vmatprep.subr.mxu0 0.0
      %5783 = vmatpush1.msra.mxu0 0.0
      %5784 = vmatprep.mubr.f32.mxu0 0.0
      %5785 = vmatmul.mubr.f32.gmra.mrb[0].mxu0 %v5678
      %v5786 = vpop.f32.mrb[0].mxu0
      %v5787 = vadd.f32 0.0, %v5786
      %v5788 = vpop.f32.mrb[0].mxu0
      %5789 = vmatprep.mubr.f32.mxu0 0.0
      %5790 = vmatmul.mubr.f32.gmra.mrb[0].mxu0 %v5679
      %v5791 = vpop.f32.mrb[0].mxu0
      %v5792 = vadd.f32 0.0, %v5791
      %v5793 = vpop.f32.mrb[0].mxu0
      %5794 = vmatprep.mubr.f32.mxu0 0.0
      %5795 = vmatmul.mubr.f32.gmra.mrb[0].mxu0 %v5680
      %v5796 = vpop.f32.mrb[0].mxu0
      %v5797 = vadd.f32 0.0, %v5796
      %v5798 = vpop.f32.mrb[0].mxu0
      %5799 = vmatprep.mubr.f32.mxu0 0.0
      %5800 = vmatmul.mubr.f32.gmra.mrb[0].mxu0 %v5681
      %v5801 = vpop.f32.mrb[0].mxu0
      %v5802 = vadd.f32 0.0, %v5801
      %v5803 = vpop.f32.mrb[0].mxu0
      %5804 = vmatprep.mubr.f32.mxu0 0.0
      %5805 = vmatmul.mubr.f32.gmra.mrb[0].mxu0 %v5682
      %v5806 = vpop.f32.mrb[0].mxu0
      %v5807 = vadd.f32 0.0, %v5806
      %v5808 = vpop.f32.mrb[0].mxu0
      %5809 = vmatprep.mubr.f32.mxu0 0.0
      %5810 = vmatmul.mubr.f32.gmra.mrb[0].mxu0 %v5683
      %v5811 = vpop.f32.mrb[0].mxu0
      %v5812 = vadd.f32 0.0, %v5811
      %v5813 = vpop.f32.mrb[0].mxu0
      %5814 = vmatprep.mubr.f32.mxu0 0.0
      %5815 = vmatmul.mubr.f32.gmra.mrb[0].mxu0 %v5684
      %v5816 = vpop.f32.mrb[0].mxu0
      %v5817 = vadd.f32 0.0, %v5816
      %v5818 = vpop.f32.mrb[0].mxu0
      %5819 = vmatprep.mubr.f32.mxu0 0.0
      %5820 = vmatmul.mubr.f32.gmra.mrb[0].mxu0 %v5685
      %v5821 = vpop.f32.mrb[0].mxu0
      %v5822 = vadd.f32 0.0, %v5821
      %v5823 = vpop.f32.mrb[0].mxu0
      %5824 = vmatprep.mubr.f32.mxu0 0.0
      %5825 = vmatmul.mubr.f32.gmra.mrb[0].mxu0 %v5686
      %v5826 = vpop.f32.mrb[0].mxu0
      %v5827 = vadd.f32 0.0, %v5826
      %v5828 = vpop.f32.mrb[0].mxu0
      %5829 = vmatprep.mubr.f32.mxu0 0.0
      %5830 = vmatmul.mubr.f32.gmra.mrb[0].mxu0 %v5687
      %v5831 = vpop.f32.mrb[0].mxu0
      %v5832 = vadd.f32 0.0, %v5831
      %v5833 = vpop.f32.mrb[0].mxu0
      %5834 = vmatprep.mubr.f32.mxu0 0.0
      %5835 = vmatmul.mubr.f32.gmra.mrb[0].mxu0 %v5688
      %v5836 = vpop.f32.mrb[0].mxu0
      %v5837 = vadd.f32 0.0, %v5836
      %v5838 = vpop.f32.mrb[0].mxu0
      %5839 = vmatprep.mubr.f32.mxu0 0.0
      %5840 = vmatmul.mubr.f32.gmra.mrb[0].mxu0 %v5689
      %v5841 = vpop.f32.mrb[0].mxu0
      %v5842 = vadd.f32 0.0, %v5841
      %v5843 = vpop.f32.mrb[0].mxu0
      %5844 = vmatprep.mubr.f32.mxu0 0.0
      %5845 = vmatmul.mubr.f32.gmra.mrb[0].mxu0 %v5690
      %v5846 = vpop.f32.mrb[0].mxu0
      %v5847 = vadd.f32 0.0, %v5846
      %v5848 = vpop.f32.mrb[0].mxu0
      %5849 = vmatprep.mubr.f32.mxu0 0.0
      %5850 = vmatmul.mubr.f32.gmra.mrb[0].mxu0 %v5691
      %v5851 = vpop.f32.mrb[0].mxu0
      %v5852 = vadd.f32 0.0, %v5851
      %v5853 = vpop.f32.mrb[0].mxu0
      %5854 = vmatprep.mubr.f32.mxu0 0.0
      %5855 = vmatmul.mubr.f32.gmra.mrb[0].mxu0 %v5692
      %v5856 = vpop.f32.mrb[0].mxu0
      %v5857 = vadd.f32 0.0, %v5856
      %v5858 = vpop.f32.mrb[0].mxu0
      %5859 = vmatprep.mubr.f32.mxu0 0.0
      %5860 = vmatmul.mubr.f32.gmra.mrb[0].mxu0 %v5693
      %v5861 = vpop.f32.mrb[0].mxu0
      %v5862 = vadd.f32 0.0, %v5861
      %v5863 = vpop.f32.mrb[0].mxu0
      %5864 = vmatprep.mubr.f32.mxu0 0.0
      %5865 = vmatmul.mubr.f32.gmra.mrb[0].mxu0 %v5694
      %v5866 = vpop.f32.mrb[0].mxu0
      %v5867 = vadd.f32 0.0, %v5866
      %v5868 = vpop.f32.mrb[0].mxu0
      %5869 = vmatprep.mubr.f32.mxu0 0.0
      %5870 = vmatmul.mubr.f32.gmra.mrb[0].mxu0 %v5695
      %v5871 = vpop.f32.mrb[0].mxu0
      %v5872 = vadd.f32 0.0, %v5871
      %v5873 = vpop.f32.mrb[0].mxu0
      %5874 = vmatprep.mubr.f32.mxu0 0.0
      %5875 = vmatmul.mubr.f32.gmra.mrb[0].mxu0 %v5696
      %v5876 = vpop.f32.mrb[0].mxu0
      %v5877 = vadd.f32 0.0, %v5876
      %v5878 = vpop.f32.mrb[0].mxu0
      %5879 = vmatprep.mubr.f32.mxu0 0.0
      %5880 = vmatmul.mubr.f32.gmra.mrb[0].mxu0 %v5697
      %v5881 = vpop.f32.mrb[0].mxu0
      %v5882 = vadd.f32 0.0, %v5881
      %v5883 = vpop.f32.mrb[0].mxu0
      %5884 = vmatprep.mubr.f32.mxu0 0.0
      %5885 = vmatmul.mubr.f32.gmra.mrb[0].mxu0 %v5698
      %v5886 = vpop.f32.mrb[0].mxu0
      %v5887 = vadd.f32 0.0, %v5886
      %v5888 = vpop.f32.mrb[0].mxu0
      %5889 = vmatprep.mubr.f32.mxu0 0.0
      %5890 = vmatmul.mubr.f32.gmra.mrb[0].mxu0 %v5699
      %v5891 = vpop.f32.mrb[0].mxu0
      %v5892 = vadd.f32 0.0, %v5891
      %v5893 = vpop.f32.mrb[0].mxu0
      %5894 = vmatprep.mubr.f32.mxu0 0.0
      %5895 = vmatmul.mubr.f32.gmra.mrb[0].mxu0 %v5700
      %v5896 = vpop.f32.mrb[0].mxu0
      %v5897 = vadd.f32 0.0, %v5896
      %v5898 = vpop.f32.mrb[0].mxu0
      %5899 = vmatprep.mubr.f32.mxu0 0.0
      %5900 = vmatmul.mubr.f32.gmra.mrb[0].mxu0 %v5701
      %v5901 = vpop.f32.mrb[0].mxu0
      %v5902 = vadd.f32 0.0, %v5901
      %v5903 = vpop.f32.mrb[0].mxu0
      %5904 = vmatprep.mubr.f32.mxu0 0.0
      %5905 = vmatmul.mubr.f32.gmra.mrb[0].mxu0 %v5702
      %v5906 = vpop.f32.mrb[0].mxu0
      %v5907 = vadd.f32 0.0, %v5906
      %v5908 = vpop.f32.mrb[0].mxu0
      %5909 = vdwg.mxu0
      %v5910 = vadd.f32 %v5394, %v5787
      %v5911 = vadd.f32 %v5395, %v5792
      %v5912 = vadd.f32 %v5396, %v5797
      %v5913 = vadd.f32 %v5397, %v5802
      %v5914 = vadd.f32 %v5398, %v5807
      %v5915 = vadd.f32 %v5399, %v5812
      %v5916 = vadd.f32 %v5400, %v5817
      %v5917 = vadd.f32 %v5401, %v5822
      %v5918 = vadd.f32 %v5402, %v5827
      %v5919 = vadd.f32 %v5403, %v5832
      %v5920 = vadd.f32 %v5404, %v5837
      %v5921 = vadd.f32 %v5405, %v5842
      %v5922 = vadd.f32 %v5406, %v5847
      %v5923 = vadd.f32 %v5407, %v5852
      %v5924 = vadd.f32 %v5408, %v5857
      %v5925 = vadd.f32 %v5409, %v5862
      %v5926 = vadd.f32 %v5410, %v5867
      %v5927 = vadd.f32 %v5411, %v5872
      %v5928 = vadd.f32 %v5412, %v5877
      %v5929 = vadd.f32 %v5413, %v5882
      %v5930 = vadd.f32 %v5414, %v5887
      %v5931 = vadd.f32 %v5415, %v5892
      %v5932 = vadd.f32 %v5416, %v5897
      %v5933 = vadd.f32 %v5417, %v5902
      %v5934 = vadd.f32 %v5418, %v5907
      %s5935 = scalar_lea.vmem [#allocation2], 728
      %v5936 = vld [vmem:[%s5935] sm:$0xff]
      %v5937 = vld [vmem:[%s5935 + $0x8] sm:$0xff]
      %v5938 = vld [vmem:[%s5935 + $0x10] sm:$0xff]
      %v5939 = vld [vmem:[%s5935 + $0x18] sm:$0xff]
      %v5940 = vld [vmem:[%s5935 + $0x20] sm:$0xff]
      %v5941 = vld [vmem:[%s5935 + $0x60] sm:$0xff]
      %v5942 = vld [vmem:[%s5935 + $0x68] sm:$0xff]
      %v5943 = vld [vmem:[%s5935 + $0x70] sm:$0xff]
      %v5944 = vld [vmem:[%s5935 + $0x78] sm:$0xff]
      %v5945 = vld [vmem:[%s5935 + $0x80] sm:$0xff]
      %v5946 = vld [vmem:[%s5935 + $0xc0] sm:$0xff]
      %v5947 = vld [vmem:[%s5935 + $0xc8] sm:$0xff]
      %v5948 = vld [vmem:[%s5935 + $0xd0] sm:$0xff]
      %v5949 = vld [vmem:[%s5935 + $0xd8] sm:$0xff]
      %v5950 = vld [vmem:[%s5935 + $0xe0] sm:$0xff]
      %v5951 = vld [vmem:[%s5935 + $0x120] sm:$0xff]
      %v5952 = vld [vmem:[%s5935 + $0x128] sm:$0xff]
      %v5953 = vld [vmem:[%s5935 + $0x130] sm:$0xff]
      %v5954 = vld [vmem:[%s5935 + $0x138] sm:$0xff]
      %v5955 = vld [vmem:[%s5935 + $0x140] sm:$0xff]
      %v5956 = vld [vmem:[%s5935 + $0x180] sm:$0xff]
      %v5957 = vld [vmem:[%s5935 + $0x188] sm:$0xff]
      %v5958 = vld [vmem:[%s5935 + $0x190] sm:$0xff]
      %v5959 = vld [vmem:[%s5935 + $0x198] sm:$0xff]
      %v5960 = vld [vmem:[%s5935 + $0x1a0] sm:$0xff]
      %s5961 = scalar_lea.vmem %s3, 1920
      %v5962 = vld [vmem:[%s5961] sm:$0xff]
      %v5963 = vld [vmem:[%s5961 + $0x8] sm:$0xff]
      %v5964 = vld [vmem:[%s5961 + $0x10] sm:$0xff]
      %v5965 = vld [vmem:[%s5961 + $0x18] sm:$0xff]
      %v5966 = vld [vmem:[%s5961 + $0x20] sm:$0xff]
      %v5967 = vld [vmem:[%s5961 + $0x28] sm:$0xff]
      %v5968 = vld [vmem:[%s5961 + $0x30] sm:$0xff]
      %v5969 = vld [vmem:[%s5961 + $0x38] sm:$0xff]
      %v5970 = vld [vmem:[%s5961 + $0x40] sm:$0xff]
      %v5971 = vld [vmem:[%s5961 + $0x48] sm:$0xff]
      %v5972 = vld [vmem:[%s5961 + $0x50] sm:$0xff]
      %v5973 = vld [vmem:[%s5961 + $0x58] sm:$0xff]
      %v5974 = vld [vmem:[%s5961 + $0x60] sm:$0xff]
      %v5975 = vld [vmem:[%s5961 + $0x68] sm:$0xff]
      %v5976 = vld [vmem:[%s5961 + $0x70] sm:$0xff]
      %v5977 = vld [vmem:[%s5961 + $0x78] sm:$0xff]
      %5978 = vmatprep.subr.mxu0 0.0
      %5979 = vmatpush1.msra.mxu0 %v5962
      %5980 = vmatprep.subr.mxu0 0.0
      %5981 = vmatpush1.msra.mxu0 %v5963
      %5982 = vmatprep.subr.mxu0 0.0
      %5983 = vmatpush1.msra.mxu0 %v5964
      %5984 = vmatprep.subr.mxu0 0.0
      %5985 = vmatpush1.msra.mxu0 %v5965
      %5986 = vmatprep.subr.mxu0 0.0
      %5987 = vmatpush1.msra.mxu0 %v5966
      %5988 = vmatprep.subr.mxu0 0.0
      %5989 = vmatpush1.msra.mxu0 %v5967
      %5990 = vmatprep.subr.mxu0 0.0
      %5991 = vmatpush1.msra.mxu0 %v5968
      %5992 = vmatprep.subr.mxu0 0.0
      %5993 = vmatpush1.msra.mxu0 %v5969
      %5994 = vmatprep.subr.mxu0 0.0
      %5995 = vmatpush1.msra.mxu0 %v5970
      %5996 = vmatprep.subr.mxu0 0.0
      %5997 = vmatpush1.msra.mxu0 %v5971
      %5998 = vmatprep.subr.mxu0 0.0
      %5999 = vmatpush1.msra.mxu0 %v5972
      %6000 = vmatprep.subr.mxu0 0.0
      %6001 = vmatpush1.msra.mxu0 %v5973
      %6002 = vmatprep.subr.mxu0 0.0
      %6003 = vmatpush1.msra.mxu0 %v5974
      %6004 = vmatprep.subr.mxu0 0.0
      %6005 = vmatpush1.msra.mxu0 %v5975
      %6006 = vmatprep.subr.mxu0 0.0
      %6007 = vmatpush1.msra.mxu0 %v5976
      %6008 = vmatprep.subr.mxu0 0.0
      %6009 = vmatpush1.msra.mxu0 %v5977
      %6010 = vmatprep.subr.mxu0 0.0
      %6011 = vmatpush1.msra.mxu0 0.0
      %6012 = vmatprep.subr.mxu0 0.0
      %6013 = vmatpush1.msra.mxu0 0.0
      %6014 = vmatprep.subr.mxu0 0.0
      %6015 = vmatpush1.msra.mxu0 0.0
      %6016 = vmatprep.subr.mxu0 0.0
      %6017 = vmatpush1.msra.mxu0 0.0
      %6018 = vmatprep.subr.mxu0 0.0
      %6019 = vmatpush1.msra.mxu0 0.0
      %6020 = vmatprep.subr.mxu0 0.0
      %6021 = vmatpush1.msra.mxu0 0.0
      %6022 = vmatprep.subr.mxu0 0.0
      %6023 = vmatpush1.msra.mxu0 0.0
      %6024 = vmatprep.subr.mxu0 0.0
      %6025 = vmatpush1.msra.mxu0 0.0
      %6026 = vmatprep.subr.mxu0 0.0
      %6027 = vmatpush1.msra.mxu0 0.0
      %6028 = vmatprep.subr.mxu0 0.0
      %6029 = vmatpush1.msra.mxu0 0.0
      %6030 = vmatprep.subr.mxu0 0.0
      %6031 = vmatpush1.msra.mxu0 0.0
      %6032 = vmatprep.subr.mxu0 0.0
      %6033 = vmatpush1.msra.mxu0 0.0
      %6034 = vmatprep.subr.mxu0 0.0
      %6035 = vmatpush1.msra.mxu0 0.0
      %6036 = vmatprep.subr.mxu0 0.0
      %6037 = vmatpush1.msra.mxu0 0.0
      %6038 = vmatprep.subr.mxu0 0.0
      %6039 = vmatpush1.msra.mxu0 0.0
      %6040 = vmatprep.subr.mxu0 0.0
      %6041 = vmatpush1.msra.mxu0 0.0
      %6042 = vmatprep.mubr.f32.mxu0 0.0
      %6043 = vmatmul.mubr.f32.gmra.mrb[0].mxu0 %v5936
      %v6044 = vpop.f32.mrb[0].mxu0
      %v6045 = vadd.f32 0.0, %v6044
      %v6046 = vpop.f32.mrb[0].mxu0
      %6047 = vmatprep.mubr.f32.mxu0 0.0
      %6048 = vmatmul.mubr.f32.gmra.mrb[0].mxu0 %v5937
      %v6049 = vpop.f32.mrb[0].mxu0
      %v6050 = vadd.f32 0.0, %v6049
      %v6051 = vpop.f32.mrb[0].mxu0
      %6052 = vmatprep.mubr.f32.mxu0 0.0
      %6053 = vmatmul.mubr.f32.gmra.mrb[0].mxu0 %v5938
      %v6054 = vpop.f32.mrb[0].mxu0
      %v6055 = vadd.f32 0.0, %v6054
      %v6056 = vpop.f32.mrb[0].mxu0
      %6057 = vmatprep.mubr.f32.mxu0 0.0
      %6058 = vmatmul.mubr.f32.gmra.mrb[0].mxu0 %v5939
      %v6059 = vpop.f32.mrb[0].mxu0
      %v6060 = vadd.f32 0.0, %v6059
      %v6061 = vpop.f32.mrb[0].mxu0
      %6062 = vmatprep.mubr.f32.mxu0 0.0
      %6063 = vmatmul.mubr.f32.gmra.mrb[0].mxu0 %v5940
      %v6064 = vpop.f32.mrb[0].mxu0
      %v6065 = vadd.f32 0.0, %v6064
      %v6066 = vpop.f32.mrb[0].mxu0
      %6067 = vmatprep.mubr.f32.mxu0 0.0
      %6068 = vmatmul.mubr.f32.gmra.mrb[0].mxu0 %v5941
      %v6069 = vpop.f32.mrb[0].mxu0
      %v6070 = vadd.f32 0.0, %v6069
      %v6071 = vpop.f32.mrb[0].mxu0
      %6072 = vmatprep.mubr.f32.mxu0 0.0
      %6073 = vmatmul.mubr.f32.gmra.mrb[0].mxu0 %v5942
      %v6074 = vpop.f32.mrb[0].mxu0
      %v6075 = vadd.f32 0.0, %v6074
      %v6076 = vpop.f32.mrb[0].mxu0
      %6077 = vmatprep.mubr.f32.mxu0 0.0
      %6078 = vmatmul.mubr.f32.gmra.mrb[0].mxu0 %v5943
      %v6079 = vpop.f32.mrb[0].mxu0
      %v6080 = vadd.f32 0.0, %v6079
      %v6081 = vpop.f32.mrb[0].mxu0
      %6082 = vmatprep.mubr.f32.mxu0 0.0
      %6083 = vmatmul.mubr.f32.gmra.mrb[0].mxu0 %v5944
      %v6084 = vpop.f32.mrb[0].mxu0
      %v6085 = vadd.f32 0.0, %v6084
      %v6086 = vpop.f32.mrb[0].mxu0
      %6087 = vmatprep.mubr.f32.mxu0 0.0
      %6088 = vmatmul.mubr.f32.gmra.mrb[0].mxu0 %v5945
      %v6089 = vpop.f32.mrb[0].mxu0
      %v6090 = vadd.f32 0.0, %v6089
      %v6091 = vpop.f32.mrb[0].mxu0
      %6092 = vmatprep.mubr.f32.mxu0 0.0
      %6093 = vmatmul.mubr.f32.gmra.mrb[0].mxu0 %v5946
      %v6094 = vpop.f32.mrb[0].mxu0
      %v6095 = vadd.f32 0.0, %v6094
      %v6096 = vpop.f32.mrb[0].mxu0
      %6097 = vmatprep.mubr.f32.mxu0 0.0
      %6098 = vmatmul.mubr.f32.gmra.mrb[0].mxu0 %v5947
      %v6099 = vpop.f32.mrb[0].mxu0
      %v6100 = vadd.f32 0.0, %v6099
      %v6101 = vpop.f32.mrb[0].mxu0
      %6102 = vmatprep.mubr.f32.mxu0 0.0
      %6103 = vmatmul.mubr.f32.gmra.mrb[0].mxu0 %v5948
      %v6104 = vpop.f32.mrb[0].mxu0
      %v6105 = vadd.f32 0.0, %v6104
      %v6106 = vpop.f32.mrb[0].mxu0
      %6107 = vmatprep.mubr.f32.mxu0 0.0
      %6108 = vmatmul.mubr.f32.gmra.mrb[0].mxu0 %v5949
      %v6109 = vpop.f32.mrb[0].mxu0
      %v6110 = vadd.f32 0.0, %v6109
      %v6111 = vpop.f32.mrb[0].mxu0
      %6112 = vmatprep.mubr.f32.mxu0 0.0
      %6113 = vmatmul.mubr.f32.gmra.mrb[0].mxu0 %v5950
      %v6114 = vpop.f32.mrb[0].mxu0
      %v6115 = vadd.f32 0.0, %v6114
      %v6116 = vpop.f32.mrb[0].mxu0
      %6117 = vmatprep.mubr.f32.mxu0 0.0
      %6118 = vmatmul.mubr.f32.gmra.mrb[0].mxu0 %v5951
      %v6119 = vpop.f32.mrb[0].mxu0
      %v6120 = vadd.f32 0.0, %v6119
      %v6121 = vpop.f32.mrb[0].mxu0
      %6122 = vmatprep.mubr.f32.mxu0 0.0
      %6123 = vmatmul.mubr.f32.gmra.mrb[0].mxu0 %v5952
      %v6124 = vpop.f32.mrb[0].mxu0
      %v6125 = vadd.f32 0.0, %v6124
      %v6126 = vpop.f32.mrb[0].mxu0
      %6127 = vmatprep.mubr.f32.mxu0 0.0
      %6128 = vmatmul.mubr.f32.gmra.mrb[0].mxu0 %v5953
      %v6129 = vpop.f32.mrb[0].mxu0
      %v6130 = vadd.f32 0.0, %v6129
      %v6131 = vpop.f32.mrb[0].mxu0
      %6132 = vmatprep.mubr.f32.mxu0 0.0
      %6133 = vmatmul.mubr.f32.gmra.mrb[0].mxu0 %v5954
      %v6134 = vpop.f32.mrb[0].mxu0
      %v6135 = vadd.f32 0.0, %v6134
      %v6136 = vpop.f32.mrb[0].mxu0
      %6137 = vmatprep.mubr.f32.mxu0 0.0
      %6138 = vmatmul.mubr.f32.gmra.mrb[0].mxu0 %v5955
      %v6139 = vpop.f32.mrb[0].mxu0
      %v6140 = vadd.f32 0.0, %v6139
      %v6141 = vpop.f32.mrb[0].mxu0
      %6142 = vmatprep.mubr.f32.mxu0 0.0
      %6143 = vmatmul.mubr.f32.gmra.mrb[0].mxu0 %v5956
      %v6144 = vpop.f32.mrb[0].mxu0
      %v6145 = vadd.f32 0.0, %v6144
      %v6146 = vpop.f32.mrb[0].mxu0
      %6147 = vmatprep.mubr.f32.mxu0 0.0
      %6148 = vmatmul.mubr.f32.gmra.mrb[0].mxu0 %v5957
      %v6149 = vpop.f32.mrb[0].mxu0
      %v6150 = vadd.f32 0.0, %v6149
      %v6151 = vpop.f32.mrb[0].mxu0
      %6152 = vmatprep.mubr.f32.mxu0 0.0
      %6153 = vmatmul.mubr.f32.gmra.mrb[0].mxu0 %v5958
      %v6154 = vpop.f32.mrb[0].mxu0
      %v6155 = vadd.f32 0.0, %v6154
      %v6156 = vpop.f32.mrb[0].mxu0
      %6157 = vmatprep.mubr.f32.mxu0 0.0
      %6158 = vmatmul.mubr.f32.gmra.mrb[0].mxu0 %v5959
      %v6159 = vpop.f32.mrb[0].mxu0
      %v6160 = vadd.f32 0.0, %v6159
      %v6161 = vpop.f32.mrb[0].mxu0
      %6162 = vmatprep.mubr.f32.mxu0 0.0
      %6163 = vmatmul.mubr.f32.gmra.mrb[0].mxu0 %v5960
      %v6164 = vpop.f32.mrb[0].mxu0
      %v6165 = vadd.f32 0.0, %v6164
      %v6166 = vpop.f32.mrb[0].mxu0
      %6167 = vdwg.mxu0
      %v6168 = vadd.f32 %v5652, %v6045
      %v6169 = vadd.f32 %v5653, %v6050
      %v6170 = vadd.f32 %v5654, %v6055
      %v6171 = vadd.f32 %v5655, %v6060
      %v6172 = vadd.f32 %v5656, %v6065
      %v6173 = vadd.f32 %v5657, %v6070
      %v6174 = vadd.f32 %v5658, %v6075
      %v6175 = vadd.f32 %v5659, %v6080
      %v6176 = vadd.f32 %v5660, %v6085
      %v6177 = vadd.f32 %v5661, %v6090
      %v6178 = vadd.f32 %v5662, %v6095
      %v6179 = vadd.f32 %v5663, %v6100
      %v6180 = vadd.f32 %v5664, %v6105
      %v6181 = vadd.f32 %v5665, %v6110
      %v6182 = vadd.f32 %v5666, %v6115
      %v6183 = vadd.f32 %v5667, %v6120
      %v6184 = vadd.f32 %v5668, %v6125
      %v6185 = vadd.f32 %v5669, %v6130
      %v6186 = vadd.f32 %v5670, %v6135
      %v6187 = vadd.f32 %v5671, %v6140
      %v6188 = vadd.f32 %v5672, %v6145
      %v6189 = vadd.f32 %v5673, %v6150
      %v6190 = vadd.f32 %v5674, %v6155
      %v6191 = vadd.f32 %v5675, %v6160
      %v6192 = vadd.f32 %v5676, %v6165
      %v6193 = vadd.f32 %v5910, %v6168
      %v6194 = vadd.f32 %v5911, %v6169
      %v6195 = vadd.f32 %v5912, %v6170
      %v6196 = vadd.f32 %v5913, %v6171
      %v6197 = vadd.f32 %v5914, %v6172
      %v6198 = vadd.f32 %v5915, %v6173
      %v6199 = vadd.f32 %v5916, %v6174
      %v6200 = vadd.f32 %v5917, %v6175
      %v6201 = vadd.f32 %v5918, %v6176
      %v6202 = vadd.f32 %v5919, %v6177
      %v6203 = vadd.f32 %v5920, %v6178
      %v6204 = vadd.f32 %v5921, %v6179
      %v6205 = vadd.f32 %v5922, %v6180
      %v6206 = vadd.f32 %v5923, %v6181
      %v6207 = vadd.f32 %v5924, %v6182
      %v6208 = vadd.f32 %v5925, %v6183
      %v6209 = vadd.f32 %v5926, %v6184
      %v6210 = vadd.f32 %v5927, %v6185
      %v6211 = vadd.f32 %v5928, %v6186
      %v6212 = vadd.f32 %v5929, %v6187
      %v6213 = vadd.f32 %v5930, %v6188
      %v6214 = vadd.f32 %v5931, %v6189
      %v6215 = vadd.f32 %v5932, %v6190
      %v6216 = vadd.f32 %v5933, %v6191
      %v6217 = vadd.f32 %v5934, %v6192
      %v6218 = vmax.f32 %v6193, 0.0
      %v6219 = vmax.f32 %v6194, 0.0
      %v6220 = vmax.f32 %v6195, 0.0
      %v6221 = vmax.f32 %v6196, 0.0
      %v6222 = vmax.f32 %v6197, 0.0
      %v6223 = vmax.f32 %v6198, 0.0
      %v6224 = vmax.f32 %v6199, 0.0
      %v6225 = vmax.f32 %v6200, 0.0
      %v6226 = vmax.f32 %v6201, 0.0
      %v6227 = vmax.f32 %v6202, 0.0
      %v6228 = vmax.f32 %v6203, 0.0
      %v6229 = vmax.f32 %v6204, 0.0
      %v6230 = vmax.f32 %v6205, 0.0
      %v6231 = vmax.f32 %v6206, 0.0
      %v6232 = vmax.f32 %v6207, 0.0
      %v6233 = vmax.f32 %v6208, 0.0
      %v6234 = vmax.f32 %v6209, 0.0
      %v6235 = vmax.f32 %v6210, 0.0
      %v6236 = vmax.f32 %v6211, 0.0
      %v6237 = vmax.f32 %v6212, 0.0
      %v6238 = vmax.f32 %v6213, 0.0
      %v6239 = vmax.f32 %v6214, 0.0
      %v6240 = vmax.f32 %v6215, 0.0
      %v6241 = vmax.f32 %v6216, 0.0
      %v6242 = vmax.f32 %v6217, 0.0
      %6243 = vst [vmem:[#allocation3] sm:$0xff] %v6218
      %6244 = vst [vmem:[#allocation3 + $0x8] sm:$0xff] %v6219
      %6245 = vst [vmem:[#allocation3 + $0x10] sm:$0xff] %v6220
      %6246 = vst [vmem:[#allocation3 + $0x18] sm:$0xff] %v6221
      %6247 = vst [vmem:[#allocation3 + $0x20] sm:$0xff] %v6222
      %6248 = vst [vmem:[#allocation3 + $0x28] sm:$0xff] %v6223
      %6249 = vst [vmem:[#allocation3 + $0x30] sm:$0xff] %v6224
      %6250 = vst [vmem:[#allocation3 + $0x38] sm:$0xff] %v6225
      %6251 = vst [vmem:[#allocation3 + $0x40] sm:$0xff] %v6226
      %6252 = vst [vmem:[#allocation3 + $0x48] sm:$0xff] %v6227
      %6253 = vst [vmem:[#allocation3 + $0x50] sm:$0xff] %v6228
      %6254 = vst [vmem:[#allocation3 + $0x58] sm:$0xff] %v6229
      %6255 = vst [vmem:[#allocation3 + $0x60] sm:$0xff] %v6230
      %6256 = vst [vmem:[#allocation3 + $0x68] sm:$0xff] %v6231
      %6257 = vst [vmem:[#allocation3 + $0x70] sm:$0xff] %v6232
      %6258 = vst [vmem:[#allocation3 + $0x78] sm:$0xff] %v6233
      %6259 = vst [vmem:[#allocation3 + $0x80] sm:$0xff] %v6234
      %6260 = vst [vmem:[#allocation3 + $0x88] sm:$0xff] %v6235
      %6261 = vst [vmem:[#allocation3 + $0x90] sm:$0xff] %v6236
      %6262 = vst [vmem:[#allocation3 + $0x98] sm:$0xff] %v6237
      %6263 = vst [vmem:[#allocation3 + $0xa0] sm:$0xff] %v6238
      %6264 = vst [vmem:[#allocation3 + $0xa8] sm:$0xff] %v6239
      %6265 = vst [vmem:[#allocation3 + $0xb0] sm:$0xff] %v6240
      %6266 = vst [vmem:[#allocation3 + $0xb8] sm:$0xff] %v6241
      %6267 = vst [vmem:[#allocation3 + $0xc0] sm:$0xff] %v6242
      %v6268 = vld [vmem:[%s6] sm:$0x1]
      %v6270 = vlaneseq
      %v6271 = vshrl.u32 %v6270, 7
      %v6272 = vsub.s32 0, %v6271
      %v6273 = vrot.slane %v6268, %v6272
      %v6275 = vld [vmem:[#allocation3] sm:$0xff]
      %v6276 = vld [vmem:[#allocation3 + $0x8] sm:$0xff]
      %v6277 = vld [vmem:[#allocation3 + $0x10] sm:$0xff]
      %v6278 = vld [vmem:[#allocation3 + $0x28] sm:$0xff]
      %v6279 = vld [vmem:[#allocation3 + $0x30] sm:$0xff]
      %v6280 = vld [vmem:[#allocation3 + $0x38] sm:$0xff]
      %v6281 = vld [vmem:[#allocation3 + $0x50] sm:$0xff]
      %v6282 = vld [vmem:[#allocation3 + $0x58] sm:$0xff]
      %v6283 = vld [vmem:[#allocation3 + $0x60] sm:$0xff]
      %v6284 = vld [vmem:[%s5] sm:$0xff]
      %v6285 = vld [vmem:[%s5 + $0x8] sm:$0xff]
      %v6286 = vld [vmem:[%s5 + $0x10] sm:$0xff]
      %v6287 = vld [vmem:[%s5 + $0x18] sm:$0xff]
      %v6288 = vld [vmem:[%s5 + $0x20] sm:$0xff]
      %v6289 = vld [vmem:[%s5 + $0x28] sm:$0xff]
      %v6290 = vld [vmem:[%s5 + $0x30] sm:$0xff]
      %v6291 = vld [vmem:[%s5 + $0x38] sm:$0xff]
      %v6292 = vld [vmem:[%s5 + $0x40] sm:$0xff]
      %v6293 = vld [vmem:[%s5 + $0x48] sm:$0xff]
      %v6294 = vld [vmem:[%s5 + $0x50] sm:$0xff]
      %v6295 = vld [vmem:[%s5 + $0x58] sm:$0xff]
      %v6296 = vld [vmem:[%s5 + $0x60] sm:$0xff]
      %v6297 = vld [vmem:[%s5 + $0x68] sm:$0xff]
      %v6298 = vld [vmem:[%s5 + $0x70] sm:$0xff]
      %v6299 = vld [vmem:[%s5 + $0x78] sm:$0xff]
      %6300 = vmatprep.subr.mxu0 0.0
      %6301 = vmatpush1.msra.mxu0 %v6284
      %6302 = vmatprep.subr.mxu0 0.0
      %6303 = vmatpush1.msra.mxu0 %v6285
      %6304 = vmatprep.subr.mxu0 0.0
      %6305 = vmatpush1.msra.mxu0 %v6286
      %6306 = vmatprep.subr.mxu0 0.0
      %6307 = vmatpush1.msra.mxu0 %v6287
      %6308 = vmatprep.subr.mxu0 0.0
      %6309 = vmatpush1.msra.mxu0 %v6288
      %6310 = vmatprep.subr.mxu0 0.0
      %6311 = vmatpush1.msra.mxu0 %v6289
      %6312 = vmatprep.subr.mxu0 0.0
      %6313 = vmatpush1.msra.mxu0 %v6290
      %6314 = vmatprep.subr.mxu0 0.0
      %6315 = vmatpush1.msra.mxu0 %v6291
      %6316 = vmatprep.subr.mxu0 0.0
      %6317 = vmatpush1.msra.mxu0 %v6292
      %6318 = vmatprep.subr.mxu0 0.0
      %6319 = vmatpush1.msra.mxu0 %v6293
      %6320 = vmatprep.subr.mxu0 0.0
      %6321 = vmatpush1.msra.mxu0 %v6294
      %6322 = vmatprep.subr.mxu0 0.0
      %6323 = vmatpush1.msra.mxu0 %v6295
      %6324 = vmatprep.subr.mxu0 0.0
      %6325 = vmatpush1.msra.mxu0 %v6296
      %6326 = vmatprep.subr.mxu0 0.0
      %6327 = vmatpush1.msra.mxu0 %v6297
      %6328 = vmatprep.subr.mxu0 0.0
      %6329 = vmatpush1.msra.mxu0 %v6298
      %6330 = vmatprep.subr.mxu0 0.0
      %6331 = vmatpush1.msra.mxu0 %v6299
      %6332 = vmatprep.subr.mxu0 0.0
      %6333 = vmatpush1.msra.mxu0 0.0
      %6334 = vmatprep.subr.mxu0 0.0
      %6335 = vmatpush1.msra.mxu0 0.0
      %6336 = vmatprep.subr.mxu0 0.0
      %6337 = vmatpush1.msra.mxu0 0.0
      %6338 = vmatprep.subr.mxu0 0.0
      %6339 = vmatpush1.msra.mxu0 0.0
      %6340 = vmatprep.subr.mxu0 0.0
      %6341 = vmatpush1.msra.mxu0 0.0
      %6342 = vmatprep.subr.mxu0 0.0
      %6343 = vmatpush1.msra.mxu0 0.0
      %6344 = vmatprep.subr.mxu0 0.0
      %6345 = vmatpush1.msra.mxu0 0.0
      %6346 = vmatprep.subr.mxu0 0.0
      %6347 = vmatpush1.msra.mxu0 0.0
      %6348 = vmatprep.subr.mxu0 0.0
      %6349 = vmatpush1.msra.mxu0 0.0
      %6350 = vmatprep.subr.mxu0 0.0
      %6351 = vmatpush1.msra.mxu0 0.0
      %6352 = vmatprep.subr.mxu0 0.0
      %6353 = vmatpush1.msra.mxu0 0.0
      %6354 = vmatprep.subr.mxu0 0.0
      %6355 = vmatpush1.msra.mxu0 0.0
      %6356 = vmatprep.subr.mxu0 0.0
      %6357 = vmatpush1.msra.mxu0 0.0
      %6358 = vmatprep.subr.mxu0 0.0
      %6359 = vmatpush1.msra.mxu0 0.0
      %6360 = vmatprep.subr.mxu0 0.0
      %6361 = vmatpush1.msra.mxu0 0.0
      %6362 = vmatprep.subr.mxu0 0.0
      %6363 = vmatpush1.msra.mxu0 0.0
      %6364 = vmatprep.mubr.f32.mxu0 0.0
      %6365 = vmatmul.mubr.f32.gmra.mrb[0].mxu0 %v6275
      %v6366 = vpop.f32.mrb[0].mxu0
      %v6367 = vadd.f32 0.0, %v6366
      %v6368 = vpop.f32.mrb[0].mxu0
      %6369 = vmatprep.mubr.f32.mxu0 0.0
      %6370 = vmatmul.mubr.f32.gmra.mrb[0].mxu0 %v6276
      %v6371 = vpop.f32.mrb[0].mxu0
      %v6372 = vadd.f32 0.0, %v6371
      %v6373 = vpop.f32.mrb[0].mxu0
      %6374 = vmatprep.mubr.f32.mxu0 0.0
      %6375 = vmatmul.mubr.f32.gmra.mrb[0].mxu0 %v6277
      %v6376 = vpop.f32.mrb[0].mxu0
      %v6377 = vadd.f32 0.0, %v6376
      %v6378 = vpop.f32.mrb[0].mxu0
      %6379 = vmatprep.mubr.f32.mxu0 0.0
      %6380 = vmatmul.mubr.f32.gmra.mrb[0].mxu0 %v6278
      %v6381 = vpop.f32.mrb[0].mxu0
      %v6382 = vadd.f32 0.0, %v6381
      %v6383 = vpop.f32.mrb[0].mxu0
      %6384 = vmatprep.mubr.f32.mxu0 0.0
      %6385 = vmatmul.mubr.f32.gmra.mrb[0].mxu0 %v6279
      %v6386 = vpop.f32.mrb[0].mxu0
      %v6387 = vadd.f32 0.0, %v6386
      %v6388 = vpop.f32.mrb[0].mxu0
      %6389 = vmatprep.mubr.f32.mxu0 0.0
      %6390 = vmatmul.mubr.f32.gmra.mrb[0].mxu0 %v6280
      %v6391 = vpop.f32.mrb[0].mxu0
      %v6392 = vadd.f32 0.0, %v6391
      %v6393 = vpop.f32.mrb[0].mxu0
      %6394 = vmatprep.mubr.f32.mxu0 0.0
      %6395 = vmatmul.mubr.f32.gmra.mrb[0].mxu0 %v6281
      %v6396 = vpop.f32.mrb[0].mxu0
      %v6397 = vadd.f32 0.0, %v6396
      %v6398 = vpop.f32.mrb[0].mxu0
      %6399 = vmatprep.mubr.f32.mxu0 0.0
      %6400 = vmatmul.mubr.f32.gmra.mrb[0].mxu0 %v6282
      %v6401 = vpop.f32.mrb[0].mxu0
      %v6402 = vadd.f32 0.0, %v6401
      %v6403 = vpop.f32.mrb[0].mxu0
      %6404 = vmatprep.mubr.f32.mxu0 0.0
      %6405 = vmatmul.mubr.f32.gmra.mrb[0].mxu0 %v6283
      %v6406 = vpop.f32.mrb[0].mxu0
      %v6407 = vadd.f32 0.0, %v6406
      %v6408 = vpop.f32.mrb[0].mxu0
      %6409 = vdwg.mxu0
      %v6410 = vadd.f32 %v6273, %v6367
      %v6411 = vadd.f32 %v6273, %v6372
      %v6412 = vadd.f32 %v6273, %v6377
      %v6413 = vadd.f32 %v6273, %v6382
      %v6414 = vadd.f32 %v6273, %v6387
      %v6415 = vadd.f32 %v6273, %v6392
      %v6416 = vadd.f32 %v6273, %v6397
      %v6417 = vadd.f32 %v6273, %v6402
      %v6418 = vadd.f32 %v6273, %v6407
      %s6419 = scalar_lea.vmem [#allocation3], 8
      %v6420 = vld [vmem:[%s6419] sm:$0xff]
      %v6421 = vld [vmem:[%s6419 + $0x8] sm:$0xff]
      %v6422 = vld [vmem:[%s6419 + $0x10] sm:$0xff]
      %v6423 = vld [vmem:[%s6419 + $0x28] sm:$0xff]
      %v6424 = vld [vmem:[%s6419 + $0x30] sm:$0xff]
      %v6425 = vld [vmem:[%s6419 + $0x38] sm:$0xff]
      %v6426 = vld [vmem:[%s6419 + $0x50] sm:$0xff]
      %v6427 = vld [vmem:[%s6419 + $0x58] sm:$0xff]
      %v6428 = vld [vmem:[%s6419 + $0x60] sm:$0xff]
      %s6429 = scalar_lea.vmem %s5, 128
      %v6430 = vld [vmem:[%s6429] sm:$0xff]
      %v6431 = vld [vmem:[%s6429 + $0x8] sm:$0xff]
      %v6432 = vld [vmem:[%s6429 + $0x10] sm:$0xff]
      %v6433 = vld [vmem:[%s6429 + $0x18] sm:$0xff]
      %v6434 = vld [vmem:[%s6429 + $0x20] sm:$0xff]
      %v6435 = vld [vmem:[%s6429 + $0x28] sm:$0xff]
      %v6436 = vld [vmem:[%s6429 + $0x30] sm:$0xff]
      %v6437 = vld [vmem:[%s6429 + $0x38] sm:$0xff]
      %v6438 = vld [vmem:[%s6429 + $0x40] sm:$0xff]
      %v6439 = vld [vmem:[%s6429 + $0x48] sm:$0xff]
      %v6440 = vld [vmem:[%s6429 + $0x50] sm:$0xff]
      %v6441 = vld [vmem:[%s6429 + $0x58] sm:$0xff]
      %v6442 = vld [vmem:[%s6429 + $0x60] sm:$0xff]
      %v6443 = vld [vmem:[%s6429 + $0x68] sm:$0xff]
      %v6444 = vld [vmem:[%s6429 + $0x70] sm:$0xff]
      %v6445 = vld [vmem:[%s6429 + $0x78] sm:$0xff]
      %s6446 = scalar_lea.vmem [#allocation3], 16
      %v6447 = vld [vmem:[%s6446] sm:$0xff]
      %v6448 = vld [vmem:[%s6446 + $0x8] sm:$0xff]
      %v6449 = vld [vmem:[%s6446 + $0x10] sm:$0xff]
      %v6450 = vld [vmem:[%s6446 + $0x28] sm:$0xff]
      %v6451 = vld [vmem:[%s6446 + $0x30] sm:$0xff]
      %v6452 = vld [vmem:[%s6446 + $0x38] sm:$0xff]
      %v6453 = vld [vmem:[%s6446 + $0x50] sm:$0xff]
      %v6454 = vld [vmem:[%s6446 + $0x58] sm:$0xff]
      %v6455 = vld [vmem:[%s6446 + $0x60] sm:$0xff]
      %s6456 = scalar_lea.vmem %s5, 256
      %v6457 = vld [vmem:[%s6456] sm:$0xff]
      %v6458 = vld [vmem:[%s6456 + $0x8] sm:$0xff]
      %v6459 = vld [vmem:[%s6456 + $0x10] sm:$0xff]
      %v6460 = vld [vmem:[%s6456 + $0x18] sm:$0xff]
      %v6461 = vld [vmem:[%s6456 + $0x20] sm:$0xff]
      %v6462 = vld [vmem:[%s6456 + $0x28] sm:$0xff]
      %v6463 = vld [vmem:[%s6456 + $0x30] sm:$0xff]
      %v6464 = vld [vmem:[%s6456 + $0x38] sm:$0xff]
      %v6465 = vld [vmem:[%s6456 + $0x40] sm:$0xff]
      %v6466 = vld [vmem:[%s6456 + $0x48] sm:$0xff]
      %v6467 = vld [vmem:[%s6456 + $0x50] sm:$0xff]
      %v6468 = vld [vmem:[%s6456 + $0x58] sm:$0xff]
      %v6469 = vld [vmem:[%s6456 + $0x60] sm:$0xff]
      %v6470 = vld [vmem:[%s6456 + $0x68] sm:$0xff]
      %v6471 = vld [vmem:[%s6456 + $0x70] sm:$0xff]
      %v6472 = vld [vmem:[%s6456 + $0x78] sm:$0xff]
      %6473 = vmatprep.subr.mxu0 0.0
      %6474 = vmatpush1.msra.mxu0 %v6457
      %6475 = vmatprep.subr.mxu0 0.0
      %6476 = vmatpush1.msra.mxu0 %v6458
      %6477 = vmatprep.subr.mxu0 0.0
      %6478 = vmatpush1.msra.mxu0 %v6459
      %6479 = vmatprep.subr.mxu0 0.0
      %6480 = vmatpush1.msra.mxu0 %v6460
      %6481 = vmatprep.subr.mxu0 0.0
      %6482 = vmatpush1.msra.mxu0 %v6461
      %6483 = vmatprep.subr.mxu0 0.0
      %6484 = vmatpush1.msra.mxu0 %v6462
      %6485 = vmatprep.subr.mxu0 0.0
      %6486 = vmatpush1.msra.mxu0 %v6463
      %6487 = vmatprep.subr.mxu0 0.0
      %6488 = vmatpush1.msra.mxu0 %v6464
      %6489 = vmatprep.subr.mxu0 0.0
      %6490 = vmatpush1.msra.mxu0 %v6465
      %6491 = vmatprep.subr.mxu0 0.0
      %6492 = vmatpush1.msra.mxu0 %v6466
      %6493 = vmatprep.subr.mxu0 0.0
      %6494 = vmatpush1.msra.mxu0 %v6467
      %6495 = vmatprep.subr.mxu0 0.0
      %6496 = vmatpush1.msra.mxu0 %v6468
      %6497 = vmatprep.subr.mxu0 0.0
      %6498 = vmatpush1.msra.mxu0 %v6469
      %6499 = vmatprep.subr.mxu0 0.0
      %6500 = vmatpush1.msra.mxu0 %v6470
      %6501 = vmatprep.subr.mxu0 0.0
      %6502 = vmatpush1.msra.mxu0 %v6471
      %6503 = vmatprep.subr.mxu0 0.0
      %6504 = vmatpush1.msra.mxu0 %v6472
      %6505 = vmatprep.subr.mxu0 0.0
      %6506 = vmatpush1.msra.mxu0 0.0
      %6507 = vmatprep.subr.mxu0 0.0
      %6508 = vmatpush1.msra.mxu0 0.0
      %6509 = vmatprep.subr.mxu0 0.0
      %6510 = vmatpush1.msra.mxu0 0.0
      %6511 = vmatprep.subr.mxu0 0.0
      %6512 = vmatpush1.msra.mxu0 0.0
      %6513 = vmatprep.subr.mxu0 0.0
      %6514 = vmatpush1.msra.mxu0 0.0
      %6515 = vmatprep.subr.mxu0 0.0
      %6516 = vmatpush1.msra.mxu0 0.0
      %6517 = vmatprep.subr.mxu0 0.0
      %6518 = vmatpush1.msra.mxu0 0.0
      %6519 = vmatprep.subr.mxu0 0.0
      %6520 = vmatpush1.msra.mxu0 0.0
      %6521 = vmatprep.subr.mxu0 0.0
      %6522 = vmatpush1.msra.mxu0 0.0
      %6523 = vmatprep.subr.mxu0 0.0
      %6524 = vmatpush1.msra.mxu0 0.0
      %6525 = vmatprep.subr.mxu0 0.0
      %6526 = vmatpush1.msra.mxu0 0.0
      %6527 = vmatprep.subr.mxu0 0.0
      %6528 = vmatpush1.msra.mxu0 0.0
      %6529 = vmatprep.subr.mxu0 0.0
      %6530 = vmatpush1.msra.mxu0 0.0
      %6531 = vmatprep.subr.mxu0 0.0
      %6532 = vmatpush1.msra.mxu0 0.0
      %6533 = vmatprep.subr.mxu0 0.0
      %6534 = vmatpush1.msra.mxu0 0.0
      %6535 = vmatprep.subr.mxu0 0.0
      %6536 = vmatpush1.msra.mxu0 0.0
      %6537 = vmatprep.mubr.f32.mxu0 0.0
      %6538 = vmatmul.mubr.f32.gmra.mrb[0].mxu0 %v6447
      %v6539 = vpop.f32.mrb[0].mxu0
      %v6540 = vadd.f32 0.0, %v6539
      %v6541 = vpop.f32.mrb[0].mxu0
      %6542 = vmatprep.mubr.f32.mxu0 0.0
      %6543 = vmatmul.mubr.f32.gmra.mrb[0].mxu0 %v6448
      %v6544 = vpop.f32.mrb[0].mxu0
      %v6545 = vadd.f32 0.0, %v6544
      %v6546 = vpop.f32.mrb[0].mxu0
      %6547 = vmatprep.mubr.f32.mxu0 0.0
      %6548 = vmatmul.mubr.f32.gmra.mrb[0].mxu0 %v6449
      %v6549 = vpop.f32.mrb[0].mxu0
      %v6550 = vadd.f32 0.0, %v6549
      %v6551 = vpop.f32.mrb[0].mxu0
      %6552 = vmatprep.mubr.f32.mxu0 0.0
      %6553 = vmatmul.mubr.f32.gmra.mrb[0].mxu0 %v6450
      %v6554 = vpop.f32.mrb[0].mxu0
      %v6555 = vadd.f32 0.0, %v6554
      %v6556 = vpop.f32.mrb[0].mxu0
      %6557 = vmatprep.mubr.f32.mxu0 0.0
      %6558 = vmatmul.mubr.f32.gmra.mrb[0].mxu0 %v6451
      %v6559 = vpop.f32.mrb[0].mxu0
      %v6560 = vadd.f32 0.0, %v6559
      %v6561 = vpop.f32.mrb[0].mxu0
      %6562 = vmatprep.mubr.f32.mxu0 0.0
      %6563 = vmatmul.mubr.f32.gmra.mrb[0].mxu0 %v6452
      %v6564 = vpop.f32.mrb[0].mxu0
      %v6565 = vadd.f32 0.0, %v6564
      %v6566 = vpop.f32.mrb[0].mxu0
      %6567 = vmatprep.mubr.f32.mxu0 0.0
      %6568 = vmatmul.mubr.f32.gmra.mrb[0].mxu0 %v6453
      %v6569 = vpop.f32.mrb[0].mxu0
      %v6570 = vadd.f32 0.0, %v6569
      %v6571 = vpop.f32.mrb[0].mxu0
      %6572 = vmatprep.mubr.f32.mxu0 0.0
      %6573 = vmatmul.mubr.f32.gmra.mrb[0].mxu0 %v6454
      %v6574 = vpop.f32.mrb[0].mxu0
      %v6575 = vadd.f32 0.0, %v6574
      %v6576 = vpop.f32.mrb[0].mxu0
      %6577 = vmatprep.mubr.f32.mxu0 0.0
      %6578 = vmatmul.mubr.f32.gmra.mrb[0].mxu0 %v6455
      %v6579 = vpop.f32.mrb[0].mxu0
      %v6580 = vadd.f32 0.0, %v6579
      %v6581 = vpop.f32.mrb[0].mxu0
      %6582 = vdwg.mxu0
      %v6583 = vadd.f32 %v6410, %v6540
      %v6584 = vadd.f32 %v6411, %v6545
      %v6585 = vadd.f32 %v6412, %v6550
      %v6586 = vadd.f32 %v6413, %v6555
      %v6587 = vadd.f32 %v6414, %v6560
      %v6588 = vadd.f32 %v6415, %v6565
      %v6589 = vadd.f32 %v6416, %v6570
      %v6590 = vadd.f32 %v6417, %v6575
      %v6591 = vadd.f32 %v6418, %v6580
      %s6592 = scalar_lea.vmem [#allocation3], 40
      %v6593 = vld [vmem:[%s6592] sm:$0xff]
      %v6594 = vld [vmem:[%s6592 + $0x8] sm:$0xff]
      %v6595 = vld [vmem:[%s6592 + $0x10] sm:$0xff]
      %v6596 = vld [vmem:[%s6592 + $0x28] sm:$0xff]
      %v6597 = vld [vmem:[%s6592 + $0x30] sm:$0xff]
      %v6598 = vld [vmem:[%s6592 + $0x38] sm:$0xff]
      %v6599 = vld [vmem:[%s6592 + $0x50] sm:$0xff]
      %v6600 = vld [vmem:[%s6592 + $0x58] sm:$0xff]
      %v6601 = vld [vmem:[%s6592 + $0x60] sm:$0xff]
      %s6602 = scalar_lea.vmem %s5, 384
      %v6603 = vld [vmem:[%s6602] sm:$0xff]
      %v6604 = vld [vmem:[%s6602 + $0x8] sm:$0xff]
      %v6605 = vld [vmem:[%s6602 + $0x10] sm:$0xff]
      %v6606 = vld [vmem:[%s6602 + $0x18] sm:$0xff]
      %v6607 = vld [vmem:[%s6602 + $0x20] sm:$0xff]
      %v6608 = vld [vmem:[%s6602 + $0x28] sm:$0xff]
      %v6609 = vld [vmem:[%s6602 + $0x30] sm:$0xff]
      %v6610 = vld [vmem:[%s6602 + $0x38] sm:$0xff]
      %v6611 = vld [vmem:[%s6602 + $0x40] sm:$0xff]
      %v6612 = vld [vmem:[%s6602 + $0x48] sm:$0xff]
      %v6613 = vld [vmem:[%s6602 + $0x50] sm:$0xff]
      %v6614 = vld [vmem:[%s6602 + $0x58] sm:$0xff]
      %v6615 = vld [vmem:[%s6602 + $0x60] sm:$0xff]
      %v6616 = vld [vmem:[%s6602 + $0x68] sm:$0xff]
      %v6617 = vld [vmem:[%s6602 + $0x70] sm:$0xff]
      %v6618 = vld [vmem:[%s6602 + $0x78] sm:$0xff]
      %6619 = vmatprep.subr.mxu0 0.0
      %6620 = vmatpush1.msra.mxu0 %v6603
      %6621 = vmatprep.subr.mxu0 0.0
      %6622 = vmatpush1.msra.mxu0 %v6604
      %6623 = vmatprep.subr.mxu0 0.0
      %6624 = vmatpush1.msra.mxu0 %v6605
      %6625 = vmatprep.subr.mxu0 0.0
      %6626 = vmatpush1.msra.mxu0 %v6606
      %6627 = vmatprep.subr.mxu0 0.0
      %6628 = vmatpush1.msra.mxu0 %v6607
      %6629 = vmatprep.subr.mxu0 0.0
      %6630 = vmatpush1.msra.mxu0 %v6608
      %6631 = vmatprep.subr.mxu0 0.0
      %6632 = vmatpush1.msra.mxu0 %v6609
      %6633 = vmatprep.subr.mxu0 0.0
      %6634 = vmatpush1.msra.mxu0 %v6610
      %6635 = vmatprep.subr.mxu0 0.0
      %6636 = vmatpush1.msra.mxu0 %v6611
      %6637 = vmatprep.subr.mxu0 0.0
      %6638 = vmatpush1.msra.mxu0 %v6612
      %6639 = vmatprep.subr.mxu0 0.0
      %6640 = vmatpush1.msra.mxu0 %v6613
      %6641 = vmatprep.subr.mxu0 0.0
      %6642 = vmatpush1.msra.mxu0 %v6614
      %6643 = vmatprep.subr.mxu0 0.0
      %6644 = vmatpush1.msra.mxu0 %v6615
      %6645 = vmatprep.subr.mxu0 0.0
      %6646 = vmatpush1.msra.mxu0 %v6616
      %6647 = vmatprep.subr.mxu0 0.0
      %6648 = vmatpush1.msra.mxu0 %v6617
      %6649 = vmatprep.subr.mxu0 0.0
      %6650 = vmatpush1.msra.mxu0 %v6618
      %6651 = vmatprep.subr.mxu0 0.0
      %6652 = vmatpush1.msra.mxu0 0.0
      %6653 = vmatprep.subr.mxu0 0.0
      %6654 = vmatpush1.msra.mxu0 0.0
      %6655 = vmatprep.subr.mxu0 0.0
      %6656 = vmatpush1.msra.mxu0 0.0
      %6657 = vmatprep.subr.mxu0 0.0
      %6658 = vmatpush1.msra.mxu0 0.0
      %6659 = vmatprep.subr.mxu0 0.0
      %6660 = vmatpush1.msra.mxu0 0.0
      %6661 = vmatprep.subr.mxu0 0.0
      %6662 = vmatpush1.msra.mxu0 0.0
      %6663 = vmatprep.subr.mxu0 0.0
      %6664 = vmatpush1.msra.mxu0 0.0
      %6665 = vmatprep.subr.mxu0 0.0
      %6666 = vmatpush1.msra.mxu0 0.0
      %6667 = vmatprep.subr.mxu0 0.0
      %6668 = vmatpush1.msra.mxu0 0.0
      %6669 = vmatprep.subr.mxu0 0.0
      %6670 = vmatpush1.msra.mxu0 0.0
      %6671 = vmatprep.subr.mxu0 0.0
      %6672 = vmatpush1.msra.mxu0 0.0
      %6673 = vmatprep.subr.mxu0 0.0
      %6674 = vmatpush1.msra.mxu0 0.0
      %6675 = vmatprep.subr.mxu0 0.0
      %6676 = vmatpush1.msra.mxu0 0.0
      %6677 = vmatprep.subr.mxu0 0.0
      %6678 = vmatpush1.msra.mxu0 0.0
      %6679 = vmatprep.subr.mxu0 0.0
      %6680 = vmatpush1.msra.mxu0 0.0
      %6681 = vmatprep.subr.mxu0 0.0
      %6682 = vmatpush1.msra.mxu0 0.0
      %6683 = vmatprep.mubr.f32.mxu0 0.0
      %6684 = vmatmul.mubr.f32.gmra.mrb[0].mxu0 %v6593
      %v6685 = vpop.f32.mrb[0].mxu0
      %v6686 = vadd.f32 0.0, %v6685
      %v6687 = vpop.f32.mrb[0].mxu0
      %6688 = vmatprep.mubr.f32.mxu0 0.0
      %6689 = vmatmul.mubr.f32.gmra.mrb[0].mxu0 %v6594
      %v6690 = vpop.f32.mrb[0].mxu0
      %v6691 = vadd.f32 0.0, %v6690
      %v6692 = vpop.f32.mrb[0].mxu0
      %6693 = vmatprep.mubr.f32.mxu0 0.0
      %6694 = vmatmul.mubr.f32.gmra.mrb[0].mxu0 %v6595
      %v6695 = vpop.f32.mrb[0].mxu0
      %v6696 = vadd.f32 0.0, %v6695
      %v6697 = vpop.f32.mrb[0].mxu0
      %6698 = vmatprep.mubr.f32.mxu0 0.0
      %6699 = vmatmul.mubr.f32.gmra.mrb[0].mxu0 %v6596
      %v6700 = vpop.f32.mrb[0].mxu0
      %v6701 = vadd.f32 0.0, %v6700
      %v6702 = vpop.f32.mrb[0].mxu0
      %6703 = vmatprep.mubr.f32.mxu0 0.0
      %6704 = vmatmul.mubr.f32.gmra.mrb[0].mxu0 %v6597
      %v6705 = vpop.f32.mrb[0].mxu0
      %v6706 = vadd.f32 0.0, %v6705
      %v6707 = vpop.f32.mrb[0].mxu0
      %6708 = vmatprep.mubr.f32.mxu0 0.0
      %6709 = vmatmul.mubr.f32.gmra.mrb[0].mxu0 %v6598
      %v6710 = vpop.f32.mrb[0].mxu0
      %v6711 = vadd.f32 0.0, %v6710
      %v6712 = vpop.f32.mrb[0].mxu0
      %6713 = vmatprep.mubr.f32.mxu0 0.0
      %6714 = vmatmul.mubr.f32.gmra.mrb[0].mxu0 %v6599
      %v6715 = vpop.f32.mrb[0].mxu0
      %v6716 = vadd.f32 0.0, %v6715
      %v6717 = vpop.f32.mrb[0].mxu0
      %6718 = vmatprep.mubr.f32.mxu0 0.0
      %6719 = vmatmul.mubr.f32.gmra.mrb[0].mxu0 %v6600
      %v6720 = vpop.f32.mrb[0].mxu0
      %v6721 = vadd.f32 0.0, %v6720
      %v6722 = vpop.f32.mrb[0].mxu0
      %6723 = vmatprep.mubr.f32.mxu0 0.0
      %6724 = vmatmul.mubr.f32.gmra.mrb[0].mxu0 %v6601
      %v6725 = vpop.f32.mrb[0].mxu0
      %v6726 = vadd.f32 0.0, %v6725
      %v6727 = vpop.f32.mrb[0].mxu0
      %6728 = vdwg.mxu0
      %6729 = vmatprep.subr.mxu0 0.0
      %6730 = vmatpush1.msra.mxu0 %v6430
      %6731 = vmatprep.subr.mxu0 0.0
      %6732 = vmatpush1.msra.mxu0 %v6431
      %6733 = vmatprep.subr.mxu0 0.0
      %6734 = vmatpush1.msra.mxu0 %v6432
      %6735 = vmatprep.subr.mxu0 0.0
      %6736 = vmatpush1.msra.mxu0 %v6433
      %6737 = vmatprep.subr.mxu0 0.0
      %6738 = vmatpush1.msra.mxu0 %v6434
      %6739 = vmatprep.subr.mxu0 0.0
      %6740 = vmatpush1.msra.mxu0 %v6435
      %6741 = vmatprep.subr.mxu0 0.0
      %6742 = vmatpush1.msra.mxu0 %v6436
      %6743 = vmatprep.subr.mxu0 0.0
      %6744 = vmatpush1.msra.mxu0 %v6437
      %6745 = vmatprep.subr.mxu0 0.0
      %6746 = vmatpush1.msra.mxu0 %v6438
      %6747 = vmatprep.subr.mxu0 0.0
      %6748 = vmatpush1.msra.mxu0 %v6439
      %6749 = vmatprep.subr.mxu0 0.0
      %6750 = vmatpush1.msra.mxu0 %v6440
      %6751 = vmatprep.subr.mxu0 0.0
      %6752 = vmatpush1.msra.mxu0 %v6441
      %6753 = vmatprep.subr.mxu0 0.0
      %6754 = vmatpush1.msra.mxu0 %v6442
      %6755 = vmatprep.subr.mxu0 0.0
      %6756 = vmatpush1.msra.mxu0 %v6443
      %6757 = vmatprep.subr.mxu0 0.0
      %6758 = vmatpush1.msra.mxu0 %v6444
      %6759 = vmatprep.subr.mxu0 0.0
      %6760 = vmatpush1.msra.mxu0 %v6445
      %6761 = vmatprep.subr.mxu0 0.0
      %6762 = vmatpush1.msra.mxu0 0.0
      %6763 = vmatprep.subr.mxu0 0.0
      %6764 = vmatpush1.msra.mxu0 0.0
      %6765 = vmatprep.subr.mxu0 0.0
      %6766 = vmatpush1.msra.mxu0 0.0
      %6767 = vmatprep.subr.mxu0 0.0
      %6768 = vmatpush1.msra.mxu0 0.0
      %6769 = vmatprep.subr.mxu0 0.0
      %6770 = vmatpush1.msra.mxu0 0.0
      %6771 = vmatprep.subr.mxu0 0.0
      %6772 = vmatpush1.msra.mxu0 0.0
      %6773 = vmatprep.subr.mxu0 0.0
      %6774 = vmatpush1.msra.mxu0 0.0
      %6775 = vmatprep.subr.mxu0 0.0
      %6776 = vmatpush1.msra.mxu0 0.0
      %6777 = vmatprep.subr.mxu0 0.0
      %6778 = vmatpush1.msra.mxu0 0.0
      %6779 = vmatprep.subr.mxu0 0.0
      %6780 = vmatpush1.msra.mxu0 0.0
      %6781 = vmatprep.subr.mxu0 0.0
      %6782 = vmatpush1.msra.mxu0 0.0
      %6783 = vmatprep.subr.mxu0 0.0
      %6784 = vmatpush1.msra.mxu0 0.0
      %6785 = vmatprep.subr.mxu0 0.0
      %6786 = vmatpush1.msra.mxu0 0.0
      %6787 = vmatprep.subr.mxu0 0.0
      %6788 = vmatpush1.msra.mxu0 0.0
      %6789 = vmatprep.subr.mxu0 0.0
      %6790 = vmatpush1.msra.mxu0 0.0
      %6791 = vmatprep.subr.mxu0 0.0
      %6792 = vmatpush1.msra.mxu0 0.0
      %6793 = vmatprep.mubr.f32.mxu0 0.0
      %6794 = vmatmul.mubr.f32.gmra.mrb[0].mxu0 %v6420
      %v6795 = vpop.f32.mrb[0].mxu0
      %v6796 = vadd.f32 %v6686, %v6795
      %v6797 = vpop.f32.mrb[0].mxu0
      %6798 = vmatprep.mubr.f32.mxu0 0.0
      %6799 = vmatmul.mubr.f32.gmra.mrb[0].mxu0 %v6421
      %v6800 = vpop.f32.mrb[0].mxu0
      %v6801 = vadd.f32 %v6691, %v6800
      %v6802 = vpop.f32.mrb[0].mxu0
      %6803 = vmatprep.mubr.f32.mxu0 0.0
      %6804 = vmatmul.mubr.f32.gmra.mrb[0].mxu0 %v6422
      %v6805 = vpop.f32.mrb[0].mxu0
      %v6806 = vadd.f32 %v6696, %v6805
      %v6807 = vpop.f32.mrb[0].mxu0
      %6808 = vmatprep.mubr.f32.mxu0 0.0
      %6809 = vmatmul.mubr.f32.gmra.mrb[0].mxu0 %v6423
      %v6810 = vpop.f32.mrb[0].mxu0
      %v6811 = vadd.f32 %v6701, %v6810
      %v6812 = vpop.f32.mrb[0].mxu0
      %6813 = vmatprep.mubr.f32.mxu0 0.0
      %6814 = vmatmul.mubr.f32.gmra.mrb[0].mxu0 %v6424
      %v6815 = vpop.f32.mrb[0].mxu0
      %v6816 = vadd.f32 %v6706, %v6815
      %v6817 = vpop.f32.mrb[0].mxu0
      %6818 = vmatprep.mubr.f32.mxu0 0.0
      %6819 = vmatmul.mubr.f32.gmra.mrb[0].mxu0 %v6425
      %v6820 = vpop.f32.mrb[0].mxu0
      %v6821 = vadd.f32 %v6711, %v6820
      %v6822 = vpop.f32.mrb[0].mxu0
      %6823 = vmatprep.mubr.f32.mxu0 0.0
      %6824 = vmatmul.mubr.f32.gmra.mrb[0].mxu0 %v6426
      %v6825 = vpop.f32.mrb[0].mxu0
      %v6826 = vadd.f32 %v6716, %v6825
      %v6827 = vpop.f32.mrb[0].mxu0
      %6828 = vmatprep.mubr.f32.mxu0 0.0
      %6829 = vmatmul.mubr.f32.gmra.mrb[0].mxu0 %v6427
      %v6830 = vpop.f32.mrb[0].mxu0
      %v6831 = vadd.f32 %v6721, %v6830
      %v6832 = vpop.f32.mrb[0].mxu0
      %6833 = vmatprep.mubr.f32.mxu0 0.0
      %6834 = vmatmul.mubr.f32.gmra.mrb[0].mxu0 %v6428
      %v6835 = vpop.f32.mrb[0].mxu0
      %v6836 = vadd.f32 %v6726, %v6835
      %v6837 = vpop.f32.mrb[0].mxu0
      %6838 = vdwg.mxu0
      %s6839 = scalar_lea.vmem [#allocation3], 48
      %v6840 = vld [vmem:[%s6839] sm:$0xff]
      %v6841 = vld [vmem:[%s6839 + $0x8] sm:$0xff]
      %v6842 = vld [vmem:[%s6839 + $0x10] sm:$0xff]
      %v6843 = vld [vmem:[%s6839 + $0x28] sm:$0xff]
      %v6844 = vld [vmem:[%s6839 + $0x30] sm:$0xff]
      %v6845 = vld [vmem:[%s6839 + $0x38] sm:$0xff]
      %v6846 = vld [vmem:[%s6839 + $0x50] sm:$0xff]
      %v6847 = vld [vmem:[%s6839 + $0x58] sm:$0xff]
      %v6848 = vld [vmem:[%s6839 + $0x60] sm:$0xff]
      %s6849 = scalar_lea.vmem %s5, 512
      %v6850 = vld [vmem:[%s6849] sm:$0xff]
      %v6851 = vld [vmem:[%s6849 + $0x8] sm:$0xff]
      %v6852 = vld [vmem:[%s6849 + $0x10] sm:$0xff]
      %v6853 = vld [vmem:[%s6849 + $0x18] sm:$0xff]
      %v6854 = vld [vmem:[%s6849 + $0x20] sm:$0xff]
      %v6855 = vld [vmem:[%s6849 + $0x28] sm:$0xff]
      %v6856 = vld [vmem:[%s6849 + $0x30] sm:$0xff]
      %v6857 = vld [vmem:[%s6849 + $0x38] sm:$0xff]
      %v6858 = vld [vmem:[%s6849 + $0x40] sm:$0xff]
      %v6859 = vld [vmem:[%s6849 + $0x48] sm:$0xff]
      %v6860 = vld [vmem:[%s6849 + $0x50] sm:$0xff]
      %v6861 = vld [vmem:[%s6849 + $0x58] sm:$0xff]
      %v6862 = vld [vmem:[%s6849 + $0x60] sm:$0xff]
      %v6863 = vld [vmem:[%s6849 + $0x68] sm:$0xff]
      %v6864 = vld [vmem:[%s6849 + $0x70] sm:$0xff]
      %v6865 = vld [vmem:[%s6849 + $0x78] sm:$0xff]
      %6866 = vmatprep.subr.mxu0 0.0
      %6867 = vmatpush1.msra.mxu0 %v6850
      %6868 = vmatprep.subr.mxu0 0.0
      %6869 = vmatpush1.msra.mxu0 %v6851
      %6870 = vmatprep.subr.mxu0 0.0
      %6871 = vmatpush1.msra.mxu0 %v6852
      %6872 = vmatprep.subr.mxu0 0.0
      %6873 = vmatpush1.msra.mxu0 %v6853
      %6874 = vmatprep.subr.mxu0 0.0
      %6875 = vmatpush1.msra.mxu0 %v6854
      %6876 = vmatprep.subr.mxu0 0.0
      %6877 = vmatpush1.msra.mxu0 %v6855
      %6878 = vmatprep.subr.mxu0 0.0
      %6879 = vmatpush1.msra.mxu0 %v6856
      %6880 = vmatprep.subr.mxu0 0.0
      %6881 = vmatpush1.msra.mxu0 %v6857
      %6882 = vmatprep.subr.mxu0 0.0
      %6883 = vmatpush1.msra.mxu0 %v6858
      %6884 = vmatprep.subr.mxu0 0.0
      %6885 = vmatpush1.msra.mxu0 %v6859
      %6886 = vmatprep.subr.mxu0 0.0
      %6887 = vmatpush1.msra.mxu0 %v6860
      %6888 = vmatprep.subr.mxu0 0.0
      %6889 = vmatpush1.msra.mxu0 %v6861
      %6890 = vmatprep.subr.mxu0 0.0
      %6891 = vmatpush1.msra.mxu0 %v6862
      %6892 = vmatprep.subr.mxu0 0.0
      %6893 = vmatpush1.msra.mxu0 %v6863
      %6894 = vmatprep.subr.mxu0 0.0
      %6895 = vmatpush1.msra.mxu0 %v6864
      %6896 = vmatprep.subr.mxu0 0.0
      %6897 = vmatpush1.msra.mxu0 %v6865
      %6898 = vmatprep.subr.mxu0 0.0
      %6899 = vmatpush1.msra.mxu0 0.0
      %6900 = vmatprep.subr.mxu0 0.0
      %6901 = vmatpush1.msra.mxu0 0.0
      %6902 = vmatprep.subr.mxu0 0.0
      %6903 = vmatpush1.msra.mxu0 0.0
      %6904 = vmatprep.subr.mxu0 0.0
      %6905 = vmatpush1.msra.mxu0 0.0
      %6906 = vmatprep.subr.mxu0 0.0
      %6907 = vmatpush1.msra.mxu0 0.0
      %6908 = vmatprep.subr.mxu0 0.0
      %6909 = vmatpush1.msra.mxu0 0.0
      %6910 = vmatprep.subr.mxu0 0.0
      %6911 = vmatpush1.msra.mxu0 0.0
      %6912 = vmatprep.subr.mxu0 0.0
      %6913 = vmatpush1.msra.mxu0 0.0
      %6914 = vmatprep.subr.mxu0 0.0
      %6915 = vmatpush1.msra.mxu0 0.0
      %6916 = vmatprep.subr.mxu0 0.0
      %6917 = vmatpush1.msra.mxu0 0.0
      %6918 = vmatprep.subr.mxu0 0.0
      %6919 = vmatpush1.msra.mxu0 0.0
      %6920 = vmatprep.subr.mxu0 0.0
      %6921 = vmatpush1.msra.mxu0 0.0
      %6922 = vmatprep.subr.mxu0 0.0
      %6923 = vmatpush1.msra.mxu0 0.0
      %6924 = vmatprep.subr.mxu0 0.0
      %6925 = vmatpush1.msra.mxu0 0.0
      %6926 = vmatprep.subr.mxu0 0.0
      %6927 = vmatpush1.msra.mxu0 0.0
      %6928 = vmatprep.subr.mxu0 0.0
      %6929 = vmatpush1.msra.mxu0 0.0
      %6930 = vmatprep.mubr.f32.mxu0 0.0
      %6931 = vmatmul.mubr.f32.gmra.mrb[0].mxu0 %v6840
      %v6932 = vpop.f32.mrb[0].mxu0
      %v6933 = vadd.f32 0.0, %v6932
      %v6934 = vpop.f32.mrb[0].mxu0
      %6935 = vmatprep.mubr.f32.mxu0 0.0
      %6936 = vmatmul.mubr.f32.gmra.mrb[0].mxu0 %v6841
      %v6937 = vpop.f32.mrb[0].mxu0
      %v6938 = vadd.f32 0.0, %v6937
      %v6939 = vpop.f32.mrb[0].mxu0
      %6940 = vmatprep.mubr.f32.mxu0 0.0
      %6941 = vmatmul.mubr.f32.gmra.mrb[0].mxu0 %v6842
      %v6942 = vpop.f32.mrb[0].mxu0
      %v6943 = vadd.f32 0.0, %v6942
      %v6944 = vpop.f32.mrb[0].mxu0
      %6945 = vmatprep.mubr.f32.mxu0 0.0
      %6946 = vmatmul.mubr.f32.gmra.mrb[0].mxu0 %v6843
      %v6947 = vpop.f32.mrb[0].mxu0
      %v6948 = vadd.f32 0.0, %v6947
      %v6949 = vpop.f32.mrb[0].mxu0
      %6950 = vmatprep.mubr.f32.mxu0 0.0
      %6951 = vmatmul.mubr.f32.gmra.mrb[0].mxu0 %v6844
      %v6952 = vpop.f32.mrb[0].mxu0
      %v6953 = vadd.f32 0.0, %v6952
      %v6954 = vpop.f32.mrb[0].mxu0
      %6955 = vmatprep.mubr.f32.mxu0 0.0
      %6956 = vmatmul.mubr.f32.gmra.mrb[0].mxu0 %v6845
      %v6957 = vpop.f32.mrb[0].mxu0
      %v6958 = vadd.f32 0.0, %v6957
      %v6959 = vpop.f32.mrb[0].mxu0
      %6960 = vmatprep.mubr.f32.mxu0 0.0
      %6961 = vmatmul.mubr.f32.gmra.mrb[0].mxu0 %v6846
      %v6962 = vpop.f32.mrb[0].mxu0
      %v6963 = vadd.f32 0.0, %v6962
      %v6964 = vpop.f32.mrb[0].mxu0
      %6965 = vmatprep.mubr.f32.mxu0 0.0
      %6966 = vmatmul.mubr.f32.gmra.mrb[0].mxu0 %v6847
      %v6967 = vpop.f32.mrb[0].mxu0
      %v6968 = vadd.f32 0.0, %v6967
      %v6969 = vpop.f32.mrb[0].mxu0
      %6970 = vmatprep.mubr.f32.mxu0 0.0
      %6971 = vmatmul.mubr.f32.gmra.mrb[0].mxu0 %v6848
      %v6972 = vpop.f32.mrb[0].mxu0
      %v6973 = vadd.f32 0.0, %v6972
      %v6974 = vpop.f32.mrb[0].mxu0
      %6975 = vdwg.mxu0
      %v6976 = vadd.f32 %v6583, %v6933
      %v6977 = vadd.f32 %v6584, %v6938
      %v6978 = vadd.f32 %v6585, %v6943
      %v6979 = vadd.f32 %v6586, %v6948
      %v6980 = vadd.f32 %v6587, %v6953
      %v6981 = vadd.f32 %v6588, %v6958
      %v6982 = vadd.f32 %v6589, %v6963
      %v6983 = vadd.f32 %v6590, %v6968
      %v6984 = vadd.f32 %v6591, %v6973
      %s6985 = scalar_lea.vmem [#allocation3], 56
      %v6986 = vld [vmem:[%s6985] sm:$0xff]
      %v6987 = vld [vmem:[%s6985 + $0x8] sm:$0xff]
      %v6988 = vld [vmem:[%s6985 + $0x10] sm:$0xff]
      %v6989 = vld [vmem:[%s6985 + $0x28] sm:$0xff]
      %v6990 = vld [vmem:[%s6985 + $0x30] sm:$0xff]
      %v6991 = vld [vmem:[%s6985 + $0x38] sm:$0xff]
      %v6992 = vld [vmem:[%s6985 + $0x50] sm:$0xff]
      %v6993 = vld [vmem:[%s6985 + $0x58] sm:$0xff]
      %v6994 = vld [vmem:[%s6985 + $0x60] sm:$0xff]
      %s6995 = scalar_lea.vmem %s5, 640
      %v6996 = vld [vmem:[%s6995] sm:$0xff]
      %v6997 = vld [vmem:[%s6995 + $0x8] sm:$0xff]
      %v6998 = vld [vmem:[%s6995 + $0x10] sm:$0xff]
      %v6999 = vld [vmem:[%s6995 + $0x18] sm:$0xff]
      %v7000 = vld [vmem:[%s6995 + $0x20] sm:$0xff]
      %v7001 = vld [vmem:[%s6995 + $0x28] sm:$0xff]
      %v7002 = vld [vmem:[%s6995 + $0x30] sm:$0xff]
      %v7003 = vld [vmem:[%s6995 + $0x38] sm:$0xff]
      %v7004 = vld [vmem:[%s6995 + $0x40] sm:$0xff]
      %v7005 = vld [vmem:[%s6995 + $0x48] sm:$0xff]
      %v7006 = vld [vmem:[%s6995 + $0x50] sm:$0xff]
      %v7007 = vld [vmem:[%s6995 + $0x58] sm:$0xff]
      %v7008 = vld [vmem:[%s6995 + $0x60] sm:$0xff]
      %v7009 = vld [vmem:[%s6995 + $0x68] sm:$0xff]
      %v7010 = vld [vmem:[%s6995 + $0x70] sm:$0xff]
      %v7011 = vld [vmem:[%s6995 + $0x78] sm:$0xff]
      %7012 = vmatprep.subr.mxu0 0.0
      %7013 = vmatpush1.msra.mxu0 %v6996
      %7014 = vmatprep.subr.mxu0 0.0
      %7015 = vmatpush1.msra.mxu0 %v6997
      %7016 = vmatprep.subr.mxu0 0.0
      %7017 = vmatpush1.msra.mxu0 %v6998
      %7018 = vmatprep.subr.mxu0 0.0
      %7019 = vmatpush1.msra.mxu0 %v6999
      %7020 = vmatprep.subr.mxu0 0.0
      %7021 = vmatpush1.msra.mxu0 %v7000
      %7022 = vmatprep.subr.mxu0 0.0
      %7023 = vmatpush1.msra.mxu0 %v7001
      %7024 = vmatprep.subr.mxu0 0.0
      %7025 = vmatpush1.msra.mxu0 %v7002
      %7026 = vmatprep.subr.mxu0 0.0
      %7027 = vmatpush1.msra.mxu0 %v7003
      %7028 = vmatprep.subr.mxu0 0.0
      %7029 = vmatpush1.msra.mxu0 %v7004
      %7030 = vmatprep.subr.mxu0 0.0
      %7031 = vmatpush1.msra.mxu0 %v7005
      %7032 = vmatprep.subr.mxu0 0.0
      %7033 = vmatpush1.msra.mxu0 %v7006
      %7034 = vmatprep.subr.mxu0 0.0
      %7035 = vmatpush1.msra.mxu0 %v7007
      %7036 = vmatprep.subr.mxu0 0.0
      %7037 = vmatpush1.msra.mxu0 %v7008
      %7038 = vmatprep.subr.mxu0 0.0
      %7039 = vmatpush1.msra.mxu0 %v7009
      %7040 = vmatprep.subr.mxu0 0.0
      %7041 = vmatpush1.msra.mxu0 %v7010
      %7042 = vmatprep.subr.mxu0 0.0
      %7043 = vmatpush1.msra.mxu0 %v7011
      %7044 = vmatprep.subr.mxu0 0.0
      %7045 = vmatpush1.msra.mxu0 0.0
      %7046 = vmatprep.subr.mxu0 0.0
      %7047 = vmatpush1.msra.mxu0 0.0
      %7048 = vmatprep.subr.mxu0 0.0
      %7049 = vmatpush1.msra.mxu0 0.0
      %7050 = vmatprep.subr.mxu0 0.0
      %7051 = vmatpush1.msra.mxu0 0.0
      %7052 = vmatprep.subr.mxu0 0.0
      %7053 = vmatpush1.msra.mxu0 0.0
      %7054 = vmatprep.subr.mxu0 0.0
      %7055 = vmatpush1.msra.mxu0 0.0
      %7056 = vmatprep.subr.mxu0 0.0
      %7057 = vmatpush1.msra.mxu0 0.0
      %7058 = vmatprep.subr.mxu0 0.0
      %7059 = vmatpush1.msra.mxu0 0.0
      %7060 = vmatprep.subr.mxu0 0.0
      %7061 = vmatpush1.msra.mxu0 0.0
      %7062 = vmatprep.subr.mxu0 0.0
      %7063 = vmatpush1.msra.mxu0 0.0
      %7064 = vmatprep.subr.mxu0 0.0
      %7065 = vmatpush1.msra.mxu0 0.0
      %7066 = vmatprep.subr.mxu0 0.0
      %7067 = vmatpush1.msra.mxu0 0.0
      %7068 = vmatprep.subr.mxu0 0.0
      %7069 = vmatpush1.msra.mxu0 0.0
      %7070 = vmatprep.subr.mxu0 0.0
      %7071 = vmatpush1.msra.mxu0 0.0
      %7072 = vmatprep.subr.mxu0 0.0
      %7073 = vmatpush1.msra.mxu0 0.0
      %7074 = vmatprep.subr.mxu0 0.0
      %7075 = vmatpush1.msra.mxu0 0.0
      %7076 = vmatprep.mubr.f32.mxu0 0.0
      %7077 = vmatmul.mubr.f32.gmra.mrb[0].mxu0 %v6986
      %v7078 = vpop.f32.mrb[0].mxu0
      %v7079 = vadd.f32 0.0, %v7078
      %v7080 = vpop.f32.mrb[0].mxu0
      %7081 = vmatprep.mubr.f32.mxu0 0.0
      %7082 = vmatmul.mubr.f32.gmra.mrb[0].mxu0 %v6987
      %v7083 = vpop.f32.mrb[0].mxu0
      %v7084 = vadd.f32 0.0, %v7083
      %v7085 = vpop.f32.mrb[0].mxu0
      %7086 = vmatprep.mubr.f32.mxu0 0.0
      %7087 = vmatmul.mubr.f32.gmra.mrb[0].mxu0 %v6988
      %v7088 = vpop.f32.mrb[0].mxu0
      %v7089 = vadd.f32 0.0, %v7088
      %v7090 = vpop.f32.mrb[0].mxu0
      %7091 = vmatprep.mubr.f32.mxu0 0.0
      %7092 = vmatmul.mubr.f32.gmra.mrb[0].mxu0 %v6989
      %v7093 = vpop.f32.mrb[0].mxu0
      %v7094 = vadd.f32 0.0, %v7093
      %v7095 = vpop.f32.mrb[0].mxu0
      %7096 = vmatprep.mubr.f32.mxu0 0.0
      %7097 = vmatmul.mubr.f32.gmra.mrb[0].mxu0 %v6990
      %v7098 = vpop.f32.mrb[0].mxu0
      %v7099 = vadd.f32 0.0, %v7098
      %v7100 = vpop.f32.mrb[0].mxu0
      %7101 = vmatprep.mubr.f32.mxu0 0.0
      %7102 = vmatmul.mubr.f32.gmra.mrb[0].mxu0 %v6991
      %v7103 = vpop.f32.mrb[0].mxu0
      %v7104 = vadd.f32 0.0, %v7103
      %v7105 = vpop.f32.mrb[0].mxu0
      %7106 = vmatprep.mubr.f32.mxu0 0.0
      %7107 = vmatmul.mubr.f32.gmra.mrb[0].mxu0 %v6992
      %v7108 = vpop.f32.mrb[0].mxu0
      %v7109 = vadd.f32 0.0, %v7108
      %v7110 = vpop.f32.mrb[0].mxu0
      %7111 = vmatprep.mubr.f32.mxu0 0.0
      %7112 = vmatmul.mubr.f32.gmra.mrb[0].mxu0 %v6993
      %v7113 = vpop.f32.mrb[0].mxu0
      %v7114 = vadd.f32 0.0, %v7113
      %v7115 = vpop.f32.mrb[0].mxu0
      %7116 = vmatprep.mubr.f32.mxu0 0.0
      %7117 = vmatmul.mubr.f32.gmra.mrb[0].mxu0 %v6994
      %v7118 = vpop.f32.mrb[0].mxu0
      %v7119 = vadd.f32 0.0, %v7118
      %v7120 = vpop.f32.mrb[0].mxu0
      %7121 = vdwg.mxu0
      %v7122 = vadd.f32 %v6796, %v7079
      %v7123 = vadd.f32 %v6801, %v7084
      %v7124 = vadd.f32 %v6806, %v7089
      %v7125 = vadd.f32 %v6811, %v7094
      %v7126 = vadd.f32 %v6816, %v7099
      %v7127 = vadd.f32 %v6821, %v7104
      %v7128 = vadd.f32 %v6826, %v7109
      %v7129 = vadd.f32 %v6831, %v7114
      %v7130 = vadd.f32 %v6836, %v7119
      %s7131 = scalar_lea.vmem [#allocation3], 80
      %v7132 = vld [vmem:[%s7131] sm:$0xff]
      %v7133 = vld [vmem:[%s7131 + $0x8] sm:$0xff]
      %v7134 = vld [vmem:[%s7131 + $0x10] sm:$0xff]
      %v7135 = vld [vmem:[%s7131 + $0x28] sm:$0xff]
      %v7136 = vld [vmem:[%s7131 + $0x30] sm:$0xff]
      %v7137 = vld [vmem:[%s7131 + $0x38] sm:$0xff]
      %v7138 = vld [vmem:[%s7131 + $0x50] sm:$0xff]
      %v7139 = vld [vmem:[%s7131 + $0x58] sm:$0xff]
      %v7140 = vld [vmem:[%s7131 + $0x60] sm:$0xff]
      %s7141 = scalar_lea.vmem %s5, 768
      %v7142 = vld [vmem:[%s7141] sm:$0xff]
      %v7143 = vld [vmem:[%s7141 + $0x8] sm:$0xff]
      %v7144 = vld [vmem:[%s7141 + $0x10] sm:$0xff]
      %v7145 = vld [vmem:[%s7141 + $0x18] sm:$0xff]
      %v7146 = vld [vmem:[%s7141 + $0x20] sm:$0xff]
      %v7147 = vld [vmem:[%s7141 + $0x28] sm:$0xff]
      %v7148 = vld [vmem:[%s7141 + $0x30] sm:$0xff]
      %v7149 = vld [vmem:[%s7141 + $0x38] sm:$0xff]
      %v7150 = vld [vmem:[%s7141 + $0x40] sm:$0xff]
      %v7151 = vld [vmem:[%s7141 + $0x48] sm:$0xff]
      %v7152 = vld [vmem:[%s7141 + $0x50] sm:$0xff]
      %v7153 = vld [vmem:[%s7141 + $0x58] sm:$0xff]
      %v7154 = vld [vmem:[%s7141 + $0x60] sm:$0xff]
      %v7155 = vld [vmem:[%s7141 + $0x68] sm:$0xff]
      %v7156 = vld [vmem:[%s7141 + $0x70] sm:$0xff]
      %v7157 = vld [vmem:[%s7141 + $0x78] sm:$0xff]
      %7158 = vmatprep.subr.mxu0 0.0
      %7159 = vmatpush1.msra.mxu0 %v7142
      %7160 = vmatprep.subr.mxu0 0.0
      %7161 = vmatpush1.msra.mxu0 %v7143
      %7162 = vmatprep.subr.mxu0 0.0
      %7163 = vmatpush1.msra.mxu0 %v7144
      %7164 = vmatprep.subr.mxu0 0.0
      %7165 = vmatpush1.msra.mxu0 %v7145
      %7166 = vmatprep.subr.mxu0 0.0
      %7167 = vmatpush1.msra.mxu0 %v7146
      %7168 = vmatprep.subr.mxu0 0.0
      %7169 = vmatpush1.msra.mxu0 %v7147
      %7170 = vmatprep.subr.mxu0 0.0
      %7171 = vmatpush1.msra.mxu0 %v7148
      %7172 = vmatprep.subr.mxu0 0.0
      %7173 = vmatpush1.msra.mxu0 %v7149
      %7174 = vmatprep.subr.mxu0 0.0
      %7175 = vmatpush1.msra.mxu0 %v7150
      %7176 = vmatprep.subr.mxu0 0.0
      %7177 = vmatpush1.msra.mxu0 %v7151
      %7178 = vmatprep.subr.mxu0 0.0
      %7179 = vmatpush1.msra.mxu0 %v7152
      %7180 = vmatprep.subr.mxu0 0.0
      %7181 = vmatpush1.msra.mxu0 %v7153
      %7182 = vmatprep.subr.mxu0 0.0
      %7183 = vmatpush1.msra.mxu0 %v7154
      %7184 = vmatprep.subr.mxu0 0.0
      %7185 = vmatpush1.msra.mxu0 %v7155
      %7186 = vmatprep.subr.mxu0 0.0
      %7187 = vmatpush1.msra.mxu0 %v7156
      %7188 = vmatprep.subr.mxu0 0.0
      %7189 = vmatpush1.msra.mxu0 %v7157
      %7190 = vmatprep.subr.mxu0 0.0
      %7191 = vmatpush1.msra.mxu0 0.0
      %7192 = vmatprep.subr.mxu0 0.0
      %7193 = vmatpush1.msra.mxu0 0.0
      %7194 = vmatprep.subr.mxu0 0.0
      %7195 = vmatpush1.msra.mxu0 0.0
      %7196 = vmatprep.subr.mxu0 0.0
      %7197 = vmatpush1.msra.mxu0 0.0
      %7198 = vmatprep.subr.mxu0 0.0
      %7199 = vmatpush1.msra.mxu0 0.0
      %7200 = vmatprep.subr.mxu0 0.0
      %7201 = vmatpush1.msra.mxu0 0.0
      %7202 = vmatprep.subr.mxu0 0.0
      %7203 = vmatpush1.msra.mxu0 0.0
      %7204 = vmatprep.subr.mxu0 0.0
      %7205 = vmatpush1.msra.mxu0 0.0
      %7206 = vmatprep.subr.mxu0 0.0
      %7207 = vmatpush1.msra.mxu0 0.0
      %7208 = vmatprep.subr.mxu0 0.0
      %7209 = vmatpush1.msra.mxu0 0.0
      %7210 = vmatprep.subr.mxu0 0.0
      %7211 = vmatpush1.msra.mxu0 0.0
      %7212 = vmatprep.subr.mxu0 0.0
      %7213 = vmatpush1.msra.mxu0 0.0
      %7214 = vmatprep.subr.mxu0 0.0
      %7215 = vmatpush1.msra.mxu0 0.0
      %7216 = vmatprep.subr.mxu0 0.0
      %7217 = vmatpush1.msra.mxu0 0.0
      %7218 = vmatprep.subr.mxu0 0.0
      %7219 = vmatpush1.msra.mxu0 0.0
      %7220 = vmatprep.subr.mxu0 0.0
      %7221 = vmatpush1.msra.mxu0 0.0
      %7222 = vmatprep.mubr.f32.mxu0 0.0
      %7223 = vmatmul.mubr.f32.gmra.mrb[0].mxu0 %v7132
      %v7224 = vpop.f32.mrb[0].mxu0
      %v7225 = vadd.f32 0.0, %v7224
      %v7226 = vpop.f32.mrb[0].mxu0
      %7227 = vmatprep.mubr.f32.mxu0 0.0
      %7228 = vmatmul.mubr.f32.gmra.mrb[0].mxu0 %v7133
      %v7229 = vpop.f32.mrb[0].mxu0
      %v7230 = vadd.f32 0.0, %v7229
      %v7231 = vpop.f32.mrb[0].mxu0
      %7232 = vmatprep.mubr.f32.mxu0 0.0
      %7233 = vmatmul.mubr.f32.gmra.mrb[0].mxu0 %v7134
      %v7234 = vpop.f32.mrb[0].mxu0
      %v7235 = vadd.f32 0.0, %v7234
      %v7236 = vpop.f32.mrb[0].mxu0
      %7237 = vmatprep.mubr.f32.mxu0 0.0
      %7238 = vmatmul.mubr.f32.gmra.mrb[0].mxu0 %v7135
      %v7239 = vpop.f32.mrb[0].mxu0
      %v7240 = vadd.f32 0.0, %v7239
      %v7241 = vpop.f32.mrb[0].mxu0
      %7242 = vmatprep.mubr.f32.mxu0 0.0
      %7243 = vmatmul.mubr.f32.gmra.mrb[0].mxu0 %v7136
      %v7244 = vpop.f32.mrb[0].mxu0
      %v7245 = vadd.f32 0.0, %v7244
      %v7246 = vpop.f32.mrb[0].mxu0
      %7247 = vmatprep.mubr.f32.mxu0 0.0
      %7248 = vmatmul.mubr.f32.gmra.mrb[0].mxu0 %v7137
      %v7249 = vpop.f32.mrb[0].mxu0
      %v7250 = vadd.f32 0.0, %v7249
      %v7251 = vpop.f32.mrb[0].mxu0
      %7252 = vmatprep.mubr.f32.mxu0 0.0
      %7253 = vmatmul.mubr.f32.gmra.mrb[0].mxu0 %v7138
      %v7254 = vpop.f32.mrb[0].mxu0
      %v7255 = vadd.f32 0.0, %v7254
      %v7256 = vpop.f32.mrb[0].mxu0
      %7257 = vmatprep.mubr.f32.mxu0 0.0
      %7258 = vmatmul.mubr.f32.gmra.mrb[0].mxu0 %v7139
      %v7259 = vpop.f32.mrb[0].mxu0
      %v7260 = vadd.f32 0.0, %v7259
      %v7261 = vpop.f32.mrb[0].mxu0
      %7262 = vmatprep.mubr.f32.mxu0 0.0
      %7263 = vmatmul.mubr.f32.gmra.mrb[0].mxu0 %v7140
      %v7264 = vpop.f32.mrb[0].mxu0
      %v7265 = vadd.f32 0.0, %v7264
      %v7266 = vpop.f32.mrb[0].mxu0
      %7267 = vdwg.mxu0
      %v7268 = vadd.f32 %v6976, %v7225
      %v7269 = vadd.f32 %v6977, %v7230
      %v7270 = vadd.f32 %v6978, %v7235
      %v7271 = vadd.f32 %v6979, %v7240
      %v7272 = vadd.f32 %v6980, %v7245
      %v7273 = vadd.f32 %v6981, %v7250
      %v7274 = vadd.f32 %v6982, %v7255
      %v7275 = vadd.f32 %v6983, %v7260
      %v7276 = vadd.f32 %v6984, %v7265
      %s7277 = scalar_lea.vmem [#allocation3], 88
      %v7278 = vld [vmem:[%s7277] sm:$0xff]
      %v7279 = vld [vmem:[%s7277 + $0x8] sm:$0xff]
      %v7280 = vld [vmem:[%s7277 + $0x10] sm:$0xff]
      %v7281 = vld [vmem:[%s7277 + $0x28] sm:$0xff]
      %v7282 = vld [vmem:[%s7277 + $0x30] sm:$0xff]
      %v7283 = vld [vmem:[%s7277 + $0x38] sm:$0xff]
      %v7284 = vld [vmem:[%s7277 + $0x50] sm:$0xff]
      %v7285 = vld [vmem:[%s7277 + $0x58] sm:$0xff]
      %v7286 = vld [vmem:[%s7277 + $0x60] sm:$0xff]
      %s7287 = scalar_lea.vmem %s5, 896
      %v7288 = vld [vmem:[%s7287] sm:$0xff]
      %v7289 = vld [vmem:[%s7287 + $0x8] sm:$0xff]
      %v7290 = vld [vmem:[%s7287 + $0x10] sm:$0xff]
      %v7291 = vld [vmem:[%s7287 + $0x18] sm:$0xff]
      %v7292 = vld [vmem:[%s7287 + $0x20] sm:$0xff]
      %v7293 = vld [vmem:[%s7287 + $0x28] sm:$0xff]
      %v7294 = vld [vmem:[%s7287 + $0x30] sm:$0xff]
      %v7295 = vld [vmem:[%s7287 + $0x38] sm:$0xff]
      %v7296 = vld [vmem:[%s7287 + $0x40] sm:$0xff]
      %v7297 = vld [vmem:[%s7287 + $0x48] sm:$0xff]
      %v7298 = vld [vmem:[%s7287 + $0x50] sm:$0xff]
      %v7299 = vld [vmem:[%s7287 + $0x58] sm:$0xff]
      %v7300 = vld [vmem:[%s7287 + $0x60] sm:$0xff]
      %v7301 = vld [vmem:[%s7287 + $0x68] sm:$0xff]
      %v7302 = vld [vmem:[%s7287 + $0x70] sm:$0xff]
      %v7303 = vld [vmem:[%s7287 + $0x78] sm:$0xff]
      %7304 = vmatprep.subr.mxu0 0.0
      %7305 = vmatpush1.msra.mxu0 %v7288
      %7306 = vmatprep.subr.mxu0 0.0
      %7307 = vmatpush1.msra.mxu0 %v7289
      %7308 = vmatprep.subr.mxu0 0.0
      %7309 = vmatpush1.msra.mxu0 %v7290
      %7310 = vmatprep.subr.mxu0 0.0
      %7311 = vmatpush1.msra.mxu0 %v7291
      %7312 = vmatprep.subr.mxu0 0.0
      %7313 = vmatpush1.msra.mxu0 %v7292
      %7314 = vmatprep.subr.mxu0 0.0
      %7315 = vmatpush1.msra.mxu0 %v7293
      %7316 = vmatprep.subr.mxu0 0.0
      %7317 = vmatpush1.msra.mxu0 %v7294
      %7318 = vmatprep.subr.mxu0 0.0
      %7319 = vmatpush1.msra.mxu0 %v7295
      %7320 = vmatprep.subr.mxu0 0.0
      %7321 = vmatpush1.msra.mxu0 %v7296
      %7322 = vmatprep.subr.mxu0 0.0
      %7323 = vmatpush1.msra.mxu0 %v7297
      %7324 = vmatprep.subr.mxu0 0.0
      %7325 = vmatpush1.msra.mxu0 %v7298
      %7326 = vmatprep.subr.mxu0 0.0
      %7327 = vmatpush1.msra.mxu0 %v7299
      %7328 = vmatprep.subr.mxu0 0.0
      %7329 = vmatpush1.msra.mxu0 %v7300
      %7330 = vmatprep.subr.mxu0 0.0
      %7331 = vmatpush1.msra.mxu0 %v7301
      %7332 = vmatprep.subr.mxu0 0.0
      %7333 = vmatpush1.msra.mxu0 %v7302
      %7334 = vmatprep.subr.mxu0 0.0
      %7335 = vmatpush1.msra.mxu0 %v7303
      %7336 = vmatprep.subr.mxu0 0.0
      %7337 = vmatpush1.msra.mxu0 0.0
      %7338 = vmatprep.subr.mxu0 0.0
      %7339 = vmatpush1.msra.mxu0 0.0
      %7340 = vmatprep.subr.mxu0 0.0
      %7341 = vmatpush1.msra.mxu0 0.0
      %7342 = vmatprep.subr.mxu0 0.0
      %7343 = vmatpush1.msra.mxu0 0.0
      %7344 = vmatprep.subr.mxu0 0.0
      %7345 = vmatpush1.msra.mxu0 0.0
      %7346 = vmatprep.subr.mxu0 0.0
      %7347 = vmatpush1.msra.mxu0 0.0
      %7348 = vmatprep.subr.mxu0 0.0
      %7349 = vmatpush1.msra.mxu0 0.0
      %7350 = vmatprep.subr.mxu0 0.0
      %7351 = vmatpush1.msra.mxu0 0.0
      %7352 = vmatprep.subr.mxu0 0.0
      %7353 = vmatpush1.msra.mxu0 0.0
      %7354 = vmatprep.subr.mxu0 0.0
      %7355 = vmatpush1.msra.mxu0 0.0
      %7356 = vmatprep.subr.mxu0 0.0
      %7357 = vmatpush1.msra.mxu0 0.0
      %7358 = vmatprep.subr.mxu0 0.0
      %7359 = vmatpush1.msra.mxu0 0.0
      %7360 = vmatprep.subr.mxu0 0.0
      %7361 = vmatpush1.msra.mxu0 0.0
      %7362 = vmatprep.subr.mxu0 0.0
      %7363 = vmatpush1.msra.mxu0 0.0
      %7364 = vmatprep.subr.mxu0 0.0
      %7365 = vmatpush1.msra.mxu0 0.0
      %7366 = vmatprep.subr.mxu0 0.0
      %7367 = vmatpush1.msra.mxu0 0.0
      %7368 = vmatprep.mubr.f32.mxu0 0.0
      %7369 = vmatmul.mubr.f32.gmra.mrb[0].mxu0 %v7278
      %v7370 = vpop.f32.mrb[0].mxu0
      %v7371 = vadd.f32 0.0, %v7370
      %v7372 = vpop.f32.mrb[0].mxu0
      %7373 = vmatprep.mubr.f32.mxu0 0.0
      %7374 = vmatmul.mubr.f32.gmra.mrb[0].mxu0 %v7279
      %v7375 = vpop.f32.mrb[0].mxu0
      %v7376 = vadd.f32 0.0, %v7375
      %v7377 = vpop.f32.mrb[0].mxu0
      %7378 = vmatprep.mubr.f32.mxu0 0.0
      %7379 = vmatmul.mubr.f32.gmra.mrb[0].mxu0 %v7280
      %v7380 = vpop.f32.mrb[0].mxu0
      %v7381 = vadd.f32 0.0, %v7380
      %v7382 = vpop.f32.mrb[0].mxu0
      %7383 = vmatprep.mubr.f32.mxu0 0.0
      %7384 = vmatmul.mubr.f32.gmra.mrb[0].mxu0 %v7281
      %v7385 = vpop.f32.mrb[0].mxu0
      %v7386 = vadd.f32 0.0, %v7385
      %v7387 = vpop.f32.mrb[0].mxu0
      %7388 = vmatprep.mubr.f32.mxu0 0.0
      %7389 = vmatmul.mubr.f32.gmra.mrb[0].mxu0 %v7282
      %v7390 = vpop.f32.mrb[0].mxu0
      %v7391 = vadd.f32 0.0, %v7390
      %v7392 = vpop.f32.mrb[0].mxu0
      %7393 = vmatprep.mubr.f32.mxu0 0.0
      %7394 = vmatmul.mubr.f32.gmra.mrb[0].mxu0 %v7283
      %v7395 = vpop.f32.mrb[0].mxu0
      %v7396 = vadd.f32 0.0, %v7395
      %v7397 = vpop.f32.mrb[0].mxu0
      %7398 = vmatprep.mubr.f32.mxu0 0.0
      %7399 = vmatmul.mubr.f32.gmra.mrb[0].mxu0 %v7284
      %v7400 = vpop.f32.mrb[0].mxu0
      %v7401 = vadd.f32 0.0, %v7400
      %v7402 = vpop.f32.mrb[0].mxu0
      %7403 = vmatprep.mubr.f32.mxu0 0.0
      %7404 = vmatmul.mubr.f32.gmra.mrb[0].mxu0 %v7285
      %v7405 = vpop.f32.mrb[0].mxu0
      %v7406 = vadd.f32 0.0, %v7405
      %v7407 = vpop.f32.mrb[0].mxu0
      %7408 = vmatprep.mubr.f32.mxu0 0.0
      %7409 = vmatmul.mubr.f32.gmra.mrb[0].mxu0 %v7286
      %v7410 = vpop.f32.mrb[0].mxu0
      %v7411 = vadd.f32 0.0, %v7410
      %v7412 = vpop.f32.mrb[0].mxu0
      %7413 = vdwg.mxu0
      %v7414 = vadd.f32 %v7122, %v7371
      %v7415 = vadd.f32 %v7123, %v7376
      %v7416 = vadd.f32 %v7124, %v7381
      %v7417 = vadd.f32 %v7125, %v7386
      %v7418 = vadd.f32 %v7126, %v7391
      %v7419 = vadd.f32 %v7127, %v7396
      %v7420 = vadd.f32 %v7128, %v7401
      %v7421 = vadd.f32 %v7129, %v7406
      %v7422 = vadd.f32 %v7130, %v7411
      %s7423 = scalar_lea.vmem [#allocation3], 96
      %v7424 = vld [vmem:[%s7423] sm:$0xff]
      %v7425 = vld [vmem:[%s7423 + $0x8] sm:$0xff]
      %v7426 = vld [vmem:[%s7423 + $0x10] sm:$0xff]
      %v7427 = vld [vmem:[%s7423 + $0x28] sm:$0xff]
      %v7428 = vld [vmem:[%s7423 + $0x30] sm:$0xff]
      %v7429 = vld [vmem:[%s7423 + $0x38] sm:$0xff]
      %v7430 = vld [vmem:[%s7423 + $0x50] sm:$0xff]
      %v7431 = vld [vmem:[%s7423 + $0x58] sm:$0xff]
      %v7432 = vld [vmem:[%s7423 + $0x60] sm:$0xff]
      %s7433 = scalar_lea.vmem %s5, 1024
      %v7434 = vld [vmem:[%s7433] sm:$0xff]
      %v7435 = vld [vmem:[%s7433 + $0x8] sm:$0xff]
      %v7436 = vld [vmem:[%s7433 + $0x10] sm:$0xff]
      %v7437 = vld [vmem:[%s7433 + $0x18] sm:$0xff]
      %v7438 = vld [vmem:[%s7433 + $0x20] sm:$0xff]
      %v7439 = vld [vmem:[%s7433 + $0x28] sm:$0xff]
      %v7440 = vld [vmem:[%s7433 + $0x30] sm:$0xff]
      %v7441 = vld [vmem:[%s7433 + $0x38] sm:$0xff]
      %v7442 = vld [vmem:[%s7433 + $0x40] sm:$0xff]
      %v7443 = vld [vmem:[%s7433 + $0x48] sm:$0xff]
      %v7444 = vld [vmem:[%s7433 + $0x50] sm:$0xff]
      %v7445 = vld [vmem:[%s7433 + $0x58] sm:$0xff]
      %v7446 = vld [vmem:[%s7433 + $0x60] sm:$0xff]
      %v7447 = vld [vmem:[%s7433 + $0x68] sm:$0xff]
      %v7448 = vld [vmem:[%s7433 + $0x70] sm:$0xff]
      %v7449 = vld [vmem:[%s7433 + $0x78] sm:$0xff]
      %7450 = vmatprep.subr.mxu0 0.0
      %7451 = vmatpush1.msra.mxu0 %v7434
      %7452 = vmatprep.subr.mxu0 0.0
      %7453 = vmatpush1.msra.mxu0 %v7435
      %7454 = vmatprep.subr.mxu0 0.0
      %7455 = vmatpush1.msra.mxu0 %v7436
      %7456 = vmatprep.subr.mxu0 0.0
      %7457 = vmatpush1.msra.mxu0 %v7437
      %7458 = vmatprep.subr.mxu0 0.0
      %7459 = vmatpush1.msra.mxu0 %v7438
      %7460 = vmatprep.subr.mxu0 0.0
      %7461 = vmatpush1.msra.mxu0 %v7439
      %7462 = vmatprep.subr.mxu0 0.0
      %7463 = vmatpush1.msra.mxu0 %v7440
      %7464 = vmatprep.subr.mxu0 0.0
      %7465 = vmatpush1.msra.mxu0 %v7441
      %7466 = vmatprep.subr.mxu0 0.0
      %7467 = vmatpush1.msra.mxu0 %v7442
      %7468 = vmatprep.subr.mxu0 0.0
      %7469 = vmatpush1.msra.mxu0 %v7443
      %7470 = vmatprep.subr.mxu0 0.0
      %7471 = vmatpush1.msra.mxu0 %v7444
      %7472 = vmatprep.subr.mxu0 0.0
      %7473 = vmatpush1.msra.mxu0 %v7445
      %7474 = vmatprep.subr.mxu0 0.0
      %7475 = vmatpush1.msra.mxu0 %v7446
      %7476 = vmatprep.subr.mxu0 0.0
      %7477 = vmatpush1.msra.mxu0 %v7447
      %7478 = vmatprep.subr.mxu0 0.0
      %7479 = vmatpush1.msra.mxu0 %v7448
      %7480 = vmatprep.subr.mxu0 0.0
      %7481 = vmatpush1.msra.mxu0 %v7449
      %7482 = vmatprep.subr.mxu0 0.0
      %7483 = vmatpush1.msra.mxu0 0.0
      %7484 = vmatprep.subr.mxu0 0.0
      %7485 = vmatpush1.msra.mxu0 0.0
      %7486 = vmatprep.subr.mxu0 0.0
      %7487 = vmatpush1.msra.mxu0 0.0
      %7488 = vmatprep.subr.mxu0 0.0
      %7489 = vmatpush1.msra.mxu0 0.0
      %7490 = vmatprep.subr.mxu0 0.0
      %7491 = vmatpush1.msra.mxu0 0.0
      %7492 = vmatprep.subr.mxu0 0.0
      %7493 = vmatpush1.msra.mxu0 0.0
      %7494 = vmatprep.subr.mxu0 0.0
      %7495 = vmatpush1.msra.mxu0 0.0
      %7496 = vmatprep.subr.mxu0 0.0
      %7497 = vmatpush1.msra.mxu0 0.0
      %7498 = vmatprep.subr.mxu0 0.0
      %7499 = vmatpush1.msra.mxu0 0.0
      %7500 = vmatprep.subr.mxu0 0.0
      %7501 = vmatpush1.msra.mxu0 0.0
      %7502 = vmatprep.subr.mxu0 0.0
      %7503 = vmatpush1.msra.mxu0 0.0
      %7504 = vmatprep.subr.mxu0 0.0
      %7505 = vmatpush1.msra.mxu0 0.0
      %7506 = vmatprep.subr.mxu0 0.0
      %7507 = vmatpush1.msra.mxu0 0.0
      %7508 = vmatprep.subr.mxu0 0.0
      %7509 = vmatpush1.msra.mxu0 0.0
      %7510 = vmatprep.subr.mxu0 0.0
      %7511 = vmatpush1.msra.mxu0 0.0
      %7512 = vmatprep.subr.mxu0 0.0
      %7513 = vmatpush1.msra.mxu0 0.0
      %7514 = vmatprep.mubr.f32.mxu0 0.0
      %7515 = vmatmul.mubr.f32.gmra.mrb[0].mxu0 %v7424
      %v7516 = vpop.f32.mrb[0].mxu0
      %v7517 = vadd.f32 0.0, %v7516
      %v7518 = vpop.f32.mrb[0].mxu0
      %7519 = vmatprep.mubr.f32.mxu0 0.0
      %7520 = vmatmul.mubr.f32.gmra.mrb[0].mxu0 %v7425
      %v7521 = vpop.f32.mrb[0].mxu0
      %v7522 = vadd.f32 0.0, %v7521
      %v7523 = vpop.f32.mrb[0].mxu0
      %7524 = vmatprep.mubr.f32.mxu0 0.0
      %7525 = vmatmul.mubr.f32.gmra.mrb[0].mxu0 %v7426
      %v7526 = vpop.f32.mrb[0].mxu0
      %v7527 = vadd.f32 0.0, %v7526
      %v7528 = vpop.f32.mrb[0].mxu0
      %7529 = vmatprep.mubr.f32.mxu0 0.0
      %7530 = vmatmul.mubr.f32.gmra.mrb[0].mxu0 %v7427
      %v7531 = vpop.f32.mrb[0].mxu0
      %v7532 = vadd.f32 0.0, %v7531
      %v7533 = vpop.f32.mrb[0].mxu0
      %7534 = vmatprep.mubr.f32.mxu0 0.0
      %7535 = vmatmul.mubr.f32.gmra.mrb[0].mxu0 %v7428
      %v7536 = vpop.f32.mrb[0].mxu0
      %v7537 = vadd.f32 0.0, %v7536
      %v7538 = vpop.f32.mrb[0].mxu0
      %7539 = vmatprep.mubr.f32.mxu0 0.0
      %7540 = vmatmul.mubr.f32.gmra.mrb[0].mxu0 %v7429
      %v7541 = vpop.f32.mrb[0].mxu0
      %v7542 = vadd.f32 0.0, %v7541
      %v7543 = vpop.f32.mrb[0].mxu0
      %7544 = vmatprep.mubr.f32.mxu0 0.0
      %7545 = vmatmul.mubr.f32.gmra.mrb[0].mxu0 %v7430
      %v7546 = vpop.f32.mrb[0].mxu0
      %v7547 = vadd.f32 0.0, %v7546
      %v7548 = vpop.f32.mrb[0].mxu0
      %7549 = vmatprep.mubr.f32.mxu0 0.0
      %7550 = vmatmul.mubr.f32.gmra.mrb[0].mxu0 %v7431
      %v7551 = vpop.f32.mrb[0].mxu0
      %v7552 = vadd.f32 0.0, %v7551
      %v7553 = vpop.f32.mrb[0].mxu0
      %7554 = vmatprep.mubr.f32.mxu0 0.0
      %7555 = vmatmul.mubr.f32.gmra.mrb[0].mxu0 %v7432
      %v7556 = vpop.f32.mrb[0].mxu0
      %v7557 = vadd.f32 0.0, %v7556
      %v7558 = vpop.f32.mrb[0].mxu0
      %7559 = vdwg.mxu0
      %v7560 = vadd.f32 %v7268, %v7517
      %v7561 = vadd.f32 %v7269, %v7522
      %v7562 = vadd.f32 %v7270, %v7527
      %v7563 = vadd.f32 %v7271, %v7532
      %v7564 = vadd.f32 %v7272, %v7537
      %v7565 = vadd.f32 %v7273, %v7542
      %v7566 = vadd.f32 %v7274, %v7547
      %v7567 = vadd.f32 %v7275, %v7552
      %v7568 = vadd.f32 %v7276, %v7557
      %v7569 = vadd.f32 %v7560, %v7414
      %v7570 = vadd.f32 %v7561, %v7415
      %v7571 = vadd.f32 %v7562, %v7416
      %v7572 = vadd.f32 %v7563, %v7417
      %v7573 = vadd.f32 %v7564, %v7418
      %v7574 = vadd.f32 %v7565, %v7419
      %v7575 = vadd.f32 %v7566, %v7420
      %v7576 = vadd.f32 %v7567, %v7421
      %v7577 = vadd.f32 %v7568, %v7422
      %v7578 = vmax.f32 %v7569, 0.0
      %v7579 = vmax.f32 %v7570, 0.0
      %v7580 = vmax.f32 %v7571, 0.0
      %v7581 = vmax.f32 %v7572, 0.0
      %v7582 = vmax.f32 %v7573, 0.0
      %v7583 = vmax.f32 %v7574, 0.0
      %v7584 = vmax.f32 %v7575, 0.0
      %v7585 = vmax.f32 %v7576, 0.0
      %v7586 = vmax.f32 %v7577, 0.0
      %7587 = vst [vmem:[%s283] sm:$0xff] %v7578
      %7588 = vst [vmem:[%s283 + $0x8] sm:$0xff] %v7579
      %7589 = vst [vmem:[%s283 + $0x10] sm:$0xff] %v7580
      %7590 = vst [vmem:[%s283 + $0x18] sm:$0xff] %v7581
      %7591 = vst [vmem:[%s283 + $0x20] sm:$0xff] %v7582
      %7592 = vst [vmem:[%s283 + $0x28] sm:$0xff] %v7583
      %7593 = vst [vmem:[%s283 + $0x30] sm:$0xff] %v7584
      %7594 = vst [vmem:[%s283 + $0x38] sm:$0xff] %v7585
      %7595 = vst [vmem:[%s283 + $0x40] sm:$0xff] %v7586
      %s7596 = smul.u32 9, %s18
      %p7597 = scmp.lt.s32.totalorder %s7596, 17
      %s7598 = scalar_select %p7597, %s7596, 17
      %s7599 = smul.addr %s7598, 8
      %s7600 = scalar_lea.vmem %s7, %s7599
      // Predicated region
      $region49: #{visual_encoder_forward.1} parent=47 // pred_check
        %p7601 = pneg %p188
      $region50: #{visual_encoder_forward.1} parent=47 // pred_check_branch
        %7603 = sbr.rel (%p7601) target = $region52
      $region51: #{visual_encoder_forward.1} parent=47 // pred_region
        %s7604 = smul.u32 9, %s18
      $region52: #{visual_encoder_forward.1} parent=47 // pred_fallthru
        _
    $region48: #{visual_encoder_forward.1} parent=5 // pred_fallthru
      _
    %p7605 = scmp.le.s32.totalorder 2, %s13
    // Predicated region
    $region53: #{visual_encoder_forward.1} parent=5 // pred_check
      %p7606 = pneg %p7605
    $region54: #{visual_encoder_forward.1} parent=5 // pred_check_branch
      %7608 = sbr.rel (%p7606) target = $region56
    $region55: #{visual_encoder_forward.1} parent=5 // pred_region
      %s7609 = ssub.s32 %s13, 2
      // Predicated region
      $region57: #{visual_encoder_forward.1} parent=55 // pred_check
        %p7610 = pneg %p194
      $region58: #{visual_encoder_forward.1} parent=55 // pred_check_branch
        %7612 = sbr.rel (%p7610) target = $region60
      $region59: #{visual_encoder_forward.1} parent=55 // pred_region
        %s7613 = smul.u32 9, %s19
        %p7614 = scmp.lt.s32.totalorder %s7613, 17
        %s7615 = scalar_select %p7614, %s7613, 17
        %s7616 = smul.addr %s7615, 8
        %s7617 = scalar_lea.vmem %s7, %s7616
      $region60: #{visual_encoder_forward.1} parent=55 // pred_fallthru
        _
    $region56: #{visual_encoder_forward.1} parent=5 // pred_fallthru
      _
  $region6: #{visual_encoder_forward.1} parent=0 // loop_footer
    %s17 = sadd.s32 1, %s13
  $region7: #{visual_encoder_forward.1} parent=0 // loop_footer_branch
    %12 = sbr.rel target = $region3
  $region8: #{visual_encoder_forward.1} parent=0 // loop_exit
    _

</llo_original>
